<compile_context>
chip_gen: v7x
topology: tpu7x:2x2x1
jax: 0.10.0
libtpu: 0.0.40
codegen_flags: <defaults>
</compile_context>

<pallas_src>
import functools

import numpy as np

import jax
import jax.numpy as jnp
from jax.experimental import pallas as pl
from jax.experimental.pallas import tpu as pltpu

ALPHA = 0.1      # LeakyReLU negative slope
BN_EPS = 1e-5    # PyTorch BatchNorm2d default eps


def feature_map_size(image_size: int, kernel_size: int, stride: int, padding: int):
    return (image_size - kernel_size + 2 * padding) // stride + 1


# ----------------------------- Pallas kernel --------------------------------

def _leaky(x):
    return jnp.where(x > 0, x, ALPHA * x)


def _conv_block(x_bf16, c_ref, ap_ref, b_ref):
    """conv (+folded BN) + max-pool + LeakyReLU on a [H, W*C] activation tile.

    Computes leaky( max_{dh,dj} sum_{di} (C[dh,di] @ X) @ AP[di,dj] + bias ).
    `c_ref is None` means the row selection was pre-folded into AP on the host
    (1x1 spatial input).  All dots are bf16 operands with f32 accumulation.
    """
    n_di, n_dj = ap_ref.shape[0], ap_ref.shape[1]
    n_dh = c_ref.shape[0] if c_ref is not None else 1
    z = None
    for dh in range(n_dh):
        if c_ref is None:
            u = [x_bf16] * n_di
        else:
            # 0/1 row-tap selection: exact gather of bf16 activation rows.
            u = [jnp.dot(c_ref[dh, di], x_bf16,
                         preferred_element_type=jnp.float32
                         ).astype(jnp.bfloat16)
                 for di in range(n_di)]
        for dj in range(n_dj):
            acc = jnp.dot(u[0], ap_ref[0, dj],
                          preferred_element_type=jnp.float32)
            for di in range(1, n_di):
                acc = acc + jnp.dot(u[di], ap_ref[di, dj],
                                    preferred_element_type=jnp.float32)
            z = acc if z is None else jnp.maximum(z, acc)
    # bias/BN-shift is per-channel so it commutes with the pooling max.
    return _leaky(z + b_ref[...])


def _forward_kernel(x_ref, c1, ap1, b1, c2, ap2, b2, ap3, b3, wfc, bfc, o_ref):
    x1 = x_ref[0]                                               # [H, W*Cin] bf16
    a1 = _conv_block(x1, c1, ap1, b1)                           # [8, 8*32]  f32
    a2 = _conv_block(a1.astype(jnp.bfloat16), c2, ap2, b2)      # [1, 1*64]  f32
    a3 = _conv_block(a2.astype(jnp.bfloat16), None, ap3, b3)    # [1, 1*128] f32
    # fc_1: weight pre-permuted to (h, w, c) flatten order and lane-padded.
    h3, wc3 = a3.shape
    a3b = a3.astype(jnp.bfloat16)
    acc = bfc[...]
    for h in range(h3):
        acc = acc + jnp.dot(a3b[h:h + 1, :], wfc[h * wc3:(h + 1) * wc3, :],
                            preferred_element_type=jnp.float32)
    o_ref[0] = acc


# --------------------- host-side parameter preprocessing --------------------

def _fold_bn(w, b, scale, shift):
    """Fold eval-mode BatchNorm affine into conv weights/bias."""
    return w * scale[:, None, None, None], b * scale + shift


def _conv_pool_mats(w_f, b_f, hi, wi, stride, pad, pool_k):
    """Build 0/1 row-selection C[dh,di] and column-Toeplitz AP[di,dj] matrices.

    X is [hi, wi*cin] (columns ordered (w, c), c fastest).  Conv padding and
    the pool_k x pool_k / stride pool_k max-pool column selection are folded
    into the matrices; pool_k=None means no pooling.
    Output activation layout is [hp, wp*cout] (same column convention).
    """
    cout, cin, kh, kw = w_f.shape
    ho = feature_map_size(hi, kh, stride, pad)
    wo = feature_map_size(wi, kw, stride, pad)
    pk = 1 if pool_k is None else pool_k
    hp = (ho - pk) // pk + 1
    wp = (wo - pk) // pk + 1

    c_mat = np.zeros((pk, kh, hp, hi), np.float32)
    for dh in range(pk):
        for di in range(kh):
            for ph in range(hp):
                r = stride * (pk * ph + dh) + di - pad
                if 0 <= r < hi:
                    c_mat[dh, di, ph, r] = 1.0

    w_t = np.transpose(w_f, (2, 3, 1, 0))            # [kh, kw, cin, cout]
    ap = np.zeros((kh, pk, wi * cin, wp * cout), np.float32)
    for di in range(kh):
        for dj2 in range(pk):
            for pw in range(wp):
                for w in range(wi):
                    dj = (w + pad) - stride * (pk * pw + dj2)
                    if 0 <= dj < kw:
                        ap[di, dj2, w * cin:(w + 1) * cin,
                           pw * cout:(pw + 1) * cout] = w_t[di, dj]

    bias_row = np.tile(b_f.astype(np.float32), wp)[None, :]     # [1, wp*cout]
    return c_mat, ap, bias_row, (hp, wp)


def build_operands(params, *, image_size, num_classes):
    """One-time host preprocessing of PyTorch-style params into kernel operands."""
    p = {k: np.asarray(v, np.float32) for k, v in params.items()}
    wf1, bf1 = _fold_bn(p['conv1_w'], p['conv1_b'], p['bn1_scale'], p['bn1_shift'])
    wf2, bf2 = _fold_bn(p['conv2_w'], p['conv2_b'], p['bn2_scale'], p['bn2_shift'])
    wf3, bf3 = _fold_bn(p['conv3_w'], p['conv3_b'], p['bn3_scale'], p['bn3_shift'])

    c1, ap1, b1r, (hh, ww) = _conv_pool_mats(wf1, bf1, image_size, image_size, 2, 1, 3)
    c2, ap2, b2r, (hh, ww) = _conv_pool_mats(wf2, bf2, hh, ww, 2, 1, 3)
    c3, ap3, b3r, (h3, w3) = _conv_pool_mats(wf3, bf3, hh, ww, 1, 1, None)

    # conv_3's input is 1x1 spatial here, so its (scalar) row selection is
    # folded into the Toeplitz matrices on the host (removes degenerate
    # 1x1 matmuls from the kernel).
    # TODO(synk): keep an in-kernel row-selection path for image sizes where
    # conv_3 still sees a >1x1 spatial input.
    assert c3.shape[2] == 1 and c3.shape[3] == 1, (
        "fused kernel currently assumes a 1x1 spatial input to conv_3")
    ap3 = np.einsum('d,djkl->jkl', c3[0, :, 0, 0], ap3)[None]   # [1, 1, K, N]

    # fc_1: permute from PyTorch (c, h, w) flatten order to our (h, w, c)
    # order and zero-pad classes to a full 128-lane tile (lane-dense store).
    cout3 = p['conv3_w'].shape[0]
    fc_mat = p['fc_w'].reshape(num_classes, cout3, h3, w3)
    fc_mat = np.transpose(fc_mat, (2, 3, 1, 0)).reshape(h3 * w3 * cout3,
                                                        num_classes)
    ncp = ((num_classes + 127) // 128) * 128
    fc_pad = np.zeros((fc_mat.shape[0], ncp), np.float32)
    fc_pad[:, :num_classes] = fc_mat
    fcb_pad = np.zeros((1, ncp), np.float32)
    fcb_pad[0, :num_classes] = p['fc_b']

    bf16 = jnp.bfloat16
    return dict(
        c1=jnp.asarray(c1, bf16), ap1=jnp.asarray(ap1, bf16),
        b1=jnp.asarray(b1r, jnp.float32),
        c2=jnp.asarray(c2, bf16), ap2=jnp.asarray(ap2, bf16),
        b2=jnp.asarray(b2r, jnp.float32),
        ap3=jnp.asarray(ap3, bf16), b3=jnp.asarray(b3r, jnp.float32),
        fc_w=jnp.asarray(fc_pad, bf16), fc_b=jnp.asarray(fcb_pad, jnp.float32),
    )


# ------------------------------ forward -------------------------------------

def brain_tumor_cnn_forward(x_nchw, ops, *, num_classes):
    n, cin, h, w = x_nchw.shape
    # NCHW -> [N, H, W*C]: layout plumbing only; each image becomes one 2-D
    # activation tile with channels dense on the lane axis.
    x_r = jnp.transpose(x_nchw, (0, 2, 3, 1)).reshape(n, h, w * cin)
    x_r = x_r.astype(jnp.bfloat16)

    operands = [x_r, ops['c1'], ops['ap1'], ops['b1'],
                ops['c2'], ops['ap2'], ops['b2'],
                ops['ap3'], ops['b3'], ops['fc_w'], ops['fc_b']]

    def _const_spec(a):
        return pl.BlockSpec(a.shape, lambda i, _nd=a.ndim: (0,) * _nd)

    in_specs = ([pl.BlockSpec((1, h, w * cin), lambda i: (i, 0, 0))]
                + [_const_spec(a) for a in operands[1:]])

    ncp = ops['fc_w'].shape[1]
    out = pl.pallas_call(
        _forward_kernel,
        out_shape=jax.ShapeDtypeStruct((n, 1, ncp), jnp.float32),
        grid=(n,),
        in_specs=in_specs,
        out_specs=pl.BlockSpec((1, 1, ncp), lambda i: (i, 0, 0)),
        compiler_params=pltpu.CompilerParams(
            dimension_semantics=("parallel",)),
    )(*operands)
    return out[:, 0, :num_classes]


# ----------------------------- parameters -----------------------------------

def init_params(key, num_classes=4, in_channel=3, image_size=48):
    ks = jax.random.split(key, 5)

    def kaiming(k, cout, cin, kk):
        fan_in = cin * kk * kk
        std = (2.0 / fan_in) ** 0.5
        return std * jax.random.normal(k, (cout, cin, kk, kk), jnp.float32)

    def bn_affine(c):
        gamma, beta = jnp.ones((c,)), jnp.zeros((c,))
        rmean, rvar = jnp.zeros((c,)), jnp.ones((c,))
        scale = gamma / jnp.sqrt(rvar + BN_EPS)
        shift = beta - rmean * scale
        return scale, shift

    s = feature_map_size(image_size, 3, 2, 1)   # conv_1
    s = feature_map_size(s, 3, 3, 0)            # max_pooling_1
    s = feature_map_size(s, 3, 2, 1)            # conv_2
    s = feature_map_size(s, 3, 3, 0)            # max_pooling_2
    s = feature_map_size(s, 3, 1, 1)            # conv_3
    in_features = s * s * 128
    bound = 1.0 / (in_features ** 0.5)

    bn1_s, bn1_b = bn_affine(32)
    bn2_s, bn2_b = bn_affine(64)
    bn3_s, bn3_b = bn_affine(128)
    return dict(
        conv1_w=kaiming(ks[0], 32, in_channel, 3), conv1_b=jnp.zeros((32,)),
        conv2_w=kaiming(ks[1], 64, 32, 3),         conv2_b=jnp.zeros((64,)),
        conv3_w=kaiming(ks[2], 128, 64, 3),        conv3_b=jnp.zeros((128,)),
        bn1_scale=bn1_s, bn1_shift=bn1_b,
        bn2_scale=bn2_s, bn2_shift=bn2_b,
        bn3_scale=bn3_s, bn3_shift=bn3_b,
        fc_w=jax.random.uniform(ks[3], (num_classes, in_features),
                                jnp.float32, -bound, bound),
        fc_b=jax.random.uniform(ks[4], (num_classes,),
                                jnp.float32, -bound, bound),
    )


if __name__ == "__main__":
    key = jax.random.PRNGKey(0)
    k_param, k_x = jax.random.split(key)

    batch, in_channel, image_size, num_classes = 2, 3, 48, 4
    params = init_params(k_param, num_classes=num_classes,
                         in_channel=in_channel, image_size=image_size)
    ops = build_operands(params, image_size=image_size,
                         num_classes=num_classes)
    x = jax.random.normal(k_x, (batch, in_channel, image_size, image_size),
                          jnp.float32)

    fwd = jax.jit(functools.partial(brain_tumor_cnn_forward,
                                    num_classes=num_classes))
    out = jax.block_until_ready(fwd(x, ops))
    assert out.shape == (batch, num_classes), out.shape
    assert bool(jnp.all(jnp.isfinite(out)))
    print("KERNEL_OK")
</pallas_src>

<mosaic_0001>
module attributes {stable_mosaic.version = 11 : i64} {
  func.func @_forward_kernel(%arg0: i32, %arg1: memref<1x48x144xbf16, #tpu.memory_space<vmem>>, %arg2: memref<3x3x8x48xbf16, #tpu.memory_space<vmem>>, %arg3: memref<3x3x144x256xbf16, #tpu.memory_space<vmem>>, %arg4: memref<1x256xf32, #tpu.memory_space<vmem>>, %arg5: memref<3x3x1x8xbf16, #tpu.memory_space<vmem>>, %arg6: memref<3x3x256x64xbf16, #tpu.memory_space<vmem>>, %arg7: memref<1x64xf32, #tpu.memory_space<vmem>>, %arg8: memref<1x1x64x128xbf16, #tpu.memory_space<vmem>>, %arg9: memref<1x128xf32, #tpu.memory_space<vmem>>, %arg10: memref<128x128xbf16, #tpu.memory_space<vmem>>, %arg11: memref<1x128xf32, #tpu.memory_space<vmem>>, %arg12: memref<1x1x128xf32, #tpu.memory_space<vmem>>) attributes {dimension_semantics = [#tpu.dimension_semantics<parallel>], iteration_bounds = array<i64: 2>, scalar_prefetch = 0 : i64, scratch_operands = 0 : i64, tpu.core_type = #tpu.core_type<tc>, window_params = [{transform_indices = @transform_0, window_bounds = array<i64: 1, 48, 144>}, {pipeline_mode = #tpu.pipeline_mode<synchronous>, transform_indices = @transform_1, window_bounds = array<i64: 3, 3, 8, 48>}, {pipeline_mode = #tpu.pipeline_mode<synchronous>, transform_indices = @transform_2, window_bounds = array<i64: 3, 3, 144, 256>}, {pipeline_mode = #tpu.pipeline_mode<synchronous>, transform_indices = @transform_3, window_bounds = array<i64: 1, 256>}, {pipeline_mode = #tpu.pipeline_mode<synchronous>, transform_indices = @transform_4, window_bounds = array<i64: 3, 3, 1, 8>}, {pipeline_mode = #tpu.pipeline_mode<synchronous>, transform_indices = @transform_5, window_bounds = array<i64: 3, 3, 256, 64>}, {pipeline_mode = #tpu.pipeline_mode<synchronous>, transform_indices = @transform_6, window_bounds = array<i64: 1, 64>}, {pipeline_mode = #tpu.pipeline_mode<synchronous>, transform_indices = @transform_7, window_bounds = array<i64: 1, 1, 64, 128>}, {pipeline_mode = #tpu.pipeline_mode<synchronous>, transform_indices = @transform_8, window_bounds = array<i64: 1, 128>}, {pipeline_mode = #tpu.pipeline_mode<synchronous>, transform_indices = @transform_9, window_bounds = array<i64: 128, 128>}, {pipeline_mode = #tpu.pipeline_mode<synchronous>, transform_indices = @transform_10, window_bounds = array<i64: 1, 128>}, {transform_indices = @transform_11, window_bounds = array<i64: 1, 1, 128>}]} {
    %c0 = arith.constant 0 : index
    %c0_0 = arith.constant 0 : index
    %c0_1 = arith.constant 0 : index
    %0 = vector.load %arg1[%c0, %c0_0, %c0_1] : memref<1x48x144xbf16, #tpu.memory_space<vmem>>, vector<1x48x144xbf16>
    %1 = vector.shape_cast %0 : vector<1x48x144xbf16> to vector<48x144xbf16>
    %c0_2 = arith.constant 0 : index
    %c0_3 = arith.constant 0 : index
    %c0_4 = arith.constant 0 : index
    %c0_5 = arith.constant 0 : index
    %2 = vector.load %arg2[%c0_2, %c0_3, %c0_4, %c0_5] : memref<3x3x8x48xbf16, #tpu.memory_space<vmem>>, vector<1x1x8x48xbf16>
    %3 = vector.shape_cast %2 : vector<1x1x8x48xbf16> to vector<8x48xbf16>
    %cst = arith.constant dense<0.000000e+00> : vector<8x144xf32>
    %4 = tpu.matmul %3, %1, %cst {dimension_numbers = #tpu.dot_dimension_numbers<[1], [0], [0], [1], [0, 0, 1, 1], [], []>} : vector<8x48xbf16>, vector<48x144xbf16>, vector<8x144xf32> -> vector<8x144xf32>
    %5 = arith.truncf %4 : vector<8x144xf32> to vector<8x144xbf16>
    %c0_6 = arith.constant 0 : index
    %c1 = arith.constant 1 : index
    %c0_7 = arith.constant 0 : index
    %c0_8 = arith.constant 0 : index
    %6 = vector.load %arg2[%c0_6, %c1, %c0_7, %c0_8] : memref<3x3x8x48xbf16, #tpu.memory_space<vmem>>, vector<1x1x8x48xbf16>
    %7 = vector.shape_cast %6 : vector<1x1x8x48xbf16> to vector<8x48xbf16>
    %cst_9 = arith.constant dense<0.000000e+00> : vector<8x144xf32>
    %8 = tpu.matmul %7, %1, %cst_9 {dimension_numbers = #tpu.dot_dimension_numbers<[1], [0], [0], [1], [0, 0, 1, 1], [], []>} : vector<8x48xbf16>, vector<48x144xbf16>, vector<8x144xf32> -> vector<8x144xf32>
    %9 = arith.truncf %8 : vector<8x144xf32> to vector<8x144xbf16>
    %c0_10 = arith.constant 0 : index
    %c2 = arith.constant 2 : index
    %c0_11 = arith.constant 0 : index
    %c0_12 = arith.constant 0 : index
    %10 = vector.load %arg2[%c0_10, %c2, %c0_11, %c0_12] : memref<3x3x8x48xbf16, #tpu.memory_space<vmem>>, vector<1x1x8x48xbf16>
    %11 = vector.shape_cast %10 : vector<1x1x8x48xbf16> to vector<8x48xbf16>
    %cst_13 = arith.constant dense<0.000000e+00> : vector<8x144xf32>
    %12 = tpu.matmul %11, %1, %cst_13 {dimension_numbers = #tpu.dot_dimension_numbers<[1], [0], [0], [1], [0, 0, 1, 1], [], []>} : vector<8x48xbf16>, vector<48x144xbf16>, vector<8x144xf32> -> vector<8x144xf32>
    %13 = arith.truncf %12 : vector<8x144xf32> to vector<8x144xbf16>
    %c0_14 = arith.constant 0 : index
    %c0_15 = arith.constant 0 : index
    %c0_16 = arith.constant 0 : index
    %c0_17 = arith.constant 0 : index
    %14 = vector.load %arg3[%c0_14, %c0_15, %c0_16, %c0_17] : memref<3x3x144x256xbf16, #tpu.memory_space<vmem>>, vector<1x1x144x256xbf16>
    %15 = vector.shape_cast %14 : vector<1x1x144x256xbf16> to vector<144x256xbf16>
    %cst_18 = arith.constant dense<0.000000e+00> : vector<8x256xf32>
    %16 = tpu.matmul %5, %15, %cst_18 {dimension_numbers = #tpu.dot_dimension_numbers<[1], [0], [0], [1], [0, 0, 1, 1], [], []>} : vector<8x144xbf16>, vector<144x256xbf16>, vector<8x256xf32> -> vector<8x256xf32>
    %c1_19 = arith.constant 1 : index
    %c0_20 = arith.constant 0 : index
    %c0_21 = arith.constant 0 : index
    %c0_22 = arith.constant 0 : index
    %17 = vector.load %arg3[%c1_19, %c0_20, %c0_21, %c0_22] : memref<3x3x144x256xbf16, #tpu.memory_space<vmem>>, vector<1x1x144x256xbf16>
    %18 = vector.shape_cast %17 : vector<1x1x144x256xbf16> to vector<144x256xbf16>
    %cst_23 = arith.constant dense<0.000000e+00> : vector<8x256xf32>
    %19 = tpu.matmul %9, %18, %cst_23 {dimension_numbers = #tpu.dot_dimension_numbers<[1], [0], [0], [1], [0, 0, 1, 1], [], []>} : vector<8x144xbf16>, vector<144x256xbf16>, vector<8x256xf32> -> vector<8x256xf32>
    %20 = arith.addf %16, %19 : vector<8x256xf32>
    %c2_24 = arith.constant 2 : index
    %c0_25 = arith.constant 0 : index
    %c0_26 = arith.constant 0 : index
    %c0_27 = arith.constant 0 : index
    %21 = vector.load %arg3[%c2_24, %c0_25, %c0_26, %c0_27] : memref<3x3x144x256xbf16, #tpu.memory_space<vmem>>, vector<1x1x144x256xbf16>
    %22 = vector.shape_cast %21 : vector<1x1x144x256xbf16> to vector<144x256xbf16>
    %cst_28 = arith.constant dense<0.000000e+00> : vector<8x256xf32>
    %23 = tpu.matmul %13, %22, %cst_28 {dimension_numbers = #tpu.dot_dimension_numbers<[1], [0], [0], [1], [0, 0, 1, 1], [], []>} : vector<8x144xbf16>, vector<144x256xbf16>, vector<8x256xf32> -> vector<8x256xf32>
    %24 = arith.addf %20, %23 : vector<8x256xf32>
    %c0_29 = arith.constant 0 : index
    %c1_30 = arith.constant 1 : index
    %c0_31 = arith.constant 0 : index
    %c0_32 = arith.constant 0 : index
    %25 = vector.load %arg3[%c0_29, %c1_30, %c0_31, %c0_32] : memref<3x3x144x256xbf16, #tpu.memory_space<vmem>>, vector<1x1x144x256xbf16>
    %26 = vector.shape_cast %25 : vector<1x1x144x256xbf16> to vector<144x256xbf16>
    %cst_33 = arith.constant dense<0.000000e+00> : vector<8x256xf32>
    %27 = tpu.matmul %5, %26, %cst_33 {dimension_numbers = #tpu.dot_dimension_numbers<[1], [0], [0], [1], [0, 0, 1, 1], [], []>} : vector<8x144xbf16>, vector<144x256xbf16>, vector<8x256xf32> -> vector<8x256xf32>
    %c1_34 = arith.constant 1 : index
    %c1_35 = arith.constant 1 : index
    %c0_36 = arith.constant 0 : index
    %c0_37 = arith.constant 0 : index
    %28 = vector.load %arg3[%c1_34, %c1_35, %c0_36, %c0_37] : memref<3x3x144x256xbf16, #tpu.memory_space<vmem>>, vector<1x1x144x256xbf16>
    %29 = vector.shape_cast %28 : vector<1x1x144x256xbf16> to vector<144x256xbf16>
    %cst_38 = arith.constant dense<0.000000e+00> : vector<8x256xf32>
    %30 = tpu.matmul %9, %29, %cst_38 {dimension_numbers = #tpu.dot_dimension_numbers<[1], [0], [0], [1], [0, 0, 1, 1], [], []>} : vector<8x144xbf16>, vector<144x256xbf16>, vector<8x256xf32> -> vector<8x256xf32>
    %31 = arith.addf %27, %30 : vector<8x256xf32>
    %c2_39 = arith.constant 2 : index
    %c1_40 = arith.constant 1 : index
    %c0_41 = arith.constant 0 : index
    %c0_42 = arith.constant 0 : index
    %32 = vector.load %arg3[%c2_39, %c1_40, %c0_41, %c0_42] : memref<3x3x144x256xbf16, #tpu.memory_space<vmem>>, vector<1x1x144x256xbf16>
    %33 = vector.shape_cast %32 : vector<1x1x144x256xbf16> to vector<144x256xbf16>
    %cst_43 = arith.constant dense<0.000000e+00> : vector<8x256xf32>
    %34 = tpu.matmul %13, %33, %cst_43 {dimension_numbers = #tpu.dot_dimension_numbers<[1], [0], [0], [1], [0, 0, 1, 1], [], []>} : vector<8x144xbf16>, vector<144x256xbf16>, vector<8x256xf32> -> vector<8x256xf32>
    %35 = arith.addf %31, %34 : vector<8x256xf32>
    %36 = arith.maximumf %24, %35 : vector<8x256xf32>
    %c0_44 = arith.constant 0 : index
    %c2_45 = arith.constant 2 : index
    %c0_46 = arith.constant 0 : index
    %c0_47 = arith.constant 0 : index
    %37 = vector.load %arg3[%c0_44, %c2_45, %c0_46, %c0_47] : memref<3x3x144x256xbf16, #tpu.memory_space<vmem>>, vector<1x1x144x256xbf16>
    %38 = vector.shape_cast %37 : vector<1x1x144x256xbf16> to vector<144x256xbf16>
    %cst_48 = arith.constant dense<0.000000e+00> : vector<8x256xf32>
    %39 = tpu.matmul %5, %38, %cst_48 {dimension_numbers = #tpu.dot_dimension_numbers<[1], [0], [0], [1], [0, 0, 1, 1], [], []>} : vector<8x144xbf16>, vector<144x256xbf16>, vector<8x256xf32> -> vector<8x256xf32>
    %c1_49 = arith.constant 1 : index
    %c2_50 = arith.constant 2 : index
    %c0_51 = arith.constant 0 : index
    %c0_52 = arith.constant 0 : index
    %40 = vector.load %arg3[%c1_49, %c2_50, %c0_51, %c0_52] : memref<3x3x144x256xbf16, #tpu.memory_space<vmem>>, vector<1x1x144x256xbf16>
    %41 = vector.shape_cast %40 : vector<1x1x144x256xbf16> to vector<144x256xbf16>
    %cst_53 = arith.constant dense<0.000000e+00> : vector<8x256xf32>
    %42 = tpu.matmul %9, %41, %cst_53 {dimension_numbers = #tpu.dot_dimension_numbers<[1], [0], [0], [1], [0, 0, 1, 1], [], []>} : vector<8x144xbf16>, vector<144x256xbf16>, vector<8x256xf32> -> vector<8x256xf32>
    %43 = arith.addf %39, %42 : vector<8x256xf32>
    %c2_54 = arith.constant 2 : index
    %c2_55 = arith.constant 2 : index
    %c0_56 = arith.constant 0 : index
    %c0_57 = arith.constant 0 : index
    %44 = vector.load %arg3[%c2_54, %c2_55, %c0_56, %c0_57] : memref<3x3x144x256xbf16, #tpu.memory_space<vmem>>, vector<1x1x144x256xbf16>
    %45 = vector.shape_cast %44 : vector<1x1x144x256xbf16> to vector<144x256xbf16>
    %cst_58 = arith.constant dense<0.000000e+00> : vector<8x256xf32>
    %46 = tpu.matmul %13, %45, %cst_58 {dimension_numbers = #tpu.dot_dimension_numbers<[1], [0], [0], [1], [0, 0, 1, 1], [], []>} : vector<8x144xbf16>, vector<144x256xbf16>, vector<8x256xf32> -> vector<8x256xf32>
    %47 = arith.addf %43, %46 : vector<8x256xf32>
    %48 = arith.maximumf %36, %47 : vector<8x256xf32>
    %c1_59 = arith.constant 1 : index
    %c0_60 = arith.constant 0 : index
    %c0_61 = arith.constant 0 : index
    %c0_62 = arith.constant 0 : index
    %49 = vector.load %arg2[%c1_59, %c0_60, %c0_61, %c0_62] : memref<3x3x8x48xbf16, #tpu.memory_space<vmem>>, vector<1x1x8x48xbf16>
    %50 = vector.shape_cast %49 : vector<1x1x8x48xbf16> to vector<8x48xbf16>
    %cst_63 = arith.constant dense<0.000000e+00> : vector<8x144xf32>
    %51 = tpu.matmul %50, %1, %cst_63 {dimension_numbers = #tpu.dot_dimension_numbers<[1], [0], [0], [1], [0, 0, 1, 1], [], []>} : vector<8x48xbf16>, vector<48x144xbf16>, vector<8x144xf32> -> vector<8x144xf32>
    %52 = arith.truncf %51 : vector<8x144xf32> to vector<8x144xbf16>
    %c1_64 = arith.constant 1 : index
    %c1_65 = arith.constant 1 : index
    %c0_66 = arith.constant 0 : index
    %c0_67 = arith.constant 0 : index
    %53 = vector.load %arg2[%c1_64, %c1_65, %c0_66, %c0_67] : memref<3x3x8x48xbf16, #tpu.memory_space<vmem>>, vector<1x1x8x48xbf16>
    %54 = vector.shape_cast %53 : vector<1x1x8x48xbf16> to vector<8x48xbf16>
    %cst_68 = arith.constant dense<0.000000e+00> : vector<8x144xf32>
    %55 = tpu.matmul %54, %1, %cst_68 {dimension_numbers = #tpu.dot_dimension_numbers<[1], [0], [0], [1], [0, 0, 1, 1], [], []>} : vector<8x48xbf16>, vector<48x144xbf16>, vector<8x144xf32> -> vector<8x144xf32>
    %56 = arith.truncf %55 : vector<8x144xf32> to vector<8x144xbf16>
    %c1_69 = arith.constant 1 : index
    %c2_70 = arith.constant 2 : index
    %c0_71 = arith.constant 0 : index
    %c0_72 = arith.constant 0 : index
    %57 = vector.load %arg2[%c1_69, %c2_70, %c0_71, %c0_72] : memref<3x3x8x48xbf16, #tpu.memory_space<vmem>>, vector<1x1x8x48xbf16>
    %58 = vector.shape_cast %57 : vector<1x1x8x48xbf16> to vector<8x48xbf16>
    %cst_73 = arith.constant dense<0.000000e+00> : vector<8x144xf32>
    %59 = tpu.matmul %58, %1, %cst_73 {dimension_numbers = #tpu.dot_dimension_numbers<[1], [0], [0], [1], [0, 0, 1, 1], [], []>} : vector<8x48xbf16>, vector<48x144xbf16>, vector<8x144xf32> -> vector<8x144xf32>
    %60 = arith.truncf %59 : vector<8x144xf32> to vector<8x144xbf16>
    %c0_74 = arith.constant 0 : index
    %c0_75 = arith.constant 0 : index
    %c0_76 = arith.constant 0 : index
    %c0_77 = arith.constant 0 : index
    %61 = vector.load %arg3[%c0_74, %c0_75, %c0_76, %c0_77] : memref<3x3x144x256xbf16, #tpu.memory_space<vmem>>, vector<1x1x144x256xbf16>
    %62 = vector.shape_cast %61 : vector<1x1x144x256xbf16> to vector<144x256xbf16>
    %cst_78 = arith.constant dense<0.000000e+00> : vector<8x256xf32>
    %63 = tpu.matmul %52, %62, %cst_78 {dimension_numbers = #tpu.dot_dimension_numbers<[1], [0], [0], [1], [0, 0, 1, 1], [], []>} : vector<8x144xbf16>, vector<144x256xbf16>, vector<8x256xf32> -> vector<8x256xf32>
    %c1_79 = arith.constant 1 : index
    %c0_80 = arith.constant 0 : index
    %c0_81 = arith.constant 0 : index
    %c0_82 = arith.constant 0 : index
    %64 = vector.load %arg3[%c1_79, %c0_80, %c0_81, %c0_82] : memref<3x3x144x256xbf16, #tpu.memory_space<vmem>>, vector<1x1x144x256xbf16>
    %65 = vector.shape_cast %64 : vector<1x1x144x256xbf16> to vector<144x256xbf16>
    %cst_83 = arith.constant dense<0.000000e+00> : vector<8x256xf32>
    %66 = tpu.matmul %56, %65, %cst_83 {dimension_numbers = #tpu.dot_dimension_numbers<[1], [0], [0], [1], [0, 0, 1, 1], [], []>} : vector<8x144xbf16>, vector<144x256xbf16>, vector<8x256xf32> -> vector<8x256xf32>
    %67 = arith.addf %63, %66 : vector<8x256xf32>
    %c2_84 = arith.constant 2 : index
    %c0_85 = arith.constant 0 : index
    %c0_86 = arith.constant 0 : index
    %c0_87 = arith.constant 0 : index
    %68 = vector.load %arg3[%c2_84, %c0_85, %c0_86, %c0_87] : memref<3x3x144x256xbf16, #tpu.memory_space<vmem>>, vector<1x1x144x256xbf16>
    %69 = vector.shape_cast %68 : vector<1x1x144x256xbf16> to vector<144x256xbf16>
    %cst_88 = arith.constant dense<0.000000e+00> : vector<8x256xf32>
    %70 = tpu.matmul %60, %69, %cst_88 {dimension_numbers = #tpu.dot_dimension_numbers<[1], [0], [0], [1], [0, 0, 1, 1], [], []>} : vector<8x144xbf16>, vector<144x256xbf16>, vector<8x256xf32> -> vector<8x256xf32>
    %71 = arith.addf %67, %70 : vector<8x256xf32>
    %72 = arith.maximumf %48, %71 : vector<8x256xf32>
    %c0_89 = arith.constant 0 : index
    %c1_90 = arith.constant 1 : index
    %c0_91 = arith.constant 0 : index
    %c0_92 = arith.constant 0 : index
    %73 = vector.load %arg3[%c0_89, %c1_90, %c0_91, %c0_92] : memref<3x3x144x256xbf16, #tpu.memory_space<vmem>>, vector<1x1x144x256xbf16>
    %74 = vector.shape_cast %73 : vector<1x1x144x256xbf16> to vector<144x256xbf16>
    %cst_93 = arith.constant dense<0.000000e+00> : vector<8x256xf32>
    %75 = tpu.matmul %52, %74, %cst_93 {dimension_numbers = #tpu.dot_dimension_numbers<[1], [0], [0], [1], [0, 0, 1, 1], [], []>} : vector<8x144xbf16>, vector<144x256xbf16>, vector<8x256xf32> -> vector<8x256xf32>
    %c1_94 = arith.constant 1 : index
    %c1_95 = arith.constant 1 : index
    %c0_96 = arith.constant 0 : index
    %c0_97 = arith.constant 0 : index
    %76 = vector.load %arg3[%c1_94, %c1_95, %c0_96, %c0_97] : memref<3x3x144x256xbf16, #tpu.memory_space<vmem>>, vector<1x1x144x256xbf16>
    %77 = vector.shape_cast %76 : vector<1x1x144x256xbf16> to vector<144x256xbf16>
    %cst_98 = arith.constant dense<0.000000e+00> : vector<8x256xf32>
    %78 = tpu.matmul %56, %77, %cst_98 {dimension_numbers = #tpu.dot_dimension_numbers<[1], [0], [0], [1], [0, 0, 1, 1], [], []>} : vector<8x144xbf16>, vector<144x256xbf16>, vector<8x256xf32> -> vector<8x256xf32>
    %79 = arith.addf %75, %78 : vector<8x256xf32>
    %c2_99 = arith.constant 2 : index
    %c1_100 = arith.constant 1 : index
    %c0_101 = arith.constant 0 : index
    %c0_102 = arith.constant 0 : index
    %80 = vector.load %arg3[%c2_99, %c1_100, %c0_101, %c0_102] : memref<3x3x144x256xbf16, #tpu.memory_space<vmem>>, vector<1x1x144x256xbf16>
    %81 = vector.shape_cast %80 : vector<1x1x144x256xbf16> to vector<144x256xbf16>
    %cst_103 = arith.constant dense<0.000000e+00> : vector<8x256xf32>
    %82 = tpu.matmul %60, %81, %cst_103 {dimension_numbers = #tpu.dot_dimension_numbers<[1], [0], [0], [1], [0, 0, 1, 1], [], []>} : vector<8x144xbf16>, vector<144x256xbf16>, vector<8x256xf32> -> vector<8x256xf32>
    %83 = arith.addf %79, %82 : vector<8x256xf32>
    %84 = arith.maximumf %72, %83 : vector<8x256xf32>
    %c0_104 = arith.constant 0 : index
    %c2_105 = arith.constant 2 : index
    %c0_106 = arith.constant 0 : index
    %c0_107 = arith.constant 0 : index
    %85 = vector.load %arg3[%c0_104, %c2_105, %c0_106, %c0_107] : memref<3x3x144x256xbf16, #tpu.memory_space<vmem>>, vector<1x1x144x256xbf16>
    %86 = vector.shape_cast %85 : vector<1x1x144x256xbf16> to vector<144x256xbf16>
    %cst_108 = arith.constant dense<0.000000e+00> : vector<8x256xf32>
    %87 = tpu.matmul %52, %86, %cst_108 {dimension_numbers = #tpu.dot_dimension_numbers<[1], [0], [0], [1], [0, 0, 1, 1], [], []>} : vector<8x144xbf16>, vector<144x256xbf16>, vector<8x256xf32> -> vector<8x256xf32>
    %c1_109 = arith.constant 1 : index
    %c2_110 = arith.constant 2 : index
    %c0_111 = arith.constant 0 : index
    %c0_112 = arith.constant 0 : index
    %88 = vector.load %arg3[%c1_109, %c2_110, %c0_111, %c0_112] : memref<3x3x144x256xbf16, #tpu.memory_space<vmem>>, vector<1x1x144x256xbf16>
    %89 = vector.shape_cast %88 : vector<1x1x144x256xbf16> to vector<144x256xbf16>
    %cst_113 = arith.constant dense<0.000000e+00> : vector<8x256xf32>
    %90 = tpu.matmul %56, %89, %cst_113 {dimension_numbers = #tpu.dot_dimension_numbers<[1], [0], [0], [1], [0, 0, 1, 1], [], []>} : vector<8x144xbf16>, vector<144x256xbf16>, vector<8x256xf32> -> vector<8x256xf32>
    %91 = arith.addf %87, %90 : vector<8x256xf32>
    %c2_114 = arith.constant 2 : index
    %c2_115 = arith.constant 2 : index
    %c0_116 = arith.constant 0 : index
    %c0_117 = arith.constant 0 : index
    %92 = vector.load %arg3[%c2_114, %c2_115, %c0_116, %c0_117] : memref<3x3x144x256xbf16, #tpu.memory_space<vmem>>, vector<1x1x144x256xbf16>
    %93 = vector.shape_cast %92 : vector<1x1x144x256xbf16> to vector<144x256xbf16>
    %cst_118 = arith.constant dense<0.000000e+00> : vector<8x256xf32>
    %94 = tpu.matmul %60, %93, %cst_118 {dimension_numbers = #tpu.dot_dimension_numbers<[1], [0], [0], [1], [0, 0, 1, 1], [], []>} : vector<8x144xbf16>, vector<144x256xbf16>, vector<8x256xf32> -> vector<8x256xf32>
    %95 = arith.addf %91, %94 : vector<8x256xf32>
    %96 = arith.maximumf %84, %95 : vector<8x256xf32>
    %c2_119 = arith.constant 2 : index
    %c0_120 = arith.constant 0 : index
    %c0_121 = arith.constant 0 : index
    %c0_122 = arith.constant 0 : index
    %97 = vector.load %arg2[%c2_119, %c0_120, %c0_121, %c0_122] : memref<3x3x8x48xbf16, #tpu.memory_space<vmem>>, vector<1x1x8x48xbf16>
    %98 = vector.shape_cast %97 : vector<1x1x8x48xbf16> to vector<8x48xbf16>
    %cst_123 = arith.constant dense<0.000000e+00> : vector<8x144xf32>
    %99 = tpu.matmul %98, %1, %cst_123 {dimension_numbers = #tpu.dot_dimension_numbers<[1], [0], [0], [1], [0, 0, 1, 1], [], []>} : vector<8x48xbf16>, vector<48x144xbf16>, vector<8x144xf32> -> vector<8x144xf32>
    %100 = arith.truncf %99 : vector<8x144xf32> to vector<8x144xbf16>
    %c2_124 = arith.constant 2 : index
    %c1_125 = arith.constant 1 : index
    %c0_126 = arith.constant 0 : index
    %c0_127 = arith.constant 0 : index
    %101 = vector.load %arg2[%c2_124, %c1_125, %c0_126, %c0_127] : memref<3x3x8x48xbf16, #tpu.memory_space<vmem>>, vector<1x1x8x48xbf16>
    %102 = vector.shape_cast %101 : vector<1x1x8x48xbf16> to vector<8x48xbf16>
    %cst_128 = arith.constant dense<0.000000e+00> : vector<8x144xf32>
    %103 = tpu.matmul %102, %1, %cst_128 {dimension_numbers = #tpu.dot_dimension_numbers<[1], [0], [0], [1], [0, 0, 1, 1], [], []>} : vector<8x48xbf16>, vector<48x144xbf16>, vector<8x144xf32> -> vector<8x144xf32>
    %104 = arith.truncf %103 : vector<8x144xf32> to vector<8x144xbf16>
    %c2_129 = arith.constant 2 : index
    %c2_130 = arith.constant 2 : index
    %c0_131 = arith.constant 0 : index
    %c0_132 = arith.constant 0 : index
    %105 = vector.load %arg2[%c2_129, %c2_130, %c0_131, %c0_132] : memref<3x3x8x48xbf16, #tpu.memory_space<vmem>>, vector<1x1x8x48xbf16>
    %106 = vector.shape_cast %105 : vector<1x1x8x48xbf16> to vector<8x48xbf16>
    %cst_133 = arith.constant dense<0.000000e+00> : vector<8x144xf32>
    %107 = tpu.matmul %106, %1, %cst_133 {dimension_numbers = #tpu.dot_dimension_numbers<[1], [0], [0], [1], [0, 0, 1, 1], [], []>} : vector<8x48xbf16>, vector<48x144xbf16>, vector<8x144xf32> -> vector<8x144xf32>
    %108 = arith.truncf %107 : vector<8x144xf32> to vector<8x144xbf16>
    %c0_134 = arith.constant 0 : index
    %c0_135 = arith.constant 0 : index
    %c0_136 = arith.constant 0 : index
    %c0_137 = arith.constant 0 : index
    %109 = vector.load %arg3[%c0_134, %c0_135, %c0_136, %c0_137] : memref<3x3x144x256xbf16, #tpu.memory_space<vmem>>, vector<1x1x144x256xbf16>
    %110 = vector.shape_cast %109 : vector<1x1x144x256xbf16> to vector<144x256xbf16>
    %cst_138 = arith.constant dense<0.000000e+00> : vector<8x256xf32>
    %111 = tpu.matmul %100, %110, %cst_138 {dimension_numbers = #tpu.dot_dimension_numbers<[1], [0], [0], [1], [0, 0, 1, 1], [], []>} : vector<8x144xbf16>, vector<144x256xbf16>, vector<8x256xf32> -> vector<8x256xf32>
    %c1_139 = arith.constant 1 : index
    %c0_140 = arith.constant 0 : index
    %c0_141 = arith.constant 0 : index
    %c0_142 = arith.constant 0 : index
    %112 = vector.load %arg3[%c1_139, %c0_140, %c0_141, %c0_142] : memref<3x3x144x256xbf16, #tpu.memory_space<vmem>>, vector<1x1x144x256xbf16>
    %113 = vector.shape_cast %112 : vector<1x1x144x256xbf16> to vector<144x256xbf16>
    %cst_143 = arith.constant dense<0.000000e+00> : vector<8x256xf32>
    %114 = tpu.matmul %104, %113, %cst_143 {dimension_numbers = #tpu.dot_dimension_numbers<[1], [0], [0], [1], [0, 0, 1, 1], [], []>} : vector<8x144xbf16>, vector<144x256xbf16>, vector<8x256xf32> -> vector<8x256xf32>
    %115 = arith.addf %111, %114 : vector<8x256xf32>
    %c2_144 = arith.constant 2 : index
    %c0_145 = arith.constant 0 : index
    %c0_146 = arith.constant 0 : index
    %c0_147 = arith.constant 0 : index
    %116 = vector.load %arg3[%c2_144, %c0_145, %c0_146, %c0_147] : memref<3x3x144x256xbf16, #tpu.memory_space<vmem>>, vector<1x1x144x256xbf16>
    %117 = vector.shape_cast %116 : vector<1x1x144x256xbf16> to vector<144x256xbf16>
    %cst_148 = arith.constant dense<0.000000e+00> : vector<8x256xf32>
    %118 = tpu.matmul %108, %117, %cst_148 {dimension_numbers = #tpu.dot_dimension_numbers<[1], [0], [0], [1], [0, 0, 1, 1], [], []>} : vector<8x144xbf16>, vector<144x256xbf16>, vector<8x256xf32> -> vector<8x256xf32>
    %119 = arith.addf %115, %118 : vector<8x256xf32>
    %120 = arith.maximumf %96, %119 : vector<8x256xf32>
    %c0_149 = arith.constant 0 : index
    %c1_150 = arith.constant 1 : index
    %c0_151 = arith.constant 0 : index
    %c0_152 = arith.constant 0 : index
    %121 = vector.load %arg3[%c0_149, %c1_150, %c0_151, %c0_152] : memref<3x3x144x256xbf16, #tpu.memory_space<vmem>>, vector<1x1x144x256xbf16>
    %122 = vector.shape_cast %121 : vector<1x1x144x256xbf16> to vector<144x256xbf16>
    %cst_153 = arith.constant dense<0.000000e+00> : vector<8x256xf32>
    %123 = tpu.matmul %100, %122, %cst_153 {dimension_numbers = #tpu.dot_dimension_numbers<[1], [0], [0], [1], [0, 0, 1, 1], [], []>} : vector<8x144xbf16>, vector<144x256xbf16>, vector<8x256xf32> -> vector<8x256xf32>
    %c1_154 = arith.constant 1 : index
    %c1_155 = arith.constant 1 : index
    %c0_156 = arith.constant 0 : index
    %c0_157 = arith.constant 0 : index
    %124 = vector.load %arg3[%c1_154, %c1_155, %c0_156, %c0_157] : memref<3x3x144x256xbf16, #tpu.memory_space<vmem>>, vector<1x1x144x256xbf16>
    %125 = vector.shape_cast %124 : vector<1x1x144x256xbf16> to vector<144x256xbf16>
    %cst_158 = arith.constant dense<0.000000e+00> : vector<8x256xf32>
    %126 = tpu.matmul %104, %125, %cst_158 {dimension_numbers = #tpu.dot_dimension_numbers<[1], [0], [0], [1], [0, 0, 1, 1], [], []>} : vector<8x144xbf16>, vector<144x256xbf16>, vector<8x256xf32> -> vector<8x256xf32>
    %127 = arith.addf %123, %126 : vector<8x256xf32>
    %c2_159 = arith.constant 2 : index
    %c1_160 = arith.constant 1 : index
    %c0_161 = arith.constant 0 : index
    %c0_162 = arith.constant 0 : index
    %128 = vector.load %arg3[%c2_159, %c1_160, %c0_161, %c0_162] : memref<3x3x144x256xbf16, #tpu.memory_space<vmem>>, vector<1x1x144x256xbf16>
    %129 = vector.shape_cast %128 : vector<1x1x144x256xbf16> to vector<144x256xbf16>
    %cst_163 = arith.constant dense<0.000000e+00> : vector<8x256xf32>
    %130 = tpu.matmul %108, %129, %cst_163 {dimension_numbers = #tpu.dot_dimension_numbers<[1], [0], [0], [1], [0, 0, 1, 1], [], []>} : vector<8x144xbf16>, vector<144x256xbf16>, vector<8x256xf32> -> vector<8x256xf32>
    %131 = arith.addf %127, %130 : vector<8x256xf32>
    %132 = arith.maximumf %120, %131 : vector<8x256xf32>
    %c0_164 = arith.constant 0 : index
    %c2_165 = arith.constant 2 : index
    %c0_166 = arith.constant 0 : index
    %c0_167 = arith.constant 0 : index
    %133 = vector.load %arg3[%c0_164, %c2_165, %c0_166, %c0_167] : memref<3x3x144x256xbf16, #tpu.memory_space<vmem>>, vector<1x1x144x256xbf16>
    %134 = vector.shape_cast %133 : vector<1x1x144x256xbf16> to vector<144x256xbf16>
    %cst_168 = arith.constant dense<0.000000e+00> : vector<8x256xf32>
    %135 = tpu.matmul %100, %134, %cst_168 {dimension_numbers = #tpu.dot_dimension_numbers<[1], [0], [0], [1], [0, 0, 1, 1], [], []>} : vector<8x144xbf16>, vector<144x256xbf16>, vector<8x256xf32> -> vector<8x256xf32>
    %c1_169 = arith.constant 1 : index
    %c2_170 = arith.constant 2 : index
    %c0_171 = arith.constant 0 : index
    %c0_172 = arith.constant 0 : index
    %136 = vector.load %arg3[%c1_169, %c2_170, %c0_171, %c0_172] : memref<3x3x144x256xbf16, #tpu.memory_space<vmem>>, vector<1x1x144x256xbf16>
    %137 = vector.shape_cast %136 : vector<1x1x144x256xbf16> to vector<144x256xbf16>
    %cst_173 = arith.constant dense<0.000000e+00> : vector<8x256xf32>
    %138 = tpu.matmul %104, %137, %cst_173 {dimension_numbers = #tpu.dot_dimension_numbers<[1], [0], [0], [1], [0, 0, 1, 1], [], []>} : vector<8x144xbf16>, vector<144x256xbf16>, vector<8x256xf32> -> vector<8x256xf32>
    %139 = arith.addf %135, %138 : vector<8x256xf32>
    %c2_174 = arith.constant 2 : index
    %c2_175 = arith.constant 2 : index
    %c0_176 = arith.constant 0 : index
    %c0_177 = arith.constant 0 : index
    %140 = vector.load %arg3[%c2_174, %c2_175, %c0_176, %c0_177] : memref<3x3x144x256xbf16, #tpu.memory_space<vmem>>, vector<1x1x144x256xbf16>
    %141 = vector.shape_cast %140 : vector<1x1x144x256xbf16> to vector<144x256xbf16>
    %cst_178 = arith.constant dense<0.000000e+00> : vector<8x256xf32>
    %142 = tpu.matmul %108, %141, %cst_178 {dimension_numbers = #tpu.dot_dimension_numbers<[1], [0], [0], [1], [0, 0, 1, 1], [], []>} : vector<8x144xbf16>, vector<144x256xbf16>, vector<8x256xf32> -> vector<8x256xf32>
    %143 = arith.addf %139, %142 : vector<8x256xf32>
    %144 = arith.maximumf %132, %143 : vector<8x256xf32>
    %c0_179 = arith.constant 0 : index
    %c0_180 = arith.constant 0 : index
    %145 = vector.load %arg4[%c0_179, %c0_180] : memref<1x256xf32, #tpu.memory_space<vmem>>, vector<1x256xf32>
    %146 = vector.broadcast %145 : vector<1x256xf32> to vector<8x256xf32>
    %147 = arith.addf %144, %146 : vector<8x256xf32>
    %cst_181 = arith.constant 0.000000e+00 : f32
    %148 = vector.broadcast %cst_181 : f32 to vector<8x256xf32>
    %149 = arith.cmpf ogt, %147, %148 : vector<8x256xf32>
    %cst_182 = arith.constant 1.000000e-01 : f32
    %150 = vector.broadcast %cst_182 : f32 to vector<8x256xf32>
    %151 = arith.mulf %150, %147 : vector<8x256xf32>
    %152 = arith.select %149, %147, %151 : vector<8x256xi1>, vector<8x256xf32>
    %153 = arith.truncf %152 : vector<8x256xf32> to vector<8x256xbf16>
    %c0_183 = arith.constant 0 : index
    %c0_184 = arith.constant 0 : index
    %c0_185 = arith.constant 0 : index
    %c0_186 = arith.constant 0 : index
    %154 = vector.load %arg5[%c0_183, %c0_184, %c0_185, %c0_186] : memref<3x3x1x8xbf16, #tpu.memory_space<vmem>>, vector<1x1x1x8xbf16>
    %155 = vector.shape_cast %154 : vector<1x1x1x8xbf16> to vector<1x8xbf16>
    %cst_187 = arith.constant dense<0.000000e+00> : vector<1x256xf32>
    %156 = tpu.matmul %155, %153, %cst_187 {dimension_numbers = #tpu.dot_dimension_numbers<[1], [0], [0], [1], [0, 0, 1, 1], [], []>} : vector<1x8xbf16>, vector<8x256xbf16>, vector<1x256xf32> -> vector<1x256xf32>
    %157 = arith.truncf %156 : vector<1x256xf32> to vector<1x256xbf16>
    %c0_188 = arith.constant 0 : index
    %c1_189 = arith.constant 1 : index
    %c0_190 = arith.constant 0 : index
    %c0_191 = arith.constant 0 : index
    %158 = vector.load %arg5[%c0_188, %c1_189, %c0_190, %c0_191] : memref<3x3x1x8xbf16, #tpu.memory_space<vmem>>, vector<1x1x1x8xbf16>
    %159 = vector.shape_cast %158 : vector<1x1x1x8xbf16> to vector<1x8xbf16>
    %cst_192 = arith.constant dense<0.000000e+00> : vector<1x256xf32>
    %160 = tpu.matmul %159, %153, %cst_192 {dimension_numbers = #tpu.dot_dimension_numbers<[1], [0], [0], [1], [0, 0, 1, 1], [], []>} : vector<1x8xbf16>, vector<8x256xbf16>, vector<1x256xf32> -> vector<1x256xf32>
    %161 = arith.truncf %160 : vector<1x256xf32> to vector<1x256xbf16>
    %c0_193 = arith.constant 0 : index
    %c2_194 = arith.constant 2 : index
    %c0_195 = arith.constant 0 : index
    %c0_196 = arith.constant 0 : index
    %162 = vector.load %arg5[%c0_193, %c2_194, %c0_195, %c0_196] : memref<3x3x1x8xbf16, #tpu.memory_space<vmem>>, vector<1x1x1x8xbf16>
    %163 = vector.shape_cast %162 : vector<1x1x1x8xbf16> to vector<1x8xbf16>
    %cst_197 = arith.constant dense<0.000000e+00> : vector<1x256xf32>
    %164 = tpu.matmul %163, %153, %cst_197 {dimension_numbers = #tpu.dot_dimension_numbers<[1], [0], [0], [1], [0, 0, 1, 1], [], []>} : vector<1x8xbf16>, vector<8x256xbf16>, vector<1x256xf32> -> vector<1x256xf32>
    %165 = arith.truncf %164 : vector<1x256xf32> to vector<1x256xbf16>
    %c0_198 = arith.constant 0 : index
    %c0_199 = arith.constant 0 : index
    %c0_200 = arith.constant 0 : index
    %c0_201 = arith.constant 0 : index
    %166 = vector.load %arg6[%c0_198, %c0_199, %c0_200, %c0_201] : memref<3x3x256x64xbf16, #tpu.memory_space<vmem>>, vector<1x1x256x64xbf16>
    %167 = vector.shape_cast %166 : vector<1x1x256x64xbf16> to vector<256x64xbf16>
    %cst_202 = arith.constant dense<0.000000e+00> : vector<1x64xf32>
    %168 = tpu.matmul %157, %167, %cst_202 {dimension_numbers = #tpu.dot_dimension_numbers<[1], [0], [0], [1], [0, 0, 1, 1], [], []>} : vector<1x256xbf16>, vector<256x64xbf16>, vector<1x64xf32> -> vector<1x64xf32>
    %c1_203 = arith.constant 1 : index
    %c0_204 = arith.constant 0 : index
    %c0_205 = arith.constant 0 : index
    %c0_206 = arith.constant 0 : index
    %169 = vector.load %arg6[%c1_203, %c0_204, %c0_205, %c0_206] : memref<3x3x256x64xbf16, #tpu.memory_space<vmem>>, vector<1x1x256x64xbf16>
    %170 = vector.shape_cast %169 : vector<1x1x256x64xbf16> to vector<256x64xbf16>
    %cst_207 = arith.constant dense<0.000000e+00> : vector<1x64xf32>
    %171 = tpu.matmul %161, %170, %cst_207 {dimension_numbers = #tpu.dot_dimension_numbers<[1], [0], [0], [1], [0, 0, 1, 1], [], []>} : vector<1x256xbf16>, vector<256x64xbf16>, vector<1x64xf32> -> vector<1x64xf32>
    %172 = arith.addf %168, %171 : vector<1x64xf32>
    %c2_208 = arith.constant 2 : index
    %c0_209 = arith.constant 0 : index
    %c0_210 = arith.constant 0 : index
    %c0_211 = arith.constant 0 : index
    %173 = vector.load %arg6[%c2_208, %c0_209, %c0_210, %c0_211] : memref<3x3x256x64xbf16, #tpu.memory_space<vmem>>, vector<1x1x256x64xbf16>
    %174 = vector.shape_cast %173 : vector<1x1x256x64xbf16> to vector<256x64xbf16>
    %cst_212 = arith.constant dense<0.000000e+00> : vector<1x64xf32>
    %175 = tpu.matmul %165, %174, %cst_212 {dimension_numbers = #tpu.dot_dimension_numbers<[1], [0], [0], [1], [0, 0, 1, 1], [], []>} : vector<1x256xbf16>, vector<256x64xbf16>, vector<1x64xf32> -> vector<1x64xf32>
    %176 = arith.addf %172, %175 : vector<1x64xf32>
    %c0_213 = arith.constant 0 : index
    %c1_214 = arith.constant 1 : index
    %c0_215 = arith.constant 0 : index
    %c0_216 = arith.constant 0 : index
    %177 = vector.load %arg6[%c0_213, %c1_214, %c0_215, %c0_216] : memref<3x3x256x64xbf16, #tpu.memory_space<vmem>>, vector<1x1x256x64xbf16>
    %178 = vector.shape_cast %177 : vector<1x1x256x64xbf16> to vector<256x64xbf16>
    %cst_217 = arith.constant dense<0.000000e+00> : vector<1x64xf32>
    %179 = tpu.matmul %157, %178, %cst_217 {dimension_numbers = #tpu.dot_dimension_numbers<[1], [0], [0], [1], [0, 0, 1, 1], [], []>} : vector<1x256xbf16>, vector<256x64xbf16>, vector<1x64xf32> -> vector<1x64xf32>
    %c1_218 = arith.constant 1 : index
    %c1_219 = arith.constant 1 : index
    %c0_220 = arith.constant 0 : index
    %c0_221 = arith.constant 0 : index
    %180 = vector.load %arg6[%c1_218, %c1_219, %c0_220, %c0_221] : memref<3x3x256x64xbf16, #tpu.memory_space<vmem>>, vector<1x1x256x64xbf16>
    %181 = vector.shape_cast %180 : vector<1x1x256x64xbf16> to vector<256x64xbf16>
    %cst_222 = arith.constant dense<0.000000e+00> : vector<1x64xf32>
    %182 = tpu.matmul %161, %181, %cst_222 {dimension_numbers = #tpu.dot_dimension_numbers<[1], [0], [0], [1], [0, 0, 1, 1], [], []>} : vector<1x256xbf16>, vector<256x64xbf16>, vector<1x64xf32> -> vector<1x64xf32>
    %183 = arith.addf %179, %182 : vector<1x64xf32>
    %c2_223 = arith.constant 2 : index
    %c1_224 = arith.constant 1 : index
    %c0_225 = arith.constant 0 : index
    %c0_226 = arith.constant 0 : index
    %184 = vector.load %arg6[%c2_223, %c1_224, %c0_225, %c0_226] : memref<3x3x256x64xbf16, #tpu.memory_space<vmem>>, vector<1x1x256x64xbf16>
    %185 = vector.shape_cast %184 : vector<1x1x256x64xbf16> to vector<256x64xbf16>
    %cst_227 = arith.constant dense<0.000000e+00> : vector<1x64xf32>
    %186 = tpu.matmul %165, %185, %cst_227 {dimension_numbers = #tpu.dot_dimension_numbers<[1], [0], [0], [1], [0, 0, 1, 1], [], []>} : vector<1x256xbf16>, vector<256x64xbf16>, vector<1x64xf32> -> vector<1x64xf32>
    %187 = arith.addf %183, %186 : vector<1x64xf32>
    %188 = arith.maximumf %176, %187 : vector<1x64xf32>
    %c0_228 = arith.constant 0 : index
    %c2_229 = arith.constant 2 : index
    %c0_230 = arith.constant 0 : index
    %c0_231 = arith.constant 0 : index
    %189 = vector.load %arg6[%c0_228, %c2_229, %c0_230, %c0_231] : memref<3x3x256x64xbf16, #tpu.memory_space<vmem>>, vector<1x1x256x64xbf16>
    %190 = vector.shape_cast %189 : vector<1x1x256x64xbf16> to vector<256x64xbf16>
    %cst_232 = arith.constant dense<0.000000e+00> : vector<1x64xf32>
    %191 = tpu.matmul %157, %190, %cst_232 {dimension_numbers = #tpu.dot_dimension_numbers<[1], [0], [0], [1], [0, 0, 1, 1], [], []>} : vector<1x256xbf16>, vector<256x64xbf16>, vector<1x64xf32> -> vector<1x64xf32>
    %c1_233 = arith.constant 1 : index
    %c2_234 = arith.constant 2 : index
    %c0_235 = arith.constant 0 : index
    %c0_236 = arith.constant 0 : index
    %192 = vector.load %arg6[%c1_233, %c2_234, %c0_235, %c0_236] : memref<3x3x256x64xbf16, #tpu.memory_space<vmem>>, vector<1x1x256x64xbf16>
    %193 = vector.shape_cast %192 : vector<1x1x256x64xbf16> to vector<256x64xbf16>
    %cst_237 = arith.constant dense<0.000000e+00> : vector<1x64xf32>
    %194 = tpu.matmul %161, %193, %cst_237 {dimension_numbers = #tpu.dot_dimension_numbers<[1], [0], [0], [1], [0, 0, 1, 1], [], []>} : vector<1x256xbf16>, vector<256x64xbf16>, vector<1x64xf32> -> vector<1x64xf32>
    %195 = arith.addf %191, %194 : vector<1x64xf32>
    %c2_238 = arith.constant 2 : index
    %c2_239 = arith.constant 2 : index
    %c0_240 = arith.constant 0 : index
    %c0_241 = arith.constant 0 : index
    %196 = vector.load %arg6[%c2_238, %c2_239, %c0_240, %c0_241] : memref<3x3x256x64xbf16, #tpu.memory_space<vmem>>, vector<1x1x256x64xbf16>
    %197 = vector.shape_cast %196 : vector<1x1x256x64xbf16> to vector<256x64xbf16>
    %cst_242 = arith.constant dense<0.000000e+00> : vector<1x64xf32>
    %198 = tpu.matmul %165, %197, %cst_242 {dimension_numbers = #tpu.dot_dimension_numbers<[1], [0], [0], [1], [0, 0, 1, 1], [], []>} : vector<1x256xbf16>, vector<256x64xbf16>, vector<1x64xf32> -> vector<1x64xf32>
    %199 = arith.addf %195, %198 : vector<1x64xf32>
    %200 = arith.maximumf %188, %199 : vector<1x64xf32>
    %c1_243 = arith.constant 1 : index
    %c0_244 = arith.constant 0 : index
    %c0_245 = arith.constant 0 : index
    %c0_246 = arith.constant 0 : index
    %201 = vector.load %arg5[%c1_243, %c0_244, %c0_245, %c0_246] : memref<3x3x1x8xbf16, #tpu.memory_space<vmem>>, vector<1x1x1x8xbf16>
    %202 = vector.shape_cast %201 : vector<1x1x1x8xbf16> to vector<1x8xbf16>
    %cst_247 = arith.constant dense<0.000000e+00> : vector<1x256xf32>
    %203 = tpu.matmul %202, %153, %cst_247 {dimension_numbers = #tpu.dot_dimension_numbers<[1], [0], [0], [1], [0, 0, 1, 1], [], []>} : vector<1x8xbf16>, vector<8x256xbf16>, vector<1x256xf32> -> vector<1x256xf32>
    %204 = arith.truncf %203 : vector<1x256xf32> to vector<1x256xbf16>
    %c1_248 = arith.constant 1 : index
    %c1_249 = arith.constant 1 : index
    %c0_250 = arith.constant 0 : index
    %c0_251 = arith.constant 0 : index
    %205 = vector.load %arg5[%c1_248, %c1_249, %c0_250, %c0_251] : memref<3x3x1x8xbf16, #tpu.memory_space<vmem>>, vector<1x1x1x8xbf16>
    %206 = vector.shape_cast %205 : vector<1x1x1x8xbf16> to vector<1x8xbf16>
    %cst_252 = arith.constant dense<0.000000e+00> : vector<1x256xf32>
    %207 = tpu.matmul %206, %153, %cst_252 {dimension_numbers = #tpu.dot_dimension_numbers<[1], [0], [0], [1], [0, 0, 1, 1], [], []>} : vector<1x8xbf16>, vector<8x256xbf16>, vector<1x256xf32> -> vector<1x256xf32>
    %208 = arith.truncf %207 : vector<1x256xf32> to vector<1x256xbf16>
    %c1_253 = arith.constant 1 : index
    %c2_254 = arith.constant 2 : index
    %c0_255 = arith.constant 0 : index
    %c0_256 = arith.constant 0 : index
    %209 = vector.load %arg5[%c1_253, %c2_254, %c0_255, %c0_256] : memref<3x3x1x8xbf16, #tpu.memory_space<vmem>>, vector<1x1x1x8xbf16>
    %210 = vector.shape_cast %209 : vector<1x1x1x8xbf16> to vector<1x8xbf16>
    %cst_257 = arith.constant dense<0.000000e+00> : vector<1x256xf32>
    %211 = tpu.matmul %210, %153, %cst_257 {dimension_numbers = #tpu.dot_dimension_numbers<[1], [0], [0], [1], [0, 0, 1, 1], [], []>} : vector<1x8xbf16>, vector<8x256xbf16>, vector<1x256xf32> -> vector<1x256xf32>
    %212 = arith.truncf %211 : vector<1x256xf32> to vector<1x256xbf16>
    %c0_258 = arith.constant 0 : index
    %c0_259 = arith.constant 0 : index
    %c0_260 = arith.constant 0 : index
    %c0_261 = arith.constant 0 : index
    %213 = vector.load %arg6[%c0_258, %c0_259, %c0_260, %c0_261] : memref<3x3x256x64xbf16, #tpu.memory_space<vmem>>, vector<1x1x256x64xbf16>
    %214 = vector.shape_cast %213 : vector<1x1x256x64xbf16> to vector<256x64xbf16>
    %cst_262 = arith.constant dense<0.000000e+00> : vector<1x64xf32>
    %215 = tpu.matmul %204, %214, %cst_262 {dimension_numbers = #tpu.dot_dimension_numbers<[1], [0], [0], [1], [0, 0, 1, 1], [], []>} : vector<1x256xbf16>, vector<256x64xbf16>, vector<1x64xf32> -> vector<1x64xf32>
    %c1_263 = arith.constant 1 : index
    %c0_264 = arith.constant 0 : index
    %c0_265 = arith.constant 0 : index
    %c0_266 = arith.constant 0 : index
    %216 = vector.load %arg6[%c1_263, %c0_264, %c0_265, %c0_266] : memref<3x3x256x64xbf16, #tpu.memory_space<vmem>>, vector<1x1x256x64xbf16>
    %217 = vector.shape_cast %216 : vector<1x1x256x64xbf16> to vector<256x64xbf16>
    %cst_267 = arith.constant dense<0.000000e+00> : vector<1x64xf32>
    %218 = tpu.matmul %208, %217, %cst_267 {dimension_numbers = #tpu.dot_dimension_numbers<[1], [0], [0], [1], [0, 0, 1, 1], [], []>} : vector<1x256xbf16>, vector<256x64xbf16>, vector<1x64xf32> -> vector<1x64xf32>
    %219 = arith.addf %215, %218 : vector<1x64xf32>
    %c2_268 = arith.constant 2 : index
    %c0_269 = arith.constant 0 : index
    %c0_270 = arith.constant 0 : index
    %c0_271 = arith.constant 0 : index
    %220 = vector.load %arg6[%c2_268, %c0_269, %c0_270, %c0_271] : memref<3x3x256x64xbf16, #tpu.memory_space<vmem>>, vector<1x1x256x64xbf16>
    %221 = vector.shape_cast %220 : vector<1x1x256x64xbf16> to vector<256x64xbf16>
    %cst_272 = arith.constant dense<0.000000e+00> : vector<1x64xf32>
    %222 = tpu.matmul %212, %221, %cst_272 {dimension_numbers = #tpu.dot_dimension_numbers<[1], [0], [0], [1], [0, 0, 1, 1], [], []>} : vector<1x256xbf16>, vector<256x64xbf16>, vector<1x64xf32> -> vector<1x64xf32>
    %223 = arith.addf %219, %222 : vector<1x64xf32>
    %224 = arith.maximumf %200, %223 : vector<1x64xf32>
    %c0_273 = arith.constant 0 : index
    %c1_274 = arith.constant 1 : index
    %c0_275 = arith.constant 0 : index
    %c0_276 = arith.constant 0 : index
    %225 = vector.load %arg6[%c0_273, %c1_274, %c0_275, %c0_276] : memref<3x3x256x64xbf16, #tpu.memory_space<vmem>>, vector<1x1x256x64xbf16>
    %226 = vector.shape_cast %225 : vector<1x1x256x64xbf16> to vector<256x64xbf16>
    %cst_277 = arith.constant dense<0.000000e+00> : vector<1x64xf32>
    %227 = tpu.matmul %204, %226, %cst_277 {dimension_numbers = #tpu.dot_dimension_numbers<[1], [0], [0], [1], [0, 0, 1, 1], [], []>} : vector<1x256xbf16>, vector<256x64xbf16>, vector<1x64xf32> -> vector<1x64xf32>
    %c1_278 = arith.constant 1 : index
    %c1_279 = arith.constant 1 : index
    %c0_280 = arith.constant 0 : index
    %c0_281 = arith.constant 0 : index
    %228 = vector.load %arg6[%c1_278, %c1_279, %c0_280, %c0_281] : memref<3x3x256x64xbf16, #tpu.memory_space<vmem>>, vector<1x1x256x64xbf16>
    %229 = vector.shape_cast %228 : vector<1x1x256x64xbf16> to vector<256x64xbf16>
    %cst_282 = arith.constant dense<0.000000e+00> : vector<1x64xf32>
    %230 = tpu.matmul %208, %229, %cst_282 {dimension_numbers = #tpu.dot_dimension_numbers<[1], [0], [0], [1], [0, 0, 1, 1], [], []>} : vector<1x256xbf16>, vector<256x64xbf16>, vector<1x64xf32> -> vector<1x64xf32>
    %231 = arith.addf %227, %230 : vector<1x64xf32>
    %c2_283 = arith.constant 2 : index
    %c1_284 = arith.constant 1 : index
    %c0_285 = arith.constant 0 : index
    %c0_286 = arith.constant 0 : index
    %232 = vector.load %arg6[%c2_283, %c1_284, %c0_285, %c0_286] : memref<3x3x256x64xbf16, #tpu.memory_space<vmem>>, vector<1x1x256x64xbf16>
    %233 = vector.shape_cast %232 : vector<1x1x256x64xbf16> to vector<256x64xbf16>
    %cst_287 = arith.constant dense<0.000000e+00> : vector<1x64xf32>
    %234 = tpu.matmul %212, %233, %cst_287 {dimension_numbers = #tpu.dot_dimension_numbers<[1], [0], [0], [1], [0, 0, 1, 1], [], []>} : vector<1x256xbf16>, vector<256x64xbf16>, vector<1x64xf32> -> vector<1x64xf32>
    %235 = arith.addf %231, %234 : vector<1x64xf32>
    %236 = arith.maximumf %224, %235 : vector<1x64xf32>
    %c0_288 = arith.constant 0 : index
    %c2_289 = arith.constant 2 : index
    %c0_290 = arith.constant 0 : index
    %c0_291 = arith.constant 0 : index
    %237 = vector.load %arg6[%c0_288, %c2_289, %c0_290, %c0_291] : memref<3x3x256x64xbf16, #tpu.memory_space<vmem>>, vector<1x1x256x64xbf16>
    %238 = vector.shape_cast %237 : vector<1x1x256x64xbf16> to vector<256x64xbf16>
    %cst_292 = arith.constant dense<0.000000e+00> : vector<1x64xf32>
    %239 = tpu.matmul %204, %238, %cst_292 {dimension_numbers = #tpu.dot_dimension_numbers<[1], [0], [0], [1], [0, 0, 1, 1], [], []>} : vector<1x256xbf16>, vector<256x64xbf16>, vector<1x64xf32> -> vector<1x64xf32>
    %c1_293 = arith.constant 1 : index
    %c2_294 = arith.constant 2 : index
    %c0_295 = arith.constant 0 : index
    %c0_296 = arith.constant 0 : index
    %240 = vector.load %arg6[%c1_293, %c2_294, %c0_295, %c0_296] : memref<3x3x256x64xbf16, #tpu.memory_space<vmem>>, vector<1x1x256x64xbf16>
    %241 = vector.shape_cast %240 : vector<1x1x256x64xbf16> to vector<256x64xbf16>
    %cst_297 = arith.constant dense<0.000000e+00> : vector<1x64xf32>
    %242 = tpu.matmul %208, %241, %cst_297 {dimension_numbers = #tpu.dot_dimension_numbers<[1], [0], [0], [1], [0, 0, 1, 1], [], []>} : vector<1x256xbf16>, vector<256x64xbf16>, vector<1x64xf32> -> vector<1x64xf32>
    %243 = arith.addf %239, %242 : vector<1x64xf32>
    %c2_298 = arith.constant 2 : index
    %c2_299 = arith.constant 2 : index
    %c0_300 = arith.constant 0 : index
    %c0_301 = arith.constant 0 : index
    %244 = vector.load %arg6[%c2_298, %c2_299, %c0_300, %c0_301] : memref<3x3x256x64xbf16, #tpu.memory_space<vmem>>, vector<1x1x256x64xbf16>
    %245 = vector.shape_cast %244 : vector<1x1x256x64xbf16> to vector<256x64xbf16>
    %cst_302 = arith.constant dense<0.000000e+00> : vector<1x64xf32>
    %246 = tpu.matmul %212, %245, %cst_302 {dimension_numbers = #tpu.dot_dimension_numbers<[1], [0], [0], [1], [0, 0, 1, 1], [], []>} : vector<1x256xbf16>, vector<256x64xbf16>, vector<1x64xf32> -> vector<1x64xf32>
    %247 = arith.addf %243, %246 : vector<1x64xf32>
    %248 = arith.maximumf %236, %247 : vector<1x64xf32>
    %c2_303 = arith.constant 2 : index
    %c0_304 = arith.constant 0 : index
    %c0_305 = arith.constant 0 : index
    %c0_306 = arith.constant 0 : index
    %249 = vector.load %arg5[%c2_303, %c0_304, %c0_305, %c0_306] : memref<3x3x1x8xbf16, #tpu.memory_space<vmem>>, vector<1x1x1x8xbf16>
    %250 = vector.shape_cast %249 : vector<1x1x1x8xbf16> to vector<1x8xbf16>
    %cst_307 = arith.constant dense<0.000000e+00> : vector<1x256xf32>
    %251 = tpu.matmul %250, %153, %cst_307 {dimension_numbers = #tpu.dot_dimension_numbers<[1], [0], [0], [1], [0, 0, 1, 1], [], []>} : vector<1x8xbf16>, vector<8x256xbf16>, vector<1x256xf32> -> vector<1x256xf32>
    %252 = arith.truncf %251 : vector<1x256xf32> to vector<1x256xbf16>
    %c2_308 = arith.constant 2 : index
    %c1_309 = arith.constant 1 : index
    %c0_310 = arith.constant 0 : index
    %c0_311 = arith.constant 0 : index
    %253 = vector.load %arg5[%c2_308, %c1_309, %c0_310, %c0_311] : memref<3x3x1x8xbf16, #tpu.memory_space<vmem>>, vector<1x1x1x8xbf16>
    %254 = vector.shape_cast %253 : vector<1x1x1x8xbf16> to vector<1x8xbf16>
    %cst_312 = arith.constant dense<0.000000e+00> : vector<1x256xf32>
    %255 = tpu.matmul %254, %153, %cst_312 {dimension_numbers = #tpu.dot_dimension_numbers<[1], [0], [0], [1], [0, 0, 1, 1], [], []>} : vector<1x8xbf16>, vector<8x256xbf16>, vector<1x256xf32> -> vector<1x256xf32>
    %256 = arith.truncf %255 : vector<1x256xf32> to vector<1x256xbf16>
    %c2_313 = arith.constant 2 : index
    %c2_314 = arith.constant 2 : index
    %c0_315 = arith.constant 0 : index
    %c0_316 = arith.constant 0 : index
    %257 = vector.load %arg5[%c2_313, %c2_314, %c0_315, %c0_316] : memref<3x3x1x8xbf16, #tpu.memory_space<vmem>>, vector<1x1x1x8xbf16>
    %258 = vector.shape_cast %257 : vector<1x1x1x8xbf16> to vector<1x8xbf16>
    %cst_317 = arith.constant dense<0.000000e+00> : vector<1x256xf32>
    %259 = tpu.matmul %258, %153, %cst_317 {dimension_numbers = #tpu.dot_dimension_numbers<[1], [0], [0], [1], [0, 0, 1, 1], [], []>} : vector<1x8xbf16>, vector<8x256xbf16>, vector<1x256xf32> -> vector<1x256xf32>
    %260 = arith.truncf %259 : vector<1x256xf32> to vector<1x256xbf16>
    %c0_318 = arith.constant 0 : index
    %c0_319 = arith.constant 0 : index
    %c0_320 = arith.constant 0 : index
    %c0_321 = arith.constant 0 : index
    %261 = vector.load %arg6[%c0_318, %c0_319, %c0_320, %c0_321] : memref<3x3x256x64xbf16, #tpu.memory_space<vmem>>, vector<1x1x256x64xbf16>
    %262 = vector.shape_cast %261 : vector<1x1x256x64xbf16> to vector<256x64xbf16>
    %cst_322 = arith.constant dense<0.000000e+00> : vector<1x64xf32>
    %263 = tpu.matmul %252, %262, %cst_322 {dimension_numbers = #tpu.dot_dimension_numbers<[1], [0], [0], [1], [0, 0, 1, 1], [], []>} : vector<1x256xbf16>, vector<256x64xbf16>, vector<1x64xf32> -> vector<1x64xf32>
    %c1_323 = arith.constant 1 : index
    %c0_324 = arith.constant 0 : index
    %c0_325 = arith.constant 0 : index
    %c0_326 = arith.constant 0 : index
    %264 = vector.load %arg6[%c1_323, %c0_324, %c0_325, %c0_326] : memref<3x3x256x64xbf16, #tpu.memory_space<vmem>>, vector<1x1x256x64xbf16>
    %265 = vector.shape_cast %264 : vector<1x1x256x64xbf16> to vector<256x64xbf16>
    %cst_327 = arith.constant dense<0.000000e+00> : vector<1x64xf32>
    %266 = tpu.matmul %256, %265, %cst_327 {dimension_numbers = #tpu.dot_dimension_numbers<[1], [0], [0], [1], [0, 0, 1, 1], [], []>} : vector<1x256xbf16>, vector<256x64xbf16>, vector<1x64xf32> -> vector<1x64xf32>
    %267 = arith.addf %263, %266 : vector<1x64xf32>
    %c2_328 = arith.constant 2 : index
    %c0_329 = arith.constant 0 : index
    %c0_330 = arith.constant 0 : index
    %c0_331 = arith.constant 0 : index
    %268 = vector.load %arg6[%c2_328, %c0_329, %c0_330, %c0_331] : memref<3x3x256x64xbf16, #tpu.memory_space<vmem>>, vector<1x1x256x64xbf16>
    %269 = vector.shape_cast %268 : vector<1x1x256x64xbf16> to vector<256x64xbf16>
    %cst_332 = arith.constant dense<0.000000e+00> : vector<1x64xf32>
    %270 = tpu.matmul %260, %269, %cst_332 {dimension_numbers = #tpu.dot_dimension_numbers<[1], [0], [0], [1], [0, 0, 1, 1], [], []>} : vector<1x256xbf16>, vector<256x64xbf16>, vector<1x64xf32> -> vector<1x64xf32>
    %271 = arith.addf %267, %270 : vector<1x64xf32>
    %272 = arith.maximumf %248, %271 : vector<1x64xf32>
    %c0_333 = arith.constant 0 : index
    %c1_334 = arith.constant 1 : index
    %c0_335 = arith.constant 0 : index
    %c0_336 = arith.constant 0 : index
    %273 = vector.load %arg6[%c0_333, %c1_334, %c0_335, %c0_336] : memref<3x3x256x64xbf16, #tpu.memory_space<vmem>>, vector<1x1x256x64xbf16>
    %274 = vector.shape_cast %273 : vector<1x1x256x64xbf16> to vector<256x64xbf16>
    %cst_337 = arith.constant dense<0.000000e+00> : vector<1x64xf32>
    %275 = tpu.matmul %252, %274, %cst_337 {dimension_numbers = #tpu.dot_dimension_numbers<[1], [0], [0], [1], [0, 0, 1, 1], [], []>} : vector<1x256xbf16>, vector<256x64xbf16>, vector<1x64xf32> -> vector<1x64xf32>
    %c1_338 = arith.constant 1 : index
    %c1_339 = arith.constant 1 : index
    %c0_340 = arith.constant 0 : index
    %c0_341 = arith.constant 0 : index
    %276 = vector.load %arg6[%c1_338, %c1_339, %c0_340, %c0_341] : memref<3x3x256x64xbf16, #tpu.memory_space<vmem>>, vector<1x1x256x64xbf16>
    %277 = vector.shape_cast %276 : vector<1x1x256x64xbf16> to vector<256x64xbf16>
    %cst_342 = arith.constant dense<0.000000e+00> : vector<1x64xf32>
    %278 = tpu.matmul %256, %277, %cst_342 {dimension_numbers = #tpu.dot_dimension_numbers<[1], [0], [0], [1], [0, 0, 1, 1], [], []>} : vector<1x256xbf16>, vector<256x64xbf16>, vector<1x64xf32> -> vector<1x64xf32>
    %279 = arith.addf %275, %278 : vector<1x64xf32>
    %c2_343 = arith.constant 2 : index
    %c1_344 = arith.constant 1 : index
    %c0_345 = arith.constant 0 : index
    %c0_346 = arith.constant 0 : index
    %280 = vector.load %arg6[%c2_343, %c1_344, %c0_345, %c0_346] : memref<3x3x256x64xbf16, #tpu.memory_space<vmem>>, vector<1x1x256x64xbf16>
    %281 = vector.shape_cast %280 : vector<1x1x256x64xbf16> to vector<256x64xbf16>
    %cst_347 = arith.constant dense<0.000000e+00> : vector<1x64xf32>
    %282 = tpu.matmul %260, %281, %cst_347 {dimension_numbers = #tpu.dot_dimension_numbers<[1], [0], [0], [1], [0, 0, 1, 1], [], []>} : vector<1x256xbf16>, vector<256x64xbf16>, vector<1x64xf32> -> vector<1x64xf32>
    %283 = arith.addf %279, %282 : vector<1x64xf32>
    %284 = arith.maximumf %272, %283 : vector<1x64xf32>
    %c0_348 = arith.constant 0 : index
    %c2_349 = arith.constant 2 : index
    %c0_350 = arith.constant 0 : index
    %c0_351 = arith.constant 0 : index
    %285 = vector.load %arg6[%c0_348, %c2_349, %c0_350, %c0_351] : memref<3x3x256x64xbf16, #tpu.memory_space<vmem>>, vector<1x1x256x64xbf16>
    %286 = vector.shape_cast %285 : vector<1x1x256x64xbf16> to vector<256x64xbf16>
    %cst_352 = arith.constant dense<0.000000e+00> : vector<1x64xf32>
    %287 = tpu.matmul %252, %286, %cst_352 {dimension_numbers = #tpu.dot_dimension_numbers<[1], [0], [0], [1], [0, 0, 1, 1], [], []>} : vector<1x256xbf16>, vector<256x64xbf16>, vector<1x64xf32> -> vector<1x64xf32>
    %c1_353 = arith.constant 1 : index
    %c2_354 = arith.constant 2 : index
    %c0_355 = arith.constant 0 : index
    %c0_356 = arith.constant 0 : index
    %288 = vector.load %arg6[%c1_353, %c2_354, %c0_355, %c0_356] : memref<3x3x256x64xbf16, #tpu.memory_space<vmem>>, vector<1x1x256x64xbf16>
    %289 = vector.shape_cast %288 : vector<1x1x256x64xbf16> to vector<256x64xbf16>
    %cst_357 = arith.constant dense<0.000000e+00> : vector<1x64xf32>
    %290 = tpu.matmul %256, %289, %cst_357 {dimension_numbers = #tpu.dot_dimension_numbers<[1], [0], [0], [1], [0, 0, 1, 1], [], []>} : vector<1x256xbf16>, vector<256x64xbf16>, vector<1x64xf32> -> vector<1x64xf32>
    %291 = arith.addf %287, %290 : vector<1x64xf32>
    %c2_358 = arith.constant 2 : index
    %c2_359 = arith.constant 2 : index
    %c0_360 = arith.constant 0 : index
    %c0_361 = arith.constant 0 : index
    %292 = vector.load %arg6[%c2_358, %c2_359, %c0_360, %c0_361] : memref<3x3x256x64xbf16, #tpu.memory_space<vmem>>, vector<1x1x256x64xbf16>
    %293 = vector.shape_cast %292 : vector<1x1x256x64xbf16> to vector<256x64xbf16>
    %cst_362 = arith.constant dense<0.000000e+00> : vector<1x64xf32>
    %294 = tpu.matmul %260, %293, %cst_362 {dimension_numbers = #tpu.dot_dimension_numbers<[1], [0], [0], [1], [0, 0, 1, 1], [], []>} : vector<1x256xbf16>, vector<256x64xbf16>, vector<1x64xf32> -> vector<1x64xf32>
    %295 = arith.addf %291, %294 : vector<1x64xf32>
    %296 = arith.maximumf %284, %295 : vector<1x64xf32>
    %c0_363 = arith.constant 0 : index
    %c0_364 = arith.constant 0 : index
    %297 = vector.load %arg7[%c0_363, %c0_364] : memref<1x64xf32, #tpu.memory_space<vmem>>, vector<1x64xf32>
    %298 = arith.addf %296, %297 : vector<1x64xf32>
    %cst_365 = arith.constant 0.000000e+00 : f32
    %299 = vector.broadcast %cst_365 : f32 to vector<1x64xf32>
    %300 = arith.cmpf ogt, %298, %299 : vector<1x64xf32>
    %cst_366 = arith.constant 1.000000e-01 : f32
    %301 = vector.broadcast %cst_366 : f32 to vector<1x64xf32>
    %302 = arith.mulf %301, %298 : vector<1x64xf32>
    %303 = arith.select %300, %298, %302 : vector<1x64xi1>, vector<1x64xf32>
    %304 = arith.truncf %303 : vector<1x64xf32> to vector<1x64xbf16>
    %c0_367 = arith.constant 0 : index
    %c0_368 = arith.constant 0 : index
    %c0_369 = arith.constant 0 : index
    %c0_370 = arith.constant 0 : index
    %305 = vector.load %arg8[%c0_367, %c0_368, %c0_369, %c0_370] : memref<1x1x64x128xbf16, #tpu.memory_space<vmem>>, vector<1x1x64x128xbf16>
    %306 = vector.shape_cast %305 : vector<1x1x64x128xbf16> to vector<64x128xbf16>
    %cst_371 = arith.constant dense<0.000000e+00> : vector<1x128xf32>
    %307 = tpu.matmul %304, %306, %cst_371 {dimension_numbers = #tpu.dot_dimension_numbers<[1], [0], [0], [1], [0, 0, 1, 1], [], []>} : vector<1x64xbf16>, vector<64x128xbf16>, vector<1x128xf32> -> vector<1x128xf32>
    %c0_372 = arith.constant 0 : index
    %c0_373 = arith.constant 0 : index
    %308 = vector.load %arg9[%c0_372, %c0_373] : memref<1x128xf32, #tpu.memory_space<vmem>>, vector<1x128xf32>
    %309 = arith.addf %307, %308 : vector<1x128xf32>
    %cst_374 = arith.constant 0.000000e+00 : f32
    %310 = vector.broadcast %cst_374 : f32 to vector<1x128xf32>
    %311 = arith.cmpf ogt, %309, %310 : vector<1x128xf32>
    %cst_375 = arith.constant 1.000000e-01 : f32
    %312 = vector.broadcast %cst_375 : f32 to vector<1x128xf32>
    %313 = arith.mulf %312, %309 : vector<1x128xf32>
    %314 = arith.select %311, %309, %313 : vector<1x128xi1>, vector<1x128xf32>
    %315 = arith.truncf %314 : vector<1x128xf32> to vector<1x128xbf16>
    %c0_376 = arith.constant 0 : index
    %c0_377 = arith.constant 0 : index
    %316 = vector.load %arg11[%c0_376, %c0_377] : memref<1x128xf32, #tpu.memory_space<vmem>>, vector<1x128xf32>
    %c0_378 = arith.constant 0 : index
    %c0_379 = arith.constant 0 : index
    %317 = vector.load %arg10[%c0_378, %c0_379] : memref<128x128xbf16, #tpu.memory_space<vmem>>, vector<128x128xbf16>
    %cst_380 = arith.constant dense<0.000000e+00> : vector<1x128xf32>
    %318 = tpu.matmul %315, %317, %cst_380 {dimension_numbers = #tpu.dot_dimension_numbers<[1], [0], [0], [1], [0, 0, 1, 1], [], []>} : vector<1x128xbf16>, vector<128x128xbf16>, vector<1x128xf32> -> vector<1x128xf32>
    %319 = arith.addf %316, %318 : vector<1x128xf32>
    %c0_381 = arith.constant 0 : index
    %c0_382 = arith.constant 0 : index
    %c0_383 = arith.constant 0 : index
    %320 = vector.load %arg12[%c0_381, %c0_382, %c0_383] : memref<1x1x128xf32, #tpu.memory_space<vmem>>, vector<1x1x128xf32>
    %321 = vector.shape_cast %320 : vector<1x1x128xf32> to vector<1x128xf32>
    %322 = vector.shape_cast %319 : vector<1x128xf32> to vector<1x1x128xf32>
    tpu.vector_store %arg12[%c0_381, %c0_382, %c0_383], %322 {strides = array<i32>} : memref<1x1x128xf32, #tpu.memory_space<vmem>>, vector<1x1x128xf32>,
    return
  }
  func.func @transform_0(%arg0: i32) -> (i32, i32, i32) {
    %c0_i32 = arith.constant 0 : i32
    %c0_i32_0 = arith.constant 0 : i32
    %c0_i32_1 = arith.constant 0 : i32
    return %arg0, %c0_i32, %c0_i32_0 : i32, i32, i32
  }
  func.func @transform_1(%arg0: i32) -> (i32, i32, i32, i32) {
    %c0_i32 = arith.constant 0 : i32
    %c0_i32_0 = arith.constant 0 : i32
    %c0_i32_1 = arith.constant 0 : i32
    %c0_i32_2 = arith.constant 0 : i32
    %c0_i32_3 = arith.constant 0 : i32
    return %c0_i32, %c0_i32_0, %c0_i32_1, %c0_i32_2 : i32, i32, i32, i32
  }
  func.func @transform_2(%arg0: i32) -> (i32, i32, i32, i32) {
    %c0_i32 = arith.constant 0 : i32
    %c0_i32_0 = arith.constant 0 : i32
    %c0_i32_1 = arith.constant 0 : i32
    %c0_i32_2 = arith.constant 0 : i32
    %c0_i32_3 = arith.constant 0 : i32
    return %c0_i32, %c0_i32_0, %c0_i32_1, %c0_i32_2 : i32, i32, i32, i32
  }
  func.func @transform_3(%arg0: i32) -> (i32, i32) {
    %c0_i32 = arith.constant 0 : i32
    %c0_i32_0 = arith.constant 0 : i32
    %c0_i32_1 = arith.constant 0 : i32
    return %c0_i32, %c0_i32_0 : i32, i32
  }
  func.func @transform_4(%arg0: i32) -> (i32, i32, i32, i32) {
    %c0_i32 = arith.constant 0 : i32
    %c0_i32_0 = arith.constant 0 : i32
    %c0_i32_1 = arith.constant 0 : i32
    %c0_i32_2 = arith.constant 0 : i32
    %c0_i32_3 = arith.constant 0 : i32
    return %c0_i32, %c0_i32_0, %c0_i32_1, %c0_i32_2 : i32, i32, i32, i32
  }
  func.func @transform_5(%arg0: i32) -> (i32, i32, i32, i32) {
    %c0_i32 = arith.constant 0 : i32
    %c0_i32_0 = arith.constant 0 : i32
    %c0_i32_1 = arith.constant 0 : i32
    %c0_i32_2 = arith.constant 0 : i32
    %c0_i32_3 = arith.constant 0 : i32
    return %c0_i32, %c0_i32_0, %c0_i32_1, %c0_i32_2 : i32, i32, i32, i32
  }
  func.func @transform_6(%arg0: i32) -> (i32, i32) {
    %c0_i32 = arith.constant 0 : i32
    %c0_i32_0 = arith.constant 0 : i32
    %c0_i32_1 = arith.constant 0 : i32
    return %c0_i32, %c0_i32_0 : i32, i32
  }
  func.func @transform_7(%arg0: i32) -> (i32, i32, i32, i32) {
    %c0_i32 = arith.constant 0 : i32
    %c0_i32_0 = arith.constant 0 : i32
    %c0_i32_1 = arith.constant 0 : i32
    %c0_i32_2 = arith.constant 0 : i32
    %c0_i32_3 = arith.constant 0 : i32
    return %c0_i32, %c0_i32_0, %c0_i32_1, %c0_i32_2 : i32, i32, i32, i32
  }
  func.func @transform_8(%arg0: i32) -> (i32, i32) {
    %c0_i32 = arith.constant 0 : i32
    %c0_i32_0 = arith.constant 0 : i32
    %c0_i32_1 = arith.constant 0 : i32
    return %c0_i32, %c0_i32_0 : i32, i32
  }
  func.func @transform_9(%arg0: i32) -> (i32, i32) {
    %c0_i32 = arith.constant 0 : i32
    %c0_i32_0 = arith.constant 0 : i32
    %c0_i32_1 = arith.constant 0 : i32
    return %c0_i32, %c0_i32_0 : i32, i32
  }
  func.func @transform_10(%arg0: i32) -> (i32, i32) {
    %c0_i32 = arith.constant 0 : i32
    %c0_i32_0 = arith.constant 0 : i32
    %c0_i32_1 = arith.constant 0 : i32
    return %c0_i32, %c0_i32_0 : i32, i32
  }
  func.func @transform_11(%arg0: i32) -> (i32, i32, i32) {
    %c0_i32 = arith.constant 0 : i32
    %c0_i32_0 = arith.constant 0 : i32
    %c0_i32_1 = arith.constant 0 : i32
    return %arg0, %c0_i32, %c0_i32_0 : i32, i32, i32
  }
}

</mosaic_0001>

<llo_original>
// kernel: brain_tumor_cnn_forward.1
$region0: #{brain_tumor_cnn_forward.1}
  #allocation0 [shape = 'u32[]', space=smem, size = 0x4, offset = 0x4, fixed_abs, tag = 'smem constant byte address 0x4 - core index']
  #allocation1 [shape = 'u32[144,128]{1,0:T(1,128)}', space=vmem, size = 0x12000, scoped, tag = 'internal scratch']
  %s0 = inlined_call_operand.vmem [shape: bf16[2,48,144], index: 0, kind: input, shape index: {}]
  %s1 = inlined_call_operand.vmem [shape: bf16[3,3,8,48], index: 1, kind: input, shape index: {}]
  %s2 = inlined_call_operand.vmem [shape: bf16[3,3,144,256], index: 2, kind: input, shape index: {}]
  %s3 = inlined_call_operand.vmem [shape: f32[1,256], index: 3, kind: input, shape index: {}]
  %s4 = inlined_call_operand.vmem [shape: bf16[3,3,1,8], index: 4, kind: input, shape index: {}]
  %s5 = inlined_call_operand.vmem [shape: bf16[3,3,256,64], index: 5, kind: input, shape index: {}]
  %s6 = inlined_call_operand.vmem [shape: f32[1,64], index: 6, kind: input, shape index: {}]
  %s7 = inlined_call_operand.vmem [shape: bf16[1,1,64,128], index: 7, kind: input, shape index: {}]
  %s8 = inlined_call_operand.vmem [shape: f32[1,128], index: 8, kind: input, shape index: {}]
  %s9 = inlined_call_operand.vmem [shape: bf16[128,128], index: 9, kind: input, shape index: {}]
  %s10 = inlined_call_operand.vmem [shape: f32[1,128], index: 10, kind: input, shape index: {}]
  %s11 = inlined_call_operand.hbm [shape: f32[2,1,128], index: 11, kind: output, shape index: {}]
  %s12 = sld [smem:[#allocation0]]
  $region77: #{brain_tumor_cnn_forward.1} parent=0
    _
  %s14 = ssub.s32 1, %s12
  %s15 = scalar_select 0, %s14, %s12
  $region1: #{brain_tumor_cnn_forward.1} parent=0
    #allocation2 [shape = 'u8[1024]{0}', space=vmem, size = 0x400, scoped, tag = 'output window, operand 0']
    #allocation3 [shape = 's32[2]{0}', space=sflag, size = 0x8, scoped, tag = 'scoped memory for brain_tumor_cnn_forward.1']
    %16 = vsyncpa [#allocation3], 0
    %s17 = scalar_lea.sflag [#allocation3], 1
    %18 = vsyncpa %s17, 0
    loop: start=0, step=1, limit=4
    $region2: #{brain_tumor_cnn_forward.1} parent=1 // loop_pre_header
      _
    $region3: #{brain_tumor_cnn_forward.1} parent=1 // loop_header
      %s20 = sphi 0, %s24
      %p21 = scmp.ge.s32.totalorder %s20, 4
      %s30 = sphi 0, %s32
      %s33 = sphi 0, %s30
      %s34 = sphi 0, %s33
      %s50 = sphi 0, %s34
      %s54 = sphi 0, %s54
      %s56 = sphi 0, %s54
      %s57 = sphi 0, %s56
      %s71 = sphi 0, %s57
      %s75 = sphi 0, %s75
      %s77 = sphi 0, %s75
      %s78 = sphi 0, %s77
      %s92 = sphi 0, %s78
      %s96 = sphi 0, %s96
      %s98 = sphi 0, %s96
      %s99 = sphi 0, %s98
      %s113 = sphi 0, %s99
      %s117 = sphi 0, %s117
      %s119 = sphi 0, %s117
      %s120 = sphi 0, %s119
      %s134 = sphi 0, %s120
      %s138 = sphi 0, %s138
      %s140 = sphi 0, %s138
      %s141 = sphi 0, %s140
      %s155 = sphi 0, %s141
      %s159 = sphi 0, %s159
      %s161 = sphi 0, %s159
      %s162 = sphi 0, %s161
      %s176 = sphi 0, %s162
      %s180 = sphi 0, %s180
      %s182 = sphi 0, %s180
      %s183 = sphi 0, %s182
      %s197 = sphi 0, %s183
      %s201 = sphi 0, %s201
      %s203 = sphi 0, %s201
      %s204 = sphi 0, %s203
      %s218 = sphi 0, %s204
      %s222 = sphi 0, %s222
      %s224 = sphi 0, %s222
      %s225 = sphi 0, %s224
      %s239 = sphi 0, %s225
      %s243 = sphi 0, %s243
      %s245 = sphi 0, %s243
      %s246 = sphi 0, %s245
      %s260 = sphi 0, %s246
      %s266 = sphi 0, %s268
      %s269 = sphi 0, %s266
      %s270 = sphi 0, %s269
      %s286 = sphi 0, %s270
    $region4: #{brain_tumor_cnn_forward.1} parent=1 // loop_header_branch
      %23 = sbr.rel (%p21) target = $region8
    $region5: #{brain_tumor_cnn_forward.1} parent=1 // loop_body
      %s25 = ssub.s32 %s20, 1
      %s26 = ssub.s32 %s20, 2
      %s27 = sadd.s32 %s20, 1
      %s28 = ssub.s32 %s20, %s27
      %p29 = scmp.eq.s32.totalorder %s28, 0
      %s31 = sadd.s32 %s30, 1
      %s32 = scalar_select %p29, %s30, %s31
      %p35 = pneg %p29
      %p36 = scmp.eq.s32.totalorder %s20, 1
      %p37 = por %p35, %p36
      %p38 = scmp.ne.s32.totalorder %s30, %s33
      %p39 = scmp.eq.s32.totalorder %s20, 0
      %p40 = por %p38, %p39
      %p41 = scmp.ne.s32.totalorder %s30, %s33
      %p42 = scmp.eq.s32.totalorder %s25, 1
      %p43 = por %p41, %p42
      %p44 = scmp.ne.s32.totalorder %s33, %s34
      %p45 = scmp.eq.s32.totalorder %s25, 0
      %p46 = por %p44, %p45
      %p47 = scmp.ne.s32.totalorder %s33, %s34
      %p48 = scmp.eq.s32.totalorder %s26, 1
      %p49 = por %p47, %p48
      %p51 = scmp.ne.s32.totalorder %s34, %s50
      %p52 = scmp.eq.s32.totalorder %s26, 0
      %p53 = por %p51, %p52
      %s55 = sadd.s32 %s54, 1
      %p58 = scmp.eq.s32.totalorder %s20, 1
      %p59 = scmp.ne.s32.totalorder %s54, %s56
      %p60 = scmp.eq.s32.totalorder %s20, 0
      %p61 = por %p59, %p60
      %p62 = scmp.ne.s32.totalorder %s54, %s56
      %p63 = scmp.eq.s32.totalorder %s25, 1
      %p64 = por %p62, %p63
      %p65 = scmp.ne.s32.totalorder %s56, %s57
      %p66 = scmp.eq.s32.totalorder %s25, 0
      %p67 = por %p65, %p66
      %p68 = scmp.ne.s32.totalorder %s56, %s57
      %p69 = scmp.eq.s32.totalorder %s26, 1
      %p70 = por %p68, %p69
      %p72 = scmp.ne.s32.totalorder %s57, %s71
      %p73 = scmp.eq.s32.totalorder %s26, 0
      %p74 = por %p72, %p73
      %s76 = sadd.s32 %s75, 1
      %p79 = scmp.eq.s32.totalorder %s20, 1
      %p80 = scmp.ne.s32.totalorder %s75, %s77
      %p81 = scmp.eq.s32.totalorder %s20, 0
      %p82 = por %p80, %p81
      %p83 = scmp.ne.s32.totalorder %s75, %s77
      %p84 = scmp.eq.s32.totalorder %s25, 1
      %p85 = por %p83, %p84
      %p86 = scmp.ne.s32.totalorder %s77, %s78
      %p87 = scmp.eq.s32.totalorder %s25, 0
      %p88 = por %p86, %p87
      %p89 = scmp.ne.s32.totalorder %s77, %s78
      %p90 = scmp.eq.s32.totalorder %s26, 1
      %p91 = por %p89, %p90
      %p93 = scmp.ne.s32.totalorder %s78, %s92
      %p94 = scmp.eq.s32.totalorder %s26, 0
      %p95 = por %p93, %p94
      %s97 = sadd.s32 %s96, 1
      %p100 = scmp.eq.s32.totalorder %s20, 1
      %p101 = scmp.ne.s32.totalorder %s96, %s98
      %p102 = scmp.eq.s32.totalorder %s20, 0
      %p103 = por %p101, %p102
      %p104 = scmp.ne.s32.totalorder %s96, %s98
      %p105 = scmp.eq.s32.totalorder %s25, 1
      %p106 = por %p104, %p105
      %p107 = scmp.ne.s32.totalorder %s98, %s99
      %p108 = scmp.eq.s32.totalorder %s25, 0
      %p109 = por %p107, %p108
      %p110 = scmp.ne.s32.totalorder %s98, %s99
      %p111 = scmp.eq.s32.totalorder %s26, 1
      %p112 = por %p110, %p111
      %p114 = scmp.ne.s32.totalorder %s99, %s113
      %p115 = scmp.eq.s32.totalorder %s26, 0
      %p116 = por %p114, %p115
      %s118 = sadd.s32 %s117, 1
      %p121 = scmp.eq.s32.totalorder %s20, 1
      %p122 = scmp.ne.s32.totalorder %s117, %s119
      %p123 = scmp.eq.s32.totalorder %s20, 0
      %p124 = por %p122, %p123
      %p125 = scmp.ne.s32.totalorder %s117, %s119
      %p126 = scmp.eq.s32.totalorder %s25, 1
      %p127 = por %p125, %p126
      %p128 = scmp.ne.s32.totalorder %s119, %s120
      %p129 = scmp.eq.s32.totalorder %s25, 0
      %p130 = por %p128, %p129
      %p131 = scmp.ne.s32.totalorder %s119, %s120
      %p132 = scmp.eq.s32.totalorder %s26, 1
      %p133 = por %p131, %p132
      %p135 = scmp.ne.s32.totalorder %s120, %s134
      %p136 = scmp.eq.s32.totalorder %s26, 0
      %p137 = por %p135, %p136
      %s139 = sadd.s32 %s138, 1
      %p142 = scmp.eq.s32.totalorder %s20, 1
      %p143 = scmp.ne.s32.totalorder %s138, %s140
      %p144 = scmp.eq.s32.totalorder %s20, 0
      %p145 = por %p143, %p144
      %p146 = scmp.ne.s32.totalorder %s138, %s140
      %p147 = scmp.eq.s32.totalorder %s25, 1
      %p148 = por %p146, %p147
      %p149 = scmp.ne.s32.totalorder %s140, %s141
      %p150 = scmp.eq.s32.totalorder %s25, 0
      %p151 = por %p149, %p150
      %p152 = scmp.ne.s32.totalorder %s140, %s141
      %p153 = scmp.eq.s32.totalorder %s26, 1
      %p154 = por %p152, %p153
      %p156 = scmp.ne.s32.totalorder %s141, %s155
      %p157 = scmp.eq.s32.totalorder %s26, 0
      %p158 = por %p156, %p157
      %s160 = sadd.s32 %s159, 1
      %p163 = scmp.eq.s32.totalorder %s20, 1
      %p164 = scmp.ne.s32.totalorder %s159, %s161
      %p165 = scmp.eq.s32.totalorder %s20, 0
      %p166 = por %p164, %p165
      %p167 = scmp.ne.s32.totalorder %s159, %s161
      %p168 = scmp.eq.s32.totalorder %s25, 1
      %p169 = por %p167, %p168
      %p170 = scmp.ne.s32.totalorder %s161, %s162
      %p171 = scmp.eq.s32.totalorder %s25, 0
      %p172 = por %p170, %p171
      %p173 = scmp.ne.s32.totalorder %s161, %s162
      %p174 = scmp.eq.s32.totalorder %s26, 1
      %p175 = por %p173, %p174
      %p177 = scmp.ne.s32.totalorder %s162, %s176
      %p178 = scmp.eq.s32.totalorder %s26, 0
      %p179 = por %p177, %p178
      %s181 = sadd.s32 %s180, 1
      %p184 = scmp.eq.s32.totalorder %s20, 1
      %p185 = scmp.ne.s32.totalorder %s180, %s182
      %p186 = scmp.eq.s32.totalorder %s20, 0
      %p187 = por %p185, %p186
      %p188 = scmp.ne.s32.totalorder %s180, %s182
      %p189 = scmp.eq.s32.totalorder %s25, 1
      %p190 = por %p188, %p189
      %p191 = scmp.ne.s32.totalorder %s182, %s183
      %p192 = scmp.eq.s32.totalorder %s25, 0
      %p193 = por %p191, %p192
      %p194 = scmp.ne.s32.totalorder %s182, %s183
      %p195 = scmp.eq.s32.totalorder %s26, 1
      %p196 = por %p194, %p195
      %p198 = scmp.ne.s32.totalorder %s183, %s197
      %p199 = scmp.eq.s32.totalorder %s26, 0
      %p200 = por %p198, %p199
      %s202 = sadd.s32 %s201, 1
      %p205 = scmp.eq.s32.totalorder %s20, 1
      %p206 = scmp.ne.s32.totalorder %s201, %s203
      %p207 = scmp.eq.s32.totalorder %s20, 0
      %p208 = por %p206, %p207
      %p209 = scmp.ne.s32.totalorder %s201, %s203
      %p210 = scmp.eq.s32.totalorder %s25, 1
      %p211 = por %p209, %p210
      %p212 = scmp.ne.s32.totalorder %s203, %s204
      %p213 = scmp.eq.s32.totalorder %s25, 0
      %p214 = por %p212, %p213
      %p215 = scmp.ne.s32.totalorder %s203, %s204
      %p216 = scmp.eq.s32.totalorder %s26, 1
      %p217 = por %p215, %p216
      %p219 = scmp.ne.s32.totalorder %s204, %s218
      %p220 = scmp.eq.s32.totalorder %s26, 0
      %p221 = por %p219, %p220
      %s223 = sadd.s32 %s222, 1
      %p226 = scmp.eq.s32.totalorder %s20, 1
      %p227 = scmp.ne.s32.totalorder %s222, %s224
      %p228 = scmp.eq.s32.totalorder %s20, 0
      %p229 = por %p227, %p228
      %p230 = scmp.ne.s32.totalorder %s222, %s224
      %p231 = scmp.eq.s32.totalorder %s25, 1
      %p232 = por %p230, %p231
      %p233 = scmp.ne.s32.totalorder %s224, %s225
      %p234 = scmp.eq.s32.totalorder %s25, 0
      %p235 = por %p233, %p234
      %p236 = scmp.ne.s32.totalorder %s224, %s225
      %p237 = scmp.eq.s32.totalorder %s26, 1
      %p238 = por %p236, %p237
      %p240 = scmp.ne.s32.totalorder %s225, %s239
      %p241 = scmp.eq.s32.totalorder %s26, 0
      %p242 = por %p240, %p241
      %s244 = sadd.s32 %s243, 1
      %p247 = scmp.eq.s32.totalorder %s20, 1
      %p248 = scmp.ne.s32.totalorder %s243, %s245
      %p249 = scmp.eq.s32.totalorder %s20, 0
      %p250 = por %p248, %p249
      %p251 = scmp.ne.s32.totalorder %s243, %s245
      %p252 = scmp.eq.s32.totalorder %s25, 1
      %p253 = por %p251, %p252
      %p254 = scmp.ne.s32.totalorder %s245, %s246
      %p255 = scmp.eq.s32.totalorder %s25, 0
      %p256 = por %p254, %p255
      %p257 = scmp.ne.s32.totalorder %s245, %s246
      %p258 = scmp.eq.s32.totalorder %s26, 1
      %p259 = por %p257, %p258
      %p261 = scmp.ne.s32.totalorder %s246, %s260
      %p262 = scmp.eq.s32.totalorder %s26, 0
      %p263 = por %p261, %p262
      %s264 = ssub.s32 %s20, %s27
      %p265 = scmp.eq.s32.totalorder %s264, 0
      %s267 = sadd.s32 %s266, 1
      %s268 = scalar_select %p265, %s266, %s267
      %p271 = pneg %p265
      %p272 = scmp.eq.s32.totalorder %s20, 1
      %p273 = por %p271, %p272
      %p274 = scmp.ne.s32.totalorder %s266, %s269
      %p275 = scmp.eq.s32.totalorder %s20, 0
      %p276 = por %p274, %p275
      %p277 = scmp.ne.s32.totalorder %s266, %s269
      %p278 = scmp.eq.s32.totalorder %s25, 1
      %p279 = por %p277, %p278
      %p280 = scmp.ne.s32.totalorder %s269, %s270
      %p281 = scmp.eq.s32.totalorder %s25, 0
      %p282 = por %p280, %p281
      %p283 = scmp.ne.s32.totalorder %s269, %s270
      %p284 = scmp.eq.s32.totalorder %s26, 1
      %p285 = por %p283, %p284
      %p287 = scmp.ne.s32.totalorder %s270, %s286
      %p288 = scmp.eq.s32.totalorder %s26, 0
      %p289 = por %p287, %p288
      %p290 = scmp.le.s32.totalorder 1, %s20
      %p291 = scmp.lt.s32.totalorder %s20, 3
      %p292 = pnand %p290, %p291
      %p293 = pneg %p292
      // Predicated region
      $region9: #{brain_tumor_cnn_forward.1} parent=5 // pred_check
        _
      $region10: #{brain_tumor_cnn_forward.1} parent=5 // pred_check_branch
        %295 = sbr.rel (%p292) target = $region12
      $region11: #{brain_tumor_cnn_forward.1} parent=5 // pred_region
        %s296 = ssub.s32 %s20, 1
        // Predicated region
        $region13: #{brain_tumor_cnn_forward.1} parent=11 // pred_check
          %p297 = pneg %p67
        $region14: #{brain_tumor_cnn_forward.1} parent=11 // pred_check_branch
          %299 = sbr.rel (%p297) target = $region16
        $region15: #{brain_tumor_cnn_forward.1} parent=11 // pred_region
          _
        $region16: #{brain_tumor_cnn_forward.1} parent=11 // pred_fallthru
          _
        // Predicated region
        $region17: #{brain_tumor_cnn_forward.1} parent=11 // pred_check
          %p300 = pneg %p88
        $region18: #{brain_tumor_cnn_forward.1} parent=11 // pred_check_branch
          %302 = sbr.rel (%p300) target = $region20
        $region19: #{brain_tumor_cnn_forward.1} parent=11 // pred_region
          _
        $region20: #{brain_tumor_cnn_forward.1} parent=11 // pred_fallthru
          _
        // Predicated region
        $region21: #{brain_tumor_cnn_forward.1} parent=11 // pred_check
          %p303 = pneg %p109
        $region22: #{brain_tumor_cnn_forward.1} parent=11 // pred_check_branch
          %305 = sbr.rel (%p303) target = $region24
        $region23: #{brain_tumor_cnn_forward.1} parent=11 // pred_region
          _
        $region24: #{brain_tumor_cnn_forward.1} parent=11 // pred_fallthru
          _
        // Predicated region
        $region25: #{brain_tumor_cnn_forward.1} parent=11 // pred_check
          %p306 = pneg %p130
        $region26: #{brain_tumor_cnn_forward.1} parent=11 // pred_check_branch
          %308 = sbr.rel (%p306) target = $region28
        $region27: #{brain_tumor_cnn_forward.1} parent=11 // pred_region
          _
        $region28: #{brain_tumor_cnn_forward.1} parent=11 // pred_fallthru
          _
        // Predicated region
        $region29: #{brain_tumor_cnn_forward.1} parent=11 // pred_check
          %p309 = pneg %p151
        $region30: #{brain_tumor_cnn_forward.1} parent=11 // pred_check_branch
          %311 = sbr.rel (%p309) target = $region32
        $region31: #{brain_tumor_cnn_forward.1} parent=11 // pred_region
          _
        $region32: #{brain_tumor_cnn_forward.1} parent=11 // pred_fallthru
          _
        // Predicated region
        $region33: #{brain_tumor_cnn_forward.1} parent=11 // pred_check
          %p312 = pneg %p172
        $region34: #{brain_tumor_cnn_forward.1} parent=11 // pred_check_branch
          %314 = sbr.rel (%p312) target = $region36
        $region35: #{brain_tumor_cnn_forward.1} parent=11 // pred_region
          _
        $region36: #{brain_tumor_cnn_forward.1} parent=11 // pred_fallthru
          _
        // Predicated region
        $region37: #{brain_tumor_cnn_forward.1} parent=11 // pred_check
          %p315 = pneg %p193
        $region38: #{brain_tumor_cnn_forward.1} parent=11 // pred_check_branch
          %317 = sbr.rel (%p315) target = $region40
        $region39: #{brain_tumor_cnn_forward.1} parent=11 // pred_region
          _
        $region40: #{brain_tumor_cnn_forward.1} parent=11 // pred_fallthru
          _
        // Predicated region
        $region41: #{brain_tumor_cnn_forward.1} parent=11 // pred_check
          %p318 = pneg %p214
        $region42: #{brain_tumor_cnn_forward.1} parent=11 // pred_check_branch
          %320 = sbr.rel (%p318) target = $region44
        $region43: #{brain_tumor_cnn_forward.1} parent=11 // pred_region
          _
        $region44: #{brain_tumor_cnn_forward.1} parent=11 // pred_fallthru
          _
        // Predicated region
        $region45: #{brain_tumor_cnn_forward.1} parent=11 // pred_check
          %p321 = pneg %p235
        $region46: #{brain_tumor_cnn_forward.1} parent=11 // pred_check_branch
          %323 = sbr.rel (%p321) target = $region48
        $region47: #{brain_tumor_cnn_forward.1} parent=11 // pred_region
          _
        $region48: #{brain_tumor_cnn_forward.1} parent=11 // pred_fallthru
          _
        // Predicated region
        $region49: #{brain_tumor_cnn_forward.1} parent=11 // pred_check
          %p324 = pneg %p256
        $region50: #{brain_tumor_cnn_forward.1} parent=11 // pred_check_branch
          %326 = sbr.rel (%p324) target = $region52
        $region51: #{brain_tumor_cnn_forward.1} parent=11 // pred_region
          _
        $region52: #{brain_tumor_cnn_forward.1} parent=11 // pred_fallthru
          _
      $region12: #{brain_tumor_cnn_forward.1} parent=5 // pred_fallthru
        _
      %p327 = scmp.lt.s32.totalorder %s20, 2
      // Predicated region
      $region53: #{brain_tumor_cnn_forward.1} parent=5 // pred_check
        %p328 = pneg %p327
      $region54: #{brain_tumor_cnn_forward.1} parent=5 // pred_check_branch
        %330 = sbr.rel (%p328) target = $region56
      $region55: #{brain_tumor_cnn_forward.1} parent=5 // pred_region
        // Predicated region
        $region57: #{brain_tumor_cnn_forward.1} parent=55 // pred_check
          %p331 = pneg %p40
        $region58: #{brain_tumor_cnn_forward.1} parent=55 // pred_check_branch
          %333 = sbr.rel (%p331) target = $region60
        $region59: #{brain_tumor_cnn_forward.1} parent=55 // pred_region
          %p334 = scmp.lt.s32.totalorder %s20, 1
          %s335 = scalar_select %p334, %s20, 1
          %s336 = smul.addr %s335, 12
          %s337 = smul.addr %s336, 4
          %s338 = scalar_lea.vmem %s0, %s337
        $region60: #{brain_tumor_cnn_forward.1} parent=55 // pred_fallthru
          _
      $region56: #{brain_tumor_cnn_forward.1} parent=5 // pred_fallthru
        _
      %p339 = scmp.le.s32.totalorder 1, %s20
      %p340 = scmp.lt.s32.totalorder %s20, 3
      %p341 = pnand %p339, %p340
      %p342 = pneg %p341
      // Predicated region
      $region61: #{brain_tumor_cnn_forward.1} parent=5 // pred_check
        _
      $region62: #{brain_tumor_cnn_forward.1} parent=5 // pred_check_branch
        %344 = sbr.rel (%p341) target = $region64
      $region63: #{brain_tumor_cnn_forward.1} parent=5 // pred_region
        %s345 = ssub.s32 %s20, 1
        %p346 = scmp.lt.s32.totalorder %s25, 1
        %s347 = scalar_select %p346, %s25, 1
        %s348 = smul.addr %s347, 12
        %s349 = smul.addr %s348, 4
        %s350 = scalar_lea.vmem %s0, %s349
        %p351 = pneg %p46
        %p352 = pneg %p43
        %p353 = pneg %p67
        %p354 = pneg %p64
        %p355 = pneg %p88
        %p356 = pneg %p85
        %p357 = pneg %p109
        %p358 = pneg %p106
        %p359 = pneg %p130
        %p360 = pneg %p127
        %p361 = pneg %p151
        %p362 = pneg %p148
        %p363 = pneg %p172
        %p364 = pneg %p169
        %p365 = pneg %p193
        %p366 = pneg %p190
        %p367 = pneg %p214
        %p368 = pneg %p211
        %p369 = pneg %p235
        %p370 = pneg %p232
        %p371 = pneg %p256
        %p372 = pneg %p253
        %p373 = pneg %p282
        %p374 = pneg %p279
        %s375 = sand.u32 %s269, 1
        %s376 = scalar_lea.sflag [#allocation3], %s375
        %s377 = sand.u32 %s269, 1
        %s378 = scalar_lea.vmem [#allocation2], %s377
        %p379 = scmp.lt.s32.totalorder %s25, 1
        %s380 = scalar_select %p379, %s25, 1
        %s381 = smul.addr %s380, 12
        %s382 = smul.addr %s381, 4
        %s383 = scalar_lea.vmem %s0, %s382
        %v385 = vld [vmem:[%s383] sm:$0xff]
        %v386 = vld [vmem:[%s383 + $0x8] sm:$0xff]
        %v387 = vld [vmem:[%s383 + $0x10] sm:$0xff]
        %v388 = vld [vmem:[%s383 + $0x18] sm:$0xff]
        %v389 = vld [vmem:[%s383 + $0x20] sm:$0xff]
        %v390 = vld [vmem:[%s383 + $0x28] sm:$0xff]
        %v391 = vld [vmem:[%s1] sm:$0xf]
        %v398 = vunpack.c.l.b16 %v385
        %v399 = vunpack.c.h.b16 %v385
        %v400 = vunpack.c.l.b16 %v386
        %v401 = vunpack.c.h.b16 %v386
        %v402 = vunpack.c.l.b16 %v387
        %v403 = vunpack.c.h.b16 %v387
        %v404 = vunpack.c.l.b16 %v388
        %v405 = vunpack.c.h.b16 %v388
        %v406 = vunpack.c.l.b16 %v389
        %v407 = vunpack.c.h.b16 %v389
        %v408 = vunpack.c.l.b16 %v390
        %v409 = vunpack.c.h.b16 %v390
        %v410 = vpack.c.b16 %v400, %v398
        %v411 = vpack.c.b16 %v401, %v399
        %v412 = vpack.c.b16 %v404, %v402
        %v413 = vpack.c.b16 %v405, %v403
        %v414 = vpack.c.b16 %v408, %v406
        %v415 = vpack.c.b16 %v409, %v407
        %vm422 = vcmask 392192
        %v424 = vsel %vm422, %v391, 0
        %426 = vmatprep.subr.bf16.mxu0 %v411
        %427 = vmatpush1.bf16.msra.mxu0 %v410
        %428 = vmatprep.subr.bf16.mxu0 %v413
        %429 = vmatpush1.bf16.msra.mxu0 %v412
        %430 = vmatprep.subr.bf16.mxu0 %v415
        %431 = vmatpush1.bf16.msra.mxu0 %v414
        %432 = vmatprep.subr.bf16.mxu0 0
        %433 = vmatpush1.bf16.msra.mxu0 0
        %434 = vmatprep.subr.bf16.mxu0 0
        %435 = vmatpush1.bf16.msra.mxu0 0
        %436 = vmatprep.subr.bf16.mxu0 0
        %437 = vmatpush1.bf16.msra.mxu0 0
        %438 = vmatprep.subr.bf16.mxu0 0
        %439 = vmatpush1.bf16.msra.mxu0 0
        %440 = vmatprep.subr.bf16.mxu0 0
        %441 = vmatpush1.bf16.msra.mxu0 0
        %442 = vmatprep.subr.bf16.mxu0 0
        %443 = vmatpush1.bf16.msra.mxu0 0
        %444 = vmatprep.subr.bf16.mxu0 0
        %445 = vmatpush1.bf16.msra.mxu0 0
        %446 = vmatprep.subr.bf16.mxu0 0
        %447 = vmatpush1.bf16.msra.mxu0 0
        %448 = vmatprep.subr.bf16.mxu0 0
        %449 = vmatpush1.bf16.msra.mxu0 0
        %450 = vmatprep.subr.bf16.mxu0 0
        %451 = vmatpush1.bf16.msra.mxu0 0
        %452 = vmatprep.subr.bf16.mxu0 0
        %453 = vmatpush1.bf16.msra.mxu0 0
        %454 = vmatprep.subr.bf16.mxu0 0
        %455 = vmatpush1.bf16.msra.mxu0 0
        %456 = vmatprep.subr.bf16.mxu0 0
        %457 = vmatpush1.bf16.msra.mxu0 0
        %458 = vmatprep.mubr.bf16.mxu0 0
        %459 = vmatmul.mubr.bf16.gmra.mrb[0].mxu0 %v424
        %v460 = vpop.f32.mrb[0].mxu0
        %v461 = vadd.f32 0.0, %v460
        %v462 = vpop.f32.mrb[0].mxu0
        %v463 = vadd.f32 0.0, %v462
        %v464 = vpop.f32.mrb[0].mxu0
        %v465 = vpop.f32.mrb[0].mxu0
        %466 = vdwg.mxu0
        %v467 = vpack.c.bf16 %v461, %v461
        %v468 = vpack.c.bf16 %v463, %v463
        %s469 = scalar_lea.vmem %s1, 4
        %v470 = vld [vmem:[%s469] sm:$0xf]
        %v472 = vsel %vm422, %v470, 0
        %474 = vmatprep.subr.bf16.mxu0 %v411
        %475 = vmatpush1.bf16.msra.mxu0 %v410
        %476 = vmatprep.subr.bf16.mxu0 %v413
        %477 = vmatpush1.bf16.msra.mxu0 %v412
        %478 = vmatprep.subr.bf16.mxu0 %v415
        %479 = vmatpush1.bf16.msra.mxu0 %v414
        %480 = vmatprep.subr.bf16.mxu0 0
        %481 = vmatpush1.bf16.msra.mxu0 0
        %482 = vmatprep.subr.bf16.mxu0 0
        %483 = vmatpush1.bf16.msra.mxu0 0
        %484 = vmatprep.subr.bf16.mxu0 0
        %485 = vmatpush1.bf16.msra.mxu0 0
        %486 = vmatprep.subr.bf16.mxu0 0
        %487 = vmatpush1.bf16.msra.mxu0 0
        %488 = vmatprep.subr.bf16.mxu0 0
        %489 = vmatpush1.bf16.msra.mxu0 0
        %490 = vmatprep.subr.bf16.mxu0 0
        %491 = vmatpush1.bf16.msra.mxu0 0
        %492 = vmatprep.subr.bf16.mxu0 0
        %493 = vmatpush1.bf16.msra.mxu0 0
        %494 = vmatprep.subr.bf16.mxu0 0
        %495 = vmatpush1.bf16.msra.mxu0 0
        %496 = vmatprep.subr.bf16.mxu0 0
        %497 = vmatpush1.bf16.msra.mxu0 0
        %498 = vmatprep.subr.bf16.mxu0 0
        %499 = vmatpush1.bf16.msra.mxu0 0
        %500 = vmatprep.subr.bf16.mxu0 0
        %501 = vmatpush1.bf16.msra.mxu0 0
        %502 = vmatprep.subr.bf16.mxu0 0
        %503 = vmatpush1.bf16.msra.mxu0 0
        %504 = vmatprep.subr.bf16.mxu0 0
        %505 = vmatpush1.bf16.msra.mxu0 0
        %506 = vmatprep.mubr.bf16.mxu0 0
        %507 = vmatmul.mubr.bf16.gmra.mrb[0].mxu0 %v472
        %v508 = vpop.f32.mrb[0].mxu0
        %v509 = vadd.f32 0.0, %v508
        %v510 = vpop.f32.mrb[0].mxu0
        %v511 = vadd.f32 0.0, %v510
        %v512 = vpop.f32.mrb[0].mxu0
        %v513 = vpop.f32.mrb[0].mxu0
        %514 = vdwg.mxu0
        %v515 = vpack.c.bf16 %v509, %v509
        %v516 = vpack.c.bf16 %v511, %v511
        %s517 = scalar_lea.vmem %s1, 8
        %v518 = vld [vmem:[%s517] sm:$0xf]
        %v520 = vsel %vm422, %v518, 0
        %522 = vmatprep.subr.bf16.mxu0 %v411
        %523 = vmatpush1.bf16.msra.mxu0 %v410
        %524 = vmatprep.subr.bf16.mxu0 %v413
        %525 = vmatpush1.bf16.msra.mxu0 %v412
        %526 = vmatprep.subr.bf16.mxu0 %v415
        %527 = vmatpush1.bf16.msra.mxu0 %v414
        %528 = vmatprep.subr.bf16.mxu0 0
        %529 = vmatpush1.bf16.msra.mxu0 0
        %530 = vmatprep.subr.bf16.mxu0 0
        %531 = vmatpush1.bf16.msra.mxu0 0
        %532 = vmatprep.subr.bf16.mxu0 0
        %533 = vmatpush1.bf16.msra.mxu0 0
        %534 = vmatprep.subr.bf16.mxu0 0
        %535 = vmatpush1.bf16.msra.mxu0 0
        %536 = vmatprep.subr.bf16.mxu0 0
        %537 = vmatpush1.bf16.msra.mxu0 0
        %538 = vmatprep.subr.bf16.mxu0 0
        %539 = vmatpush1.bf16.msra.mxu0 0
        %540 = vmatprep.subr.bf16.mxu0 0
        %541 = vmatpush1.bf16.msra.mxu0 0
        %542 = vmatprep.subr.bf16.mxu0 0
        %543 = vmatpush1.bf16.msra.mxu0 0
        %544 = vmatprep.subr.bf16.mxu0 0
        %545 = vmatpush1.bf16.msra.mxu0 0
        %546 = vmatprep.subr.bf16.mxu0 0
        %547 = vmatpush1.bf16.msra.mxu0 0
        %548 = vmatprep.subr.bf16.mxu0 0
        %549 = vmatpush1.bf16.msra.mxu0 0
        %550 = vmatprep.subr.bf16.mxu0 0
        %551 = vmatpush1.bf16.msra.mxu0 0
        %552 = vmatprep.subr.bf16.mxu0 0
        %553 = vmatpush1.bf16.msra.mxu0 0
        %554 = vmatprep.mubr.bf16.mxu0 0
        %555 = vmatmul.mubr.bf16.gmra.mrb[0].mxu0 %v520
        %v556 = vpop.f32.mrb[0].mxu0
        %v557 = vadd.f32 0.0, %v556
        %v558 = vpop.f32.mrb[0].mxu0
        %v559 = vadd.f32 0.0, %v558
        %v560 = vpop.f32.mrb[0].mxu0
        %v561 = vpop.f32.mrb[0].mxu0
        %562 = vdwg.mxu0
        %v563 = vpack.c.bf16 %v557, %v557
        %v564 = vpack.c.bf16 %v559, %v559
        %v565 = vld [vmem:[%s2] sm:$0xff]
        %v566 = vld [vmem:[%s2 + $0x8] sm:$0xff]
        %v567 = vld [vmem:[%s2 + $0x10] sm:$0xff]
        %v568 = vld [vmem:[%s2 + $0x18] sm:$0xff]
        %v569 = vld [vmem:[%s2 + $0x20] sm:$0xff]
        %v570 = vld [vmem:[%s2 + $0x28] sm:$0xff]
        %v571 = vld [vmem:[%s2 + $0x30] sm:$0xff]
        %v572 = vld [vmem:[%s2 + $0x38] sm:$0xff]
        %v573 = vld [vmem:[%s2 + $0x40] sm:$0xff]
        %v574 = vld [vmem:[%s2 + $0x48] sm:$0xff]
        %v575 = vld [vmem:[%s2 + $0x50] sm:$0xff]
        %v576 = vld [vmem:[%s2 + $0x58] sm:$0xff]
        %v577 = vld [vmem:[%s2 + $0x60] sm:$0xff]
        %v578 = vld [vmem:[%s2 + $0x68] sm:$0xff]
        %v579 = vld [vmem:[%s2 + $0x70] sm:$0xff]
        %v580 = vld [vmem:[%s2 + $0x78] sm:$0xff]
        %v581 = vld [vmem:[%s2 + $0x80] sm:$0xff]
        %v582 = vld [vmem:[%s2 + $0x88] sm:$0xff]
        %s583 = scalar_lea.vmem %s2, 432
        %v584 = vld [vmem:[%s583] sm:$0xff]
        %v585 = vld [vmem:[%s583 + $0x8] sm:$0xff]
        %v586 = vld [vmem:[%s583 + $0x10] sm:$0xff]
        %v587 = vld [vmem:[%s583 + $0x18] sm:$0xff]
        %v588 = vld [vmem:[%s583 + $0x20] sm:$0xff]
        %v589 = vld [vmem:[%s583 + $0x28] sm:$0xff]
        %v590 = vld [vmem:[%s583 + $0x30] sm:$0xff]
        %v591 = vld [vmem:[%s583 + $0x38] sm:$0xff]
        %v592 = vld [vmem:[%s583 + $0x40] sm:$0xff]
        %v593 = vld [vmem:[%s583 + $0x48] sm:$0xff]
        %v594 = vld [vmem:[%s583 + $0x50] sm:$0xff]
        %v595 = vld [vmem:[%s583 + $0x58] sm:$0xff]
        %v596 = vld [vmem:[%s583 + $0x60] sm:$0xff]
        %v597 = vld [vmem:[%s583 + $0x68] sm:$0xff]
        %v598 = vld [vmem:[%s583 + $0x70] sm:$0xff]
        %v599 = vld [vmem:[%s583 + $0x78] sm:$0xff]
        %v600 = vld [vmem:[%s583 + $0x80] sm:$0xff]
        %v601 = vld [vmem:[%s583 + $0x88] sm:$0xff]
        %v620 = vunpack.c.l.b16 %v584
        %v621 = vunpack.c.h.b16 %v584
        %v622 = vunpack.c.l.b16 %v585
        %v623 = vunpack.c.h.b16 %v585
        %v624 = vunpack.c.l.b16 %v586
        %v625 = vunpack.c.h.b16 %v586
        %v626 = vunpack.c.l.b16 %v587
        %v627 = vunpack.c.h.b16 %v587
        %v628 = vunpack.c.l.b16 %v588
        %v629 = vunpack.c.h.b16 %v588
        %v630 = vunpack.c.l.b16 %v589
        %v631 = vunpack.c.h.b16 %v589
        %v632 = vunpack.c.l.b16 %v590
        %v633 = vunpack.c.h.b16 %v590
        %v634 = vunpack.c.l.b16 %v591
        %v635 = vunpack.c.h.b16 %v591
        %v636 = vunpack.c.l.b16 %v592
        %v637 = vunpack.c.h.b16 %v592
        %v638 = vunpack.c.l.b16 %v593
        %v639 = vunpack.c.h.b16 %v593
        %v640 = vunpack.c.l.b16 %v594
        %v641 = vunpack.c.h.b16 %v594
        %v642 = vunpack.c.l.b16 %v595
        %v643 = vunpack.c.h.b16 %v595
        %v644 = vunpack.c.l.b16 %v596
        %v645 = vunpack.c.h.b16 %v596
        %v646 = vunpack.c.l.b16 %v597
        %v647 = vunpack.c.h.b16 %v597
        %v648 = vunpack.c.l.b16 %v598
        %v649 = vunpack.c.h.b16 %v598
        %v650 = vunpack.c.l.b16 %v599
        %v651 = vunpack.c.h.b16 %v599
        %v652 = vunpack.c.l.b16 %v600
        %v653 = vunpack.c.h.b16 %v600
        %v654 = vunpack.c.l.b16 %v601
        %v655 = vunpack.c.h.b16 %v601
        %v656 = vpack.c.b16 %v622, %v620
        %v657 = vpack.c.b16 %v623, %v621
        %v658 = vpack.c.b16 %v626, %v624
        %v659 = vpack.c.b16 %v627, %v625
        %v660 = vpack.c.b16 %v630, %v628
        %v661 = vpack.c.b16 %v631, %v629
        %v662 = vpack.c.b16 %v634, %v632
        %v663 = vpack.c.b16 %v635, %v633
        %v664 = vpack.c.b16 %v638, %v636
        %v665 = vpack.c.b16 %v639, %v637
        %v666 = vpack.c.b16 %v642, %v640
        %v667 = vpack.c.b16 %v643, %v641
        %v668 = vpack.c.b16 %v646, %v644
        %v669 = vpack.c.b16 %v647, %v645
        %v670 = vpack.c.b16 %v650, %v648
        %v671 = vpack.c.b16 %v651, %v649
        %v672 = vpack.c.b16 %v654, %v652
        %v673 = vpack.c.b16 %v655, %v653
        %vm692 = vcmask 130048
        %v694 = vsel %vm692, %v516, 0
        %696 = vmatprep.subr.bf16.mxu0 %v657
        %697 = vmatpush1.bf16.msra.mxu0 %v656
        %698 = vmatprep.subr.bf16.mxu0 %v659
        %699 = vmatpush1.bf16.msra.mxu0 %v658
        %700 = vmatprep.subr.bf16.mxu0 %v661
        %701 = vmatpush1.bf16.msra.mxu0 %v660
        %702 = vmatprep.subr.bf16.mxu0 %v663
        %703 = vmatpush1.bf16.msra.mxu0 %v662
        %704 = vmatprep.subr.bf16.mxu0 %v665
        %705 = vmatpush1.bf16.msra.mxu0 %v664
        %706 = vmatprep.subr.bf16.mxu0 %v667
        %707 = vmatpush1.bf16.msra.mxu0 %v666
        %708 = vmatprep.subr.bf16.mxu0 %v669
        %709 = vmatpush1.bf16.msra.mxu0 %v668
        %710 = vmatprep.subr.bf16.mxu0 %v671
        %711 = vmatpush1.bf16.msra.mxu0 %v670
        %712 = vmatprep.subr.bf16.mxu0 %v673
        %713 = vmatpush1.bf16.msra.mxu0 %v672
        %714 = vmatprep.subr.bf16.mxu0 0
        %715 = vmatpush1.bf16.msra.mxu0 0
        %716 = vmatprep.subr.bf16.mxu0 0
        %717 = vmatpush1.bf16.msra.mxu0 0
        %718 = vmatprep.subr.bf16.mxu0 0
        %719 = vmatpush1.bf16.msra.mxu0 0
        %720 = vmatprep.subr.bf16.mxu0 0
        %721 = vmatpush1.bf16.msra.mxu0 0
        %722 = vmatprep.subr.bf16.mxu0 0
        %723 = vmatpush1.bf16.msra.mxu0 0
        %724 = vmatprep.subr.bf16.mxu0 0
        %725 = vmatpush1.bf16.msra.mxu0 0
        %726 = vmatprep.subr.bf16.mxu0 0
        %727 = vmatpush1.bf16.msra.mxu0 0
        %728 = vmatprep.mubr.bf16.mxu0 %v694
        %729 = vmatmul.mubr.bf16.gmra.mrb[0].mxu0 %v515
        %v730 = vpop.f32.mrb[0].mxu0
        %v731 = vadd.f32 0.0, %v730
        %v732 = vpop.f32.mrb[0].mxu0
        %v733 = vadd.f32 0.0, %v732
        %v734 = vpop.f32.mrb[0].mxu0
        %v735 = vpop.f32.mrb[0].mxu0
        %736 = vdwg.mxu0
        %v755 = vunpack.c.l.b16 %v565
        %v756 = vunpack.c.h.b16 %v565
        %v757 = vunpack.c.l.b16 %v566
        %v758 = vunpack.c.h.b16 %v566
        %v759 = vunpack.c.l.b16 %v567
        %v760 = vunpack.c.h.b16 %v567
        %v761 = vunpack.c.l.b16 %v568
        %v762 = vunpack.c.h.b16 %v568
        %v763 = vunpack.c.l.b16 %v569
        %v764 = vunpack.c.h.b16 %v569
        %v765 = vunpack.c.l.b16 %v570
        %v766 = vunpack.c.h.b16 %v570
        %v767 = vunpack.c.l.b16 %v571
        %v768 = vunpack.c.h.b16 %v571
        %v769 = vunpack.c.l.b16 %v572
        %v770 = vunpack.c.h.b16 %v572
        %v771 = vunpack.c.l.b16 %v573
        %v772 = vunpack.c.h.b16 %v573
        %v773 = vunpack.c.l.b16 %v574
        %v774 = vunpack.c.h.b16 %v574
        %v775 = vunpack.c.l.b16 %v575
        %v776 = vunpack.c.h.b16 %v575
        %v777 = vunpack.c.l.b16 %v576
        %v778 = vunpack.c.h.b16 %v576
        %v779 = vunpack.c.l.b16 %v577
        %v780 = vunpack.c.h.b16 %v577
        %v781 = vunpack.c.l.b16 %v578
        %v782 = vunpack.c.h.b16 %v578
        %v783 = vunpack.c.l.b16 %v579
        %v784 = vunpack.c.h.b16 %v579
        %v785 = vunpack.c.l.b16 %v580
        %v786 = vunpack.c.h.b16 %v580
        %v787 = vunpack.c.l.b16 %v581
        %v788 = vunpack.c.h.b16 %v581
        %v789 = vunpack.c.l.b16 %v582
        %v790 = vunpack.c.h.b16 %v582
        %v791 = vpack.c.b16 %v757, %v755
        %v792 = vpack.c.b16 %v758, %v756
        %v793 = vpack.c.b16 %v761, %v759
        %v794 = vpack.c.b16 %v762, %v760
        %v795 = vpack.c.b16 %v765, %v763
        %v796 = vpack.c.b16 %v766, %v764
        %v797 = vpack.c.b16 %v769, %v767
        %v798 = vpack.c.b16 %v770, %v768
        %v799 = vpack.c.b16 %v773, %v771
        %v800 = vpack.c.b16 %v774, %v772
        %v801 = vpack.c.b16 %v777, %v775
        %v802 = vpack.c.b16 %v778, %v776
        %v803 = vpack.c.b16 %v781, %v779
        %v804 = vpack.c.b16 %v782, %v780
        %v805 = vpack.c.b16 %v785, %v783
        %v806 = vpack.c.b16 %v786, %v784
        %v807 = vpack.c.b16 %v789, %v787
        %v808 = vpack.c.b16 %v790, %v788
        %v828 = vsel %vm692, %v468, 0
        %830 = vmatprep.subr.bf16.mxu0 %v792
        %831 = vmatpush1.bf16.msra.mxu0 %v791
        %832 = vmatprep.subr.bf16.mxu0 %v794
        %833 = vmatpush1.bf16.msra.mxu0 %v793
        %834 = vmatprep.subr.bf16.mxu0 %v796
        %835 = vmatpush1.bf16.msra.mxu0 %v795
        %836 = vmatprep.subr.bf16.mxu0 %v798
        %837 = vmatpush1.bf16.msra.mxu0 %v797
        %838 = vmatprep.subr.bf16.mxu0 %v800
        %839 = vmatpush1.bf16.msra.mxu0 %v799
        %840 = vmatprep.subr.bf16.mxu0 %v802
        %841 = vmatpush1.bf16.msra.mxu0 %v801
        %842 = vmatprep.subr.bf16.mxu0 %v804
        %843 = vmatpush1.bf16.msra.mxu0 %v803
        %844 = vmatprep.subr.bf16.mxu0 %v806
        %845 = vmatpush1.bf16.msra.mxu0 %v805
        %846 = vmatprep.subr.bf16.mxu0 %v808
        %847 = vmatpush1.bf16.msra.mxu0 %v807
        %848 = vmatprep.subr.bf16.mxu0 0
        %849 = vmatpush1.bf16.msra.mxu0 0
        %850 = vmatprep.subr.bf16.mxu0 0
        %851 = vmatpush1.bf16.msra.mxu0 0
        %852 = vmatprep.subr.bf16.mxu0 0
        %853 = vmatpush1.bf16.msra.mxu0 0
        %854 = vmatprep.subr.bf16.mxu0 0
        %855 = vmatpush1.bf16.msra.mxu0 0
        %856 = vmatprep.subr.bf16.mxu0 0
        %857 = vmatpush1.bf16.msra.mxu0 0
        %858 = vmatprep.subr.bf16.mxu0 0
        %859 = vmatpush1.bf16.msra.mxu0 0
        %860 = vmatprep.subr.bf16.mxu0 0
        %861 = vmatpush1.bf16.msra.mxu0 0
        %862 = vmatprep.mubr.bf16.mxu0 %v828
        %863 = vmatmul.mubr.bf16.gmra.mrb[0].mxu0 %v467
        %v864 = vpop.f32.mrb[0].mxu0
        %v865 = vadd.f32 %v731, %v864
        %v866 = vpop.f32.mrb[0].mxu0
        %v867 = vadd.f32 %v733, %v866
        %v868 = vpop.f32.mrb[0].mxu0
        %v869 = vpop.f32.mrb[0].mxu0
        %870 = vdwg.mxu0
        %s871 = scalar_lea.vmem %s2, 864
        %v872 = vld [vmem:[%s871] sm:$0xff]
        %v873 = vld [vmem:[%s871 + $0x8] sm:$0xff]
        %v874 = vld [vmem:[%s871 + $0x10] sm:$0xff]
        %v875 = vld [vmem:[%s871 + $0x18] sm:$0xff]
        %v876 = vld [vmem:[%s871 + $0x20] sm:$0xff]
        %v877 = vld [vmem:[%s871 + $0x28] sm:$0xff]
        %v878 = vld [vmem:[%s871 + $0x30] sm:$0xff]
        %v879 = vld [vmem:[%s871 + $0x38] sm:$0xff]
        %v880 = vld [vmem:[%s871 + $0x40] sm:$0xff]
        %v881 = vld [vmem:[%s871 + $0x48] sm:$0xff]
        %v882 = vld [vmem:[%s871 + $0x50] sm:$0xff]
        %v883 = vld [vmem:[%s871 + $0x58] sm:$0xff]
        %v884 = vld [vmem:[%s871 + $0x60] sm:$0xff]
        %v885 = vld [vmem:[%s871 + $0x68] sm:$0xff]
        %v886 = vld [vmem:[%s871 + $0x70] sm:$0xff]
        %v887 = vld [vmem:[%s871 + $0x78] sm:$0xff]
        %v888 = vld [vmem:[%s871 + $0x80] sm:$0xff]
        %v889 = vld [vmem:[%s871 + $0x88] sm:$0xff]
        %v908 = vunpack.c.l.b16 %v872
        %v909 = vunpack.c.h.b16 %v872
        %v910 = vunpack.c.l.b16 %v873
        %v911 = vunpack.c.h.b16 %v873
        %v912 = vunpack.c.l.b16 %v874
        %v913 = vunpack.c.h.b16 %v874
        %v914 = vunpack.c.l.b16 %v875
        %v915 = vunpack.c.h.b16 %v875
        %v916 = vunpack.c.l.b16 %v876
        %v917 = vunpack.c.h.b16 %v876
        %v918 = vunpack.c.l.b16 %v877
        %v919 = vunpack.c.h.b16 %v877
        %v920 = vunpack.c.l.b16 %v878
        %v921 = vunpack.c.h.b16 %v878
        %v922 = vunpack.c.l.b16 %v879
        %v923 = vunpack.c.h.b16 %v879
        %v924 = vunpack.c.l.b16 %v880
        %v925 = vunpack.c.h.b16 %v880
        %v926 = vunpack.c.l.b16 %v881
        %v927 = vunpack.c.h.b16 %v881
        %v928 = vunpack.c.l.b16 %v882
        %v929 = vunpack.c.h.b16 %v882
        %v930 = vunpack.c.l.b16 %v883
        %v931 = vunpack.c.h.b16 %v883
        %v932 = vunpack.c.l.b16 %v884
        %v933 = vunpack.c.h.b16 %v884
        %v934 = vunpack.c.l.b16 %v885
        %v935 = vunpack.c.h.b16 %v885
        %v936 = vunpack.c.l.b16 %v886
        %v937 = vunpack.c.h.b16 %v886
        %v938 = vunpack.c.l.b16 %v887
        %v939 = vunpack.c.h.b16 %v887
        %v940 = vunpack.c.l.b16 %v888
        %v941 = vunpack.c.h.b16 %v888
        %v942 = vunpack.c.l.b16 %v889
        %v943 = vunpack.c.h.b16 %v889
        %v944 = vpack.c.b16 %v910, %v908
        %v945 = vpack.c.b16 %v911, %v909
        %v946 = vpack.c.b16 %v914, %v912
        %v947 = vpack.c.b16 %v915, %v913
        %v948 = vpack.c.b16 %v918, %v916
        %v949 = vpack.c.b16 %v919, %v917
        %v950 = vpack.c.b16 %v922, %v920
        %v951 = vpack.c.b16 %v923, %v921
        %v952 = vpack.c.b16 %v926, %v924
        %v953 = vpack.c.b16 %v927, %v925
        %v954 = vpack.c.b16 %v930, %v928
        %v955 = vpack.c.b16 %v931, %v929
        %v956 = vpack.c.b16 %v934, %v932
        %v957 = vpack.c.b16 %v935, %v933
        %v958 = vpack.c.b16 %v938, %v936
        %v959 = vpack.c.b16 %v939, %v937
        %v960 = vpack.c.b16 %v942, %v940
        %v961 = vpack.c.b16 %v943, %v941
        %v981 = vsel %vm692, %v564, 0
        %983 = vmatprep.subr.bf16.mxu0 %v945
        %984 = vmatpush1.bf16.msra.mxu0 %v944
        %985 = vmatprep.subr.bf16.mxu0 %v947
        %986 = vmatpush1.bf16.msra.mxu0 %v946
        %987 = vmatprep.subr.bf16.mxu0 %v949
        %988 = vmatpush1.bf16.msra.mxu0 %v948
        %989 = vmatprep.subr.bf16.mxu0 %v951
        %990 = vmatpush1.bf16.msra.mxu0 %v950
        %991 = vmatprep.subr.bf16.mxu0 %v953
        %992 = vmatpush1.bf16.msra.mxu0 %v952
        %993 = vmatprep.subr.bf16.mxu0 %v955
        %994 = vmatpush1.bf16.msra.mxu0 %v954
        %995 = vmatprep.subr.bf16.mxu0 %v957
        %996 = vmatpush1.bf16.msra.mxu0 %v956
        %997 = vmatprep.subr.bf16.mxu0 %v959
        %998 = vmatpush1.bf16.msra.mxu0 %v958
        %999 = vmatprep.subr.bf16.mxu0 %v961
        %1000 = vmatpush1.bf16.msra.mxu0 %v960
        %1001 = vmatprep.subr.bf16.mxu0 0
        %1002 = vmatpush1.bf16.msra.mxu0 0
        %1003 = vmatprep.subr.bf16.mxu0 0
        %1004 = vmatpush1.bf16.msra.mxu0 0
        %1005 = vmatprep.subr.bf16.mxu0 0
        %1006 = vmatpush1.bf16.msra.mxu0 0
        %1007 = vmatprep.subr.bf16.mxu0 0
        %1008 = vmatpush1.bf16.msra.mxu0 0
        %1009 = vmatprep.subr.bf16.mxu0 0
        %1010 = vmatpush1.bf16.msra.mxu0 0
        %1011 = vmatprep.subr.bf16.mxu0 0
        %1012 = vmatpush1.bf16.msra.mxu0 0
        %1013 = vmatprep.subr.bf16.mxu0 0
        %1014 = vmatpush1.bf16.msra.mxu0 0
        %1015 = vmatprep.mubr.bf16.mxu0 %v981
        %1016 = vmatmul.mubr.bf16.gmra.mrb[0].mxu0 %v563
        %v1017 = vpop.f32.mrb[0].mxu0
        %v1018 = vadd.f32 0.0, %v1017
        %v1019 = vpop.f32.mrb[0].mxu0
        %v1020 = vadd.f32 0.0, %v1019
        %v1021 = vpop.f32.mrb[0].mxu0
        %v1022 = vpop.f32.mrb[0].mxu0
        %1023 = vdwg.mxu0
        %v1024 = vadd.f32 %v865, %v1018
        %v1025 = vadd.f32 %v867, %v1020
        %s1026 = scalar_lea.vmem %s2, 144
        %v1027 = vld [vmem:[%s1026] sm:$0xff]
        %v1028 = vld [vmem:[%s1026 + $0x8] sm:$0xff]
        %v1029 = vld [vmem:[%s1026 + $0x10] sm:$0xff]
        %v1030 = vld [vmem:[%s1026 + $0x18] sm:$0xff]
        %v1031 = vld [vmem:[%s1026 + $0x20] sm:$0xff]
        %v1032 = vld [vmem:[%s1026 + $0x28] sm:$0xff]
        %v1033 = vld [vmem:[%s1026 + $0x30] sm:$0xff]
        %v1034 = vld [vmem:[%s1026 + $0x38] sm:$0xff]
        %v1035 = vld [vmem:[%s1026 + $0x40] sm:$0xff]
        %v1036 = vld [vmem:[%s1026 + $0x48] sm:$0xff]
        %v1037 = vld [vmem:[%s1026 + $0x50] sm:$0xff]
        %v1038 = vld [vmem:[%s1026 + $0x58] sm:$0xff]
        %v1039 = vld [vmem:[%s1026 + $0x60] sm:$0xff]
        %v1040 = vld [vmem:[%s1026 + $0x68] sm:$0xff]
        %v1041 = vld [vmem:[%s1026 + $0x70] sm:$0xff]
        %v1042 = vld [vmem:[%s1026 + $0x78] sm:$0xff]
        %v1043 = vld [vmem:[%s1026 + $0x80] sm:$0xff]
        %v1044 = vld [vmem:[%s1026 + $0x88] sm:$0xff]
        %s1045 = scalar_lea.vmem %s2, 576
        %v1046 = vld [vmem:[%s1045] sm:$0xff]
        %v1047 = vld [vmem:[%s1045 + $0x8] sm:$0xff]
        %v1048 = vld [vmem:[%s1045 + $0x10] sm:$0xff]
        %v1049 = vld [vmem:[%s1045 + $0x18] sm:$0xff]
        %v1050 = vld [vmem:[%s1045 + $0x20] sm:$0xff]
        %v1051 = vld [vmem:[%s1045 + $0x28] sm:$0xff]
        %v1052 = vld [vmem:[%s1045 + $0x30] sm:$0xff]
        %v1053 = vld [vmem:[%s1045 + $0x38] sm:$0xff]
        %v1054 = vld [vmem:[%s1045 + $0x40] sm:$0xff]
        %v1055 = vld [vmem:[%s1045 + $0x48] sm:$0xff]
        %v1056 = vld [vmem:[%s1045 + $0x50] sm:$0xff]
        %v1057 = vld [vmem:[%s1045 + $0x58] sm:$0xff]
        %v1058 = vld [vmem:[%s1045 + $0x60] sm:$0xff]
        %v1059 = vld [vmem:[%s1045 + $0x68] sm:$0xff]
        %v1060 = vld [vmem:[%s1045 + $0x70] sm:$0xff]
        %v1061 = vld [vmem:[%s1045 + $0x78] sm:$0xff]
        %v1062 = vld [vmem:[%s1045 + $0x80] sm:$0xff]
        %v1063 = vld [vmem:[%s1045 + $0x88] sm:$0xff]
        %v1082 = vunpack.c.l.b16 %v1046
        %v1083 = vunpack.c.h.b16 %v1046
        %v1084 = vunpack.c.l.b16 %v1047
        %v1085 = vunpack.c.h.b16 %v1047
        %v1086 = vunpack.c.l.b16 %v1048
        %v1087 = vunpack.c.h.b16 %v1048
        %v1088 = vunpack.c.l.b16 %v1049
        %v1089 = vunpack.c.h.b16 %v1049
        %v1090 = vunpack.c.l.b16 %v1050
        %v1091 = vunpack.c.h.b16 %v1050
        %v1092 = vunpack.c.l.b16 %v1051
        %v1093 = vunpack.c.h.b16 %v1051
        %v1094 = vunpack.c.l.b16 %v1052
        %v1095 = vunpack.c.h.b16 %v1052
        %v1096 = vunpack.c.l.b16 %v1053
        %v1097 = vunpack.c.h.b16 %v1053
        %v1098 = vunpack.c.l.b16 %v1054
        %v1099 = vunpack.c.h.b16 %v1054
        %v1100 = vunpack.c.l.b16 %v1055
        %v1101 = vunpack.c.h.b16 %v1055
        %v1102 = vunpack.c.l.b16 %v1056
        %v1103 = vunpack.c.h.b16 %v1056
        %v1104 = vunpack.c.l.b16 %v1057
        %v1105 = vunpack.c.h.b16 %v1057
        %v1106 = vunpack.c.l.b16 %v1058
        %v1107 = vunpack.c.h.b16 %v1058
        %v1108 = vunpack.c.l.b16 %v1059
        %v1109 = vunpack.c.h.b16 %v1059
        %v1110 = vunpack.c.l.b16 %v1060
        %v1111 = vunpack.c.h.b16 %v1060
        %v1112 = vunpack.c.l.b16 %v1061
        %v1113 = vunpack.c.h.b16 %v1061
        %v1114 = vunpack.c.l.b16 %v1062
        %v1115 = vunpack.c.h.b16 %v1062
        %v1116 = vunpack.c.l.b16 %v1063
        %v1117 = vunpack.c.h.b16 %v1063
        %v1118 = vpack.c.b16 %v1084, %v1082
        %v1119 = vpack.c.b16 %v1085, %v1083
        %v1120 = vpack.c.b16 %v1088, %v1086
        %v1121 = vpack.c.b16 %v1089, %v1087
        %v1122 = vpack.c.b16 %v1092, %v1090
        %v1123 = vpack.c.b16 %v1093, %v1091
        %v1124 = vpack.c.b16 %v1096, %v1094
        %v1125 = vpack.c.b16 %v1097, %v1095
        %v1126 = vpack.c.b16 %v1100, %v1098
        %v1127 = vpack.c.b16 %v1101, %v1099
        %v1128 = vpack.c.b16 %v1104, %v1102
        %v1129 = vpack.c.b16 %v1105, %v1103
        %v1130 = vpack.c.b16 %v1108, %v1106
        %v1131 = vpack.c.b16 %v1109, %v1107
        %v1132 = vpack.c.b16 %v1112, %v1110
        %v1133 = vpack.c.b16 %v1113, %v1111
        %v1134 = vpack.c.b16 %v1116, %v1114
        %v1135 = vpack.c.b16 %v1117, %v1115
        %1154 = vmatprep.subr.bf16.mxu0 %v1119
        %1155 = vmatpush1.bf16.msra.mxu0 %v1118
        %1156 = vmatprep.subr.bf16.mxu0 %v1121
        %1157 = vmatpush1.bf16.msra.mxu0 %v1120
        %1158 = vmatprep.subr.bf16.mxu0 %v1123
        %1159 = vmatpush1.bf16.msra.mxu0 %v1122
        %1160 = vmatprep.subr.bf16.mxu0 %v1125
        %1161 = vmatpush1.bf16.msra.mxu0 %v1124
        %1162 = vmatprep.subr.bf16.mxu0 %v1127
        %1163 = vmatpush1.bf16.msra.mxu0 %v1126
        %1164 = vmatprep.subr.bf16.mxu0 %v1129
        %1165 = vmatpush1.bf16.msra.mxu0 %v1128
        %1166 = vmatprep.subr.bf16.mxu0 %v1131
        %1167 = vmatpush1.bf16.msra.mxu0 %v1130
        %1168 = vmatprep.subr.bf16.mxu0 %v1133
        %1169 = vmatpush1.bf16.msra.mxu0 %v1132
        %1170 = vmatprep.subr.bf16.mxu0 %v1135
        %1171 = vmatpush1.bf16.msra.mxu0 %v1134
        %1172 = vmatprep.subr.bf16.mxu0 0
        %1173 = vmatpush1.bf16.msra.mxu0 0
        %1174 = vmatprep.subr.bf16.mxu0 0
        %1175 = vmatpush1.bf16.msra.mxu0 0
        %1176 = vmatprep.subr.bf16.mxu0 0
        %1177 = vmatpush1.bf16.msra.mxu0 0
        %1178 = vmatprep.subr.bf16.mxu0 0
        %1179 = vmatpush1.bf16.msra.mxu0 0
        %1180 = vmatprep.subr.bf16.mxu0 0
        %1181 = vmatpush1.bf16.msra.mxu0 0
        %1182 = vmatprep.subr.bf16.mxu0 0
        %1183 = vmatpush1.bf16.msra.mxu0 0
        %1184 = vmatprep.subr.bf16.mxu0 0
        %1185 = vmatpush1.bf16.msra.mxu0 0
        %1186 = vmatprep.mubr.bf16.mxu0 %v694
        %1187 = vmatmul.mubr.bf16.gmra.mrb[0].mxu0 %v515
        %v1188 = vpop.f32.mrb[0].mxu0
        %v1189 = vadd.f32 0.0, %v1188
        %v1190 = vpop.f32.mrb[0].mxu0
        %v1191 = vadd.f32 0.0, %v1190
        %v1192 = vpop.f32.mrb[0].mxu0
        %v1193 = vpop.f32.mrb[0].mxu0
        %1194 = vdwg.mxu0
        %v1213 = vunpack.c.l.b16 %v1027
        %v1214 = vunpack.c.h.b16 %v1027
        %v1215 = vunpack.c.l.b16 %v1028
        %v1216 = vunpack.c.h.b16 %v1028
        %v1217 = vunpack.c.l.b16 %v1029
        %v1218 = vunpack.c.h.b16 %v1029
        %v1219 = vunpack.c.l.b16 %v1030
        %v1220 = vunpack.c.h.b16 %v1030
        %v1221 = vunpack.c.l.b16 %v1031
        %v1222 = vunpack.c.h.b16 %v1031
        %v1223 = vunpack.c.l.b16 %v1032
        %v1224 = vunpack.c.h.b16 %v1032
        %v1225 = vunpack.c.l.b16 %v1033
        %v1226 = vunpack.c.h.b16 %v1033
        %v1227 = vunpack.c.l.b16 %v1034
        %v1228 = vunpack.c.h.b16 %v1034
        %v1229 = vunpack.c.l.b16 %v1035
        %v1230 = vunpack.c.h.b16 %v1035
        %v1231 = vunpack.c.l.b16 %v1036
        %v1232 = vunpack.c.h.b16 %v1036
        %v1233 = vunpack.c.l.b16 %v1037
        %v1234 = vunpack.c.h.b16 %v1037
        %v1235 = vunpack.c.l.b16 %v1038
        %v1236 = vunpack.c.h.b16 %v1038
        %v1237 = vunpack.c.l.b16 %v1039
        %v1238 = vunpack.c.h.b16 %v1039
        %v1239 = vunpack.c.l.b16 %v1040
        %v1240 = vunpack.c.h.b16 %v1040
        %v1241 = vunpack.c.l.b16 %v1041
        %v1242 = vunpack.c.h.b16 %v1041
        %v1243 = vunpack.c.l.b16 %v1042
        %v1244 = vunpack.c.h.b16 %v1042
        %v1245 = vunpack.c.l.b16 %v1043
        %v1246 = vunpack.c.h.b16 %v1043
        %v1247 = vunpack.c.l.b16 %v1044
        %v1248 = vunpack.c.h.b16 %v1044
        %v1249 = vpack.c.b16 %v1215, %v1213
        %v1250 = vpack.c.b16 %v1216, %v1214
        %v1251 = vpack.c.b16 %v1219, %v1217
        %v1252 = vpack.c.b16 %v1220, %v1218
        %v1253 = vpack.c.b16 %v1223, %v1221
        %v1254 = vpack.c.b16 %v1224, %v1222
        %v1255 = vpack.c.b16 %v1227, %v1225
        %v1256 = vpack.c.b16 %v1228, %v1226
        %v1257 = vpack.c.b16 %v1231, %v1229
        %v1258 = vpack.c.b16 %v1232, %v1230
        %v1259 = vpack.c.b16 %v1235, %v1233
        %v1260 = vpack.c.b16 %v1236, %v1234
        %v1261 = vpack.c.b16 %v1239, %v1237
        %v1262 = vpack.c.b16 %v1240, %v1238
        %v1263 = vpack.c.b16 %v1243, %v1241
        %v1264 = vpack.c.b16 %v1244, %v1242
        %v1265 = vpack.c.b16 %v1247, %v1245
        %v1266 = vpack.c.b16 %v1248, %v1246
        %1285 = vmatprep.subr.bf16.mxu0 %v1250
        %1286 = vmatpush1.bf16.msra.mxu0 %v1249
        %1287 = vmatprep.subr.bf16.mxu0 %v1252
        %1288 = vmatpush1.bf16.msra.mxu0 %v1251
        %1289 = vmatprep.subr.bf16.mxu0 %v1254
        %1290 = vmatpush1.bf16.msra.mxu0 %v1253
        %1291 = vmatprep.subr.bf16.mxu0 %v1256
        %1292 = vmatpush1.bf16.msra.mxu0 %v1255
        %1293 = vmatprep.subr.bf16.mxu0 %v1258
        %1294 = vmatpush1.bf16.msra.mxu0 %v1257
        %1295 = vmatprep.subr.bf16.mxu0 %v1260
        %1296 = vmatpush1.bf16.msra.mxu0 %v1259
        %1297 = vmatprep.subr.bf16.mxu0 %v1262
        %1298 = vmatpush1.bf16.msra.mxu0 %v1261
        %1299 = vmatprep.subr.bf16.mxu0 %v1264
        %1300 = vmatpush1.bf16.msra.mxu0 %v1263
        %1301 = vmatprep.subr.bf16.mxu0 %v1266
        %1302 = vmatpush1.bf16.msra.mxu0 %v1265
        %1303 = vmatprep.subr.bf16.mxu0 0
        %1304 = vmatpush1.bf16.msra.mxu0 0
        %1305 = vmatprep.subr.bf16.mxu0 0
        %1306 = vmatpush1.bf16.msra.mxu0 0
        %1307 = vmatprep.subr.bf16.mxu0 0
        %1308 = vmatpush1.bf16.msra.mxu0 0
        %1309 = vmatprep.subr.bf16.mxu0 0
        %1310 = vmatpush1.bf16.msra.mxu0 0
        %1311 = vmatprep.subr.bf16.mxu0 0
        %1312 = vmatpush1.bf16.msra.mxu0 0
        %1313 = vmatprep.subr.bf16.mxu0 0
        %1314 = vmatpush1.bf16.msra.mxu0 0
        %1315 = vmatprep.subr.bf16.mxu0 0
        %1316 = vmatpush1.bf16.msra.mxu0 0
        %1317 = vmatprep.mubr.bf16.mxu0 %v828
        %1318 = vmatmul.mubr.bf16.gmra.mrb[0].mxu0 %v467
        %v1319 = vpop.f32.mrb[0].mxu0
        %v1320 = vadd.f32 %v1189, %v1319
        %v1321 = vpop.f32.mrb[0].mxu0
        %v1322 = vadd.f32 %v1191, %v1321
        %v1323 = vpop.f32.mrb[0].mxu0
        %v1324 = vpop.f32.mrb[0].mxu0
        %1325 = vdwg.mxu0
        %s1326 = scalar_lea.vmem %s2, 1008
        %v1327 = vld [vmem:[%s1326] sm:$0xff]
        %v1328 = vld [vmem:[%s1326 + $0x8] sm:$0xff]
        %v1329 = vld [vmem:[%s1326 + $0x10] sm:$0xff]
        %v1330 = vld [vmem:[%s1326 + $0x18] sm:$0xff]
        %v1331 = vld [vmem:[%s1326 + $0x20] sm:$0xff]
        %v1332 = vld [vmem:[%s1326 + $0x28] sm:$0xff]
        %v1333 = vld [vmem:[%s1326 + $0x30] sm:$0xff]
        %v1334 = vld [vmem:[%s1326 + $0x38] sm:$0xff]
        %v1335 = vld [vmem:[%s1326 + $0x40] sm:$0xff]
        %v1336 = vld [vmem:[%s1326 + $0x48] sm:$0xff]
        %v1337 = vld [vmem:[%s1326 + $0x50] sm:$0xff]
        %v1338 = vld [vmem:[%s1326 + $0x58] sm:$0xff]
        %v1339 = vld [vmem:[%s1326 + $0x60] sm:$0xff]
        %v1340 = vld [vmem:[%s1326 + $0x68] sm:$0xff]
        %v1341 = vld [vmem:[%s1326 + $0x70] sm:$0xff]
        %v1342 = vld [vmem:[%s1326 + $0x78] sm:$0xff]
        %v1343 = vld [vmem:[%s1326 + $0x80] sm:$0xff]
        %v1344 = vld [vmem:[%s1326 + $0x88] sm:$0xff]
        %v1363 = vunpack.c.l.b16 %v1327
        %v1364 = vunpack.c.h.b16 %v1327
        %v1365 = vunpack.c.l.b16 %v1328
        %v1366 = vunpack.c.h.b16 %v1328
        %v1367 = vunpack.c.l.b16 %v1329
        %v1368 = vunpack.c.h.b16 %v1329
        %v1369 = vunpack.c.l.b16 %v1330
        %v1370 = vunpack.c.h.b16 %v1330
        %v1371 = vunpack.c.l.b16 %v1331
        %v1372 = vunpack.c.h.b16 %v1331
        %v1373 = vunpack.c.l.b16 %v1332
        %v1374 = vunpack.c.h.b16 %v1332
        %v1375 = vunpack.c.l.b16 %v1333
        %v1376 = vunpack.c.h.b16 %v1333
        %v1377 = vunpack.c.l.b16 %v1334
        %v1378 = vunpack.c.h.b16 %v1334
        %v1379 = vunpack.c.l.b16 %v1335
        %v1380 = vunpack.c.h.b16 %v1335
        %v1381 = vunpack.c.l.b16 %v1336
        %v1382 = vunpack.c.h.b16 %v1336
        %v1383 = vunpack.c.l.b16 %v1337
        %v1384 = vunpack.c.h.b16 %v1337
        %v1385 = vunpack.c.l.b16 %v1338
        %v1386 = vunpack.c.h.b16 %v1338
        %v1387 = vunpack.c.l.b16 %v1339
        %v1388 = vunpack.c.h.b16 %v1339
        %v1389 = vunpack.c.l.b16 %v1340
        %v1390 = vunpack.c.h.b16 %v1340
        %v1391 = vunpack.c.l.b16 %v1341
        %v1392 = vunpack.c.h.b16 %v1341
        %v1393 = vunpack.c.l.b16 %v1342
        %v1394 = vunpack.c.h.b16 %v1342
        %v1395 = vunpack.c.l.b16 %v1343
        %v1396 = vunpack.c.h.b16 %v1343
        %v1397 = vunpack.c.l.b16 %v1344
        %v1398 = vunpack.c.h.b16 %v1344
        %v1399 = vpack.c.b16 %v1365, %v1363
        %v1400 = vpack.c.b16 %v1366, %v1364
        %v1401 = vpack.c.b16 %v1369, %v1367
        %v1402 = vpack.c.b16 %v1370, %v1368
        %v1403 = vpack.c.b16 %v1373, %v1371
        %v1404 = vpack.c.b16 %v1374, %v1372
        %v1405 = vpack.c.b16 %v1377, %v1375
        %v1406 = vpack.c.b16 %v1378, %v1376
        %v1407 = vpack.c.b16 %v1381, %v1379
        %v1408 = vpack.c.b16 %v1382, %v1380
        %v1409 = vpack.c.b16 %v1385, %v1383
        %v1410 = vpack.c.b16 %v1386, %v1384
        %v1411 = vpack.c.b16 %v1389, %v1387
        %v1412 = vpack.c.b16 %v1390, %v1388
        %v1413 = vpack.c.b16 %v1393, %v1391
        %v1414 = vpack.c.b16 %v1394, %v1392
        %v1415 = vpack.c.b16 %v1397, %v1395
        %v1416 = vpack.c.b16 %v1398, %v1396
        %1435 = vmatprep.subr.bf16.mxu0 %v1400
        %1436 = vmatpush1.bf16.msra.mxu0 %v1399
        %1437 = vmatprep.subr.bf16.mxu0 %v1402
        %1438 = vmatpush1.bf16.msra.mxu0 %v1401
        %1439 = vmatprep.subr.bf16.mxu0 %v1404
        %1440 = vmatpush1.bf16.msra.mxu0 %v1403
        %1441 = vmatprep.subr.bf16.mxu0 %v1406
        %1442 = vmatpush1.bf16.msra.mxu0 %v1405
        %1443 = vmatprep.subr.bf16.mxu0 %v1408
        %1444 = vmatpush1.bf16.msra.mxu0 %v1407
        %1445 = vmatprep.subr.bf16.mxu0 %v1410
        %1446 = vmatpush1.bf16.msra.mxu0 %v1409
        %1447 = vmatprep.subr.bf16.mxu0 %v1412
        %1448 = vmatpush1.bf16.msra.mxu0 %v1411
        %1449 = vmatprep.subr.bf16.mxu0 %v1414
        %1450 = vmatpush1.bf16.msra.mxu0 %v1413
        %1451 = vmatprep.subr.bf16.mxu0 %v1416
        %1452 = vmatpush1.bf16.msra.mxu0 %v1415
        %1453 = vmatprep.subr.bf16.mxu0 0
        %1454 = vmatpush1.bf16.msra.mxu0 0
        %1455 = vmatprep.subr.bf16.mxu0 0
        %1456 = vmatpush1.bf16.msra.mxu0 0
        %1457 = vmatprep.subr.bf16.mxu0 0
        %1458 = vmatpush1.bf16.msra.mxu0 0
        %1459 = vmatprep.subr.bf16.mxu0 0
        %1460 = vmatpush1.bf16.msra.mxu0 0
        %1461 = vmatprep.subr.bf16.mxu0 0
        %1462 = vmatpush1.bf16.msra.mxu0 0
        %1463 = vmatprep.subr.bf16.mxu0 0
        %1464 = vmatpush1.bf16.msra.mxu0 0
        %1465 = vmatprep.subr.bf16.mxu0 0
        %1466 = vmatpush1.bf16.msra.mxu0 0
        %1467 = vmatprep.mubr.bf16.mxu0 %v981
        %1468 = vmatmul.mubr.bf16.gmra.mrb[0].mxu0 %v563
        %v1469 = vpop.f32.mrb[0].mxu0
        %v1470 = vadd.f32 0.0, %v1469
        %v1471 = vpop.f32.mrb[0].mxu0
        %v1472 = vadd.f32 0.0, %v1471
        %v1473 = vpop.f32.mrb[0].mxu0
        %v1474 = vpop.f32.mrb[0].mxu0
        %1475 = vdwg.mxu0
        %v1476 = vadd.f32 %v1320, %v1470
        %v1477 = vadd.f32 %v1322, %v1472
        %v1478 = vmax.f32 %v1024, %v1476
        %v1479 = vmax.f32 %v1025, %v1477
        %s1480 = scalar_lea.vmem %s2, 288
        %v1481 = vld [vmem:[%s1480] sm:$0xff]
        %v1482 = vld [vmem:[%s1480 + $0x8] sm:$0xff]
        %v1483 = vld [vmem:[%s1480 + $0x10] sm:$0xff]
        %v1484 = vld [vmem:[%s1480 + $0x18] sm:$0xff]
        %v1485 = vld [vmem:[%s1480 + $0x20] sm:$0xff]
        %v1486 = vld [vmem:[%s1480 + $0x28] sm:$0xff]
        %v1487 = vld [vmem:[%s1480 + $0x30] sm:$0xff]
        %v1488 = vld [vmem:[%s1480 + $0x38] sm:$0xff]
        %v1489 = vld [vmem:[%s1480 + $0x40] sm:$0xff]
        %v1490 = vld [vmem:[%s1480 + $0x48] sm:$0xff]
        %v1491 = vld [vmem:[%s1480 + $0x50] sm:$0xff]
        %v1492 = vld [vmem:[%s1480 + $0x58] sm:$0xff]
        %v1493 = vld [vmem:[%s1480 + $0x60] sm:$0xff]
        %v1494 = vld [vmem:[%s1480 + $0x68] sm:$0xff]
        %v1495 = vld [vmem:[%s1480 + $0x70] sm:$0xff]
        %v1496 = vld [vmem:[%s1480 + $0x78] sm:$0xff]
        %v1497 = vld [vmem:[%s1480 + $0x80] sm:$0xff]
        %v1498 = vld [vmem:[%s1480 + $0x88] sm:$0xff]
        %s1499 = scalar_lea.vmem %s2, 720
        %v1500 = vld [vmem:[%s1499] sm:$0xff]
        %v1501 = vld [vmem:[%s1499 + $0x8] sm:$0xff]
        %v1502 = vld [vmem:[%s1499 + $0x10] sm:$0xff]
        %v1503 = vld [vmem:[%s1499 + $0x18] sm:$0xff]
        %v1504 = vld [vmem:[%s1499 + $0x20] sm:$0xff]
        %v1505 = vld [vmem:[%s1499 + $0x28] sm:$0xff]
        %v1506 = vld [vmem:[%s1499 + $0x30] sm:$0xff]
        %v1507 = vld [vmem:[%s1499 + $0x38] sm:$0xff]
        %v1508 = vld [vmem:[%s1499 + $0x40] sm:$0xff]
        %v1509 = vld [vmem:[%s1499 + $0x48] sm:$0xff]
        %v1510 = vld [vmem:[%s1499 + $0x50] sm:$0xff]
        %v1511 = vld [vmem:[%s1499 + $0x58] sm:$0xff]
        %v1512 = vld [vmem:[%s1499 + $0x60] sm:$0xff]
        %v1513 = vld [vmem:[%s1499 + $0x68] sm:$0xff]
        %v1514 = vld [vmem:[%s1499 + $0x70] sm:$0xff]
        %v1515 = vld [vmem:[%s1499 + $0x78] sm:$0xff]
        %v1516 = vld [vmem:[%s1499 + $0x80] sm:$0xff]
        %v1517 = vld [vmem:[%s1499 + $0x88] sm:$0xff]
        %v1536 = vunpack.c.l.b16 %v1500
        %v1537 = vunpack.c.h.b16 %v1500
        %v1538 = vunpack.c.l.b16 %v1501
        %v1539 = vunpack.c.h.b16 %v1501
        %v1540 = vunpack.c.l.b16 %v1502
        %v1541 = vunpack.c.h.b16 %v1502
        %v1542 = vunpack.c.l.b16 %v1503
        %v1543 = vunpack.c.h.b16 %v1503
        %v1544 = vunpack.c.l.b16 %v1504
        %v1545 = vunpack.c.h.b16 %v1504
        %v1546 = vunpack.c.l.b16 %v1505
        %v1547 = vunpack.c.h.b16 %v1505
        %v1548 = vunpack.c.l.b16 %v1506
        %v1549 = vunpack.c.h.b16 %v1506
        %v1550 = vunpack.c.l.b16 %v1507
        %v1551 = vunpack.c.h.b16 %v1507
        %v1552 = vunpack.c.l.b16 %v1508
        %v1553 = vunpack.c.h.b16 %v1508
        %v1554 = vunpack.c.l.b16 %v1509
        %v1555 = vunpack.c.h.b16 %v1509
        %v1556 = vunpack.c.l.b16 %v1510
        %v1557 = vunpack.c.h.b16 %v1510
        %v1558 = vunpack.c.l.b16 %v1511
        %v1559 = vunpack.c.h.b16 %v1511
        %v1560 = vunpack.c.l.b16 %v1512
        %v1561 = vunpack.c.h.b16 %v1512
        %v1562 = vunpack.c.l.b16 %v1513
        %v1563 = vunpack.c.h.b16 %v1513
        %v1564 = vunpack.c.l.b16 %v1514
        %v1565 = vunpack.c.h.b16 %v1514
        %v1566 = vunpack.c.l.b16 %v1515
        %v1567 = vunpack.c.h.b16 %v1515
        %v1568 = vunpack.c.l.b16 %v1516
        %v1569 = vunpack.c.h.b16 %v1516
        %v1570 = vunpack.c.l.b16 %v1517
        %v1571 = vunpack.c.h.b16 %v1517
        %v1572 = vpack.c.b16 %v1538, %v1536
        %v1573 = vpack.c.b16 %v1539, %v1537
        %v1574 = vpack.c.b16 %v1542, %v1540
        %v1575 = vpack.c.b16 %v1543, %v1541
        %v1576 = vpack.c.b16 %v1546, %v1544
        %v1577 = vpack.c.b16 %v1547, %v1545
        %v1578 = vpack.c.b16 %v1550, %v1548
        %v1579 = vpack.c.b16 %v1551, %v1549
        %v1580 = vpack.c.b16 %v1554, %v1552
        %v1581 = vpack.c.b16 %v1555, %v1553
        %v1582 = vpack.c.b16 %v1558, %v1556
        %v1583 = vpack.c.b16 %v1559, %v1557
        %v1584 = vpack.c.b16 %v1562, %v1560
        %v1585 = vpack.c.b16 %v1563, %v1561
        %v1586 = vpack.c.b16 %v1566, %v1564
        %v1587 = vpack.c.b16 %v1567, %v1565
        %v1588 = vpack.c.b16 %v1570, %v1568
        %v1589 = vpack.c.b16 %v1571, %v1569
        %1608 = vmatprep.subr.bf16.mxu0 %v1573
        %1609 = vmatpush1.bf16.msra.mxu0 %v1572
        %1610 = vmatprep.subr.bf16.mxu0 %v1575
        %1611 = vmatpush1.bf16.msra.mxu0 %v1574
        %1612 = vmatprep.subr.bf16.mxu0 %v1577
        %1613 = vmatpush1.bf16.msra.mxu0 %v1576
        %1614 = vmatprep.subr.bf16.mxu0 %v1579
        %1615 = vmatpush1.bf16.msra.mxu0 %v1578
        %1616 = vmatprep.subr.bf16.mxu0 %v1581
        %1617 = vmatpush1.bf16.msra.mxu0 %v1580
        %1618 = vmatprep.subr.bf16.mxu0 %v1583
        %1619 = vmatpush1.bf16.msra.mxu0 %v1582
        %1620 = vmatprep.subr.bf16.mxu0 %v1585
        %1621 = vmatpush1.bf16.msra.mxu0 %v1584
        %1622 = vmatprep.subr.bf16.mxu0 %v1587
        %1623 = vmatpush1.bf16.msra.mxu0 %v1586
        %1624 = vmatprep.subr.bf16.mxu0 %v1589
        %1625 = vmatpush1.bf16.msra.mxu0 %v1588
        %1626 = vmatprep.subr.bf16.mxu0 0
        %1627 = vmatpush1.bf16.msra.mxu0 0
        %1628 = vmatprep.subr.bf16.mxu0 0
        %1629 = vmatpush1.bf16.msra.mxu0 0
        %1630 = vmatprep.subr.bf16.mxu0 0
        %1631 = vmatpush1.bf16.msra.mxu0 0
        %1632 = vmatprep.subr.bf16.mxu0 0
        %1633 = vmatpush1.bf16.msra.mxu0 0
        %1634 = vmatprep.subr.bf16.mxu0 0
        %1635 = vmatpush1.bf16.msra.mxu0 0
        %1636 = vmatprep.subr.bf16.mxu0 0
        %1637 = vmatpush1.bf16.msra.mxu0 0
        %1638 = vmatprep.subr.bf16.mxu0 0
        %1639 = vmatpush1.bf16.msra.mxu0 0
        %1640 = vmatprep.mubr.bf16.mxu0 %v694
        %1641 = vmatmul.mubr.bf16.gmra.mrb[0].mxu0 %v515
        %v1642 = vpop.f32.mrb[0].mxu0
        %v1643 = vadd.f32 0.0, %v1642
        %v1644 = vpop.f32.mrb[0].mxu0
        %v1645 = vadd.f32 0.0, %v1644
        %v1646 = vpop.f32.mrb[0].mxu0
        %v1647 = vpop.f32.mrb[0].mxu0
        %1648 = vdwg.mxu0
        %v1667 = vunpack.c.l.b16 %v1481
        %v1668 = vunpack.c.h.b16 %v1481
        %v1669 = vunpack.c.l.b16 %v1482
        %v1670 = vunpack.c.h.b16 %v1482
        %v1671 = vunpack.c.l.b16 %v1483
        %v1672 = vunpack.c.h.b16 %v1483
        %v1673 = vunpack.c.l.b16 %v1484
        %v1674 = vunpack.c.h.b16 %v1484
        %v1675 = vunpack.c.l.b16 %v1485
        %v1676 = vunpack.c.h.b16 %v1485
        %v1677 = vunpack.c.l.b16 %v1486
        %v1678 = vunpack.c.h.b16 %v1486
        %v1679 = vunpack.c.l.b16 %v1487
        %v1680 = vunpack.c.h.b16 %v1487
        %v1681 = vunpack.c.l.b16 %v1488
        %v1682 = vunpack.c.h.b16 %v1488
        %v1683 = vunpack.c.l.b16 %v1489
        %v1684 = vunpack.c.h.b16 %v1489
        %v1685 = vunpack.c.l.b16 %v1490
        %v1686 = vunpack.c.h.b16 %v1490
        %v1687 = vunpack.c.l.b16 %v1491
        %v1688 = vunpack.c.h.b16 %v1491
        %v1689 = vunpack.c.l.b16 %v1492
        %v1690 = vunpack.c.h.b16 %v1492
        %v1691 = vunpack.c.l.b16 %v1493
        %v1692 = vunpack.c.h.b16 %v1493
        %v1693 = vunpack.c.l.b16 %v1494
        %v1694 = vunpack.c.h.b16 %v1494
        %v1695 = vunpack.c.l.b16 %v1495
        %v1696 = vunpack.c.h.b16 %v1495
        %v1697 = vunpack.c.l.b16 %v1496
        %v1698 = vunpack.c.h.b16 %v1496
        %v1699 = vunpack.c.l.b16 %v1497
        %v1700 = vunpack.c.h.b16 %v1497
        %v1701 = vunpack.c.l.b16 %v1498
        %v1702 = vunpack.c.h.b16 %v1498
        %v1703 = vpack.c.b16 %v1669, %v1667
        %v1704 = vpack.c.b16 %v1670, %v1668
        %v1705 = vpack.c.b16 %v1673, %v1671
        %v1706 = vpack.c.b16 %v1674, %v1672
        %v1707 = vpack.c.b16 %v1677, %v1675
        %v1708 = vpack.c.b16 %v1678, %v1676
        %v1709 = vpack.c.b16 %v1681, %v1679
        %v1710 = vpack.c.b16 %v1682, %v1680
        %v1711 = vpack.c.b16 %v1685, %v1683
        %v1712 = vpack.c.b16 %v1686, %v1684
        %v1713 = vpack.c.b16 %v1689, %v1687
        %v1714 = vpack.c.b16 %v1690, %v1688
        %v1715 = vpack.c.b16 %v1693, %v1691
        %v1716 = vpack.c.b16 %v1694, %v1692
        %v1717 = vpack.c.b16 %v1697, %v1695
        %v1718 = vpack.c.b16 %v1698, %v1696
        %v1719 = vpack.c.b16 %v1701, %v1699
        %v1720 = vpack.c.b16 %v1702, %v1700
        %1739 = vmatprep.subr.bf16.mxu0 %v1704
        %1740 = vmatpush1.bf16.msra.mxu0 %v1703
        %1741 = vmatprep.subr.bf16.mxu0 %v1706
        %1742 = vmatpush1.bf16.msra.mxu0 %v1705
        %1743 = vmatprep.subr.bf16.mxu0 %v1708
        %1744 = vmatpush1.bf16.msra.mxu0 %v1707
        %1745 = vmatprep.subr.bf16.mxu0 %v1710
        %1746 = vmatpush1.bf16.msra.mxu0 %v1709
        %1747 = vmatprep.subr.bf16.mxu0 %v1712
        %1748 = vmatpush1.bf16.msra.mxu0 %v1711
        %1749 = vmatprep.subr.bf16.mxu0 %v1714
        %1750 = vmatpush1.bf16.msra.mxu0 %v1713
        %1751 = vmatprep.subr.bf16.mxu0 %v1716
        %1752 = vmatpush1.bf16.msra.mxu0 %v1715
        %1753 = vmatprep.subr.bf16.mxu0 %v1718
        %1754 = vmatpush1.bf16.msra.mxu0 %v1717
        %1755 = vmatprep.subr.bf16.mxu0 %v1720
        %1756 = vmatpush1.bf16.msra.mxu0 %v1719
        %1757 = vmatprep.subr.bf16.mxu0 0
        %1758 = vmatpush1.bf16.msra.mxu0 0
        %1759 = vmatprep.subr.bf16.mxu0 0
        %1760 = vmatpush1.bf16.msra.mxu0 0
        %1761 = vmatprep.subr.bf16.mxu0 0
        %1762 = vmatpush1.bf16.msra.mxu0 0
        %1763 = vmatprep.subr.bf16.mxu0 0
        %1764 = vmatpush1.bf16.msra.mxu0 0
        %1765 = vmatprep.subr.bf16.mxu0 0
        %1766 = vmatpush1.bf16.msra.mxu0 0
        %1767 = vmatprep.subr.bf16.mxu0 0
        %1768 = vmatpush1.bf16.msra.mxu0 0
        %1769 = vmatprep.subr.bf16.mxu0 0
        %1770 = vmatpush1.bf16.msra.mxu0 0
        %1771 = vmatprep.mubr.bf16.mxu0 %v828
        %1772 = vmatmul.mubr.bf16.gmra.mrb[0].mxu0 %v467
        %v1773 = vpop.f32.mrb[0].mxu0
        %v1774 = vadd.f32 %v1643, %v1773
        %v1775 = vpop.f32.mrb[0].mxu0
        %v1776 = vadd.f32 %v1645, %v1775
        %v1777 = vpop.f32.mrb[0].mxu0
        %v1778 = vpop.f32.mrb[0].mxu0
        %1779 = vdwg.mxu0
        %s1780 = scalar_lea.vmem %s2, 1152
        %v1781 = vld [vmem:[%s1780] sm:$0xff]
        %v1782 = vld [vmem:[%s1780 + $0x8] sm:$0xff]
        %v1783 = vld [vmem:[%s1780 + $0x10] sm:$0xff]
        %v1784 = vld [vmem:[%s1780 + $0x18] sm:$0xff]
        %v1785 = vld [vmem:[%s1780 + $0x20] sm:$0xff]
        %v1786 = vld [vmem:[%s1780 + $0x28] sm:$0xff]
        %v1787 = vld [vmem:[%s1780 + $0x30] sm:$0xff]
        %v1788 = vld [vmem:[%s1780 + $0x38] sm:$0xff]
        %v1789 = vld [vmem:[%s1780 + $0x40] sm:$0xff]
        %v1790 = vld [vmem:[%s1780 + $0x48] sm:$0xff]
        %v1791 = vld [vmem:[%s1780 + $0x50] sm:$0xff]
        %v1792 = vld [vmem:[%s1780 + $0x58] sm:$0xff]
        %v1793 = vld [vmem:[%s1780 + $0x60] sm:$0xff]
        %v1794 = vld [vmem:[%s1780 + $0x68] sm:$0xff]
        %v1795 = vld [vmem:[%s1780 + $0x70] sm:$0xff]
        %v1796 = vld [vmem:[%s1780 + $0x78] sm:$0xff]
        %v1797 = vld [vmem:[%s1780 + $0x80] sm:$0xff]
        %v1798 = vld [vmem:[%s1780 + $0x88] sm:$0xff]
        %v1817 = vunpack.c.l.b16 %v1781
        %v1818 = vunpack.c.h.b16 %v1781
        %v1819 = vunpack.c.l.b16 %v1782
        %v1820 = vunpack.c.h.b16 %v1782
        %v1821 = vunpack.c.l.b16 %v1783
        %v1822 = vunpack.c.h.b16 %v1783
        %v1823 = vunpack.c.l.b16 %v1784
        %v1824 = vunpack.c.h.b16 %v1784
        %v1825 = vunpack.c.l.b16 %v1785
        %v1826 = vunpack.c.h.b16 %v1785
        %v1827 = vunpack.c.l.b16 %v1786
        %v1828 = vunpack.c.h.b16 %v1786
        %v1829 = vunpack.c.l.b16 %v1787
        %v1830 = vunpack.c.h.b16 %v1787
        %v1831 = vunpack.c.l.b16 %v1788
        %v1832 = vunpack.c.h.b16 %v1788
        %v1833 = vunpack.c.l.b16 %v1789
        %v1834 = vunpack.c.h.b16 %v1789
        %v1835 = vunpack.c.l.b16 %v1790
        %v1836 = vunpack.c.h.b16 %v1790
        %v1837 = vunpack.c.l.b16 %v1791
        %v1838 = vunpack.c.h.b16 %v1791
        %v1839 = vunpack.c.l.b16 %v1792
        %v1840 = vunpack.c.h.b16 %v1792
        %v1841 = vunpack.c.l.b16 %v1793
        %v1842 = vunpack.c.h.b16 %v1793
        %v1843 = vunpack.c.l.b16 %v1794
        %v1844 = vunpack.c.h.b16 %v1794
        %v1845 = vunpack.c.l.b16 %v1795
        %v1846 = vunpack.c.h.b16 %v1795
        %v1847 = vunpack.c.l.b16 %v1796
        %v1848 = vunpack.c.h.b16 %v1796
        %v1849 = vunpack.c.l.b16 %v1797
        %v1850 = vunpack.c.h.b16 %v1797
        %v1851 = vunpack.c.l.b16 %v1798
        %v1852 = vunpack.c.h.b16 %v1798
        %v1853 = vpack.c.b16 %v1819, %v1817
        %v1854 = vpack.c.b16 %v1820, %v1818
        %v1855 = vpack.c.b16 %v1823, %v1821
        %v1856 = vpack.c.b16 %v1824, %v1822
        %v1857 = vpack.c.b16 %v1827, %v1825
        %v1858 = vpack.c.b16 %v1828, %v1826
        %v1859 = vpack.c.b16 %v1831, %v1829
        %v1860 = vpack.c.b16 %v1832, %v1830
        %v1861 = vpack.c.b16 %v1835, %v1833
        %v1862 = vpack.c.b16 %v1836, %v1834
        %v1863 = vpack.c.b16 %v1839, %v1837
        %v1864 = vpack.c.b16 %v1840, %v1838
        %v1865 = vpack.c.b16 %v1843, %v1841
        %v1866 = vpack.c.b16 %v1844, %v1842
        %v1867 = vpack.c.b16 %v1847, %v1845
        %v1868 = vpack.c.b16 %v1848, %v1846
        %v1869 = vpack.c.b16 %v1851, %v1849
        %v1870 = vpack.c.b16 %v1852, %v1850
        %1889 = vmatprep.subr.bf16.mxu0 %v1854
        %1890 = vmatpush1.bf16.msra.mxu0 %v1853
        %1891 = vmatprep.subr.bf16.mxu0 %v1856
        %1892 = vmatpush1.bf16.msra.mxu0 %v1855
        %1893 = vmatprep.subr.bf16.mxu0 %v1858
        %1894 = vmatpush1.bf16.msra.mxu0 %v1857
        %1895 = vmatprep.subr.bf16.mxu0 %v1860
        %1896 = vmatpush1.bf16.msra.mxu0 %v1859
        %1897 = vmatprep.subr.bf16.mxu0 %v1862
        %1898 = vmatpush1.bf16.msra.mxu0 %v1861
        %1899 = vmatprep.subr.bf16.mxu0 %v1864
        %1900 = vmatpush1.bf16.msra.mxu0 %v1863
        %1901 = vmatprep.subr.bf16.mxu0 %v1866
        %1902 = vmatpush1.bf16.msra.mxu0 %v1865
        %1903 = vmatprep.subr.bf16.mxu0 %v1868
        %1904 = vmatpush1.bf16.msra.mxu0 %v1867
        %1905 = vmatprep.subr.bf16.mxu0 %v1870
        %1906 = vmatpush1.bf16.msra.mxu0 %v1869
        %1907 = vmatprep.subr.bf16.mxu0 0
        %1908 = vmatpush1.bf16.msra.mxu0 0
        %1909 = vmatprep.subr.bf16.mxu0 0
        %1910 = vmatpush1.bf16.msra.mxu0 0
        %1911 = vmatprep.subr.bf16.mxu0 0
        %1912 = vmatpush1.bf16.msra.mxu0 0
        %1913 = vmatprep.subr.bf16.mxu0 0
        %1914 = vmatpush1.bf16.msra.mxu0 0
        %1915 = vmatprep.subr.bf16.mxu0 0
        %1916 = vmatpush1.bf16.msra.mxu0 0
        %1917 = vmatprep.subr.bf16.mxu0 0
        %1918 = vmatpush1.bf16.msra.mxu0 0
        %1919 = vmatprep.subr.bf16.mxu0 0
        %1920 = vmatpush1.bf16.msra.mxu0 0
        %1921 = vmatprep.mubr.bf16.mxu0 %v981
        %1922 = vmatmul.mubr.bf16.gmra.mrb[0].mxu0 %v563
        %v1923 = vpop.f32.mrb[0].mxu0
        %v1924 = vadd.f32 0.0, %v1923
        %v1925 = vpop.f32.mrb[0].mxu0
        %v1926 = vadd.f32 0.0, %v1925
        %v1927 = vpop.f32.mrb[0].mxu0
        %v1928 = vpop.f32.mrb[0].mxu0
        %1929 = vdwg.mxu0
        %v1930 = vadd.f32 %v1774, %v1924
        %v1931 = vadd.f32 %v1776, %v1926
        %v1932 = vmax.f32 %v1478, %v1930
        %v1933 = vmax.f32 %v1479, %v1931
        %s1934 = scalar_lea.vmem %s1, 12
        %v1935 = vld [vmem:[%s1934] sm:$0xf]
        %v1937 = vsel %vm422, %v1935, 0
        %1939 = vmatprep.subr.bf16.mxu0 %v411
        %1940 = vmatpush1.bf16.msra.mxu0 %v410
        %1941 = vmatprep.subr.bf16.mxu0 %v413
        %1942 = vmatpush1.bf16.msra.mxu0 %v412
        %1943 = vmatprep.subr.bf16.mxu0 %v415
        %1944 = vmatpush1.bf16.msra.mxu0 %v414
        %1945 = vmatprep.subr.bf16.mxu0 0
        %1946 = vmatpush1.bf16.msra.mxu0 0
        %1947 = vmatprep.subr.bf16.mxu0 0
        %1948 = vmatpush1.bf16.msra.mxu0 0
        %1949 = vmatprep.subr.bf16.mxu0 0
        %1950 = vmatpush1.bf16.msra.mxu0 0
        %1951 = vmatprep.subr.bf16.mxu0 0
        %1952 = vmatpush1.bf16.msra.mxu0 0
        %1953 = vmatprep.subr.bf16.mxu0 0
        %1954 = vmatpush1.bf16.msra.mxu0 0
        %1955 = vmatprep.subr.bf16.mxu0 0
        %1956 = vmatpush1.bf16.msra.mxu0 0
        %1957 = vmatprep.subr.bf16.mxu0 0
        %1958 = vmatpush1.bf16.msra.mxu0 0
        %1959 = vmatprep.subr.bf16.mxu0 0
        %1960 = vmatpush1.bf16.msra.mxu0 0
        %1961 = vmatprep.subr.bf16.mxu0 0
        %1962 = vmatpush1.bf16.msra.mxu0 0
        %1963 = vmatprep.subr.bf16.mxu0 0
        %1964 = vmatpush1.bf16.msra.mxu0 0
        %1965 = vmatprep.subr.bf16.mxu0 0
        %1966 = vmatpush1.bf16.msra.mxu0 0
        %1967 = vmatprep.subr.bf16.mxu0 0
        %1968 = vmatpush1.bf16.msra.mxu0 0
        %1969 = vmatprep.subr.bf16.mxu0 0
        %1970 = vmatpush1.bf16.msra.mxu0 0
        %1971 = vmatprep.mubr.bf16.mxu0 0
        %1972 = vmatmul.mubr.bf16.gmra.mrb[0].mxu0 %v1937
        %v1973 = vpop.f32.mrb[0].mxu0
        %v1974 = vadd.f32 0.0, %v1973
        %v1975 = vpop.f32.mrb[0].mxu0
        %v1976 = vadd.f32 0.0, %v1975
        %v1977 = vpop.f32.mrb[0].mxu0
        %v1978 = vpop.f32.mrb[0].mxu0
        %1979 = vdwg.mxu0
        %v1980 = vpack.c.bf16 %v1974, %v1974
        %v1981 = vpack.c.bf16 %v1976, %v1976
        %s1982 = scalar_lea.vmem %s1, 16
        %v1983 = vld [vmem:[%s1982] sm:$0xf]
        %v1985 = vsel %vm422, %v1983, 0
        %1987 = vmatprep.subr.bf16.mxu0 %v411
        %1988 = vmatpush1.bf16.msra.mxu0 %v410
        %1989 = vmatprep.subr.bf16.mxu0 %v413
        %1990 = vmatpush1.bf16.msra.mxu0 %v412
        %1991 = vmatprep.subr.bf16.mxu0 %v415
        %1992 = vmatpush1.bf16.msra.mxu0 %v414
        %1993 = vmatprep.subr.bf16.mxu0 0
        %1994 = vmatpush1.bf16.msra.mxu0 0
        %1995 = vmatprep.subr.bf16.mxu0 0
        %1996 = vmatpush1.bf16.msra.mxu0 0
        %1997 = vmatprep.subr.bf16.mxu0 0
        %1998 = vmatpush1.bf16.msra.mxu0 0
        %1999 = vmatprep.subr.bf16.mxu0 0
        %2000 = vmatpush1.bf16.msra.mxu0 0
        %2001 = vmatprep.subr.bf16.mxu0 0
        %2002 = vmatpush1.bf16.msra.mxu0 0
        %2003 = vmatprep.subr.bf16.mxu0 0
        %2004 = vmatpush1.bf16.msra.mxu0 0
        %2005 = vmatprep.subr.bf16.mxu0 0
        %2006 = vmatpush1.bf16.msra.mxu0 0
        %2007 = vmatprep.subr.bf16.mxu0 0
        %2008 = vmatpush1.bf16.msra.mxu0 0
        %2009 = vmatprep.subr.bf16.mxu0 0
        %2010 = vmatpush1.bf16.msra.mxu0 0
        %2011 = vmatprep.subr.bf16.mxu0 0
        %2012 = vmatpush1.bf16.msra.mxu0 0
        %2013 = vmatprep.subr.bf16.mxu0 0
        %2014 = vmatpush1.bf16.msra.mxu0 0
        %2015 = vmatprep.subr.bf16.mxu0 0
        %2016 = vmatpush1.bf16.msra.mxu0 0
        %2017 = vmatprep.subr.bf16.mxu0 0
        %2018 = vmatpush1.bf16.msra.mxu0 0
        %2019 = vmatprep.mubr.bf16.mxu0 0
        %2020 = vmatmul.mubr.bf16.gmra.mrb[0].mxu0 %v1985
        %v2021 = vpop.f32.mrb[0].mxu0
        %v2022 = vadd.f32 0.0, %v2021
        %v2023 = vpop.f32.mrb[0].mxu0
        %v2024 = vadd.f32 0.0, %v2023
        %v2025 = vpop.f32.mrb[0].mxu0
        %v2026 = vpop.f32.mrb[0].mxu0
        %2027 = vdwg.mxu0
        %v2028 = vpack.c.bf16 %v2022, %v2022
        %v2029 = vpack.c.bf16 %v2024, %v2024
        %s2030 = scalar_lea.vmem %s1, 20
        %v2031 = vld [vmem:[%s2030] sm:$0xf]
        %v2033 = vsel %vm422, %v2031, 0
        %2035 = vmatprep.subr.bf16.mxu0 %v411
        %2036 = vmatpush1.bf16.msra.mxu0 %v410
        %2037 = vmatprep.subr.bf16.mxu0 %v413
        %2038 = vmatpush1.bf16.msra.mxu0 %v412
        %2039 = vmatprep.subr.bf16.mxu0 %v415
        %2040 = vmatpush1.bf16.msra.mxu0 %v414
        %2041 = vmatprep.subr.bf16.mxu0 0
        %2042 = vmatpush1.bf16.msra.mxu0 0
        %2043 = vmatprep.subr.bf16.mxu0 0
        %2044 = vmatpush1.bf16.msra.mxu0 0
        %2045 = vmatprep.subr.bf16.mxu0 0
        %2046 = vmatpush1.bf16.msra.mxu0 0
        %2047 = vmatprep.subr.bf16.mxu0 0
        %2048 = vmatpush1.bf16.msra.mxu0 0
        %2049 = vmatprep.subr.bf16.mxu0 0
        %2050 = vmatpush1.bf16.msra.mxu0 0
        %2051 = vmatprep.subr.bf16.mxu0 0
        %2052 = vmatpush1.bf16.msra.mxu0 0
        %2053 = vmatprep.subr.bf16.mxu0 0
        %2054 = vmatpush1.bf16.msra.mxu0 0
        %2055 = vmatprep.subr.bf16.mxu0 0
        %2056 = vmatpush1.bf16.msra.mxu0 0
        %2057 = vmatprep.subr.bf16.mxu0 0
        %2058 = vmatpush1.bf16.msra.mxu0 0
        %2059 = vmatprep.subr.bf16.mxu0 0
        %2060 = vmatpush1.bf16.msra.mxu0 0
        %2061 = vmatprep.subr.bf16.mxu0 0
        %2062 = vmatpush1.bf16.msra.mxu0 0
        %2063 = vmatprep.subr.bf16.mxu0 0
        %2064 = vmatpush1.bf16.msra.mxu0 0
        %2065 = vmatprep.subr.bf16.mxu0 0
        %2066 = vmatpush1.bf16.msra.mxu0 0
        %2067 = vmatprep.mubr.bf16.mxu0 0
        %2068 = vmatmul.mubr.bf16.gmra.mrb[0].mxu0 %v2033
        %v2069 = vpop.f32.mrb[0].mxu0
        %v2070 = vadd.f32 0.0, %v2069
        %v2071 = vpop.f32.mrb[0].mxu0
        %v2072 = vadd.f32 0.0, %v2071
        %v2073 = vpop.f32.mrb[0].mxu0
        %v2074 = vpop.f32.mrb[0].mxu0
        %2075 = vdwg.mxu0
        %v2076 = vpack.c.bf16 %v2070, %v2070
        %v2077 = vpack.c.bf16 %v2072, %v2072
        %v2079 = vsel %vm692, %v2029, 0
        %2081 = vmatprep.subr.bf16.mxu0 %v657
        %2082 = vmatpush1.bf16.msra.mxu0 %v656
        %2083 = vmatprep.subr.bf16.mxu0 %v659
        %2084 = vmatpush1.bf16.msra.mxu0 %v658
        %2085 = vmatprep.subr.bf16.mxu0 %v661
        %2086 = vmatpush1.bf16.msra.mxu0 %v660
        %2087 = vmatprep.subr.bf16.mxu0 %v663
        %2088 = vmatpush1.bf16.msra.mxu0 %v662
        %2089 = vmatprep.subr.bf16.mxu0 %v665
        %2090 = vmatpush1.bf16.msra.mxu0 %v664
        %2091 = vmatprep.subr.bf16.mxu0 %v667
        %2092 = vmatpush1.bf16.msra.mxu0 %v666
        %2093 = vmatprep.subr.bf16.mxu0 %v669
        %2094 = vmatpush1.bf16.msra.mxu0 %v668
        %2095 = vmatprep.subr.bf16.mxu0 %v671
        %2096 = vmatpush1.bf16.msra.mxu0 %v670
        %2097 = vmatprep.subr.bf16.mxu0 %v673
        %2098 = vmatpush1.bf16.msra.mxu0 %v672
        %2099 = vmatprep.subr.bf16.mxu0 0
        %2100 = vmatpush1.bf16.msra.mxu0 0
        %2101 = vmatprep.subr.bf16.mxu0 0
        %2102 = vmatpush1.bf16.msra.mxu0 0
        %2103 = vmatprep.subr.bf16.mxu0 0
        %2104 = vmatpush1.bf16.msra.mxu0 0
        %2105 = vmatprep.subr.bf16.mxu0 0
        %2106 = vmatpush1.bf16.msra.mxu0 0
        %2107 = vmatprep.subr.bf16.mxu0 0
        %2108 = vmatpush1.bf16.msra.mxu0 0
        %2109 = vmatprep.subr.bf16.mxu0 0
        %2110 = vmatpush1.bf16.msra.mxu0 0
        %2111 = vmatprep.subr.bf16.mxu0 0
        %2112 = vmatpush1.bf16.msra.mxu0 0
        %2113 = vmatprep.mubr.bf16.mxu0 %v2079
        %2114 = vmatmul.mubr.bf16.gmra.mrb[0].mxu0 %v2028
        %v2115 = vpop.f32.mrb[0].mxu0
        %v2116 = vadd.f32 0.0, %v2115
        %v2117 = vpop.f32.mrb[0].mxu0
        %v2118 = vadd.f32 0.0, %v2117
        %v2119 = vpop.f32.mrb[0].mxu0
        %v2120 = vpop.f32.mrb[0].mxu0
        %2121 = vdwg.mxu0
        %v2123 = vsel %vm692, %v1981, 0
        %2125 = vmatprep.subr.bf16.mxu0 %v792
        %2126 = vmatpush1.bf16.msra.mxu0 %v791
        %2127 = vmatprep.subr.bf16.mxu0 %v794
        %2128 = vmatpush1.bf16.msra.mxu0 %v793
        %2129 = vmatprep.subr.bf16.mxu0 %v796
        %2130 = vmatpush1.bf16.msra.mxu0 %v795
        %2131 = vmatprep.subr.bf16.mxu0 %v798
        %2132 = vmatpush1.bf16.msra.mxu0 %v797
        %2133 = vmatprep.subr.bf16.mxu0 %v800
        %2134 = vmatpush1.bf16.msra.mxu0 %v799
        %2135 = vmatprep.subr.bf16.mxu0 %v802
        %2136 = vmatpush1.bf16.msra.mxu0 %v801
        %2137 = vmatprep.subr.bf16.mxu0 %v804
        %2138 = vmatpush1.bf16.msra.mxu0 %v803
        %2139 = vmatprep.subr.bf16.mxu0 %v806
        %2140 = vmatpush1.bf16.msra.mxu0 %v805
        %2141 = vmatprep.subr.bf16.mxu0 %v808
        %2142 = vmatpush1.bf16.msra.mxu0 %v807
        %2143 = vmatprep.subr.bf16.mxu0 0
        %2144 = vmatpush1.bf16.msra.mxu0 0
        %2145 = vmatprep.subr.bf16.mxu0 0
        %2146 = vmatpush1.bf16.msra.mxu0 0
        %2147 = vmatprep.subr.bf16.mxu0 0
        %2148 = vmatpush1.bf16.msra.mxu0 0
        %2149 = vmatprep.subr.bf16.mxu0 0
        %2150 = vmatpush1.bf16.msra.mxu0 0
        %2151 = vmatprep.subr.bf16.mxu0 0
        %2152 = vmatpush1.bf16.msra.mxu0 0
        %2153 = vmatprep.subr.bf16.mxu0 0
        %2154 = vmatpush1.bf16.msra.mxu0 0
        %2155 = vmatprep.subr.bf16.mxu0 0
        %2156 = vmatpush1.bf16.msra.mxu0 0
        %2157 = vmatprep.mubr.bf16.mxu0 %v2123
        %2158 = vmatmul.mubr.bf16.gmra.mrb[0].mxu0 %v1980
        %v2159 = vpop.f32.mrb[0].mxu0
        %v2160 = vadd.f32 %v2116, %v2159
        %v2161 = vpop.f32.mrb[0].mxu0
        %v2162 = vadd.f32 %v2118, %v2161
        %v2163 = vpop.f32.mrb[0].mxu0
        %v2164 = vpop.f32.mrb[0].mxu0
        %2165 = vdwg.mxu0
        %v2167 = vsel %vm692, %v2077, 0
        %2169 = vmatprep.subr.bf16.mxu0 %v945
        %2170 = vmatpush1.bf16.msra.mxu0 %v944
        %2171 = vmatprep.subr.bf16.mxu0 %v947
        %2172 = vmatpush1.bf16.msra.mxu0 %v946
        %2173 = vmatprep.subr.bf16.mxu0 %v949
        %2174 = vmatpush1.bf16.msra.mxu0 %v948
        %2175 = vmatprep.subr.bf16.mxu0 %v951
        %2176 = vmatpush1.bf16.msra.mxu0 %v950
        %2177 = vmatprep.subr.bf16.mxu0 %v953
        %2178 = vmatpush1.bf16.msra.mxu0 %v952
        %2179 = vmatprep.subr.bf16.mxu0 %v955
        %2180 = vmatpush1.bf16.msra.mxu0 %v954
        %2181 = vmatprep.subr.bf16.mxu0 %v957
        %2182 = vmatpush1.bf16.msra.mxu0 %v956
        %2183 = vmatprep.subr.bf16.mxu0 %v959
        %2184 = vmatpush1.bf16.msra.mxu0 %v958
        %2185 = vmatprep.subr.bf16.mxu0 %v961
        %2186 = vmatpush1.bf16.msra.mxu0 %v960
        %2187 = vmatprep.subr.bf16.mxu0 0
        %2188 = vmatpush1.bf16.msra.mxu0 0
        %2189 = vmatprep.subr.bf16.mxu0 0
        %2190 = vmatpush1.bf16.msra.mxu0 0
        %2191 = vmatprep.subr.bf16.mxu0 0
        %2192 = vmatpush1.bf16.msra.mxu0 0
        %2193 = vmatprep.subr.bf16.mxu0 0
        %2194 = vmatpush1.bf16.msra.mxu0 0
        %2195 = vmatprep.subr.bf16.mxu0 0
        %2196 = vmatpush1.bf16.msra.mxu0 0
        %2197 = vmatprep.subr.bf16.mxu0 0
        %2198 = vmatpush1.bf16.msra.mxu0 0
        %2199 = vmatprep.subr.bf16.mxu0 0
        %2200 = vmatpush1.bf16.msra.mxu0 0
        %2201 = vmatprep.mubr.bf16.mxu0 %v2167
        %2202 = vmatmul.mubr.bf16.gmra.mrb[0].mxu0 %v2076
        %v2203 = vpop.f32.mrb[0].mxu0
        %v2204 = vadd.f32 0.0, %v2203
        %v2205 = vpop.f32.mrb[0].mxu0
        %v2206 = vadd.f32 0.0, %v2205
        %v2207 = vpop.f32.mrb[0].mxu0
        %v2208 = vpop.f32.mrb[0].mxu0
        %2209 = vdwg.mxu0
        %v2210 = vadd.f32 %v2160, %v2204
        %v2211 = vadd.f32 %v2162, %v2206
        %v2212 = vmax.f32 %v1932, %v2210
        %v2213 = vmax.f32 %v1933, %v2211
        %2214 = vmatprep.subr.bf16.mxu0 %v1119
        %2215 = vmatpush1.bf16.msra.mxu0 %v1118
        %2216 = vmatprep.subr.bf16.mxu0 %v1121
        %2217 = vmatpush1.bf16.msra.mxu0 %v1120
        %2218 = vmatprep.subr.bf16.mxu0 %v1123
        %2219 = vmatpush1.bf16.msra.mxu0 %v1122
        %2220 = vmatprep.subr.bf16.mxu0 %v1125
        %2221 = vmatpush1.bf16.msra.mxu0 %v1124
        %2222 = vmatprep.subr.bf16.mxu0 %v1127
        %2223 = vmatpush1.bf16.msra.mxu0 %v1126
        %2224 = vmatprep.subr.bf16.mxu0 %v1129
        %2225 = vmatpush1.bf16.msra.mxu0 %v1128
        %2226 = vmatprep.subr.bf16.mxu0 %v1131
        %2227 = vmatpush1.bf16.msra.mxu0 %v1130
        %2228 = vmatprep.subr.bf16.mxu0 %v1133
        %2229 = vmatpush1.bf16.msra.mxu0 %v1132
        %2230 = vmatprep.subr.bf16.mxu0 %v1135
        %2231 = vmatpush1.bf16.msra.mxu0 %v1134
        %2232 = vmatprep.subr.bf16.mxu0 0
        %2233 = vmatpush1.bf16.msra.mxu0 0
        %2234 = vmatprep.subr.bf16.mxu0 0
        %2235 = vmatpush1.bf16.msra.mxu0 0
        %2236 = vmatprep.subr.bf16.mxu0 0
        %2237 = vmatpush1.bf16.msra.mxu0 0
        %2238 = vmatprep.subr.bf16.mxu0 0
        %2239 = vmatpush1.bf16.msra.mxu0 0
        %2240 = vmatprep.subr.bf16.mxu0 0
        %2241 = vmatpush1.bf16.msra.mxu0 0
        %2242 = vmatprep.subr.bf16.mxu0 0
        %2243 = vmatpush1.bf16.msra.mxu0 0
        %2244 = vmatprep.subr.bf16.mxu0 0
        %2245 = vmatpush1.bf16.msra.mxu0 0
        %2246 = vmatprep.mubr.bf16.mxu0 %v2079
        %2247 = vmatmul.mubr.bf16.gmra.mrb[0].mxu0 %v2028
        %v2248 = vpop.f32.mrb[0].mxu0
        %v2249 = vadd.f32 0.0, %v2248
        %v2250 = vpop.f32.mrb[0].mxu0
        %v2251 = vadd.f32 0.0, %v2250
        %v2252 = vpop.f32.mrb[0].mxu0
        %v2253 = vpop.f32.mrb[0].mxu0
        %2254 = vdwg.mxu0
        %2255 = vmatprep.subr.bf16.mxu0 %v1250
        %2256 = vmatpush1.bf16.msra.mxu0 %v1249
        %2257 = vmatprep.subr.bf16.mxu0 %v1252
        %2258 = vmatpush1.bf16.msra.mxu0 %v1251
        %2259 = vmatprep.subr.bf16.mxu0 %v1254
        %2260 = vmatpush1.bf16.msra.mxu0 %v1253
        %2261 = vmatprep.subr.bf16.mxu0 %v1256
        %2262 = vmatpush1.bf16.msra.mxu0 %v1255
        %2263 = vmatprep.subr.bf16.mxu0 %v1258
        %2264 = vmatpush1.bf16.msra.mxu0 %v1257
        %2265 = vmatprep.subr.bf16.mxu0 %v1260
        %2266 = vmatpush1.bf16.msra.mxu0 %v1259
        %2267 = vmatprep.subr.bf16.mxu0 %v1262
        %2268 = vmatpush1.bf16.msra.mxu0 %v1261
        %2269 = vmatprep.subr.bf16.mxu0 %v1264
        %2270 = vmatpush1.bf16.msra.mxu0 %v1263
        %2271 = vmatprep.subr.bf16.mxu0 %v1266
        %2272 = vmatpush1.bf16.msra.mxu0 %v1265
        %2273 = vmatprep.subr.bf16.mxu0 0
        %2274 = vmatpush1.bf16.msra.mxu0 0
        %2275 = vmatprep.subr.bf16.mxu0 0
        %2276 = vmatpush1.bf16.msra.mxu0 0
        %2277 = vmatprep.subr.bf16.mxu0 0
        %2278 = vmatpush1.bf16.msra.mxu0 0
        %2279 = vmatprep.subr.bf16.mxu0 0
        %2280 = vmatpush1.bf16.msra.mxu0 0
        %2281 = vmatprep.subr.bf16.mxu0 0
        %2282 = vmatpush1.bf16.msra.mxu0 0
        %2283 = vmatprep.subr.bf16.mxu0 0
        %2284 = vmatpush1.bf16.msra.mxu0 0
        %2285 = vmatprep.subr.bf16.mxu0 0
        %2286 = vmatpush1.bf16.msra.mxu0 0
        %2287 = vmatprep.mubr.bf16.mxu0 %v2123
        %2288 = vmatmul.mubr.bf16.gmra.mrb[0].mxu0 %v1980
        %v2289 = vpop.f32.mrb[0].mxu0
        %v2290 = vadd.f32 %v2249, %v2289
        %v2291 = vpop.f32.mrb[0].mxu0
        %v2292 = vadd.f32 %v2251, %v2291
        %v2293 = vpop.f32.mrb[0].mxu0
        %v2294 = vpop.f32.mrb[0].mxu0
        %2295 = vdwg.mxu0
        %2296 = vmatprep.subr.bf16.mxu0 %v1400
        %2297 = vmatpush1.bf16.msra.mxu0 %v1399
        %2298 = vmatprep.subr.bf16.mxu0 %v1402
        %2299 = vmatpush1.bf16.msra.mxu0 %v1401
        %2300 = vmatprep.subr.bf16.mxu0 %v1404
        %2301 = vmatpush1.bf16.msra.mxu0 %v1403
        %2302 = vmatprep.subr.bf16.mxu0 %v1406
        %2303 = vmatpush1.bf16.msra.mxu0 %v1405
        %2304 = vmatprep.subr.bf16.mxu0 %v1408
        %2305 = vmatpush1.bf16.msra.mxu0 %v1407
        %2306 = vmatprep.subr.bf16.mxu0 %v1410
        %2307 = vmatpush1.bf16.msra.mxu0 %v1409
        %2308 = vmatprep.subr.bf16.mxu0 %v1412
        %2309 = vmatpush1.bf16.msra.mxu0 %v1411
        %2310 = vmatprep.subr.bf16.mxu0 %v1414
        %2311 = vmatpush1.bf16.msra.mxu0 %v1413
        %2312 = vmatprep.subr.bf16.mxu0 %v1416
        %2313 = vmatpush1.bf16.msra.mxu0 %v1415
        %2314 = vmatprep.subr.bf16.mxu0 0
        %2315 = vmatpush1.bf16.msra.mxu0 0
        %2316 = vmatprep.subr.bf16.mxu0 0
        %2317 = vmatpush1.bf16.msra.mxu0 0
        %2318 = vmatprep.subr.bf16.mxu0 0
        %2319 = vmatpush1.bf16.msra.mxu0 0
        %2320 = vmatprep.subr.bf16.mxu0 0
        %2321 = vmatpush1.bf16.msra.mxu0 0
        %2322 = vmatprep.subr.bf16.mxu0 0
        %2323 = vmatpush1.bf16.msra.mxu0 0
        %2324 = vmatprep.subr.bf16.mxu0 0
        %2325 = vmatpush1.bf16.msra.mxu0 0
        %2326 = vmatprep.subr.bf16.mxu0 0
        %2327 = vmatpush1.bf16.msra.mxu0 0
        %2328 = vmatprep.mubr.bf16.mxu0 %v2167
        %2329 = vmatmul.mubr.bf16.gmra.mrb[0].mxu0 %v2076
        %v2330 = vpop.f32.mrb[0].mxu0
        %v2331 = vadd.f32 0.0, %v2330
        %v2332 = vpop.f32.mrb[0].mxu0
        %v2333 = vadd.f32 0.0, %v2332
        %v2334 = vpop.f32.mrb[0].mxu0
        %v2335 = vpop.f32.mrb[0].mxu0
        %2336 = vdwg.mxu0
        %v2337 = vadd.f32 %v2290, %v2331
        %v2338 = vadd.f32 %v2292, %v2333
        %v2339 = vmax.f32 %v2212, %v2337
        %v2340 = vmax.f32 %v2213, %v2338
        %2341 = vmatprep.subr.bf16.mxu0 %v1573
        %2342 = vmatpush1.bf16.msra.mxu0 %v1572
        %2343 = vmatprep.subr.bf16.mxu0 %v1575
        %2344 = vmatpush1.bf16.msra.mxu0 %v1574
        %2345 = vmatprep.subr.bf16.mxu0 %v1577
        %2346 = vmatpush1.bf16.msra.mxu0 %v1576
        %2347 = vmatprep.subr.bf16.mxu0 %v1579
        %2348 = vmatpush1.bf16.msra.mxu0 %v1578
        %2349 = vmatprep.subr.bf16.mxu0 %v1581
        %2350 = vmatpush1.bf16.msra.mxu0 %v1580
        %2351 = vmatprep.subr.bf16.mxu0 %v1583
        %2352 = vmatpush1.bf16.msra.mxu0 %v1582
        %2353 = vmatprep.subr.bf16.mxu0 %v1585
        %2354 = vmatpush1.bf16.msra.mxu0 %v1584
        %2355 = vmatprep.subr.bf16.mxu0 %v1587
        %2356 = vmatpush1.bf16.msra.mxu0 %v1586
        %2357 = vmatprep.subr.bf16.mxu0 %v1589
        %2358 = vmatpush1.bf16.msra.mxu0 %v1588
        %2359 = vmatprep.subr.bf16.mxu0 0
        %2360 = vmatpush1.bf16.msra.mxu0 0
        %2361 = vmatprep.subr.bf16.mxu0 0
        %2362 = vmatpush1.bf16.msra.mxu0 0
        %2363 = vmatprep.subr.bf16.mxu0 0
        %2364 = vmatpush1.bf16.msra.mxu0 0
        %2365 = vmatprep.subr.bf16.mxu0 0
        %2366 = vmatpush1.bf16.msra.mxu0 0
        %2367 = vmatprep.subr.bf16.mxu0 0
        %2368 = vmatpush1.bf16.msra.mxu0 0
        %2369 = vmatprep.subr.bf16.mxu0 0
        %2370 = vmatpush1.bf16.msra.mxu0 0
        %2371 = vmatprep.subr.bf16.mxu0 0
        %2372 = vmatpush1.bf16.msra.mxu0 0
        %2373 = vmatprep.mubr.bf16.mxu0 %v2079
        %2374 = vmatmul.mubr.bf16.gmra.mrb[0].mxu0 %v2028
        %v2375 = vpop.f32.mrb[0].mxu0
        %v2376 = vadd.f32 0.0, %v2375
        %v2377 = vpop.f32.mrb[0].mxu0
        %v2378 = vadd.f32 0.0, %v2377
        %v2379 = vpop.f32.mrb[0].mxu0
        %v2380 = vpop.f32.mrb[0].mxu0
        %2381 = vdwg.mxu0
        %2382 = vmatprep.subr.bf16.mxu0 %v1704
        %2383 = vmatpush1.bf16.msra.mxu0 %v1703
        %2384 = vmatprep.subr.bf16.mxu0 %v1706
        %2385 = vmatpush1.bf16.msra.mxu0 %v1705
        %2386 = vmatprep.subr.bf16.mxu0 %v1708
        %2387 = vmatpush1.bf16.msra.mxu0 %v1707
        %2388 = vmatprep.subr.bf16.mxu0 %v1710
        %2389 = vmatpush1.bf16.msra.mxu0 %v1709
        %2390 = vmatprep.subr.bf16.mxu0 %v1712
        %2391 = vmatpush1.bf16.msra.mxu0 %v1711
        %2392 = vmatprep.subr.bf16.mxu0 %v1714
        %2393 = vmatpush1.bf16.msra.mxu0 %v1713
        %2394 = vmatprep.subr.bf16.mxu0 %v1716
        %2395 = vmatpush1.bf16.msra.mxu0 %v1715
        %2396 = vmatprep.subr.bf16.mxu0 %v1718
        %2397 = vmatpush1.bf16.msra.mxu0 %v1717
        %2398 = vmatprep.subr.bf16.mxu0 %v1720
        %2399 = vmatpush1.bf16.msra.mxu0 %v1719
        %2400 = vmatprep.subr.bf16.mxu0 0
        %2401 = vmatpush1.bf16.msra.mxu0 0
        %2402 = vmatprep.subr.bf16.mxu0 0
        %2403 = vmatpush1.bf16.msra.mxu0 0
        %2404 = vmatprep.subr.bf16.mxu0 0
        %2405 = vmatpush1.bf16.msra.mxu0 0
        %2406 = vmatprep.subr.bf16.mxu0 0
        %2407 = vmatpush1.bf16.msra.mxu0 0
        %2408 = vmatprep.subr.bf16.mxu0 0
        %2409 = vmatpush1.bf16.msra.mxu0 0
        %2410 = vmatprep.subr.bf16.mxu0 0
        %2411 = vmatpush1.bf16.msra.mxu0 0
        %2412 = vmatprep.subr.bf16.mxu0 0
        %2413 = vmatpush1.bf16.msra.mxu0 0
        %2414 = vmatprep.mubr.bf16.mxu0 %v2123
        %2415 = vmatmul.mubr.bf16.gmra.mrb[0].mxu0 %v1980
        %v2416 = vpop.f32.mrb[0].mxu0
        %v2417 = vadd.f32 %v2376, %v2416
        %v2418 = vpop.f32.mrb[0].mxu0
        %v2419 = vadd.f32 %v2378, %v2418
        %v2420 = vpop.f32.mrb[0].mxu0
        %v2421 = vpop.f32.mrb[0].mxu0
        %2422 = vdwg.mxu0
        %2423 = vmatprep.subr.bf16.mxu0 %v1854
        %2424 = vmatpush1.bf16.msra.mxu0 %v1853
        %2425 = vmatprep.subr.bf16.mxu0 %v1856
        %2426 = vmatpush1.bf16.msra.mxu0 %v1855
        %2427 = vmatprep.subr.bf16.mxu0 %v1858
        %2428 = vmatpush1.bf16.msra.mxu0 %v1857
        %2429 = vmatprep.subr.bf16.mxu0 %v1860
        %2430 = vmatpush1.bf16.msra.mxu0 %v1859
        %2431 = vmatprep.subr.bf16.mxu0 %v1862
        %2432 = vmatpush1.bf16.msra.mxu0 %v1861
        %2433 = vmatprep.subr.bf16.mxu0 %v1864
        %2434 = vmatpush1.bf16.msra.mxu0 %v1863
        %2435 = vmatprep.subr.bf16.mxu0 %v1866
        %2436 = vmatpush1.bf16.msra.mxu0 %v1865
        %2437 = vmatprep.subr.bf16.mxu0 %v1868
        %2438 = vmatpush1.bf16.msra.mxu0 %v1867
        %2439 = vmatprep.subr.bf16.mxu0 %v1870
        %2440 = vmatpush1.bf16.msra.mxu0 %v1869
        %2441 = vmatprep.subr.bf16.mxu0 0
        %2442 = vmatpush1.bf16.msra.mxu0 0
        %2443 = vmatprep.subr.bf16.mxu0 0
        %2444 = vmatpush1.bf16.msra.mxu0 0
        %2445 = vmatprep.subr.bf16.mxu0 0
        %2446 = vmatpush1.bf16.msra.mxu0 0
        %2447 = vmatprep.subr.bf16.mxu0 0
        %2448 = vmatpush1.bf16.msra.mxu0 0
        %2449 = vmatprep.subr.bf16.mxu0 0
        %2450 = vmatpush1.bf16.msra.mxu0 0
        %2451 = vmatprep.subr.bf16.mxu0 0
        %2452 = vmatpush1.bf16.msra.mxu0 0
        %2453 = vmatprep.subr.bf16.mxu0 0
        %2454 = vmatpush1.bf16.msra.mxu0 0
        %2455 = vmatprep.mubr.bf16.mxu0 %v2167
        %2456 = vmatmul.mubr.bf16.gmra.mrb[0].mxu0 %v2076
        %v2457 = vpop.f32.mrb[0].mxu0
        %v2458 = vadd.f32 0.0, %v2457
        %v2459 = vpop.f32.mrb[0].mxu0
        %v2460 = vadd.f32 0.0, %v2459
        %v2461 = vpop.f32.mrb[0].mxu0
        %v2462 = vpop.f32.mrb[0].mxu0
        %2463 = vdwg.mxu0
        %v2464 = vadd.f32 %v2417, %v2458
        %v2465 = vadd.f32 %v2419, %v2460
        %v2466 = vmax.f32 %v2339, %v2464
        %v2467 = vmax.f32 %v2340, %v2465
        %s2468 = scalar_lea.vmem %s1, 24
        %v2469 = vld [vmem:[%s2468] sm:$0xf]
        %v2471 = vsel %vm422, %v2469, 0
        %2473 = vmatprep.subr.bf16.mxu0 %v411
        %2474 = vmatpush1.bf16.msra.mxu0 %v410
        %2475 = vmatprep.subr.bf16.mxu0 %v413
        %2476 = vmatpush1.bf16.msra.mxu0 %v412
        %2477 = vmatprep.subr.bf16.mxu0 %v415
        %2478 = vmatpush1.bf16.msra.mxu0 %v414
        %2479 = vmatprep.subr.bf16.mxu0 0
        %2480 = vmatpush1.bf16.msra.mxu0 0
        %2481 = vmatprep.subr.bf16.mxu0 0
        %2482 = vmatpush1.bf16.msra.mxu0 0
        %2483 = vmatprep.subr.bf16.mxu0 0
        %2484 = vmatpush1.bf16.msra.mxu0 0
        %2485 = vmatprep.subr.bf16.mxu0 0
        %2486 = vmatpush1.bf16.msra.mxu0 0
        %2487 = vmatprep.subr.bf16.mxu0 0
        %2488 = vmatpush1.bf16.msra.mxu0 0
        %2489 = vmatprep.subr.bf16.mxu0 0
        %2490 = vmatpush1.bf16.msra.mxu0 0
        %2491 = vmatprep.subr.bf16.mxu0 0
        %2492 = vmatpush1.bf16.msra.mxu0 0
        %2493 = vmatprep.subr.bf16.mxu0 0
        %2494 = vmatpush1.bf16.msra.mxu0 0
        %2495 = vmatprep.subr.bf16.mxu0 0
        %2496 = vmatpush1.bf16.msra.mxu0 0
        %2497 = vmatprep.subr.bf16.mxu0 0
        %2498 = vmatpush1.bf16.msra.mxu0 0
        %2499 = vmatprep.subr.bf16.mxu0 0
        %2500 = vmatpush1.bf16.msra.mxu0 0
        %2501 = vmatprep.subr.bf16.mxu0 0
        %2502 = vmatpush1.bf16.msra.mxu0 0
        %2503 = vmatprep.subr.bf16.mxu0 0
        %2504 = vmatpush1.bf16.msra.mxu0 0
        %2505 = vmatprep.mubr.bf16.mxu0 0
        %2506 = vmatmul.mubr.bf16.gmra.mrb[0].mxu0 %v2471
        %v2507 = vpop.f32.mrb[0].mxu0
        %v2508 = vadd.f32 0.0, %v2507
        %v2509 = vpop.f32.mrb[0].mxu0
        %v2510 = vadd.f32 0.0, %v2509
        %v2511 = vpop.f32.mrb[0].mxu0
        %v2512 = vpop.f32.mrb[0].mxu0
        %2513 = vdwg.mxu0
        %v2514 = vpack.c.bf16 %v2508, %v2508
        %v2515 = vpack.c.bf16 %v2510, %v2510
        %s2516 = scalar_lea.vmem %s1, 28
        %v2517 = vld [vmem:[%s2516] sm:$0xf]
        %v2519 = vsel %vm422, %v2517, 0
        %2521 = vmatprep.subr.bf16.mxu0 %v411
        %2522 = vmatpush1.bf16.msra.mxu0 %v410
        %2523 = vmatprep.subr.bf16.mxu0 %v413
        %2524 = vmatpush1.bf16.msra.mxu0 %v412
        %2525 = vmatprep.subr.bf16.mxu0 %v415
        %2526 = vmatpush1.bf16.msra.mxu0 %v414
        %2527 = vmatprep.subr.bf16.mxu0 0
        %2528 = vmatpush1.bf16.msra.mxu0 0
        %2529 = vmatprep.subr.bf16.mxu0 0
        %2530 = vmatpush1.bf16.msra.mxu0 0
        %2531 = vmatprep.subr.bf16.mxu0 0
        %2532 = vmatpush1.bf16.msra.mxu0 0
        %2533 = vmatprep.subr.bf16.mxu0 0
        %2534 = vmatpush1.bf16.msra.mxu0 0
        %2535 = vmatprep.subr.bf16.mxu0 0
        %2536 = vmatpush1.bf16.msra.mxu0 0
        %2537 = vmatprep.subr.bf16.mxu0 0
        %2538 = vmatpush1.bf16.msra.mxu0 0
        %2539 = vmatprep.subr.bf16.mxu0 0
        %2540 = vmatpush1.bf16.msra.mxu0 0
        %2541 = vmatprep.subr.bf16.mxu0 0
        %2542 = vmatpush1.bf16.msra.mxu0 0
        %2543 = vmatprep.subr.bf16.mxu0 0
        %2544 = vmatpush1.bf16.msra.mxu0 0
        %2545 = vmatprep.subr.bf16.mxu0 0
        %2546 = vmatpush1.bf16.msra.mxu0 0
        %2547 = vmatprep.subr.bf16.mxu0 0
        %2548 = vmatpush1.bf16.msra.mxu0 0
        %2549 = vmatprep.subr.bf16.mxu0 0
        %2550 = vmatpush1.bf16.msra.mxu0 0
        %2551 = vmatprep.subr.bf16.mxu0 0
        %2552 = vmatpush1.bf16.msra.mxu0 0
        %2553 = vmatprep.mubr.bf16.mxu0 0
        %2554 = vmatmul.mubr.bf16.gmra.mrb[0].mxu0 %v2519
        %v2555 = vpop.f32.mrb[0].mxu0
        %v2556 = vadd.f32 0.0, %v2555
        %v2557 = vpop.f32.mrb[0].mxu0
        %v2558 = vadd.f32 0.0, %v2557
        %v2559 = vpop.f32.mrb[0].mxu0
        %v2560 = vpop.f32.mrb[0].mxu0
        %2561 = vdwg.mxu0
        %v2562 = vpack.c.bf16 %v2556, %v2556
        %v2563 = vpack.c.bf16 %v2558, %v2558
        %s2564 = scalar_lea.vmem %s1, 32
        %v2565 = vld [vmem:[%s2564] sm:$0xf]
        %v2567 = vsel %vm422, %v2565, 0
        %2569 = vmatprep.subr.bf16.mxu0 %v411
        %2570 = vmatpush1.bf16.msra.mxu0 %v410
        %2571 = vmatprep.subr.bf16.mxu0 %v413
        %2572 = vmatpush1.bf16.msra.mxu0 %v412
        %2573 = vmatprep.subr.bf16.mxu0 %v415
        %2574 = vmatpush1.bf16.msra.mxu0 %v414
        %2575 = vmatprep.subr.bf16.mxu0 0
        %2576 = vmatpush1.bf16.msra.mxu0 0
        %2577 = vmatprep.subr.bf16.mxu0 0
        %2578 = vmatpush1.bf16.msra.mxu0 0
        %2579 = vmatprep.subr.bf16.mxu0 0
        %2580 = vmatpush1.bf16.msra.mxu0 0
        %2581 = vmatprep.subr.bf16.mxu0 0
        %2582 = vmatpush1.bf16.msra.mxu0 0
        %2583 = vmatprep.subr.bf16.mxu0 0
        %2584 = vmatpush1.bf16.msra.mxu0 0
        %2585 = vmatprep.subr.bf16.mxu0 0
        %2586 = vmatpush1.bf16.msra.mxu0 0
        %2587 = vmatprep.subr.bf16.mxu0 0
        %2588 = vmatpush1.bf16.msra.mxu0 0
        %2589 = vmatprep.subr.bf16.mxu0 0
        %2590 = vmatpush1.bf16.msra.mxu0 0
        %2591 = vmatprep.subr.bf16.mxu0 0
        %2592 = vmatpush1.bf16.msra.mxu0 0
        %2593 = vmatprep.subr.bf16.mxu0 0
        %2594 = vmatpush1.bf16.msra.mxu0 0
        %2595 = vmatprep.subr.bf16.mxu0 0
        %2596 = vmatpush1.bf16.msra.mxu0 0
        %2597 = vmatprep.subr.bf16.mxu0 0
        %2598 = vmatpush1.bf16.msra.mxu0 0
        %2599 = vmatprep.subr.bf16.mxu0 0
        %2600 = vmatpush1.bf16.msra.mxu0 0
        %2601 = vmatprep.mubr.bf16.mxu0 0
        %2602 = vmatmul.mubr.bf16.gmra.mrb[0].mxu0 %v2567
        %v2603 = vpop.f32.mrb[0].mxu0
        %v2604 = vadd.f32 0.0, %v2603
        %v2605 = vpop.f32.mrb[0].mxu0
        %v2606 = vadd.f32 0.0, %v2605
        %v2607 = vpop.f32.mrb[0].mxu0
        %v2608 = vpop.f32.mrb[0].mxu0
        %2609 = vdwg.mxu0
        %v2610 = vpack.c.bf16 %v2604, %v2604
        %v2611 = vpack.c.bf16 %v2606, %v2606
        %v2613 = vsel %vm692, %v2563, 0
        %2615 = vmatprep.subr.bf16.mxu0 %v657
        %2616 = vmatpush1.bf16.msra.mxu0 %v656
        %2617 = vmatprep.subr.bf16.mxu0 %v659
        %2618 = vmatpush1.bf16.msra.mxu0 %v658
        %2619 = vmatprep.subr.bf16.mxu0 %v661
        %2620 = vmatpush1.bf16.msra.mxu0 %v660
        %2621 = vmatprep.subr.bf16.mxu0 %v663
        %2622 = vmatpush1.bf16.msra.mxu0 %v662
        %2623 = vmatprep.subr.bf16.mxu0 %v665
        %2624 = vmatpush1.bf16.msra.mxu0 %v664
        %2625 = vmatprep.subr.bf16.mxu0 %v667
        %2626 = vmatpush1.bf16.msra.mxu0 %v666
        %2627 = vmatprep.subr.bf16.mxu0 %v669
        %2628 = vmatpush1.bf16.msra.mxu0 %v668
        %2629 = vmatprep.subr.bf16.mxu0 %v671
        %2630 = vmatpush1.bf16.msra.mxu0 %v670
        %2631 = vmatprep.subr.bf16.mxu0 %v673
        %2632 = vmatpush1.bf16.msra.mxu0 %v672
        %2633 = vmatprep.subr.bf16.mxu0 0
        %2634 = vmatpush1.bf16.msra.mxu0 0
        %2635 = vmatprep.subr.bf16.mxu0 0
        %2636 = vmatpush1.bf16.msra.mxu0 0
        %2637 = vmatprep.subr.bf16.mxu0 0
        %2638 = vmatpush1.bf16.msra.mxu0 0
        %2639 = vmatprep.subr.bf16.mxu0 0
        %2640 = vmatpush1.bf16.msra.mxu0 0
        %2641 = vmatprep.subr.bf16.mxu0 0
        %2642 = vmatpush1.bf16.msra.mxu0 0
        %2643 = vmatprep.subr.bf16.mxu0 0
        %2644 = vmatpush1.bf16.msra.mxu0 0
        %2645 = vmatprep.subr.bf16.mxu0 0
        %2646 = vmatpush1.bf16.msra.mxu0 0
        %2647 = vmatprep.mubr.bf16.mxu0 %v2613
        %2648 = vmatmul.mubr.bf16.gmra.mrb[0].mxu0 %v2562
        %v2649 = vpop.f32.mrb[0].mxu0
        %v2650 = vadd.f32 0.0, %v2649
        %v2651 = vpop.f32.mrb[0].mxu0
        %v2652 = vadd.f32 0.0, %v2651
        %v2653 = vpop.f32.mrb[0].mxu0
        %v2654 = vpop.f32.mrb[0].mxu0
        %2655 = vdwg.mxu0
        %v2657 = vsel %vm692, %v2515, 0
        %2659 = vmatprep.subr.bf16.mxu0 %v792
        %2660 = vmatpush1.bf16.msra.mxu0 %v791
        %2661 = vmatprep.subr.bf16.mxu0 %v794
        %2662 = vmatpush1.bf16.msra.mxu0 %v793
        %2663 = vmatprep.subr.bf16.mxu0 %v796
        %2664 = vmatpush1.bf16.msra.mxu0 %v795
        %2665 = vmatprep.subr.bf16.mxu0 %v798
        %2666 = vmatpush1.bf16.msra.mxu0 %v797
        %2667 = vmatprep.subr.bf16.mxu0 %v800
        %2668 = vmatpush1.bf16.msra.mxu0 %v799
        %2669 = vmatprep.subr.bf16.mxu0 %v802
        %2670 = vmatpush1.bf16.msra.mxu0 %v801
        %2671 = vmatprep.subr.bf16.mxu0 %v804
        %2672 = vmatpush1.bf16.msra.mxu0 %v803
        %2673 = vmatprep.subr.bf16.mxu0 %v806
        %2674 = vmatpush1.bf16.msra.mxu0 %v805
        %2675 = vmatprep.subr.bf16.mxu0 %v808
        %2676 = vmatpush1.bf16.msra.mxu0 %v807
        %2677 = vmatprep.subr.bf16.mxu0 0
        %2678 = vmatpush1.bf16.msra.mxu0 0
        %2679 = vmatprep.subr.bf16.mxu0 0
        %2680 = vmatpush1.bf16.msra.mxu0 0
        %2681 = vmatprep.subr.bf16.mxu0 0
        %2682 = vmatpush1.bf16.msra.mxu0 0
        %2683 = vmatprep.subr.bf16.mxu0 0
        %2684 = vmatpush1.bf16.msra.mxu0 0
        %2685 = vmatprep.subr.bf16.mxu0 0
        %2686 = vmatpush1.bf16.msra.mxu0 0
        %2687 = vmatprep.subr.bf16.mxu0 0
        %2688 = vmatpush1.bf16.msra.mxu0 0
        %2689 = vmatprep.subr.bf16.mxu0 0
        %2690 = vmatpush1.bf16.msra.mxu0 0
        %2691 = vmatprep.mubr.bf16.mxu0 %v2657
        %2692 = vmatmul.mubr.bf16.gmra.mrb[0].mxu0 %v2514
        %v2693 = vpop.f32.mrb[0].mxu0
        %v2694 = vadd.f32 %v2650, %v2693
        %v2695 = vpop.f32.mrb[0].mxu0
        %v2696 = vadd.f32 %v2652, %v2695
        %v2697 = vpop.f32.mrb[0].mxu0
        %v2698 = vpop.f32.mrb[0].mxu0
        %2699 = vdwg.mxu0
        %v2701 = vsel %vm692, %v2611, 0
        %2703 = vmatprep.subr.bf16.mxu0 %v945
        %2704 = vmatpush1.bf16.msra.mxu0 %v944
        %2705 = vmatprep.subr.bf16.mxu0 %v947
        %2706 = vmatpush1.bf16.msra.mxu0 %v946
        %2707 = vmatprep.subr.bf16.mxu0 %v949
        %2708 = vmatpush1.bf16.msra.mxu0 %v948
        %2709 = vmatprep.subr.bf16.mxu0 %v951
        %2710 = vmatpush1.bf16.msra.mxu0 %v950
        %2711 = vmatprep.subr.bf16.mxu0 %v953
        %2712 = vmatpush1.bf16.msra.mxu0 %v952
        %2713 = vmatprep.subr.bf16.mxu0 %v955
        %2714 = vmatpush1.bf16.msra.mxu0 %v954
        %2715 = vmatprep.subr.bf16.mxu0 %v957
        %2716 = vmatpush1.bf16.msra.mxu0 %v956
        %2717 = vmatprep.subr.bf16.mxu0 %v959
        %2718 = vmatpush1.bf16.msra.mxu0 %v958
        %2719 = vmatprep.subr.bf16.mxu0 %v961
        %2720 = vmatpush1.bf16.msra.mxu0 %v960
        %2721 = vmatprep.subr.bf16.mxu0 0
        %2722 = vmatpush1.bf16.msra.mxu0 0
        %2723 = vmatprep.subr.bf16.mxu0 0
        %2724 = vmatpush1.bf16.msra.mxu0 0
        %2725 = vmatprep.subr.bf16.mxu0 0
        %2726 = vmatpush1.bf16.msra.mxu0 0
        %2727 = vmatprep.subr.bf16.mxu0 0
        %2728 = vmatpush1.bf16.msra.mxu0 0
        %2729 = vmatprep.subr.bf16.mxu0 0
        %2730 = vmatpush1.bf16.msra.mxu0 0
        %2731 = vmatprep.subr.bf16.mxu0 0
        %2732 = vmatpush1.bf16.msra.mxu0 0
        %2733 = vmatprep.subr.bf16.mxu0 0
        %2734 = vmatpush1.bf16.msra.mxu0 0
        %2735 = vmatprep.mubr.bf16.mxu0 %v2701
        %2736 = vmatmul.mubr.bf16.gmra.mrb[0].mxu0 %v2610
        %v2737 = vpop.f32.mrb[0].mxu0
        %v2738 = vadd.f32 0.0, %v2737
        %v2739 = vpop.f32.mrb[0].mxu0
        %v2740 = vadd.f32 0.0, %v2739
        %v2741 = vpop.f32.mrb[0].mxu0
        %v2742 = vpop.f32.mrb[0].mxu0
        %2743 = vdwg.mxu0
        %v2744 = vadd.f32 %v2694, %v2738
        %v2745 = vadd.f32 %v2696, %v2740
        %v2746 = vmax.f32 %v2466, %v2744
        %v2747 = vmax.f32 %v2467, %v2745
        %2748 = vmatprep.subr.bf16.mxu0 %v1119
        %2749 = vmatpush1.bf16.msra.mxu0 %v1118
        %2750 = vmatprep.subr.bf16.mxu0 %v1121
        %2751 = vmatpush1.bf16.msra.mxu0 %v1120
        %2752 = vmatprep.subr.bf16.mxu0 %v1123
        %2753 = vmatpush1.bf16.msra.mxu0 %v1122
        %2754 = vmatprep.subr.bf16.mxu0 %v1125
        %2755 = vmatpush1.bf16.msra.mxu0 %v1124
        %2756 = vmatprep.subr.bf16.mxu0 %v1127
        %2757 = vmatpush1.bf16.msra.mxu0 %v1126
        %2758 = vmatprep.subr.bf16.mxu0 %v1129
        %2759 = vmatpush1.bf16.msra.mxu0 %v1128
        %2760 = vmatprep.subr.bf16.mxu0 %v1131
        %2761 = vmatpush1.bf16.msra.mxu0 %v1130
        %2762 = vmatprep.subr.bf16.mxu0 %v1133
        %2763 = vmatpush1.bf16.msra.mxu0 %v1132
        %2764 = vmatprep.subr.bf16.mxu0 %v1135
        %2765 = vmatpush1.bf16.msra.mxu0 %v1134
        %2766 = vmatprep.subr.bf16.mxu0 0
        %2767 = vmatpush1.bf16.msra.mxu0 0
        %2768 = vmatprep.subr.bf16.mxu0 0
        %2769 = vmatpush1.bf16.msra.mxu0 0
        %2770 = vmatprep.subr.bf16.mxu0 0
        %2771 = vmatpush1.bf16.msra.mxu0 0
        %2772 = vmatprep.subr.bf16.mxu0 0
        %2773 = vmatpush1.bf16.msra.mxu0 0
        %2774 = vmatprep.subr.bf16.mxu0 0
        %2775 = vmatpush1.bf16.msra.mxu0 0
        %2776 = vmatprep.subr.bf16.mxu0 0
        %2777 = vmatpush1.bf16.msra.mxu0 0
        %2778 = vmatprep.subr.bf16.mxu0 0
        %2779 = vmatpush1.bf16.msra.mxu0 0
        %2780 = vmatprep.mubr.bf16.mxu0 %v2613
        %2781 = vmatmul.mubr.bf16.gmra.mrb[0].mxu0 %v2562
        %v2782 = vpop.f32.mrb[0].mxu0
        %v2783 = vadd.f32 0.0, %v2782
        %v2784 = vpop.f32.mrb[0].mxu0
        %v2785 = vadd.f32 0.0, %v2784
        %v2786 = vpop.f32.mrb[0].mxu0
        %v2787 = vpop.f32.mrb[0].mxu0
        %2788 = vdwg.mxu0
        %2789 = vmatprep.subr.bf16.mxu0 %v1250
        %2790 = vmatpush1.bf16.msra.mxu0 %v1249
        %2791 = vmatprep.subr.bf16.mxu0 %v1252
        %2792 = vmatpush1.bf16.msra.mxu0 %v1251
        %2793 = vmatprep.subr.bf16.mxu0 %v1254
        %2794 = vmatpush1.bf16.msra.mxu0 %v1253
        %2795 = vmatprep.subr.bf16.mxu0 %v1256
        %2796 = vmatpush1.bf16.msra.mxu0 %v1255
        %2797 = vmatprep.subr.bf16.mxu0 %v1258
        %2798 = vmatpush1.bf16.msra.mxu0 %v1257
        %2799 = vmatprep.subr.bf16.mxu0 %v1260
        %2800 = vmatpush1.bf16.msra.mxu0 %v1259
        %2801 = vmatprep.subr.bf16.mxu0 %v1262
        %2802 = vmatpush1.bf16.msra.mxu0 %v1261
        %2803 = vmatprep.subr.bf16.mxu0 %v1264
        %2804 = vmatpush1.bf16.msra.mxu0 %v1263
        %2805 = vmatprep.subr.bf16.mxu0 %v1266
        %2806 = vmatpush1.bf16.msra.mxu0 %v1265
        %2807 = vmatprep.subr.bf16.mxu0 0
        %2808 = vmatpush1.bf16.msra.mxu0 0
        %2809 = vmatprep.subr.bf16.mxu0 0
        %2810 = vmatpush1.bf16.msra.mxu0 0
        %2811 = vmatprep.subr.bf16.mxu0 0
        %2812 = vmatpush1.bf16.msra.mxu0 0
        %2813 = vmatprep.subr.bf16.mxu0 0
        %2814 = vmatpush1.bf16.msra.mxu0 0
        %2815 = vmatprep.subr.bf16.mxu0 0
        %2816 = vmatpush1.bf16.msra.mxu0 0
        %2817 = vmatprep.subr.bf16.mxu0 0
        %2818 = vmatpush1.bf16.msra.mxu0 0
        %2819 = vmatprep.subr.bf16.mxu0 0
        %2820 = vmatpush1.bf16.msra.mxu0 0
        %2821 = vmatprep.mubr.bf16.mxu0 %v2657
        %2822 = vmatmul.mubr.bf16.gmra.mrb[0].mxu0 %v2514
        %v2823 = vpop.f32.mrb[0].mxu0
        %v2824 = vadd.f32 %v2783, %v2823
        %v2825 = vpop.f32.mrb[0].mxu0
        %v2826 = vadd.f32 %v2785, %v2825
        %v2827 = vpop.f32.mrb[0].mxu0
        %v2828 = vpop.f32.mrb[0].mxu0
        %2829 = vdwg.mxu0
        %2830 = vmatprep.subr.bf16.mxu0 %v1400
        %2831 = vmatpush1.bf16.msra.mxu0 %v1399
        %2832 = vmatprep.subr.bf16.mxu0 %v1402
        %2833 = vmatpush1.bf16.msra.mxu0 %v1401
        %2834 = vmatprep.subr.bf16.mxu0 %v1404
        %2835 = vmatpush1.bf16.msra.mxu0 %v1403
        %2836 = vmatprep.subr.bf16.mxu0 %v1406
        %2837 = vmatpush1.bf16.msra.mxu0 %v1405
        %2838 = vmatprep.subr.bf16.mxu0 %v1408
        %2839 = vmatpush1.bf16.msra.mxu0 %v1407
        %2840 = vmatprep.subr.bf16.mxu0 %v1410
        %2841 = vmatpush1.bf16.msra.mxu0 %v1409
        %2842 = vmatprep.subr.bf16.mxu0 %v1412
        %2843 = vmatpush1.bf16.msra.mxu0 %v1411
        %2844 = vmatprep.subr.bf16.mxu0 %v1414
        %2845 = vmatpush1.bf16.msra.mxu0 %v1413
        %2846 = vmatprep.subr.bf16.mxu0 %v1416
        %2847 = vmatpush1.bf16.msra.mxu0 %v1415
        %2848 = vmatprep.subr.bf16.mxu0 0
        %2849 = vmatpush1.bf16.msra.mxu0 0
        %2850 = vmatprep.subr.bf16.mxu0 0
        %2851 = vmatpush1.bf16.msra.mxu0 0
        %2852 = vmatprep.subr.bf16.mxu0 0
        %2853 = vmatpush1.bf16.msra.mxu0 0
        %2854 = vmatprep.subr.bf16.mxu0 0
        %2855 = vmatpush1.bf16.msra.mxu0 0
        %2856 = vmatprep.subr.bf16.mxu0 0
        %2857 = vmatpush1.bf16.msra.mxu0 0
        %2858 = vmatprep.subr.bf16.mxu0 0
        %2859 = vmatpush1.bf16.msra.mxu0 0
        %2860 = vmatprep.subr.bf16.mxu0 0
        %2861 = vmatpush1.bf16.msra.mxu0 0
        %2862 = vmatprep.mubr.bf16.mxu0 %v2701
        %2863 = vmatmul.mubr.bf16.gmra.mrb[0].mxu0 %v2610
        %v2864 = vpop.f32.mrb[0].mxu0
        %v2865 = vadd.f32 0.0, %v2864
        %v2866 = vpop.f32.mrb[0].mxu0
        %v2867 = vadd.f32 0.0, %v2866
        %v2868 = vpop.f32.mrb[0].mxu0
        %v2869 = vpop.f32.mrb[0].mxu0
        %2870 = vdwg.mxu0
        %v2871 = vadd.f32 %v2824, %v2865
        %v2872 = vadd.f32 %v2826, %v2867
        %v2873 = vmax.f32 %v2746, %v2871
        %v2874 = vmax.f32 %v2747, %v2872
        %2875 = vmatprep.subr.bf16.mxu0 %v1573
        %2876 = vmatpush1.bf16.msra.mxu0 %v1572
        %2877 = vmatprep.subr.bf16.mxu0 %v1575
        %2878 = vmatpush1.bf16.msra.mxu0 %v1574
        %2879 = vmatprep.subr.bf16.mxu0 %v1577
        %2880 = vmatpush1.bf16.msra.mxu0 %v1576
        %2881 = vmatprep.subr.bf16.mxu0 %v1579
        %2882 = vmatpush1.bf16.msra.mxu0 %v1578
        %2883 = vmatprep.subr.bf16.mxu0 %v1581
        %2884 = vmatpush1.bf16.msra.mxu0 %v1580
        %2885 = vmatprep.subr.bf16.mxu0 %v1583
        %2886 = vmatpush1.bf16.msra.mxu0 %v1582
        %2887 = vmatprep.subr.bf16.mxu0 %v1585
        %2888 = vmatpush1.bf16.msra.mxu0 %v1584
        %2889 = vmatprep.subr.bf16.mxu0 %v1587
        %2890 = vmatpush1.bf16.msra.mxu0 %v1586
        %2891 = vmatprep.subr.bf16.mxu0 %v1589
        %2892 = vmatpush1.bf16.msra.mxu0 %v1588
        %2893 = vmatprep.subr.bf16.mxu0 0
        %2894 = vmatpush1.bf16.msra.mxu0 0
        %2895 = vmatprep.subr.bf16.mxu0 0
        %2896 = vmatpush1.bf16.msra.mxu0 0
        %2897 = vmatprep.subr.bf16.mxu0 0
        %2898 = vmatpush1.bf16.msra.mxu0 0
        %2899 = vmatprep.subr.bf16.mxu0 0
        %2900 = vmatpush1.bf16.msra.mxu0 0
        %2901 = vmatprep.subr.bf16.mxu0 0
        %2902 = vmatpush1.bf16.msra.mxu0 0
        %2903 = vmatprep.subr.bf16.mxu0 0
        %2904 = vmatpush1.bf16.msra.mxu0 0
        %2905 = vmatprep.subr.bf16.mxu0 0
        %2906 = vmatpush1.bf16.msra.mxu0 0
        %2907 = vmatprep.mubr.bf16.mxu0 %v2613
        %2908 = vmatmul.mubr.bf16.gmra.mrb[0].mxu0 %v2562
        %v2909 = vpop.f32.mrb[0].mxu0
        %v2910 = vadd.f32 0.0, %v2909
        %v2911 = vpop.f32.mrb[0].mxu0
        %v2912 = vadd.f32 0.0, %v2911
        %v2913 = vpop.f32.mrb[0].mxu0
        %v2914 = vpop.f32.mrb[0].mxu0
        %2915 = vdwg.mxu0
        %2916 = vmatprep.subr.bf16.mxu0 %v1704
        %2917 = vmatpush1.bf16.msra.mxu0 %v1703
        %2918 = vmatprep.subr.bf16.mxu0 %v1706
        %2919 = vmatpush1.bf16.msra.mxu0 %v1705
        %2920 = vmatprep.subr.bf16.mxu0 %v1708
        %2921 = vmatpush1.bf16.msra.mxu0 %v1707
        %2922 = vmatprep.subr.bf16.mxu0 %v1710
        %2923 = vmatpush1.bf16.msra.mxu0 %v1709
        %2924 = vmatprep.subr.bf16.mxu0 %v1712
        %2925 = vmatpush1.bf16.msra.mxu0 %v1711
        %2926 = vmatprep.subr.bf16.mxu0 %v1714
        %2927 = vmatpush1.bf16.msra.mxu0 %v1713
        %2928 = vmatprep.subr.bf16.mxu0 %v1716
        %2929 = vmatpush1.bf16.msra.mxu0 %v1715
        %2930 = vmatprep.subr.bf16.mxu0 %v1718
        %2931 = vmatpush1.bf16.msra.mxu0 %v1717
        %2932 = vmatprep.subr.bf16.mxu0 %v1720
        %2933 = vmatpush1.bf16.msra.mxu0 %v1719
        %2934 = vmatprep.subr.bf16.mxu0 0
        %2935 = vmatpush1.bf16.msra.mxu0 0
        %2936 = vmatprep.subr.bf16.mxu0 0
        %2937 = vmatpush1.bf16.msra.mxu0 0
        %2938 = vmatprep.subr.bf16.mxu0 0
        %2939 = vmatpush1.bf16.msra.mxu0 0
        %2940 = vmatprep.subr.bf16.mxu0 0
        %2941 = vmatpush1.bf16.msra.mxu0 0
        %2942 = vmatprep.subr.bf16.mxu0 0
        %2943 = vmatpush1.bf16.msra.mxu0 0
        %2944 = vmatprep.subr.bf16.mxu0 0
        %2945 = vmatpush1.bf16.msra.mxu0 0
        %2946 = vmatprep.subr.bf16.mxu0 0
        %2947 = vmatpush1.bf16.msra.mxu0 0
        %2948 = vmatprep.mubr.bf16.mxu0 %v2657
        %2949 = vmatmul.mubr.bf16.gmra.mrb[0].mxu0 %v2514
        %v2950 = vpop.f32.mrb[0].mxu0
        %v2951 = vadd.f32 %v2910, %v2950
        %v2952 = vpop.f32.mrb[0].mxu0
        %v2953 = vadd.f32 %v2912, %v2952
        %v2954 = vpop.f32.mrb[0].mxu0
        %v2955 = vpop.f32.mrb[0].mxu0
        %2956 = vdwg.mxu0
        %2957 = vmatprep.subr.bf16.mxu0 %v1854
        %2958 = vmatpush1.bf16.msra.mxu0 %v1853
        %2959 = vmatprep.subr.bf16.mxu0 %v1856
        %2960 = vmatpush1.bf16.msra.mxu0 %v1855
        %2961 = vmatprep.subr.bf16.mxu0 %v1858
        %2962 = vmatpush1.bf16.msra.mxu0 %v1857
        %2963 = vmatprep.subr.bf16.mxu0 %v1860
        %2964 = vmatpush1.bf16.msra.mxu0 %v1859
        %2965 = vmatprep.subr.bf16.mxu0 %v1862
        %2966 = vmatpush1.bf16.msra.mxu0 %v1861
        %2967 = vmatprep.subr.bf16.mxu0 %v1864
        %2968 = vmatpush1.bf16.msra.mxu0 %v1863
        %2969 = vmatprep.subr.bf16.mxu0 %v1866
        %2970 = vmatpush1.bf16.msra.mxu0 %v1865
        %2971 = vmatprep.subr.bf16.mxu0 %v1868
        %2972 = vmatpush1.bf16.msra.mxu0 %v1867
        %2973 = vmatprep.subr.bf16.mxu0 %v1870
        %2974 = vmatpush1.bf16.msra.mxu0 %v1869
        %2975 = vmatprep.subr.bf16.mxu0 0
        %2976 = vmatpush1.bf16.msra.mxu0 0
        %2977 = vmatprep.subr.bf16.mxu0 0
        %2978 = vmatpush1.bf16.msra.mxu0 0
        %2979 = vmatprep.subr.bf16.mxu0 0
        %2980 = vmatpush1.bf16.msra.mxu0 0
        %2981 = vmatprep.subr.bf16.mxu0 0
        %2982 = vmatpush1.bf16.msra.mxu0 0
        %2983 = vmatprep.subr.bf16.mxu0 0
        %2984 = vmatpush1.bf16.msra.mxu0 0
        %2985 = vmatprep.subr.bf16.mxu0 0
        %2986 = vmatpush1.bf16.msra.mxu0 0
        %2987 = vmatprep.subr.bf16.mxu0 0
        %2988 = vmatpush1.bf16.msra.mxu0 0
        %2989 = vmatprep.mubr.bf16.mxu0 %v2701
        %2990 = vmatmul.mubr.bf16.gmra.mrb[0].mxu0 %v2610
        %v2991 = vpop.f32.mrb[0].mxu0
        %v2992 = vadd.f32 0.0, %v2991
        %v2993 = vpop.f32.mrb[0].mxu0
        %v2994 = vadd.f32 0.0, %v2993
        %v2995 = vpop.f32.mrb[0].mxu0
        %v2996 = vpop.f32.mrb[0].mxu0
        %2997 = vdwg.mxu0
        %v2998 = vadd.f32 %v2951, %v2992
        %v2999 = vadd.f32 %v2953, %v2994
        %v3000 = vmax.f32 %v2873, %v2998
        %v3001 = vmax.f32 %v2874, %v2999
        %v3002 = vld [vmem:[%s3] sm:$0x3]
        %v3004 = vlaneseq
        %v3005 = vshrl.u32 %v3004, 7
        %v3006 = vsub.s32 0, %v3005
        %v3007 = vrot.slane %v3002, %v3006
        %v3008 = vlaneseq
        %v3009 = vshrl.u32 %v3008, 7
        %v3010 = vsub.s32 1, %v3009
        %v3011 = vrot.slane %v3002, %v3010
        %v3014 = vadd.f32 %v3000, %v3007
        %v3015 = vadd.f32 %v3001, %v3011
        %vm3016 = vcmp.gt.f32.partialorder %v3014, 0.0
        %vm3017 = vcmp.gt.f32.partialorder %v3015, 0.0
        %v3018 = vmul.f32 %v3014, 0.1
        %v3019 = vmul.f32 %v3015, 0.1
        %v3020 = vsel %vm3016, %v3014, %v3018
        %v3021 = vsel %vm3017, %v3015, %v3019
        %v3022 = vpack.c.bf16 %v3020, %v3020
        %v3023 = vpack.c.bf16 %v3021, %v3021
        %v3024 = vld [vmem:[%s4] sm:$0x1]
        %vm3025 = vcmask 64512
        %v3027 = vsel %vm3025, %v3024, 0
        %vm3029 = vcmask 1043456
        %v3031 = vsel %vm3029, %v3022, 0
        %v3034 = vsel %vm3029, %v3023, 0
        %3036 = vmatprep.subr.bf16.mxu0 %v3034
        %3037 = vmatpush1.bf16.msra.mxu0 %v3031
        %3038 = vmatprep.subr.bf16.mxu0 0
        %3039 = vmatpush1.bf16.msra.mxu0 0
        %3040 = vmatprep.subr.bf16.mxu0 0
        %3041 = vmatpush1.bf16.msra.mxu0 0
        %3042 = vmatprep.subr.bf16.mxu0 0
        %3043 = vmatpush1.bf16.msra.mxu0 0
        %3044 = vmatprep.subr.bf16.mxu0 0
        %3045 = vmatpush1.bf16.msra.mxu0 0
        %3046 = vmatprep.subr.bf16.mxu0 0
        %3047 = vmatpush1.bf16.msra.mxu0 0
        %3048 = vmatprep.subr.bf16.mxu0 0
        %3049 = vmatpush1.bf16.msra.mxu0 0
        %3050 = vmatprep.subr.bf16.mxu0 0
        %3051 = vmatpush1.bf16.msra.mxu0 0
        %3052 = vmatprep.subr.bf16.mxu0 0
        %3053 = vmatpush1.bf16.msra.mxu0 0
        %3054 = vmatprep.subr.bf16.mxu0 0
        %3055 = vmatpush1.bf16.msra.mxu0 0
        %3056 = vmatprep.subr.bf16.mxu0 0
        %3057 = vmatpush1.bf16.msra.mxu0 0
        %3058 = vmatprep.subr.bf16.mxu0 0
        %3059 = vmatpush1.bf16.msra.mxu0 0
        %3060 = vmatprep.subr.bf16.mxu0 0
        %3061 = vmatpush1.bf16.msra.mxu0 0
        %3062 = vmatprep.subr.bf16.mxu0 0
        %3063 = vmatpush1.bf16.msra.mxu0 0
        %3064 = vmatprep.subr.bf16.mxu0 0
        %3065 = vmatpush1.bf16.msra.mxu0 0
        %3066 = vmatprep.subr.bf16.mxu0 0
        %3067 = vmatpush1.bf16.msra.mxu0 0
        %3068 = vmatprep.mubr.bf16.mxu0 0
        %3069 = vmatmul.mubr.bf16.gmra.mrb[0].mxu0 %v3027
        %v3070 = vpop.f32.mrb[0].mxu0
        %v3071 = vadd.f32 0.0, %v3070
        %v3072 = vpop.f32.mrb[0].mxu0
        %v3073 = vadd.f32 0.0, %v3072
        %v3074 = vpop.f32.mrb[0].mxu0
        %v3075 = vpop.f32.mrb[0].mxu0
        %3076 = vdwg.mxu0
        %v3077 = vpack.c.bf16 %v3071, %v3071
        %v3078 = vpack.c.bf16 %v3073, %v3073
        %s3079 = scalar_lea.vmem %s4, 1
        %v3080 = vld [vmem:[%s3079] sm:$0x1]
        %v3082 = vsel %vm3025, %v3080, 0
        %3084 = vmatprep.subr.bf16.mxu0 %v3034
        %3085 = vmatpush1.bf16.msra.mxu0 %v3031
        %3086 = vmatprep.subr.bf16.mxu0 0
        %3087 = vmatpush1.bf16.msra.mxu0 0
        %3088 = vmatprep.subr.bf16.mxu0 0
        %3089 = vmatpush1.bf16.msra.mxu0 0
        %3090 = vmatprep.subr.bf16.mxu0 0
        %3091 = vmatpush1.bf16.msra.mxu0 0
        %3092 = vmatprep.subr.bf16.mxu0 0
        %3093 = vmatpush1.bf16.msra.mxu0 0
        %3094 = vmatprep.subr.bf16.mxu0 0
        %3095 = vmatpush1.bf16.msra.mxu0 0
        %3096 = vmatprep.subr.bf16.mxu0 0
        %3097 = vmatpush1.bf16.msra.mxu0 0
        %3098 = vmatprep.subr.bf16.mxu0 0
        %3099 = vmatpush1.bf16.msra.mxu0 0
        %3100 = vmatprep.subr.bf16.mxu0 0
        %3101 = vmatpush1.bf16.msra.mxu0 0
        %3102 = vmatprep.subr.bf16.mxu0 0
        %3103 = vmatpush1.bf16.msra.mxu0 0
        %3104 = vmatprep.subr.bf16.mxu0 0
        %3105 = vmatpush1.bf16.msra.mxu0 0
        %3106 = vmatprep.subr.bf16.mxu0 0
        %3107 = vmatpush1.bf16.msra.mxu0 0
        %3108 = vmatprep.subr.bf16.mxu0 0
        %3109 = vmatpush1.bf16.msra.mxu0 0
        %3110 = vmatprep.subr.bf16.mxu0 0
        %3111 = vmatpush1.bf16.msra.mxu0 0
        %3112 = vmatprep.subr.bf16.mxu0 0
        %3113 = vmatpush1.bf16.msra.mxu0 0
        %3114 = vmatprep.subr.bf16.mxu0 0
        %3115 = vmatpush1.bf16.msra.mxu0 0
        %3116 = vmatprep.mubr.bf16.mxu0 0
        %3117 = vmatmul.mubr.bf16.gmra.mrb[0].mxu0 %v3082
        %v3118 = vpop.f32.mrb[0].mxu0
        %v3119 = vadd.f32 0.0, %v3118
        %v3120 = vpop.f32.mrb[0].mxu0
        %v3121 = vadd.f32 0.0, %v3120
        %v3122 = vpop.f32.mrb[0].mxu0
        %v3123 = vpop.f32.mrb[0].mxu0
        %3124 = vdwg.mxu0
        %v3125 = vpack.c.bf16 %v3119, %v3119
        %v3126 = vpack.c.bf16 %v3121, %v3121
        %s3127 = scalar_lea.vmem %s4, 2
        %v3128 = vld [vmem:[%s3127] sm:$0x1]
        %v3130 = vsel %vm3025, %v3128, 0
        %3132 = vmatprep.subr.bf16.mxu0 %v3034
        %3133 = vmatpush1.bf16.msra.mxu0 %v3031
        %3134 = vmatprep.subr.bf16.mxu0 0
        %3135 = vmatpush1.bf16.msra.mxu0 0
        %3136 = vmatprep.subr.bf16.mxu0 0
        %3137 = vmatpush1.bf16.msra.mxu0 0
        %3138 = vmatprep.subr.bf16.mxu0 0
        %3139 = vmatpush1.bf16.msra.mxu0 0
        %3140 = vmatprep.subr.bf16.mxu0 0
        %3141 = vmatpush1.bf16.msra.mxu0 0
        %3142 = vmatprep.subr.bf16.mxu0 0
        %3143 = vmatpush1.bf16.msra.mxu0 0
        %3144 = vmatprep.subr.bf16.mxu0 0
        %3145 = vmatpush1.bf16.msra.mxu0 0
        %3146 = vmatprep.subr.bf16.mxu0 0
        %3147 = vmatpush1.bf16.msra.mxu0 0
        %3148 = vmatprep.subr.bf16.mxu0 0
        %3149 = vmatpush1.bf16.msra.mxu0 0
        %3150 = vmatprep.subr.bf16.mxu0 0
        %3151 = vmatpush1.bf16.msra.mxu0 0
        %3152 = vmatprep.subr.bf16.mxu0 0
        %3153 = vmatpush1.bf16.msra.mxu0 0
        %3154 = vmatprep.subr.bf16.mxu0 0
        %3155 = vmatpush1.bf16.msra.mxu0 0
        %3156 = vmatprep.subr.bf16.mxu0 0
        %3157 = vmatpush1.bf16.msra.mxu0 0
        %3158 = vmatprep.subr.bf16.mxu0 0
        %3159 = vmatpush1.bf16.msra.mxu0 0
        %3160 = vmatprep.subr.bf16.mxu0 0
        %3161 = vmatpush1.bf16.msra.mxu0 0
        %3162 = vmatprep.subr.bf16.mxu0 0
        %3163 = vmatpush1.bf16.msra.mxu0 0
        %3164 = vmatprep.mubr.bf16.mxu0 0
        %3165 = vmatmul.mubr.bf16.gmra.mrb[0].mxu0 %v3130
        %v3166 = vpop.f32.mrb[0].mxu0
        %v3167 = vadd.f32 0.0, %v3166
        %v3168 = vpop.f32.mrb[0].mxu0
        %v3169 = vadd.f32 0.0, %v3168
        %v3170 = vpop.f32.mrb[0].mxu0
        %v3171 = vpop.f32.mrb[0].mxu0
        %3172 = vdwg.mxu0
        %v3173 = vpack.c.bf16 %v3167, %v3167
        %v3174 = vpack.c.bf16 %v3169, %v3169
        %v3175 = vld [vmem:[%s5] sm:$0xf]
        %v3176 = vld [vmem:[%s5 + $0x4] sm:$0xf]
        %v3177 = vld [vmem:[%s5 + $0x8] sm:$0xf]
        %v3178 = vld [vmem:[%s5 + $0xc] sm:$0xf]
        %v3179 = vld [vmem:[%s5 + $0x10] sm:$0xf]
        %v3180 = vld [vmem:[%s5 + $0x14] sm:$0xf]
        %v3181 = vld [vmem:[%s5 + $0x18] sm:$0xf]
        %v3182 = vld [vmem:[%s5 + $0x1c] sm:$0xf]
        %v3183 = vld [vmem:[%s5 + $0x20] sm:$0xf]
        %v3184 = vld [vmem:[%s5 + $0x24] sm:$0xf]
        %v3185 = vld [vmem:[%s5 + $0x28] sm:$0xf]
        %v3186 = vld [vmem:[%s5 + $0x2c] sm:$0xf]
        %v3187 = vld [vmem:[%s5 + $0x30] sm:$0xf]
        %v3188 = vld [vmem:[%s5 + $0x34] sm:$0xf]
        %v3189 = vld [vmem:[%s5 + $0x38] sm:$0xf]
        %v3190 = vld [vmem:[%s5 + $0x3c] sm:$0xf]
        %v3191 = vld [vmem:[%s5 + $0x40] sm:$0xf]
        %v3192 = vld [vmem:[%s5 + $0x44] sm:$0xf]
        %v3193 = vld [vmem:[%s5 + $0x48] sm:$0xf]
        %v3194 = vld [vmem:[%s5 + $0x4c] sm:$0xf]
        %v3195 = vld [vmem:[%s5 + $0x50] sm:$0xf]
        %v3196 = vld [vmem:[%s5 + $0x54] sm:$0xf]
        %v3197 = vld [vmem:[%s5 + $0x58] sm:$0xf]
        %v3198 = vld [vmem:[%s5 + $0x5c] sm:$0xf]
        %v3199 = vld [vmem:[%s5 + $0x60] sm:$0xf]
        %v3200 = vld [vmem:[%s5 + $0x64] sm:$0xf]
        %v3201 = vld [vmem:[%s5 + $0x68] sm:$0xf]
        %v3202 = vld [vmem:[%s5 + $0x6c] sm:$0xf]
        %v3203 = vld [vmem:[%s5 + $0x70] sm:$0xf]
        %v3204 = vld [vmem:[%s5 + $0x74] sm:$0xf]
        %v3205 = vld [vmem:[%s5 + $0x78] sm:$0xf]
        %v3206 = vld [vmem:[%s5 + $0x7c] sm:$0xf]
        %s3207 = scalar_lea.vmem %s5, 384
        %v3208 = vld [vmem:[%s3207] sm:$0xf]
        %v3209 = vld [vmem:[%s3207 + $0x4] sm:$0xf]
        %v3210 = vld [vmem:[%s3207 + $0x8] sm:$0xf]
        %v3211 = vld [vmem:[%s3207 + $0xc] sm:$0xf]
        %v3212 = vld [vmem:[%s3207 + $0x10] sm:$0xf]
        %v3213 = vld [vmem:[%s3207 + $0x14] sm:$0xf]
        %v3214 = vld [vmem:[%s3207 + $0x18] sm:$0xf]
        %v3215 = vld [vmem:[%s3207 + $0x1c] sm:$0xf]
        %v3216 = vld [vmem:[%s3207 + $0x20] sm:$0xf]
        %v3217 = vld [vmem:[%s3207 + $0x24] sm:$0xf]
        %v3218 = vld [vmem:[%s3207 + $0x28] sm:$0xf]
        %v3219 = vld [vmem:[%s3207 + $0x2c] sm:$0xf]
        %v3220 = vld [vmem:[%s3207 + $0x30] sm:$0xf]
        %v3221 = vld [vmem:[%s3207 + $0x34] sm:$0xf]
        %v3222 = vld [vmem:[%s3207 + $0x38] sm:$0xf]
        %v3223 = vld [vmem:[%s3207 + $0x3c] sm:$0xf]
        %v3224 = vld [vmem:[%s3207 + $0x40] sm:$0xf]
        %v3225 = vld [vmem:[%s3207 + $0x44] sm:$0xf]
        %v3226 = vld [vmem:[%s3207 + $0x48] sm:$0xf]
        %v3227 = vld [vmem:[%s3207 + $0x4c] sm:$0xf]
        %v3228 = vld [vmem:[%s3207 + $0x50] sm:$0xf]
        %v3229 = vld [vmem:[%s3207 + $0x54] sm:$0xf]
        %v3230 = vld [vmem:[%s3207 + $0x58] sm:$0xf]
        %v3231 = vld [vmem:[%s3207 + $0x5c] sm:$0xf]
        %v3232 = vld [vmem:[%s3207 + $0x60] sm:$0xf]
        %v3233 = vld [vmem:[%s3207 + $0x64] sm:$0xf]
        %v3234 = vld [vmem:[%s3207 + $0x68] sm:$0xf]
        %v3235 = vld [vmem:[%s3207 + $0x6c] sm:$0xf]
        %v3236 = vld [vmem:[%s3207 + $0x70] sm:$0xf]
        %v3237 = vld [vmem:[%s3207 + $0x74] sm:$0xf]
        %v3238 = vld [vmem:[%s3207 + $0x78] sm:$0xf]
        %v3239 = vld [vmem:[%s3207 + $0x7c] sm:$0xf]
        %v3272 = vunpack.c.l.b16 %v3208
        %v3273 = vunpack.c.l.b16 %v3209
        %v3274 = vunpack.c.l.b16 %v3210
        %v3275 = vunpack.c.l.b16 %v3211
        %v3276 = vunpack.c.l.b16 %v3212
        %v3277 = vunpack.c.l.b16 %v3213
        %v3278 = vunpack.c.l.b16 %v3214
        %v3279 = vunpack.c.l.b16 %v3215
        %v3280 = vunpack.c.l.b16 %v3216
        %v3281 = vunpack.c.l.b16 %v3217
        %v3282 = vunpack.c.l.b16 %v3218
        %v3283 = vunpack.c.l.b16 %v3219
        %v3284 = vunpack.c.l.b16 %v3220
        %v3285 = vunpack.c.l.b16 %v3221
        %v3286 = vunpack.c.l.b16 %v3222
        %v3287 = vunpack.c.l.b16 %v3223
        %v3288 = vunpack.c.l.b16 %v3224
        %v3289 = vunpack.c.l.b16 %v3225
        %v3290 = vunpack.c.l.b16 %v3226
        %v3291 = vunpack.c.l.b16 %v3227
        %v3292 = vunpack.c.l.b16 %v3228
        %v3293 = vunpack.c.l.b16 %v3229
        %v3294 = vunpack.c.l.b16 %v3230
        %v3295 = vunpack.c.l.b16 %v3231
        %v3296 = vunpack.c.l.b16 %v3232
        %v3297 = vunpack.c.l.b16 %v3233
        %v3298 = vunpack.c.l.b16 %v3234
        %v3299 = vunpack.c.l.b16 %v3235
        %v3300 = vunpack.c.l.b16 %v3236
        %v3301 = vunpack.c.l.b16 %v3237
        %v3302 = vunpack.c.l.b16 %v3238
        %v3303 = vunpack.c.l.b16 %v3239
        %v3304 = vpack.c.b16 %v3273, %v3272
        %v3305 = vpack.c.b16 %v3275, %v3274
        %v3306 = vpack.c.b16 %v3277, %v3276
        %v3307 = vpack.c.b16 %v3279, %v3278
        %v3308 = vpack.c.b16 %v3281, %v3280
        %v3309 = vpack.c.b16 %v3283, %v3282
        %v3310 = vpack.c.b16 %v3285, %v3284
        %v3311 = vpack.c.b16 %v3287, %v3286
        %v3312 = vpack.c.b16 %v3289, %v3288
        %v3313 = vpack.c.b16 %v3291, %v3290
        %v3314 = vpack.c.b16 %v3293, %v3292
        %v3315 = vpack.c.b16 %v3295, %v3294
        %v3316 = vpack.c.b16 %v3297, %v3296
        %v3317 = vpack.c.b16 %v3299, %v3298
        %v3318 = vpack.c.b16 %v3301, %v3300
        %v3319 = vpack.c.b16 %v3303, %v3302
        %3336 = vmatprep.subr.bf16.mxu0 0
        %3337 = vmatpush1.bf16.msra.mxu0 %v3304
        %3338 = vmatprep.subr.bf16.mxu0 0
        %3339 = vmatpush1.bf16.msra.mxu0 %v3305
        %3340 = vmatprep.subr.bf16.mxu0 0
        %3341 = vmatpush1.bf16.msra.mxu0 %v3306
        %3342 = vmatprep.subr.bf16.mxu0 0
        %3343 = vmatpush1.bf16.msra.mxu0 %v3307
        %3344 = vmatprep.subr.bf16.mxu0 0
        %3345 = vmatpush1.bf16.msra.mxu0 %v3308
        %3346 = vmatprep.subr.bf16.mxu0 0
        %3347 = vmatpush1.bf16.msra.mxu0 %v3309
        %3348 = vmatprep.subr.bf16.mxu0 0
        %3349 = vmatpush1.bf16.msra.mxu0 %v3310
        %3350 = vmatprep.subr.bf16.mxu0 0
        %3351 = vmatpush1.bf16.msra.mxu0 %v3311
        %3352 = vmatprep.subr.bf16.mxu0 0
        %3353 = vmatpush1.bf16.msra.mxu0 %v3312
        %3354 = vmatprep.subr.bf16.mxu0 0
        %3355 = vmatpush1.bf16.msra.mxu0 %v3313
        %3356 = vmatprep.subr.bf16.mxu0 0
        %3357 = vmatpush1.bf16.msra.mxu0 %v3314
        %3358 = vmatprep.subr.bf16.mxu0 0
        %3359 = vmatpush1.bf16.msra.mxu0 %v3315
        %3360 = vmatprep.subr.bf16.mxu0 0
        %3361 = vmatpush1.bf16.msra.mxu0 %v3316
        %3362 = vmatprep.subr.bf16.mxu0 0
        %3363 = vmatpush1.bf16.msra.mxu0 %v3317
        %3364 = vmatprep.subr.bf16.mxu0 0
        %3365 = vmatpush1.bf16.msra.mxu0 %v3318
        %3366 = vmatprep.subr.bf16.mxu0 0
        %3367 = vmatpush1.bf16.msra.mxu0 %v3319
        %3368 = vmatprep.mubr.bf16.mxu0 %v3126
        %3369 = vmatmul.mubr.bf16.gmra.mrb[0].mxu0 %v3125
        %v3370 = vpop.f32.mrb[0].mxu0
        %v3371 = vadd.f32 0.0, %v3370
        %v3372 = vpop.f32.mrb[0].mxu0
        %v3373 = vpop.f32.mrb[0].mxu0
        %v3374 = vpop.f32.mrb[0].mxu0
        %3375 = vdwg.mxu0
        %v3408 = vunpack.c.l.b16 %v3175
        %v3409 = vunpack.c.l.b16 %v3176
        %v3410 = vunpack.c.l.b16 %v3177
        %v3411 = vunpack.c.l.b16 %v3178
        %v3412 = vunpack.c.l.b16 %v3179
        %v3413 = vunpack.c.l.b16 %v3180
        %v3414 = vunpack.c.l.b16 %v3181
        %v3415 = vunpack.c.l.b16 %v3182
        %v3416 = vunpack.c.l.b16 %v3183
        %v3417 = vunpack.c.l.b16 %v3184
        %v3418 = vunpack.c.l.b16 %v3185
        %v3419 = vunpack.c.l.b16 %v3186
        %v3420 = vunpack.c.l.b16 %v3187
        %v3421 = vunpack.c.l.b16 %v3188
        %v3422 = vunpack.c.l.b16 %v3189
        %v3423 = vunpack.c.l.b16 %v3190
        %v3424 = vunpack.c.l.b16 %v3191
        %v3425 = vunpack.c.l.b16 %v3192
        %v3426 = vunpack.c.l.b16 %v3193
        %v3427 = vunpack.c.l.b16 %v3194
        %v3428 = vunpack.c.l.b16 %v3195
        %v3429 = vunpack.c.l.b16 %v3196
        %v3430 = vunpack.c.l.b16 %v3197
        %v3431 = vunpack.c.l.b16 %v3198
        %v3432 = vunpack.c.l.b16 %v3199
        %v3433 = vunpack.c.l.b16 %v3200
        %v3434 = vunpack.c.l.b16 %v3201
        %v3435 = vunpack.c.l.b16 %v3202
        %v3436 = vunpack.c.l.b16 %v3203
        %v3437 = vunpack.c.l.b16 %v3204
        %v3438 = vunpack.c.l.b16 %v3205
        %v3439 = vunpack.c.l.b16 %v3206
        %v3440 = vpack.c.b16 %v3409, %v3408
        %v3441 = vpack.c.b16 %v3411, %v3410
        %v3442 = vpack.c.b16 %v3413, %v3412
        %v3443 = vpack.c.b16 %v3415, %v3414
        %v3444 = vpack.c.b16 %v3417, %v3416
        %v3445 = vpack.c.b16 %v3419, %v3418
        %v3446 = vpack.c.b16 %v3421, %v3420
        %v3447 = vpack.c.b16 %v3423, %v3422
        %v3448 = vpack.c.b16 %v3425, %v3424
        %v3449 = vpack.c.b16 %v3427, %v3426
        %v3450 = vpack.c.b16 %v3429, %v3428
        %v3451 = vpack.c.b16 %v3431, %v3430
        %v3452 = vpack.c.b16 %v3433, %v3432
        %v3453 = vpack.c.b16 %v3435, %v3434
        %v3454 = vpack.c.b16 %v3437, %v3436
        %v3455 = vpack.c.b16 %v3439, %v3438
        %3472 = vmatprep.subr.bf16.mxu0 0
        %3473 = vmatpush1.bf16.msra.mxu0 %v3440
        %3474 = vmatprep.subr.bf16.mxu0 0
        %3475 = vmatpush1.bf16.msra.mxu0 %v3441
        %3476 = vmatprep.subr.bf16.mxu0 0
        %3477 = vmatpush1.bf16.msra.mxu0 %v3442
        %3478 = vmatprep.subr.bf16.mxu0 0
        %3479 = vmatpush1.bf16.msra.mxu0 %v3443
        %3480 = vmatprep.subr.bf16.mxu0 0
        %3481 = vmatpush1.bf16.msra.mxu0 %v3444
        %3482 = vmatprep.subr.bf16.mxu0 0
        %3483 = vmatpush1.bf16.msra.mxu0 %v3445
        %3484 = vmatprep.subr.bf16.mxu0 0
        %3485 = vmatpush1.bf16.msra.mxu0 %v3446
        %3486 = vmatprep.subr.bf16.mxu0 0
        %3487 = vmatpush1.bf16.msra.mxu0 %v3447
        %3488 = vmatprep.subr.bf16.mxu0 0
        %3489 = vmatpush1.bf16.msra.mxu0 %v3448
        %3490 = vmatprep.subr.bf16.mxu0 0
        %3491 = vmatpush1.bf16.msra.mxu0 %v3449
        %3492 = vmatprep.subr.bf16.mxu0 0
        %3493 = vmatpush1.bf16.msra.mxu0 %v3450
        %3494 = vmatprep.subr.bf16.mxu0 0
        %3495 = vmatpush1.bf16.msra.mxu0 %v3451
        %3496 = vmatprep.subr.bf16.mxu0 0
        %3497 = vmatpush1.bf16.msra.mxu0 %v3452
        %3498 = vmatprep.subr.bf16.mxu0 0
        %3499 = vmatpush1.bf16.msra.mxu0 %v3453
        %3500 = vmatprep.subr.bf16.mxu0 0
        %3501 = vmatpush1.bf16.msra.mxu0 %v3454
        %3502 = vmatprep.subr.bf16.mxu0 0
        %3503 = vmatpush1.bf16.msra.mxu0 %v3455
        %3504 = vmatprep.mubr.bf16.mxu0 %v3078
        %3505 = vmatmul.mubr.bf16.gmra.mrb[0].mxu0 %v3077
        %v3506 = vpop.f32.mrb[0].mxu0
        %v3507 = vadd.f32 %v3371, %v3506
        %v3508 = vpop.f32.mrb[0].mxu0
        %v3509 = vpop.f32.mrb[0].mxu0
        %v3510 = vpop.f32.mrb[0].mxu0
        %3511 = vdwg.mxu0
        %s3512 = scalar_lea.vmem %s5, 768
        %v3513 = vld [vmem:[%s3512] sm:$0xf]
        %v3514 = vld [vmem:[%s3512 + $0x4] sm:$0xf]
        %v3515 = vld [vmem:[%s3512 + $0x8] sm:$0xf]
        %v3516 = vld [vmem:[%s3512 + $0xc] sm:$0xf]
        %v3517 = vld [vmem:[%s3512 + $0x10] sm:$0xf]
        %v3518 = vld [vmem:[%s3512 + $0x14] sm:$0xf]
        %v3519 = vld [vmem:[%s3512 + $0x18] sm:$0xf]
        %v3520 = vld [vmem:[%s3512 + $0x1c] sm:$0xf]
        %v3521 = vld [vmem:[%s3512 + $0x20] sm:$0xf]
        %v3522 = vld [vmem:[%s3512 + $0x24] sm:$0xf]
        %v3523 = vld [vmem:[%s3512 + $0x28] sm:$0xf]
        %v3524 = vld [vmem:[%s3512 + $0x2c] sm:$0xf]
        %v3525 = vld [vmem:[%s3512 + $0x30] sm:$0xf]
        %v3526 = vld [vmem:[%s3512 + $0x34] sm:$0xf]
        %v3527 = vld [vmem:[%s3512 + $0x38] sm:$0xf]
        %v3528 = vld [vmem:[%s3512 + $0x3c] sm:$0xf]
        %v3529 = vld [vmem:[%s3512 + $0x40] sm:$0xf]
        %v3530 = vld [vmem:[%s3512 + $0x44] sm:$0xf]
        %v3531 = vld [vmem:[%s3512 + $0x48] sm:$0xf]
        %v3532 = vld [vmem:[%s3512 + $0x4c] sm:$0xf]
        %v3533 = vld [vmem:[%s3512 + $0x50] sm:$0xf]
        %v3534 = vld [vmem:[%s3512 + $0x54] sm:$0xf]
        %v3535 = vld [vmem:[%s3512 + $0x58] sm:$0xf]
        %v3536 = vld [vmem:[%s3512 + $0x5c] sm:$0xf]
        %v3537 = vld [vmem:[%s3512 + $0x60] sm:$0xf]
        %v3538 = vld [vmem:[%s3512 + $0x64] sm:$0xf]
        %v3539 = vld [vmem:[%s3512 + $0x68] sm:$0xf]
        %v3540 = vld [vmem:[%s3512 + $0x6c] sm:$0xf]
        %v3541 = vld [vmem:[%s3512 + $0x70] sm:$0xf]
        %v3542 = vld [vmem:[%s3512 + $0x74] sm:$0xf]
        %v3543 = vld [vmem:[%s3512 + $0x78] sm:$0xf]
        %v3544 = vld [vmem:[%s3512 + $0x7c] sm:$0xf]
        %v3577 = vunpack.c.l.b16 %v3513
        %v3578 = vunpack.c.l.b16 %v3514
        %v3579 = vunpack.c.l.b16 %v3515
        %v3580 = vunpack.c.l.b16 %v3516
        %v3581 = vunpack.c.l.b16 %v3517
        %v3582 = vunpack.c.l.b16 %v3518
        %v3583 = vunpack.c.l.b16 %v3519
        %v3584 = vunpack.c.l.b16 %v3520
        %v3585 = vunpack.c.l.b16 %v3521
        %v3586 = vunpack.c.l.b16 %v3522
        %v3587 = vunpack.c.l.b16 %v3523
        %v3588 = vunpack.c.l.b16 %v3524
        %v3589 = vunpack.c.l.b16 %v3525
        %v3590 = vunpack.c.l.b16 %v3526
        %v3591 = vunpack.c.l.b16 %v3527
        %v3592 = vunpack.c.l.b16 %v3528
        %v3593 = vunpack.c.l.b16 %v3529
        %v3594 = vunpack.c.l.b16 %v3530
        %v3595 = vunpack.c.l.b16 %v3531
        %v3596 = vunpack.c.l.b16 %v3532
        %v3597 = vunpack.c.l.b16 %v3533
        %v3598 = vunpack.c.l.b16 %v3534
        %v3599 = vunpack.c.l.b16 %v3535
        %v3600 = vunpack.c.l.b16 %v3536
        %v3601 = vunpack.c.l.b16 %v3537
        %v3602 = vunpack.c.l.b16 %v3538
        %v3603 = vunpack.c.l.b16 %v3539
        %v3604 = vunpack.c.l.b16 %v3540
        %v3605 = vunpack.c.l.b16 %v3541
        %v3606 = vunpack.c.l.b16 %v3542
        %v3607 = vunpack.c.l.b16 %v3543
        %v3608 = vunpack.c.l.b16 %v3544
        %v3609 = vpack.c.b16 %v3578, %v3577
        %v3610 = vpack.c.b16 %v3580, %v3579
        %v3611 = vpack.c.b16 %v3582, %v3581
        %v3612 = vpack.c.b16 %v3584, %v3583
        %v3613 = vpack.c.b16 %v3586, %v3585
        %v3614 = vpack.c.b16 %v3588, %v3587
        %v3615 = vpack.c.b16 %v3590, %v3589
        %v3616 = vpack.c.b16 %v3592, %v3591
        %v3617 = vpack.c.b16 %v3594, %v3593
        %v3618 = vpack.c.b16 %v3596, %v3595
        %v3619 = vpack.c.b16 %v3598, %v3597
        %v3620 = vpack.c.b16 %v3600, %v3599
        %v3621 = vpack.c.b16 %v3602, %v3601
        %v3622 = vpack.c.b16 %v3604, %v3603
        %v3623 = vpack.c.b16 %v3606, %v3605
        %v3624 = vpack.c.b16 %v3608, %v3607
        %3641 = vmatprep.subr.bf16.mxu0 0
        %3642 = vmatpush1.bf16.msra.mxu0 %v3609
        %3643 = vmatprep.subr.bf16.mxu0 0
        %3644 = vmatpush1.bf16.msra.mxu0 %v3610
        %3645 = vmatprep.subr.bf16.mxu0 0
        %3646 = vmatpush1.bf16.msra.mxu0 %v3611
        %3647 = vmatprep.subr.bf16.mxu0 0
        %3648 = vmatpush1.bf16.msra.mxu0 %v3612
        %3649 = vmatprep.subr.bf16.mxu0 0
        %3650 = vmatpush1.bf16.msra.mxu0 %v3613
        %3651 = vmatprep.subr.bf16.mxu0 0
        %3652 = vmatpush1.bf16.msra.mxu0 %v3614
        %3653 = vmatprep.subr.bf16.mxu0 0
        %3654 = vmatpush1.bf16.msra.mxu0 %v3615
        %3655 = vmatprep.subr.bf16.mxu0 0
        %3656 = vmatpush1.bf16.msra.mxu0 %v3616
        %3657 = vmatprep.subr.bf16.mxu0 0
        %3658 = vmatpush1.bf16.msra.mxu0 %v3617
        %3659 = vmatprep.subr.bf16.mxu0 0
        %3660 = vmatpush1.bf16.msra.mxu0 %v3618
        %3661 = vmatprep.subr.bf16.mxu0 0
        %3662 = vmatpush1.bf16.msra.mxu0 %v3619
        %3663 = vmatprep.subr.bf16.mxu0 0
        %3664 = vmatpush1.bf16.msra.mxu0 %v3620
        %3665 = vmatprep.subr.bf16.mxu0 0
        %3666 = vmatpush1.bf16.msra.mxu0 %v3621
        %3667 = vmatprep.subr.bf16.mxu0 0
        %3668 = vmatpush1.bf16.msra.mxu0 %v3622
        %3669 = vmatprep.subr.bf16.mxu0 0
        %3670 = vmatpush1.bf16.msra.mxu0 %v3623
        %3671 = vmatprep.subr.bf16.mxu0 0
        %3672 = vmatpush1.bf16.msra.mxu0 %v3624
        %3673 = vmatprep.mubr.bf16.mxu0 %v3174
        %3674 = vmatmul.mubr.bf16.gmra.mrb[0].mxu0 %v3173
        %v3675 = vpop.f32.mrb[0].mxu0
        %v3676 = vadd.f32 0.0, %v3675
        %v3677 = vpop.f32.mrb[0].mxu0
        %v3678 = vpop.f32.mrb[0].mxu0
        %v3679 = vpop.f32.mrb[0].mxu0
        %3680 = vdwg.mxu0
        %v3681 = vadd.f32 %v3507, %v3676
        %s3682 = scalar_lea.vmem %s5, 128
        %v3683 = vld [vmem:[%s3682] sm:$0xf]
        %v3684 = vld [vmem:[%s3682 + $0x4] sm:$0xf]
        %v3685 = vld [vmem:[%s3682 + $0x8] sm:$0xf]
        %v3686 = vld [vmem:[%s3682 + $0xc] sm:$0xf]
        %v3687 = vld [vmem:[%s3682 + $0x10] sm:$0xf]
        %v3688 = vld [vmem:[%s3682 + $0x14] sm:$0xf]
        %v3689 = vld [vmem:[%s3682 + $0x18] sm:$0xf]
        %v3690 = vld [vmem:[%s3682 + $0x1c] sm:$0xf]
        %v3691 = vld [vmem:[%s3682 + $0x20] sm:$0xf]
        %v3692 = vld [vmem:[%s3682 + $0x24] sm:$0xf]
        %v3693 = vld [vmem:[%s3682 + $0x28] sm:$0xf]
        %v3694 = vld [vmem:[%s3682 + $0x2c] sm:$0xf]
        %v3695 = vld [vmem:[%s3682 + $0x30] sm:$0xf]
        %v3696 = vld [vmem:[%s3682 + $0x34] sm:$0xf]
        %v3697 = vld [vmem:[%s3682 + $0x38] sm:$0xf]
        %v3698 = vld [vmem:[%s3682 + $0x3c] sm:$0xf]
        %v3699 = vld [vmem:[%s3682 + $0x40] sm:$0xf]
        %v3700 = vld [vmem:[%s3682 + $0x44] sm:$0xf]
        %v3701 = vld [vmem:[%s3682 + $0x48] sm:$0xf]
        %v3702 = vld [vmem:[%s3682 + $0x4c] sm:$0xf]
        %v3703 = vld [vmem:[%s3682 + $0x50] sm:$0xf]
        %v3704 = vld [vmem:[%s3682 + $0x54] sm:$0xf]
        %v3705 = vld [vmem:[%s3682 + $0x58] sm:$0xf]
        %v3706 = vld [vmem:[%s3682 + $0x5c] sm:$0xf]
        %v3707 = vld [vmem:[%s3682 + $0x60] sm:$0xf]
        %v3708 = vld [vmem:[%s3682 + $0x64] sm:$0xf]
        %v3709 = vld [vmem:[%s3682 + $0x68] sm:$0xf]
        %v3710 = vld [vmem:[%s3682 + $0x6c] sm:$0xf]
        %v3711 = vld [vmem:[%s3682 + $0x70] sm:$0xf]
        %v3712 = vld [vmem:[%s3682 + $0x74] sm:$0xf]
        %v3713 = vld [vmem:[%s3682 + $0x78] sm:$0xf]
        %v3714 = vld [vmem:[%s3682 + $0x7c] sm:$0xf]
        %s3715 = scalar_lea.vmem %s5, 512
        %v3716 = vld [vmem:[%s3715] sm:$0xf]
        %v3717 = vld [vmem:[%s3715 + $0x4] sm:$0xf]
        %v3718 = vld [vmem:[%s3715 + $0x8] sm:$0xf]
        %v3719 = vld [vmem:[%s3715 + $0xc] sm:$0xf]
        %v3720 = vld [vmem:[%s3715 + $0x10] sm:$0xf]
        %v3721 = vld [vmem:[%s3715 + $0x14] sm:$0xf]
        %v3722 = vld [vmem:[%s3715 + $0x18] sm:$0xf]
        %v3723 = vld [vmem:[%s3715 + $0x1c] sm:$0xf]
        %v3724 = vld [vmem:[%s3715 + $0x20] sm:$0xf]
        %v3725 = vld [vmem:[%s3715 + $0x24] sm:$0xf]
        %v3726 = vld [vmem:[%s3715 + $0x28] sm:$0xf]
        %v3727 = vld [vmem:[%s3715 + $0x2c] sm:$0xf]
        %v3728 = vld [vmem:[%s3715 + $0x30] sm:$0xf]
        %v3729 = vld [vmem:[%s3715 + $0x34] sm:$0xf]
        %v3730 = vld [vmem:[%s3715 + $0x38] sm:$0xf]
        %v3731 = vld [vmem:[%s3715 + $0x3c] sm:$0xf]
        %v3732 = vld [vmem:[%s3715 + $0x40] sm:$0xf]
        %v3733 = vld [vmem:[%s3715 + $0x44] sm:$0xf]
        %v3734 = vld [vmem:[%s3715 + $0x48] sm:$0xf]
        %v3735 = vld [vmem:[%s3715 + $0x4c] sm:$0xf]
        %v3736 = vld [vmem:[%s3715 + $0x50] sm:$0xf]
        %v3737 = vld [vmem:[%s3715 + $0x54] sm:$0xf]
        %v3738 = vld [vmem:[%s3715 + $0x58] sm:$0xf]
        %v3739 = vld [vmem:[%s3715 + $0x5c] sm:$0xf]
        %v3740 = vld [vmem:[%s3715 + $0x60] sm:$0xf]
        %v3741 = vld [vmem:[%s3715 + $0x64] sm:$0xf]
        %v3742 = vld [vmem:[%s3715 + $0x68] sm:$0xf]
        %v3743 = vld [vmem:[%s3715 + $0x6c] sm:$0xf]
        %v3744 = vld [vmem:[%s3715 + $0x70] sm:$0xf]
        %v3745 = vld [vmem:[%s3715 + $0x74] sm:$0xf]
        %v3746 = vld [vmem:[%s3715 + $0x78] sm:$0xf]
        %v3747 = vld [vmem:[%s3715 + $0x7c] sm:$0xf]
        %v3780 = vunpack.c.l.b16 %v3716
        %v3781 = vunpack.c.l.b16 %v3717
        %v3782 = vunpack.c.l.b16 %v3718
        %v3783 = vunpack.c.l.b16 %v3719
        %v3784 = vunpack.c.l.b16 %v3720
        %v3785 = vunpack.c.l.b16 %v3721
        %v3786 = vunpack.c.l.b16 %v3722
        %v3787 = vunpack.c.l.b16 %v3723
        %v3788 = vunpack.c.l.b16 %v3724
        %v3789 = vunpack.c.l.b16 %v3725
        %v3790 = vunpack.c.l.b16 %v3726
        %v3791 = vunpack.c.l.b16 %v3727
        %v3792 = vunpack.c.l.b16 %v3728
        %v3793 = vunpack.c.l.b16 %v3729
        %v3794 = vunpack.c.l.b16 %v3730
        %v3795 = vunpack.c.l.b16 %v3731
        %v3796 = vunpack.c.l.b16 %v3732
        %v3797 = vunpack.c.l.b16 %v3733
        %v3798 = vunpack.c.l.b16 %v3734
        %v3799 = vunpack.c.l.b16 %v3735
        %v3800 = vunpack.c.l.b16 %v3736
        %v3801 = vunpack.c.l.b16 %v3737
        %v3802 = vunpack.c.l.b16 %v3738
        %v3803 = vunpack.c.l.b16 %v3739
        %v3804 = vunpack.c.l.b16 %v3740
        %v3805 = vunpack.c.l.b16 %v3741
        %v3806 = vunpack.c.l.b16 %v3742
        %v3807 = vunpack.c.l.b16 %v3743
        %v3808 = vunpack.c.l.b16 %v3744
        %v3809 = vunpack.c.l.b16 %v3745
        %v3810 = vunpack.c.l.b16 %v3746
        %v3811 = vunpack.c.l.b16 %v3747
        %v3812 = vpack.c.b16 %v3781, %v3780
        %v3813 = vpack.c.b16 %v3783, %v3782
        %v3814 = vpack.c.b16 %v3785, %v3784
        %v3815 = vpack.c.b16 %v3787, %v3786
        %v3816 = vpack.c.b16 %v3789, %v3788
        %v3817 = vpack.c.b16 %v3791, %v3790
        %v3818 = vpack.c.b16 %v3793, %v3792
        %v3819 = vpack.c.b16 %v3795, %v3794
        %v3820 = vpack.c.b16 %v3797, %v3796
        %v3821 = vpack.c.b16 %v3799, %v3798
        %v3822 = vpack.c.b16 %v3801, %v3800
        %v3823 = vpack.c.b16 %v3803, %v3802
        %v3824 = vpack.c.b16 %v3805, %v3804
        %v3825 = vpack.c.b16 %v3807, %v3806
        %v3826 = vpack.c.b16 %v3809, %v3808
        %v3827 = vpack.c.b16 %v3811, %v3810
        %3844 = vmatprep.subr.bf16.mxu0 0
        %3845 = vmatpush1.bf16.msra.mxu0 %v3812
        %3846 = vmatprep.subr.bf16.mxu0 0
        %3847 = vmatpush1.bf16.msra.mxu0 %v3813
        %3848 = vmatprep.subr.bf16.mxu0 0
        %3849 = vmatpush1.bf16.msra.mxu0 %v3814
        %3850 = vmatprep.subr.bf16.mxu0 0
        %3851 = vmatpush1.bf16.msra.mxu0 %v3815
        %3852 = vmatprep.subr.bf16.mxu0 0
        %3853 = vmatpush1.bf16.msra.mxu0 %v3816
        %3854 = vmatprep.subr.bf16.mxu0 0
        %3855 = vmatpush1.bf16.msra.mxu0 %v3817
        %3856 = vmatprep.subr.bf16.mxu0 0
        %3857 = vmatpush1.bf16.msra.mxu0 %v3818
        %3858 = vmatprep.subr.bf16.mxu0 0
        %3859 = vmatpush1.bf16.msra.mxu0 %v3819
        %3860 = vmatprep.subr.bf16.mxu0 0
        %3861 = vmatpush1.bf16.msra.mxu0 %v3820
        %3862 = vmatprep.subr.bf16.mxu0 0
        %3863 = vmatpush1.bf16.msra.mxu0 %v3821
        %3864 = vmatprep.subr.bf16.mxu0 0
        %3865 = vmatpush1.bf16.msra.mxu0 %v3822
        %3866 = vmatprep.subr.bf16.mxu0 0
        %3867 = vmatpush1.bf16.msra.mxu0 %v3823
        %3868 = vmatprep.subr.bf16.mxu0 0
        %3869 = vmatpush1.bf16.msra.mxu0 %v3824
        %3870 = vmatprep.subr.bf16.mxu0 0
        %3871 = vmatpush1.bf16.msra.mxu0 %v3825
        %3872 = vmatprep.subr.bf16.mxu0 0
        %3873 = vmatpush1.bf16.msra.mxu0 %v3826
        %3874 = vmatprep.subr.bf16.mxu0 0
        %3875 = vmatpush1.bf16.msra.mxu0 %v3827
        %3876 = vmatprep.mubr.bf16.mxu0 %v3126
        %3877 = vmatmul.mubr.bf16.gmra.mrb[0].mxu0 %v3125
        %v3878 = vpop.f32.mrb[0].mxu0
        %v3879 = vadd.f32 0.0, %v3878
        %v3880 = vpop.f32.mrb[0].mxu0
        %v3881 = vpop.f32.mrb[0].mxu0
        %v3882 = vpop.f32.mrb[0].mxu0
        %3883 = vdwg.mxu0
        %v3916 = vunpack.c.l.b16 %v3683
        %v3917 = vunpack.c.l.b16 %v3684
        %v3918 = vunpack.c.l.b16 %v3685
        %v3919 = vunpack.c.l.b16 %v3686
        %v3920 = vunpack.c.l.b16 %v3687
        %v3921 = vunpack.c.l.b16 %v3688
        %v3922 = vunpack.c.l.b16 %v3689
        %v3923 = vunpack.c.l.b16 %v3690
        %v3924 = vunpack.c.l.b16 %v3691
        %v3925 = vunpack.c.l.b16 %v3692
        %v3926 = vunpack.c.l.b16 %v3693
        %v3927 = vunpack.c.l.b16 %v3694
        %v3928 = vunpack.c.l.b16 %v3695
        %v3929 = vunpack.c.l.b16 %v3696
        %v3930 = vunpack.c.l.b16 %v3697
        %v3931 = vunpack.c.l.b16 %v3698
        %v3932 = vunpack.c.l.b16 %v3699
        %v3933 = vunpack.c.l.b16 %v3700
        %v3934 = vunpack.c.l.b16 %v3701
        %v3935 = vunpack.c.l.b16 %v3702
        %v3936 = vunpack.c.l.b16 %v3703
        %v3937 = vunpack.c.l.b16 %v3704
        %v3938 = vunpack.c.l.b16 %v3705
        %v3939 = vunpack.c.l.b16 %v3706
        %v3940 = vunpack.c.l.b16 %v3707
        %v3941 = vunpack.c.l.b16 %v3708
        %v3942 = vunpack.c.l.b16 %v3709
        %v3943 = vunpack.c.l.b16 %v3710
        %v3944 = vunpack.c.l.b16 %v3711
        %v3945 = vunpack.c.l.b16 %v3712
        %v3946 = vunpack.c.l.b16 %v3713
        %v3947 = vunpack.c.l.b16 %v3714
        %v3948 = vpack.c.b16 %v3917, %v3916
        %v3949 = vpack.c.b16 %v3919, %v3918
        %v3950 = vpack.c.b16 %v3921, %v3920
        %v3951 = vpack.c.b16 %v3923, %v3922
        %v3952 = vpack.c.b16 %v3925, %v3924
        %v3953 = vpack.c.b16 %v3927, %v3926
        %v3954 = vpack.c.b16 %v3929, %v3928
        %v3955 = vpack.c.b16 %v3931, %v3930
        %v3956 = vpack.c.b16 %v3933, %v3932
        %v3957 = vpack.c.b16 %v3935, %v3934
        %v3958 = vpack.c.b16 %v3937, %v3936
        %v3959 = vpack.c.b16 %v3939, %v3938
        %v3960 = vpack.c.b16 %v3941, %v3940
        %v3961 = vpack.c.b16 %v3943, %v3942
        %v3962 = vpack.c.b16 %v3945, %v3944
        %v3963 = vpack.c.b16 %v3947, %v3946
        %3980 = vmatprep.subr.bf16.mxu0 0
        %3981 = vmatpush1.bf16.msra.mxu0 %v3948
        %3982 = vmatprep.subr.bf16.mxu0 0
        %3983 = vmatpush1.bf16.msra.mxu0 %v3949
        %3984 = vmatprep.subr.bf16.mxu0 0
        %3985 = vmatpush1.bf16.msra.mxu0 %v3950
        %3986 = vmatprep.subr.bf16.mxu0 0
        %3987 = vmatpush1.bf16.msra.mxu0 %v3951
        %3988 = vmatprep.subr.bf16.mxu0 0
        %3989 = vmatpush1.bf16.msra.mxu0 %v3952
        %3990 = vmatprep.subr.bf16.mxu0 0
        %3991 = vmatpush1.bf16.msra.mxu0 %v3953
        %3992 = vmatprep.subr.bf16.mxu0 0
        %3993 = vmatpush1.bf16.msra.mxu0 %v3954
        %3994 = vmatprep.subr.bf16.mxu0 0
        %3995 = vmatpush1.bf16.msra.mxu0 %v3955
        %3996 = vmatprep.subr.bf16.mxu0 0
        %3997 = vmatpush1.bf16.msra.mxu0 %v3956
        %3998 = vmatprep.subr.bf16.mxu0 0
        %3999 = vmatpush1.bf16.msra.mxu0 %v3957
        %4000 = vmatprep.subr.bf16.mxu0 0
        %4001 = vmatpush1.bf16.msra.mxu0 %v3958
        %4002 = vmatprep.subr.bf16.mxu0 0
        %4003 = vmatpush1.bf16.msra.mxu0 %v3959
        %4004 = vmatprep.subr.bf16.mxu0 0
        %4005 = vmatpush1.bf16.msra.mxu0 %v3960
        %4006 = vmatprep.subr.bf16.mxu0 0
        %4007 = vmatpush1.bf16.msra.mxu0 %v3961
        %4008 = vmatprep.subr.bf16.mxu0 0
        %4009 = vmatpush1.bf16.msra.mxu0 %v3962
        %4010 = vmatprep.subr.bf16.mxu0 0
        %4011 = vmatpush1.bf16.msra.mxu0 %v3963
        %4012 = vmatprep.mubr.bf16.mxu0 %v3078
        %4013 = vmatmul.mubr.bf16.gmra.mrb[0].mxu0 %v3077
        %v4014 = vpop.f32.mrb[0].mxu0
        %v4015 = vadd.f32 %v3879, %v4014
        %v4016 = vpop.f32.mrb[0].mxu0
        %v4017 = vpop.f32.mrb[0].mxu0
        %v4018 = vpop.f32.mrb[0].mxu0
        %4019 = vdwg.mxu0
        %s4020 = scalar_lea.vmem %s5, 896
        %v4021 = vld [vmem:[%s4020] sm:$0xf]
        %v4022 = vld [vmem:[%s4020 + $0x4] sm:$0xf]
        %v4023 = vld [vmem:[%s4020 + $0x8] sm:$0xf]
        %v4024 = vld [vmem:[%s4020 + $0xc] sm:$0xf]
        %v4025 = vld [vmem:[%s4020 + $0x10] sm:$0xf]
        %v4026 = vld [vmem:[%s4020 + $0x14] sm:$0xf]
        %v4027 = vld [vmem:[%s4020 + $0x18] sm:$0xf]
        %v4028 = vld [vmem:[%s4020 + $0x1c] sm:$0xf]
        %v4029 = vld [vmem:[%s4020 + $0x20] sm:$0xf]
        %v4030 = vld [vmem:[%s4020 + $0x24] sm:$0xf]
        %v4031 = vld [vmem:[%s4020 + $0x28] sm:$0xf]
        %v4032 = vld [vmem:[%s4020 + $0x2c] sm:$0xf]
        %v4033 = vld [vmem:[%s4020 + $0x30] sm:$0xf]
        %v4034 = vld [vmem:[%s4020 + $0x34] sm:$0xf]
        %v4035 = vld [vmem:[%s4020 + $0x38] sm:$0xf]
        %v4036 = vld [vmem:[%s4020 + $0x3c] sm:$0xf]
        %v4037 = vld [vmem:[%s4020 + $0x40] sm:$0xf]
        %v4038 = vld [vmem:[%s4020 + $0x44] sm:$0xf]
        %v4039 = vld [vmem:[%s4020 + $0x48] sm:$0xf]
        %v4040 = vld [vmem:[%s4020 + $0x4c] sm:$0xf]
        %v4041 = vld [vmem:[%s4020 + $0x50] sm:$0xf]
        %v4042 = vld [vmem:[%s4020 + $0x54] sm:$0xf]
        %v4043 = vld [vmem:[%s4020 + $0x58] sm:$0xf]
        %v4044 = vld [vmem:[%s4020 + $0x5c] sm:$0xf]
        %v4045 = vld [vmem:[%s4020 + $0x60] sm:$0xf]
        %v4046 = vld [vmem:[%s4020 + $0x64] sm:$0xf]
        %v4047 = vld [vmem:[%s4020 + $0x68] sm:$0xf]
        %v4048 = vld [vmem:[%s4020 + $0x6c] sm:$0xf]
        %v4049 = vld [vmem:[%s4020 + $0x70] sm:$0xf]
        %v4050 = vld [vmem:[%s4020 + $0x74] sm:$0xf]
        %v4051 = vld [vmem:[%s4020 + $0x78] sm:$0xf]
        %v4052 = vld [vmem:[%s4020 + $0x7c] sm:$0xf]
        %v4085 = vunpack.c.l.b16 %v4021
        %v4086 = vunpack.c.l.b16 %v4022
        %v4087 = vunpack.c.l.b16 %v4023
        %v4088 = vunpack.c.l.b16 %v4024
        %v4089 = vunpack.c.l.b16 %v4025
        %v4090 = vunpack.c.l.b16 %v4026
        %v4091 = vunpack.c.l.b16 %v4027
        %v4092 = vunpack.c.l.b16 %v4028
        %v4093 = vunpack.c.l.b16 %v4029
        %v4094 = vunpack.c.l.b16 %v4030
        %v4095 = vunpack.c.l.b16 %v4031
        %v4096 = vunpack.c.l.b16 %v4032
        %v4097 = vunpack.c.l.b16 %v4033
        %v4098 = vunpack.c.l.b16 %v4034
        %v4099 = vunpack.c.l.b16 %v4035
        %v4100 = vunpack.c.l.b16 %v4036
        %v4101 = vunpack.c.l.b16 %v4037
        %v4102 = vunpack.c.l.b16 %v4038
        %v4103 = vunpack.c.l.b16 %v4039
        %v4104 = vunpack.c.l.b16 %v4040
        %v4105 = vunpack.c.l.b16 %v4041
        %v4106 = vunpack.c.l.b16 %v4042
        %v4107 = vunpack.c.l.b16 %v4043
        %v4108 = vunpack.c.l.b16 %v4044
        %v4109 = vunpack.c.l.b16 %v4045
        %v4110 = vunpack.c.l.b16 %v4046
        %v4111 = vunpack.c.l.b16 %v4047
        %v4112 = vunpack.c.l.b16 %v4048
        %v4113 = vunpack.c.l.b16 %v4049
        %v4114 = vunpack.c.l.b16 %v4050
        %v4115 = vunpack.c.l.b16 %v4051
        %v4116 = vunpack.c.l.b16 %v4052
        %v4117 = vpack.c.b16 %v4086, %v4085
        %v4118 = vpack.c.b16 %v4088, %v4087
        %v4119 = vpack.c.b16 %v4090, %v4089
        %v4120 = vpack.c.b16 %v4092, %v4091
        %v4121 = vpack.c.b16 %v4094, %v4093
        %v4122 = vpack.c.b16 %v4096, %v4095
        %v4123 = vpack.c.b16 %v4098, %v4097
        %v4124 = vpack.c.b16 %v4100, %v4099
        %v4125 = vpack.c.b16 %v4102, %v4101
        %v4126 = vpack.c.b16 %v4104, %v4103
        %v4127 = vpack.c.b16 %v4106, %v4105
        %v4128 = vpack.c.b16 %v4108, %v4107
        %v4129 = vpack.c.b16 %v4110, %v4109
        %v4130 = vpack.c.b16 %v4112, %v4111
        %v4131 = vpack.c.b16 %v4114, %v4113
        %v4132 = vpack.c.b16 %v4116, %v4115
        %4149 = vmatprep.subr.bf16.mxu0 0
        %4150 = vmatpush1.bf16.msra.mxu0 %v4117
        %4151 = vmatprep.subr.bf16.mxu0 0
        %4152 = vmatpush1.bf16.msra.mxu0 %v4118
        %4153 = vmatprep.subr.bf16.mxu0 0
        %4154 = vmatpush1.bf16.msra.mxu0 %v4119
        %4155 = vmatprep.subr.bf16.mxu0 0
        %4156 = vmatpush1.bf16.msra.mxu0 %v4120
        %4157 = vmatprep.subr.bf16.mxu0 0
        %4158 = vmatpush1.bf16.msra.mxu0 %v4121
        %4159 = vmatprep.subr.bf16.mxu0 0
        %4160 = vmatpush1.bf16.msra.mxu0 %v4122
        %4161 = vmatprep.subr.bf16.mxu0 0
        %4162 = vmatpush1.bf16.msra.mxu0 %v4123
        %4163 = vmatprep.subr.bf16.mxu0 0
        %4164 = vmatpush1.bf16.msra.mxu0 %v4124
        %4165 = vmatprep.subr.bf16.mxu0 0
        %4166 = vmatpush1.bf16.msra.mxu0 %v4125
        %4167 = vmatprep.subr.bf16.mxu0 0
        %4168 = vmatpush1.bf16.msra.mxu0 %v4126
        %4169 = vmatprep.subr.bf16.mxu0 0
        %4170 = vmatpush1.bf16.msra.mxu0 %v4127
        %4171 = vmatprep.subr.bf16.mxu0 0
        %4172 = vmatpush1.bf16.msra.mxu0 %v4128
        %4173 = vmatprep.subr.bf16.mxu0 0
        %4174 = vmatpush1.bf16.msra.mxu0 %v4129
        %4175 = vmatprep.subr.bf16.mxu0 0
        %4176 = vmatpush1.bf16.msra.mxu0 %v4130
        %4177 = vmatprep.subr.bf16.mxu0 0
        %4178 = vmatpush1.bf16.msra.mxu0 %v4131
        %4179 = vmatprep.subr.bf16.mxu0 0
        %4180 = vmatpush1.bf16.msra.mxu0 %v4132
        %4181 = vmatprep.mubr.bf16.mxu0 %v3174
        %4182 = vmatmul.mubr.bf16.gmra.mrb[0].mxu0 %v3173
        %v4183 = vpop.f32.mrb[0].mxu0
        %v4184 = vadd.f32 0.0, %v4183
        %v4185 = vpop.f32.mrb[0].mxu0
        %v4186 = vpop.f32.mrb[0].mxu0
        %v4187 = vpop.f32.mrb[0].mxu0
        %4188 = vdwg.mxu0
        %v4189 = vadd.f32 %v4015, %v4184
        %v4190 = vmax.f32 %v3681, %v4189
        %s4191 = scalar_lea.vmem %s5, 256
        %v4192 = vld [vmem:[%s4191] sm:$0xf]
        %v4193 = vld [vmem:[%s4191 + $0x4] sm:$0xf]
        %v4194 = vld [vmem:[%s4191 + $0x8] sm:$0xf]
        %v4195 = vld [vmem:[%s4191 + $0xc] sm:$0xf]
        %v4196 = vld [vmem:[%s4191 + $0x10] sm:$0xf]
        %v4197 = vld [vmem:[%s4191 + $0x14] sm:$0xf]
        %v4198 = vld [vmem:[%s4191 + $0x18] sm:$0xf]
        %v4199 = vld [vmem:[%s4191 + $0x1c] sm:$0xf]
        %v4200 = vld [vmem:[%s4191 + $0x20] sm:$0xf]
        %v4201 = vld [vmem:[%s4191 + $0x24] sm:$0xf]
        %v4202 = vld [vmem:[%s4191 + $0x28] sm:$0xf]
        %v4203 = vld [vmem:[%s4191 + $0x2c] sm:$0xf]
        %v4204 = vld [vmem:[%s4191 + $0x30] sm:$0xf]
        %v4205 = vld [vmem:[%s4191 + $0x34] sm:$0xf]
        %v4206 = vld [vmem:[%s4191 + $0x38] sm:$0xf]
        %v4207 = vld [vmem:[%s4191 + $0x3c] sm:$0xf]
        %v4208 = vld [vmem:[%s4191 + $0x40] sm:$0xf]
        %v4209 = vld [vmem:[%s4191 + $0x44] sm:$0xf]
        %v4210 = vld [vmem:[%s4191 + $0x48] sm:$0xf]
        %v4211 = vld [vmem:[%s4191 + $0x4c] sm:$0xf]
        %v4212 = vld [vmem:[%s4191 + $0x50] sm:$0xf]
        %v4213 = vld [vmem:[%s4191 + $0x54] sm:$0xf]
        %v4214 = vld [vmem:[%s4191 + $0x58] sm:$0xf]
        %v4215 = vld [vmem:[%s4191 + $0x5c] sm:$0xf]
        %v4216 = vld [vmem:[%s4191 + $0x60] sm:$0xf]
        %v4217 = vld [vmem:[%s4191 + $0x64] sm:$0xf]
        %v4218 = vld [vmem:[%s4191 + $0x68] sm:$0xf]
        %v4219 = vld [vmem:[%s4191 + $0x6c] sm:$0xf]
        %v4220 = vld [vmem:[%s4191 + $0x70] sm:$0xf]
        %v4221 = vld [vmem:[%s4191 + $0x74] sm:$0xf]
        %v4222 = vld [vmem:[%s4191 + $0x78] sm:$0xf]
        %v4223 = vld [vmem:[%s4191 + $0x7c] sm:$0xf]
        %s4224 = scalar_lea.vmem %s5, 640
        %v4225 = vld [vmem:[%s4224] sm:$0xf]
        %v4226 = vld [vmem:[%s4224 + $0x4] sm:$0xf]
        %v4227 = vld [vmem:[%s4224 + $0x8] sm:$0xf]
        %v4228 = vld [vmem:[%s4224 + $0xc] sm:$0xf]
        %v4229 = vld [vmem:[%s4224 + $0x10] sm:$0xf]
        %v4230 = vld [vmem:[%s4224 + $0x14] sm:$0xf]
        %v4231 = vld [vmem:[%s4224 + $0x18] sm:$0xf]
        %v4232 = vld [vmem:[%s4224 + $0x1c] sm:$0xf]
        %v4233 = vld [vmem:[%s4224 + $0x20] sm:$0xf]
        %v4234 = vld [vmem:[%s4224 + $0x24] sm:$0xf]
        %v4235 = vld [vmem:[%s4224 + $0x28] sm:$0xf]
        %v4236 = vld [vmem:[%s4224 + $0x2c] sm:$0xf]
        %v4237 = vld [vmem:[%s4224 + $0x30] sm:$0xf]
        %v4238 = vld [vmem:[%s4224 + $0x34] sm:$0xf]
        %v4239 = vld [vmem:[%s4224 + $0x38] sm:$0xf]
        %v4240 = vld [vmem:[%s4224 + $0x3c] sm:$0xf]
        %v4241 = vld [vmem:[%s4224 + $0x40] sm:$0xf]
        %v4242 = vld [vmem:[%s4224 + $0x44] sm:$0xf]
        %v4243 = vld [vmem:[%s4224 + $0x48] sm:$0xf]
        %v4244 = vld [vmem:[%s4224 + $0x4c] sm:$0xf]
        %v4245 = vld [vmem:[%s4224 + $0x50] sm:$0xf]
        %v4246 = vld [vmem:[%s4224 + $0x54] sm:$0xf]
        %v4247 = vld [vmem:[%s4224 + $0x58] sm:$0xf]
        %v4248 = vld [vmem:[%s4224 + $0x5c] sm:$0xf]
        %v4249 = vld [vmem:[%s4224 + $0x60] sm:$0xf]
        %v4250 = vld [vmem:[%s4224 + $0x64] sm:$0xf]
        %v4251 = vld [vmem:[%s4224 + $0x68] sm:$0xf]
        %v4252 = vld [vmem:[%s4224 + $0x6c] sm:$0xf]
        %v4253 = vld [vmem:[%s4224 + $0x70] sm:$0xf]
        %v4254 = vld [vmem:[%s4224 + $0x74] sm:$0xf]
        %v4255 = vld [vmem:[%s4224 + $0x78] sm:$0xf]
        %v4256 = vld [vmem:[%s4224 + $0x7c] sm:$0xf]
        %v4289 = vunpack.c.l.b16 %v4225
        %v4290 = vunpack.c.l.b16 %v4226
        %v4291 = vunpack.c.l.b16 %v4227
        %v4292 = vunpack.c.l.b16 %v4228
        %v4293 = vunpack.c.l.b16 %v4229
        %v4294 = vunpack.c.l.b16 %v4230
        %v4295 = vunpack.c.l.b16 %v4231
        %v4296 = vunpack.c.l.b16 %v4232
        %v4297 = vunpack.c.l.b16 %v4233
        %v4298 = vunpack.c.l.b16 %v4234
        %v4299 = vunpack.c.l.b16 %v4235
        %v4300 = vunpack.c.l.b16 %v4236
        %v4301 = vunpack.c.l.b16 %v4237
        %v4302 = vunpack.c.l.b16 %v4238
        %v4303 = vunpack.c.l.b16 %v4239
        %v4304 = vunpack.c.l.b16 %v4240
        %v4305 = vunpack.c.l.b16 %v4241
        %v4306 = vunpack.c.l.b16 %v4242
        %v4307 = vunpack.c.l.b16 %v4243
        %v4308 = vunpack.c.l.b16 %v4244
        %v4309 = vunpack.c.l.b16 %v4245
        %v4310 = vunpack.c.l.b16 %v4246
        %v4311 = vunpack.c.l.b16 %v4247
        %v4312 = vunpack.c.l.b16 %v4248
        %v4313 = vunpack.c.l.b16 %v4249
        %v4314 = vunpack.c.l.b16 %v4250
        %v4315 = vunpack.c.l.b16 %v4251
        %v4316 = vunpack.c.l.b16 %v4252
        %v4317 = vunpack.c.l.b16 %v4253
        %v4318 = vunpack.c.l.b16 %v4254
        %v4319 = vunpack.c.l.b16 %v4255
        %v4320 = vunpack.c.l.b16 %v4256
        %v4321 = vpack.c.b16 %v4290, %v4289
        %v4322 = vpack.c.b16 %v4292, %v4291
        %v4323 = vpack.c.b16 %v4294, %v4293
        %v4324 = vpack.c.b16 %v4296, %v4295
        %v4325 = vpack.c.b16 %v4298, %v4297
        %v4326 = vpack.c.b16 %v4300, %v4299
        %v4327 = vpack.c.b16 %v4302, %v4301
        %v4328 = vpack.c.b16 %v4304, %v4303
        %v4329 = vpack.c.b16 %v4306, %v4305
        %v4330 = vpack.c.b16 %v4308, %v4307
        %v4331 = vpack.c.b16 %v4310, %v4309
        %v4332 = vpack.c.b16 %v4312, %v4311
        %v4333 = vpack.c.b16 %v4314, %v4313
        %v4334 = vpack.c.b16 %v4316, %v4315
        %v4335 = vpack.c.b16 %v4318, %v4317
        %v4336 = vpack.c.b16 %v4320, %v4319
        %4353 = vmatprep.subr.bf16.mxu0 0
        %4354 = vmatpush1.bf16.msra.mxu0 %v4321
        %4355 = vmatprep.subr.bf16.mxu0 0
        %4356 = vmatpush1.bf16.msra.mxu0 %v4322
        %4357 = vmatprep.subr.bf16.mxu0 0
        %4358 = vmatpush1.bf16.msra.mxu0 %v4323
        %4359 = vmatprep.subr.bf16.mxu0 0
        %4360 = vmatpush1.bf16.msra.mxu0 %v4324
        %4361 = vmatprep.subr.bf16.mxu0 0
        %4362 = vmatpush1.bf16.msra.mxu0 %v4325
        %4363 = vmatprep.subr.bf16.mxu0 0
        %4364 = vmatpush1.bf16.msra.mxu0 %v4326
        %4365 = vmatprep.subr.bf16.mxu0 0
        %4366 = vmatpush1.bf16.msra.mxu0 %v4327
        %4367 = vmatprep.subr.bf16.mxu0 0
        %4368 = vmatpush1.bf16.msra.mxu0 %v4328
        %4369 = vmatprep.subr.bf16.mxu0 0
        %4370 = vmatpush1.bf16.msra.mxu0 %v4329
        %4371 = vmatprep.subr.bf16.mxu0 0
        %4372 = vmatpush1.bf16.msra.mxu0 %v4330
        %4373 = vmatprep.subr.bf16.mxu0 0
        %4374 = vmatpush1.bf16.msra.mxu0 %v4331
        %4375 = vmatprep.subr.bf16.mxu0 0
        %4376 = vmatpush1.bf16.msra.mxu0 %v4332
        %4377 = vmatprep.subr.bf16.mxu0 0
        %4378 = vmatpush1.bf16.msra.mxu0 %v4333
        %4379 = vmatprep.subr.bf16.mxu0 0
        %4380 = vmatpush1.bf16.msra.mxu0 %v4334
        %4381 = vmatprep.subr.bf16.mxu0 0
        %4382 = vmatpush1.bf16.msra.mxu0 %v4335
        %4383 = vmatprep.subr.bf16.mxu0 0
        %4384 = vmatpush1.bf16.msra.mxu0 %v4336
        %4385 = vmatprep.mubr.bf16.mxu0 %v3126
        %4386 = vmatmul.mubr.bf16.gmra.mrb[0].mxu0 %v3125
        %v4387 = vpop.f32.mrb[0].mxu0
        %v4388 = vadd.f32 0.0, %v4387
        %v4389 = vpop.f32.mrb[0].mxu0
        %v4390 = vpop.f32.mrb[0].mxu0
        %v4391 = vpop.f32.mrb[0].mxu0
        %4392 = vdwg.mxu0
        %v4425 = vunpack.c.l.b16 %v4192
        %v4426 = vunpack.c.l.b16 %v4193
        %v4427 = vunpack.c.l.b16 %v4194
        %v4428 = vunpack.c.l.b16 %v4195
        %v4429 = vunpack.c.l.b16 %v4196
        %v4430 = vunpack.c.l.b16 %v4197
        %v4431 = vunpack.c.l.b16 %v4198
        %v4432 = vunpack.c.l.b16 %v4199
        %v4433 = vunpack.c.l.b16 %v4200
        %v4434 = vunpack.c.l.b16 %v4201
        %v4435 = vunpack.c.l.b16 %v4202
        %v4436 = vunpack.c.l.b16 %v4203
        %v4437 = vunpack.c.l.b16 %v4204
        %v4438 = vunpack.c.l.b16 %v4205
        %v4439 = vunpack.c.l.b16 %v4206
        %v4440 = vunpack.c.l.b16 %v4207
        %v4441 = vunpack.c.l.b16 %v4208
        %v4442 = vunpack.c.l.b16 %v4209
        %v4443 = vunpack.c.l.b16 %v4210
        %v4444 = vunpack.c.l.b16 %v4211
        %v4445 = vunpack.c.l.b16 %v4212
        %v4446 = vunpack.c.l.b16 %v4213
        %v4447 = vunpack.c.l.b16 %v4214
        %v4448 = vunpack.c.l.b16 %v4215
        %v4449 = vunpack.c.l.b16 %v4216
        %v4450 = vunpack.c.l.b16 %v4217
        %v4451 = vunpack.c.l.b16 %v4218
        %v4452 = vunpack.c.l.b16 %v4219
        %v4453 = vunpack.c.l.b16 %v4220
        %v4454 = vunpack.c.l.b16 %v4221
        %v4455 = vunpack.c.l.b16 %v4222
        %v4456 = vunpack.c.l.b16 %v4223
        %v4457 = vpack.c.b16 %v4426, %v4425
        %v4458 = vpack.c.b16 %v4428, %v4427
        %v4459 = vpack.c.b16 %v4430, %v4429
        %v4460 = vpack.c.b16 %v4432, %v4431
        %v4461 = vpack.c.b16 %v4434, %v4433
        %v4462 = vpack.c.b16 %v4436, %v4435
        %v4463 = vpack.c.b16 %v4438, %v4437
        %v4464 = vpack.c.b16 %v4440, %v4439
        %v4465 = vpack.c.b16 %v4442, %v4441
        %v4466 = vpack.c.b16 %v4444, %v4443
        %v4467 = vpack.c.b16 %v4446, %v4445
        %v4468 = vpack.c.b16 %v4448, %v4447
        %v4469 = vpack.c.b16 %v4450, %v4449
        %v4470 = vpack.c.b16 %v4452, %v4451
        %v4471 = vpack.c.b16 %v4454, %v4453
        %v4472 = vpack.c.b16 %v4456, %v4455
        %4489 = vmatprep.subr.bf16.mxu0 0
        %4490 = vmatpush1.bf16.msra.mxu0 %v4457
        %4491 = vmatprep.subr.bf16.mxu0 0
        %4492 = vmatpush1.bf16.msra.mxu0 %v4458
        %4493 = vmatprep.subr.bf16.mxu0 0
        %4494 = vmatpush1.bf16.msra.mxu0 %v4459
        %4495 = vmatprep.subr.bf16.mxu0 0
        %4496 = vmatpush1.bf16.msra.mxu0 %v4460
        %4497 = vmatprep.subr.bf16.mxu0 0
        %4498 = vmatpush1.bf16.msra.mxu0 %v4461
        %4499 = vmatprep.subr.bf16.mxu0 0
        %4500 = vmatpush1.bf16.msra.mxu0 %v4462
        %4501 = vmatprep.subr.bf16.mxu0 0
        %4502 = vmatpush1.bf16.msra.mxu0 %v4463
        %4503 = vmatprep.subr.bf16.mxu0 0
        %4504 = vmatpush1.bf16.msra.mxu0 %v4464
        %4505 = vmatprep.subr.bf16.mxu0 0
        %4506 = vmatpush1.bf16.msra.mxu0 %v4465
        %4507 = vmatprep.subr.bf16.mxu0 0
        %4508 = vmatpush1.bf16.msra.mxu0 %v4466
        %4509 = vmatprep.subr.bf16.mxu0 0
        %4510 = vmatpush1.bf16.msra.mxu0 %v4467
        %4511 = vmatprep.subr.bf16.mxu0 0
        %4512 = vmatpush1.bf16.msra.mxu0 %v4468
        %4513 = vmatprep.subr.bf16.mxu0 0
        %4514 = vmatpush1.bf16.msra.mxu0 %v4469
        %4515 = vmatprep.subr.bf16.mxu0 0
        %4516 = vmatpush1.bf16.msra.mxu0 %v4470
        %4517 = vmatprep.subr.bf16.mxu0 0
        %4518 = vmatpush1.bf16.msra.mxu0 %v4471
        %4519 = vmatprep.subr.bf16.mxu0 0
        %4520 = vmatpush1.bf16.msra.mxu0 %v4472
        %4521 = vmatprep.mubr.bf16.mxu0 %v3078
        %4522 = vmatmul.mubr.bf16.gmra.mrb[0].mxu0 %v3077
        %v4523 = vpop.f32.mrb[0].mxu0
        %v4524 = vadd.f32 %v4388, %v4523
        %v4525 = vpop.f32.mrb[0].mxu0
        %v4526 = vpop.f32.mrb[0].mxu0
        %v4527 = vpop.f32.mrb[0].mxu0
        %4528 = vdwg.mxu0
        %s4529 = scalar_lea.vmem %s5, 1024
        %v4530 = vld [vmem:[%s4529] sm:$0xf]
        %v4531 = vld [vmem:[%s4529 + $0x4] sm:$0xf]
        %v4532 = vld [vmem:[%s4529 + $0x8] sm:$0xf]
        %v4533 = vld [vmem:[%s4529 + $0xc] sm:$0xf]
        %v4534 = vld [vmem:[%s4529 + $0x10] sm:$0xf]
        %v4535 = vld [vmem:[%s4529 + $0x14] sm:$0xf]
        %v4536 = vld [vmem:[%s4529 + $0x18] sm:$0xf]
        %v4537 = vld [vmem:[%s4529 + $0x1c] sm:$0xf]
        %v4538 = vld [vmem:[%s4529 + $0x20] sm:$0xf]
        %v4539 = vld [vmem:[%s4529 + $0x24] sm:$0xf]
        %v4540 = vld [vmem:[%s4529 + $0x28] sm:$0xf]
        %v4541 = vld [vmem:[%s4529 + $0x2c] sm:$0xf]
        %v4542 = vld [vmem:[%s4529 + $0x30] sm:$0xf]
        %v4543 = vld [vmem:[%s4529 + $0x34] sm:$0xf]
        %v4544 = vld [vmem:[%s4529 + $0x38] sm:$0xf]
        %v4545 = vld [vmem:[%s4529 + $0x3c] sm:$0xf]
        %v4546 = vld [vmem:[%s4529 + $0x40] sm:$0xf]
        %v4547 = vld [vmem:[%s4529 + $0x44] sm:$0xf]
        %v4548 = vld [vmem:[%s4529 + $0x48] sm:$0xf]
        %v4549 = vld [vmem:[%s4529 + $0x4c] sm:$0xf]
        %v4550 = vld [vmem:[%s4529 + $0x50] sm:$0xf]
        %v4551 = vld [vmem:[%s4529 + $0x54] sm:$0xf]
        %v4552 = vld [vmem:[%s4529 + $0x58] sm:$0xf]
        %v4553 = vld [vmem:[%s4529 + $0x5c] sm:$0xf]
        %v4554 = vld [vmem:[%s4529 + $0x60] sm:$0xf]
        %v4555 = vld [vmem:[%s4529 + $0x64] sm:$0xf]
        %v4556 = vld [vmem:[%s4529 + $0x68] sm:$0xf]
        %v4557 = vld [vmem:[%s4529 + $0x6c] sm:$0xf]
        %v4558 = vld [vmem:[%s4529 + $0x70] sm:$0xf]
        %v4559 = vld [vmem:[%s4529 + $0x74] sm:$0xf]
        %v4560 = vld [vmem:[%s4529 + $0x78] sm:$0xf]
        %v4561 = vld [vmem:[%s4529 + $0x7c] sm:$0xf]
        %v4594 = vunpack.c.l.b16 %v4530
        %v4595 = vunpack.c.l.b16 %v4531
        %v4596 = vunpack.c.l.b16 %v4532
        %v4597 = vunpack.c.l.b16 %v4533
        %v4598 = vunpack.c.l.b16 %v4534
        %v4599 = vunpack.c.l.b16 %v4535
        %v4600 = vunpack.c.l.b16 %v4536
        %v4601 = vunpack.c.l.b16 %v4537
        %v4602 = vunpack.c.l.b16 %v4538
        %v4603 = vunpack.c.l.b16 %v4539
        %v4604 = vunpack.c.l.b16 %v4540
        %v4605 = vunpack.c.l.b16 %v4541
        %v4606 = vunpack.c.l.b16 %v4542
        %v4607 = vunpack.c.l.b16 %v4543
        %v4608 = vunpack.c.l.b16 %v4544
        %v4609 = vunpack.c.l.b16 %v4545
        %v4610 = vunpack.c.l.b16 %v4546
        %v4611 = vunpack.c.l.b16 %v4547
        %v4612 = vunpack.c.l.b16 %v4548
        %v4613 = vunpack.c.l.b16 %v4549
        %v4614 = vunpack.c.l.b16 %v4550
        %v4615 = vunpack.c.l.b16 %v4551
        %v4616 = vunpack.c.l.b16 %v4552
        %v4617 = vunpack.c.l.b16 %v4553
        %v4618 = vunpack.c.l.b16 %v4554
        %v4619 = vunpack.c.l.b16 %v4555
        %v4620 = vunpack.c.l.b16 %v4556
        %v4621 = vunpack.c.l.b16 %v4557
        %v4622 = vunpack.c.l.b16 %v4558
        %v4623 = vunpack.c.l.b16 %v4559
        %v4624 = vunpack.c.l.b16 %v4560
        %v4625 = vunpack.c.l.b16 %v4561
        %v4626 = vpack.c.b16 %v4595, %v4594
        %v4627 = vpack.c.b16 %v4597, %v4596
        %v4628 = vpack.c.b16 %v4599, %v4598
        %v4629 = vpack.c.b16 %v4601, %v4600
        %v4630 = vpack.c.b16 %v4603, %v4602
        %v4631 = vpack.c.b16 %v4605, %v4604
        %v4632 = vpack.c.b16 %v4607, %v4606
        %v4633 = vpack.c.b16 %v4609, %v4608
        %v4634 = vpack.c.b16 %v4611, %v4610
        %v4635 = vpack.c.b16 %v4613, %v4612
        %v4636 = vpack.c.b16 %v4615, %v4614
        %v4637 = vpack.c.b16 %v4617, %v4616
        %v4638 = vpack.c.b16 %v4619, %v4618
        %v4639 = vpack.c.b16 %v4621, %v4620
        %v4640 = vpack.c.b16 %v4623, %v4622
        %v4641 = vpack.c.b16 %v4625, %v4624
        %4658 = vmatprep.subr.bf16.mxu0 0
        %4659 = vmatpush1.bf16.msra.mxu0 %v4626
        %4660 = vmatprep.subr.bf16.mxu0 0
        %4661 = vmatpush1.bf16.msra.mxu0 %v4627
        %4662 = vmatprep.subr.bf16.mxu0 0
        %4663 = vmatpush1.bf16.msra.mxu0 %v4628
        %4664 = vmatprep.subr.bf16.mxu0 0
        %4665 = vmatpush1.bf16.msra.mxu0 %v4629
        %4666 = vmatprep.subr.bf16.mxu0 0
        %4667 = vmatpush1.bf16.msra.mxu0 %v4630
        %4668 = vmatprep.subr.bf16.mxu0 0
        %4669 = vmatpush1.bf16.msra.mxu0 %v4631
        %4670 = vmatprep.subr.bf16.mxu0 0
        %4671 = vmatpush1.bf16.msra.mxu0 %v4632
        %4672 = vmatprep.subr.bf16.mxu0 0
        %4673 = vmatpush1.bf16.msra.mxu0 %v4633
        %4674 = vmatprep.subr.bf16.mxu0 0
        %4675 = vmatpush1.bf16.msra.mxu0 %v4634
        %4676 = vmatprep.subr.bf16.mxu0 0
        %4677 = vmatpush1.bf16.msra.mxu0 %v4635
        %4678 = vmatprep.subr.bf16.mxu0 0
        %4679 = vmatpush1.bf16.msra.mxu0 %v4636
        %4680 = vmatprep.subr.bf16.mxu0 0
        %4681 = vmatpush1.bf16.msra.mxu0 %v4637
        %4682 = vmatprep.subr.bf16.mxu0 0
        %4683 = vmatpush1.bf16.msra.mxu0 %v4638
        %4684 = vmatprep.subr.bf16.mxu0 0
        %4685 = vmatpush1.bf16.msra.mxu0 %v4639
        %4686 = vmatprep.subr.bf16.mxu0 0
        %4687 = vmatpush1.bf16.msra.mxu0 %v4640
        %4688 = vmatprep.subr.bf16.mxu0 0
        %4689 = vmatpush1.bf16.msra.mxu0 %v4641
        %4690 = vmatprep.mubr.bf16.mxu0 %v3174
        %4691 = vmatmul.mubr.bf16.gmra.mrb[0].mxu0 %v3173
        %v4692 = vpop.f32.mrb[0].mxu0
        %v4693 = vadd.f32 0.0, %v4692
        %v4694 = vpop.f32.mrb[0].mxu0
        %v4695 = vpop.f32.mrb[0].mxu0
        %v4696 = vpop.f32.mrb[0].mxu0
        %4697 = vdwg.mxu0
        %v4698 = vadd.f32 %v4524, %v4693
        %v4699 = vmax.f32 %v4190, %v4698
        %s4700 = scalar_lea.vmem %s4, 3
        %v4701 = vld [vmem:[%s4700] sm:$0x1]
        %v4703 = vsel %vm3025, %v4701, 0
        %4705 = vmatprep.subr.bf16.mxu0 %v3034
        %4706 = vmatpush1.bf16.msra.mxu0 %v3031
        %4707 = vmatprep.subr.bf16.mxu0 0
        %4708 = vmatpush1.bf16.msra.mxu0 0
        %4709 = vmatprep.subr.bf16.mxu0 0
        %4710 = vmatpush1.bf16.msra.mxu0 0
        %4711 = vmatprep.subr.bf16.mxu0 0
        %4712 = vmatpush1.bf16.msra.mxu0 0
        %4713 = vmatprep.subr.bf16.mxu0 0
        %4714 = vmatpush1.bf16.msra.mxu0 0
        %4715 = vmatprep.subr.bf16.mxu0 0
        %4716 = vmatpush1.bf16.msra.mxu0 0
        %4717 = vmatprep.subr.bf16.mxu0 0
        %4718 = vmatpush1.bf16.msra.mxu0 0
        %4719 = vmatprep.subr.bf16.mxu0 0
        %4720 = vmatpush1.bf16.msra.mxu0 0
        %4721 = vmatprep.subr.bf16.mxu0 0
        %4722 = vmatpush1.bf16.msra.mxu0 0
        %4723 = vmatprep.subr.bf16.mxu0 0
        %4724 = vmatpush1.bf16.msra.mxu0 0
        %4725 = vmatprep.subr.bf16.mxu0 0
        %4726 = vmatpush1.bf16.msra.mxu0 0
        %4727 = vmatprep.subr.bf16.mxu0 0
        %4728 = vmatpush1.bf16.msra.mxu0 0
        %4729 = vmatprep.subr.bf16.mxu0 0
        %4730 = vmatpush1.bf16.msra.mxu0 0
        %4731 = vmatprep.subr.bf16.mxu0 0
        %4732 = vmatpush1.bf16.msra.mxu0 0
        %4733 = vmatprep.subr.bf16.mxu0 0
        %4734 = vmatpush1.bf16.msra.mxu0 0
        %4735 = vmatprep.subr.bf16.mxu0 0
        %4736 = vmatpush1.bf16.msra.mxu0 0
        %4737 = vmatprep.mubr.bf16.mxu0 0
        %4738 = vmatmul.mubr.bf16.gmra.mrb[0].mxu0 %v4703
        %v4739 = vpop.f32.mrb[0].mxu0
        %v4740 = vadd.f32 0.0, %v4739
        %v4741 = vpop.f32.mrb[0].mxu0
        %v4742 = vadd.f32 0.0, %v4741
        %v4743 = vpop.f32.mrb[0].mxu0
        %v4744 = vpop.f32.mrb[0].mxu0
        %4745 = vdwg.mxu0
        %v4746 = vpack.c.bf16 %v4740, %v4740
        %v4747 = vpack.c.bf16 %v4742, %v4742
        %s4748 = scalar_lea.vmem %s4, 4
        %v4749 = vld [vmem:[%s4748] sm:$0x1]
        %v4751 = vsel %vm3025, %v4749, 0
        %4753 = vmatprep.subr.bf16.mxu0 %v3034
        %4754 = vmatpush1.bf16.msra.mxu0 %v3031
        %4755 = vmatprep.subr.bf16.mxu0 0
        %4756 = vmatpush1.bf16.msra.mxu0 0
        %4757 = vmatprep.subr.bf16.mxu0 0
        %4758 = vmatpush1.bf16.msra.mxu0 0
        %4759 = vmatprep.subr.bf16.mxu0 0
        %4760 = vmatpush1.bf16.msra.mxu0 0
        %4761 = vmatprep.subr.bf16.mxu0 0
        %4762 = vmatpush1.bf16.msra.mxu0 0
        %4763 = vmatprep.subr.bf16.mxu0 0
        %4764 = vmatpush1.bf16.msra.mxu0 0
        %4765 = vmatprep.subr.bf16.mxu0 0
        %4766 = vmatpush1.bf16.msra.mxu0 0
        %4767 = vmatprep.subr.bf16.mxu0 0
        %4768 = vmatpush1.bf16.msra.mxu0 0
        %4769 = vmatprep.subr.bf16.mxu0 0
        %4770 = vmatpush1.bf16.msra.mxu0 0
        %4771 = vmatprep.subr.bf16.mxu0 0
        %4772 = vmatpush1.bf16.msra.mxu0 0
        %4773 = vmatprep.subr.bf16.mxu0 0
        %4774 = vmatpush1.bf16.msra.mxu0 0
        %4775 = vmatprep.subr.bf16.mxu0 0
        %4776 = vmatpush1.bf16.msra.mxu0 0
        %4777 = vmatprep.subr.bf16.mxu0 0
        %4778 = vmatpush1.bf16.msra.mxu0 0
        %4779 = vmatprep.subr.bf16.mxu0 0
        %4780 = vmatpush1.bf16.msra.mxu0 0
        %4781 = vmatprep.subr.bf16.mxu0 0
        %4782 = vmatpush1.bf16.msra.mxu0 0
        %4783 = vmatprep.subr.bf16.mxu0 0
        %4784 = vmatpush1.bf16.msra.mxu0 0
        %4785 = vmatprep.mubr.bf16.mxu0 0
        %4786 = vmatmul.mubr.bf16.gmra.mrb[0].mxu0 %v4751
        %v4787 = vpop.f32.mrb[0].mxu0
        %v4788 = vadd.f32 0.0, %v4787
        %v4789 = vpop.f32.mrb[0].mxu0
        %v4790 = vadd.f32 0.0, %v4789
        %v4791 = vpop.f32.mrb[0].mxu0
        %v4792 = vpop.f32.mrb[0].mxu0
        %4793 = vdwg.mxu0
        %v4794 = vpack.c.bf16 %v4788, %v4788
        %v4795 = vpack.c.bf16 %v4790, %v4790
        %s4796 = scalar_lea.vmem %s4, 5
        %v4797 = vld [vmem:[%s4796] sm:$0x1]
        %v4799 = vsel %vm3025, %v4797, 0
        %4801 = vmatprep.subr.bf16.mxu0 %v3034
        %4802 = vmatpush1.bf16.msra.mxu0 %v3031
        %4803 = vmatprep.subr.bf16.mxu0 0
        %4804 = vmatpush1.bf16.msra.mxu0 0
        %4805 = vmatprep.subr.bf16.mxu0 0
        %4806 = vmatpush1.bf16.msra.mxu0 0
        %4807 = vmatprep.subr.bf16.mxu0 0
        %4808 = vmatpush1.bf16.msra.mxu0 0
        %4809 = vmatprep.subr.bf16.mxu0 0
        %4810 = vmatpush1.bf16.msra.mxu0 0
        %4811 = vmatprep.subr.bf16.mxu0 0
        %4812 = vmatpush1.bf16.msra.mxu0 0
        %4813 = vmatprep.subr.bf16.mxu0 0
        %4814 = vmatpush1.bf16.msra.mxu0 0
        %4815 = vmatprep.subr.bf16.mxu0 0
        %4816 = vmatpush1.bf16.msra.mxu0 0
        %4817 = vmatprep.subr.bf16.mxu0 0
        %4818 = vmatpush1.bf16.msra.mxu0 0
        %4819 = vmatprep.subr.bf16.mxu0 0
        %4820 = vmatpush1.bf16.msra.mxu0 0
        %4821 = vmatprep.subr.bf16.mxu0 0
        %4822 = vmatpush1.bf16.msra.mxu0 0
        %4823 = vmatprep.subr.bf16.mxu0 0
        %4824 = vmatpush1.bf16.msra.mxu0 0
        %4825 = vmatprep.subr.bf16.mxu0 0
        %4826 = vmatpush1.bf16.msra.mxu0 0
        %4827 = vmatprep.subr.bf16.mxu0 0
        %4828 = vmatpush1.bf16.msra.mxu0 0
        %4829 = vmatprep.subr.bf16.mxu0 0
        %4830 = vmatpush1.bf16.msra.mxu0 0
        %4831 = vmatprep.subr.bf16.mxu0 0
        %4832 = vmatpush1.bf16.msra.mxu0 0
        %4833 = vmatprep.mubr.bf16.mxu0 0
        %4834 = vmatmul.mubr.bf16.gmra.mrb[0].mxu0 %v4799
        %v4835 = vpop.f32.mrb[0].mxu0
        %v4836 = vadd.f32 0.0, %v4835
        %v4837 = vpop.f32.mrb[0].mxu0
        %v4838 = vadd.f32 0.0, %v4837
        %v4839 = vpop.f32.mrb[0].mxu0
        %v4840 = vpop.f32.mrb[0].mxu0
        %4841 = vdwg.mxu0
        %v4842 = vpack.c.bf16 %v4836, %v4836
        %v4843 = vpack.c.bf16 %v4838, %v4838
        %4844 = vmatprep.subr.bf16.mxu0 0
        %4845 = vmatpush1.bf16.msra.mxu0 %v3304
        %4846 = vmatprep.subr.bf16.mxu0 0
        %4847 = vmatpush1.bf16.msra.mxu0 %v3305
        %4848 = vmatprep.subr.bf16.mxu0 0
        %4849 = vmatpush1.bf16.msra.mxu0 %v3306
        %4850 = vmatprep.subr.bf16.mxu0 0
        %4851 = vmatpush1.bf16.msra.mxu0 %v3307
        %4852 = vmatprep.subr.bf16.mxu0 0
        %4853 = vmatpush1.bf16.msra.mxu0 %v3308
        %4854 = vmatprep.subr.bf16.mxu0 0
        %4855 = vmatpush1.bf16.msra.mxu0 %v3309
        %4856 = vmatprep.subr.bf16.mxu0 0
        %4857 = vmatpush1.bf16.msra.mxu0 %v3310
        %4858 = vmatprep.subr.bf16.mxu0 0
        %4859 = vmatpush1.bf16.msra.mxu0 %v3311
        %4860 = vmatprep.subr.bf16.mxu0 0
        %4861 = vmatpush1.bf16.msra.mxu0 %v3312
        %4862 = vmatprep.subr.bf16.mxu0 0
        %4863 = vmatpush1.bf16.msra.mxu0 %v3313
        %4864 = vmatprep.subr.bf16.mxu0 0
        %4865 = vmatpush1.bf16.msra.mxu0 %v3314
        %4866 = vmatprep.subr.bf16.mxu0 0
        %4867 = vmatpush1.bf16.msra.mxu0 %v3315
        %4868 = vmatprep.subr.bf16.mxu0 0
        %4869 = vmatpush1.bf16.msra.mxu0 %v3316
        %4870 = vmatprep.subr.bf16.mxu0 0
        %4871 = vmatpush1.bf16.msra.mxu0 %v3317
        %4872 = vmatprep.subr.bf16.mxu0 0
        %4873 = vmatpush1.bf16.msra.mxu0 %v3318
        %4874 = vmatprep.subr.bf16.mxu0 0
        %4875 = vmatpush1.bf16.msra.mxu0 %v3319
        %4876 = vmatprep.mubr.bf16.mxu0 %v4795
        %4877 = vmatmul.mubr.bf16.gmra.mrb[0].mxu0 %v4794
        %v4878 = vpop.f32.mrb[0].mxu0
        %v4879 = vadd.f32 0.0, %v4878
        %v4880 = vpop.f32.mrb[0].mxu0
        %v4881 = vpop.f32.mrb[0].mxu0
        %v4882 = vpop.f32.mrb[0].mxu0
        %4883 = vdwg.mxu0
        %4884 = vmatprep.subr.bf16.mxu0 0
        %4885 = vmatpush1.bf16.msra.mxu0 %v3440
        %4886 = vmatprep.subr.bf16.mxu0 0
        %4887 = vmatpush1.bf16.msra.mxu0 %v3441
        %4888 = vmatprep.subr.bf16.mxu0 0
        %4889 = vmatpush1.bf16.msra.mxu0 %v3442
        %4890 = vmatprep.subr.bf16.mxu0 0
        %4891 = vmatpush1.bf16.msra.mxu0 %v3443
        %4892 = vmatprep.subr.bf16.mxu0 0
        %4893 = vmatpush1.bf16.msra.mxu0 %v3444
        %4894 = vmatprep.subr.bf16.mxu0 0
        %4895 = vmatpush1.bf16.msra.mxu0 %v3445
        %4896 = vmatprep.subr.bf16.mxu0 0
        %4897 = vmatpush1.bf16.msra.mxu0 %v3446
        %4898 = vmatprep.subr.bf16.mxu0 0
        %4899 = vmatpush1.bf16.msra.mxu0 %v3447
        %4900 = vmatprep.subr.bf16.mxu0 0
        %4901 = vmatpush1.bf16.msra.mxu0 %v3448
        %4902 = vmatprep.subr.bf16.mxu0 0
        %4903 = vmatpush1.bf16.msra.mxu0 %v3449
        %4904 = vmatprep.subr.bf16.mxu0 0
        %4905 = vmatpush1.bf16.msra.mxu0 %v3450
        %4906 = vmatprep.subr.bf16.mxu0 0
        %4907 = vmatpush1.bf16.msra.mxu0 %v3451
        %4908 = vmatprep.subr.bf16.mxu0 0
        %4909 = vmatpush1.bf16.msra.mxu0 %v3452
        %4910 = vmatprep.subr.bf16.mxu0 0
        %4911 = vmatpush1.bf16.msra.mxu0 %v3453
        %4912 = vmatprep.subr.bf16.mxu0 0
        %4913 = vmatpush1.bf16.msra.mxu0 %v3454
        %4914 = vmatprep.subr.bf16.mxu0 0
        %4915 = vmatpush1.bf16.msra.mxu0 %v3455
        %4916 = vmatprep.mubr.bf16.mxu0 %v4747
        %4917 = vmatmul.mubr.bf16.gmra.mrb[0].mxu0 %v4746
        %v4918 = vpop.f32.mrb[0].mxu0
        %v4919 = vadd.f32 %v4879, %v4918
        %v4920 = vpop.f32.mrb[0].mxu0
        %v4921 = vpop.f32.mrb[0].mxu0
        %v4922 = vpop.f32.mrb[0].mxu0
        %4923 = vdwg.mxu0
        %4924 = vmatprep.subr.bf16.mxu0 0
        %4925 = vmatpush1.bf16.msra.mxu0 %v3609
        %4926 = vmatprep.subr.bf16.mxu0 0
        %4927 = vmatpush1.bf16.msra.mxu0 %v3610
        %4928 = vmatprep.subr.bf16.mxu0 0
        %4929 = vmatpush1.bf16.msra.mxu0 %v3611
        %4930 = vmatprep.subr.bf16.mxu0 0
        %4931 = vmatpush1.bf16.msra.mxu0 %v3612
        %4932 = vmatprep.subr.bf16.mxu0 0
        %4933 = vmatpush1.bf16.msra.mxu0 %v3613
        %4934 = vmatprep.subr.bf16.mxu0 0
        %4935 = vmatpush1.bf16.msra.mxu0 %v3614
        %4936 = vmatprep.subr.bf16.mxu0 0
        %4937 = vmatpush1.bf16.msra.mxu0 %v3615
        %4938 = vmatprep.subr.bf16.mxu0 0
        %4939 = vmatpush1.bf16.msra.mxu0 %v3616
        %4940 = vmatprep.subr.bf16.mxu0 0
        %4941 = vmatpush1.bf16.msra.mxu0 %v3617
        %4942 = vmatprep.subr.bf16.mxu0 0
        %4943 = vmatpush1.bf16.msra.mxu0 %v3618
        %4944 = vmatprep.subr.bf16.mxu0 0
        %4945 = vmatpush1.bf16.msra.mxu0 %v3619
        %4946 = vmatprep.subr.bf16.mxu0 0
        %4947 = vmatpush1.bf16.msra.mxu0 %v3620
        %4948 = vmatprep.subr.bf16.mxu0 0
        %4949 = vmatpush1.bf16.msra.mxu0 %v3621
        %4950 = vmatprep.subr.bf16.mxu0 0
        %4951 = vmatpush1.bf16.msra.mxu0 %v3622
        %4952 = vmatprep.subr.bf16.mxu0 0
        %4953 = vmatpush1.bf16.msra.mxu0 %v3623
        %4954 = vmatprep.subr.bf16.mxu0 0
        %4955 = vmatpush1.bf16.msra.mxu0 %v3624
        %4956 = vmatprep.mubr.bf16.mxu0 %v4843
        %4957 = vmatmul.mubr.bf16.gmra.mrb[0].mxu0 %v4842
        %v4958 = vpop.f32.mrb[0].mxu0
        %v4959 = vadd.f32 0.0, %v4958
        %v4960 = vpop.f32.mrb[0].mxu0
        %v4961 = vpop.f32.mrb[0].mxu0
        %v4962 = vpop.f32.mrb[0].mxu0
        %4963 = vdwg.mxu0
        %v4964 = vadd.f32 %v4919, %v4959
        %v4965 = vmax.f32 %v4699, %v4964
        %4966 = vmatprep.subr.bf16.mxu0 0
        %4967 = vmatpush1.bf16.msra.mxu0 %v3812
        %4968 = vmatprep.subr.bf16.mxu0 0
        %4969 = vmatpush1.bf16.msra.mxu0 %v3813
        %4970 = vmatprep.subr.bf16.mxu0 0
        %4971 = vmatpush1.bf16.msra.mxu0 %v3814
        %4972 = vmatprep.subr.bf16.mxu0 0
        %4973 = vmatpush1.bf16.msra.mxu0 %v3815
        %4974 = vmatprep.subr.bf16.mxu0 0
        %4975 = vmatpush1.bf16.msra.mxu0 %v3816
        %4976 = vmatprep.subr.bf16.mxu0 0
        %4977 = vmatpush1.bf16.msra.mxu0 %v3817
        %4978 = vmatprep.subr.bf16.mxu0 0
        %4979 = vmatpush1.bf16.msra.mxu0 %v3818
        %4980 = vmatprep.subr.bf16.mxu0 0
        %4981 = vmatpush1.bf16.msra.mxu0 %v3819
        %4982 = vmatprep.subr.bf16.mxu0 0
        %4983 = vmatpush1.bf16.msra.mxu0 %v3820
        %4984 = vmatprep.subr.bf16.mxu0 0
        %4985 = vmatpush1.bf16.msra.mxu0 %v3821
        %4986 = vmatprep.subr.bf16.mxu0 0
        %4987 = vmatpush1.bf16.msra.mxu0 %v3822
        %4988 = vmatprep.subr.bf16.mxu0 0
        %4989 = vmatpush1.bf16.msra.mxu0 %v3823
        %4990 = vmatprep.subr.bf16.mxu0 0
        %4991 = vmatpush1.bf16.msra.mxu0 %v3824
        %4992 = vmatprep.subr.bf16.mxu0 0
        %4993 = vmatpush1.bf16.msra.mxu0 %v3825
        %4994 = vmatprep.subr.bf16.mxu0 0
        %4995 = vmatpush1.bf16.msra.mxu0 %v3826
        %4996 = vmatprep.subr.bf16.mxu0 0
        %4997 = vmatpush1.bf16.msra.mxu0 %v3827
        %4998 = vmatprep.mubr.bf16.mxu0 %v4795
        %4999 = vmatmul.mubr.bf16.gmra.mrb[0].mxu0 %v4794
        %v5000 = vpop.f32.mrb[0].mxu0
        %v5001 = vadd.f32 0.0, %v5000
        %v5002 = vpop.f32.mrb[0].mxu0
        %v5003 = vpop.f32.mrb[0].mxu0
        %v5004 = vpop.f32.mrb[0].mxu0
        %5005 = vdwg.mxu0
        %5006 = vmatprep.subr.bf16.mxu0 0
        %5007 = vmatpush1.bf16.msra.mxu0 %v3948
        %5008 = vmatprep.subr.bf16.mxu0 0
        %5009 = vmatpush1.bf16.msra.mxu0 %v3949
        %5010 = vmatprep.subr.bf16.mxu0 0
        %5011 = vmatpush1.bf16.msra.mxu0 %v3950
        %5012 = vmatprep.subr.bf16.mxu0 0
        %5013 = vmatpush1.bf16.msra.mxu0 %v3951
        %5014 = vmatprep.subr.bf16.mxu0 0
        %5015 = vmatpush1.bf16.msra.mxu0 %v3952
        %5016 = vmatprep.subr.bf16.mxu0 0
        %5017 = vmatpush1.bf16.msra.mxu0 %v3953
        %5018 = vmatprep.subr.bf16.mxu0 0
        %5019 = vmatpush1.bf16.msra.mxu0 %v3954
        %5020 = vmatprep.subr.bf16.mxu0 0
        %5021 = vmatpush1.bf16.msra.mxu0 %v3955
        %5022 = vmatprep.subr.bf16.mxu0 0
        %5023 = vmatpush1.bf16.msra.mxu0 %v3956
        %5024 = vmatprep.subr.bf16.mxu0 0
        %5025 = vmatpush1.bf16.msra.mxu0 %v3957
        %5026 = vmatprep.subr.bf16.mxu0 0
        %5027 = vmatpush1.bf16.msra.mxu0 %v3958
        %5028 = vmatprep.subr.bf16.mxu0 0
        %5029 = vmatpush1.bf16.msra.mxu0 %v3959
        %5030 = vmatprep.subr.bf16.mxu0 0
        %5031 = vmatpush1.bf16.msra.mxu0 %v3960
        %5032 = vmatprep.subr.bf16.mxu0 0
        %5033 = vmatpush1.bf16.msra.mxu0 %v3961
        %5034 = vmatprep.subr.bf16.mxu0 0
        %5035 = vmatpush1.bf16.msra.mxu0 %v3962
        %5036 = vmatprep.subr.bf16.mxu0 0
        %5037 = vmatpush1.bf16.msra.mxu0 %v3963
        %5038 = vmatprep.mubr.bf16.mxu0 %v4747
        %5039 = vmatmul.mubr.bf16.gmra.mrb[0].mxu0 %v4746
        %v5040 = vpop.f32.mrb[0].mxu0
        %v5041 = vadd.f32 %v5001, %v5040
        %v5042 = vpop.f32.mrb[0].mxu0
        %v5043 = vpop.f32.mrb[0].mxu0
        %v5044 = vpop.f32.mrb[0].mxu0
        %5045 = vdwg.mxu0
        %5046 = vmatprep.subr.bf16.mxu0 0
        %5047 = vmatpush1.bf16.msra.mxu0 %v4117
        %5048 = vmatprep.subr.bf16.mxu0 0
        %5049 = vmatpush1.bf16.msra.mxu0 %v4118
        %5050 = vmatprep.subr.bf16.mxu0 0
        %5051 = vmatpush1.bf16.msra.mxu0 %v4119
        %5052 = vmatprep.subr.bf16.mxu0 0
        %5053 = vmatpush1.bf16.msra.mxu0 %v4120
        %5054 = vmatprep.subr.bf16.mxu0 0
        %5055 = vmatpush1.bf16.msra.mxu0 %v4121
        %5056 = vmatprep.subr.bf16.mxu0 0
        %5057 = vmatpush1.bf16.msra.mxu0 %v4122
        %5058 = vmatprep.subr.bf16.mxu0 0
        %5059 = vmatpush1.bf16.msra.mxu0 %v4123
        %5060 = vmatprep.subr.bf16.mxu0 0
        %5061 = vmatpush1.bf16.msra.mxu0 %v4124
        %5062 = vmatprep.subr.bf16.mxu0 0
        %5063 = vmatpush1.bf16.msra.mxu0 %v4125
        %5064 = vmatprep.subr.bf16.mxu0 0
        %5065 = vmatpush1.bf16.msra.mxu0 %v4126
        %5066 = vmatprep.subr.bf16.mxu0 0
        %5067 = vmatpush1.bf16.msra.mxu0 %v4127
        %5068 = vmatprep.subr.bf16.mxu0 0
        %5069 = vmatpush1.bf16.msra.mxu0 %v4128
        %5070 = vmatprep.subr.bf16.mxu0 0
        %5071 = vmatpush1.bf16.msra.mxu0 %v4129
        %5072 = vmatprep.subr.bf16.mxu0 0
        %5073 = vmatpush1.bf16.msra.mxu0 %v4130
        %5074 = vmatprep.subr.bf16.mxu0 0
        %5075 = vmatpush1.bf16.msra.mxu0 %v4131
        %5076 = vmatprep.subr.bf16.mxu0 0
        %5077 = vmatpush1.bf16.msra.mxu0 %v4132
        %5078 = vmatprep.mubr.bf16.mxu0 %v4843
        %5079 = vmatmul.mubr.bf16.gmra.mrb[0].mxu0 %v4842
        %v5080 = vpop.f32.mrb[0].mxu0
        %v5081 = vadd.f32 0.0, %v5080
        %v5082 = vpop.f32.mrb[0].mxu0
        %v5083 = vpop.f32.mrb[0].mxu0
        %v5084 = vpop.f32.mrb[0].mxu0
        %5085 = vdwg.mxu0
        %v5086 = vadd.f32 %v5041, %v5081
        %v5087 = vmax.f32 %v4965, %v5086
        %5088 = vmatprep.subr.bf16.mxu0 0
        %5089 = vmatpush1.bf16.msra.mxu0 %v4321
        %5090 = vmatprep.subr.bf16.mxu0 0
        %5091 = vmatpush1.bf16.msra.mxu0 %v4322
        %5092 = vmatprep.subr.bf16.mxu0 0
        %5093 = vmatpush1.bf16.msra.mxu0 %v4323
        %5094 = vmatprep.subr.bf16.mxu0 0
        %5095 = vmatpush1.bf16.msra.mxu0 %v4324
        %5096 = vmatprep.subr.bf16.mxu0 0
        %5097 = vmatpush1.bf16.msra.mxu0 %v4325
        %5098 = vmatprep.subr.bf16.mxu0 0
        %5099 = vmatpush1.bf16.msra.mxu0 %v4326
        %5100 = vmatprep.subr.bf16.mxu0 0
        %5101 = vmatpush1.bf16.msra.mxu0 %v4327
        %5102 = vmatprep.subr.bf16.mxu0 0
        %5103 = vmatpush1.bf16.msra.mxu0 %v4328
        %5104 = vmatprep.subr.bf16.mxu0 0
        %5105 = vmatpush1.bf16.msra.mxu0 %v4329
        %5106 = vmatprep.subr.bf16.mxu0 0
        %5107 = vmatpush1.bf16.msra.mxu0 %v4330
        %5108 = vmatprep.subr.bf16.mxu0 0
        %5109 = vmatpush1.bf16.msra.mxu0 %v4331
        %5110 = vmatprep.subr.bf16.mxu0 0
        %5111 = vmatpush1.bf16.msra.mxu0 %v4332
        %5112 = vmatprep.subr.bf16.mxu0 0
        %5113 = vmatpush1.bf16.msra.mxu0 %v4333
        %5114 = vmatprep.subr.bf16.mxu0 0
        %5115 = vmatpush1.bf16.msra.mxu0 %v4334
        %5116 = vmatprep.subr.bf16.mxu0 0
        %5117 = vmatpush1.bf16.msra.mxu0 %v4335
        %5118 = vmatprep.subr.bf16.mxu0 0
        %5119 = vmatpush1.bf16.msra.mxu0 %v4336
        %5120 = vmatprep.mubr.bf16.mxu0 %v4795
        %5121 = vmatmul.mubr.bf16.gmra.mrb[0].mxu0 %v4794
        %v5122 = vpop.f32.mrb[0].mxu0
        %v5123 = vadd.f32 0.0, %v5122
        %v5124 = vpop.f32.mrb[0].mxu0
        %v5125 = vpop.f32.mrb[0].mxu0
        %v5126 = vpop.f32.mrb[0].mxu0
        %5127 = vdwg.mxu0
        %5128 = vmatprep.subr.bf16.mxu0 0
        %5129 = vmatpush1.bf16.msra.mxu0 %v4457
        %5130 = vmatprep.subr.bf16.mxu0 0
        %5131 = vmatpush1.bf16.msra.mxu0 %v4458
        %5132 = vmatprep.subr.bf16.mxu0 0
        %5133 = vmatpush1.bf16.msra.mxu0 %v4459
        %5134 = vmatprep.subr.bf16.mxu0 0
        %5135 = vmatpush1.bf16.msra.mxu0 %v4460
        %5136 = vmatprep.subr.bf16.mxu0 0
        %5137 = vmatpush1.bf16.msra.mxu0 %v4461
        %5138 = vmatprep.subr.bf16.mxu0 0
        %5139 = vmatpush1.bf16.msra.mxu0 %v4462
        %5140 = vmatprep.subr.bf16.mxu0 0
        %5141 = vmatpush1.bf16.msra.mxu0 %v4463
        %5142 = vmatprep.subr.bf16.mxu0 0
        %5143 = vmatpush1.bf16.msra.mxu0 %v4464
        %5144 = vmatprep.subr.bf16.mxu0 0
        %5145 = vmatpush1.bf16.msra.mxu0 %v4465
        %5146 = vmatprep.subr.bf16.mxu0 0
        %5147 = vmatpush1.bf16.msra.mxu0 %v4466
        %5148 = vmatprep.subr.bf16.mxu0 0
        %5149 = vmatpush1.bf16.msra.mxu0 %v4467
        %5150 = vmatprep.subr.bf16.mxu0 0
        %5151 = vmatpush1.bf16.msra.mxu0 %v4468
        %5152 = vmatprep.subr.bf16.mxu0 0
        %5153 = vmatpush1.bf16.msra.mxu0 %v4469
        %5154 = vmatprep.subr.bf16.mxu0 0
        %5155 = vmatpush1.bf16.msra.mxu0 %v4470
        %5156 = vmatprep.subr.bf16.mxu0 0
        %5157 = vmatpush1.bf16.msra.mxu0 %v4471
        %5158 = vmatprep.subr.bf16.mxu0 0
        %5159 = vmatpush1.bf16.msra.mxu0 %v4472
        %5160 = vmatprep.mubr.bf16.mxu0 %v4747
        %5161 = vmatmul.mubr.bf16.gmra.mrb[0].mxu0 %v4746
        %v5162 = vpop.f32.mrb[0].mxu0
        %v5163 = vadd.f32 %v5123, %v5162
        %v5164 = vpop.f32.mrb[0].mxu0
        %v5165 = vpop.f32.mrb[0].mxu0
        %v5166 = vpop.f32.mrb[0].mxu0
        %5167 = vdwg.mxu0
        %5168 = vmatprep.subr.bf16.mxu0 0
        %5169 = vmatpush1.bf16.msra.mxu0 %v4626
        %5170 = vmatprep.subr.bf16.mxu0 0
        %5171 = vmatpush1.bf16.msra.mxu0 %v4627
        %5172 = vmatprep.subr.bf16.mxu0 0
        %5173 = vmatpush1.bf16.msra.mxu0 %v4628
        %5174 = vmatprep.subr.bf16.mxu0 0
        %5175 = vmatpush1.bf16.msra.mxu0 %v4629
        %5176 = vmatprep.subr.bf16.mxu0 0
        %5177 = vmatpush1.bf16.msra.mxu0 %v4630
        %5178 = vmatprep.subr.bf16.mxu0 0
        %5179 = vmatpush1.bf16.msra.mxu0 %v4631
        %5180 = vmatprep.subr.bf16.mxu0 0
        %5181 = vmatpush1.bf16.msra.mxu0 %v4632
        %5182 = vmatprep.subr.bf16.mxu0 0
        %5183 = vmatpush1.bf16.msra.mxu0 %v4633
        %5184 = vmatprep.subr.bf16.mxu0 0
        %5185 = vmatpush1.bf16.msra.mxu0 %v4634
        %5186 = vmatprep.subr.bf16.mxu0 0
        %5187 = vmatpush1.bf16.msra.mxu0 %v4635
        %5188 = vmatprep.subr.bf16.mxu0 0
        %5189 = vmatpush1.bf16.msra.mxu0 %v4636
        %5190 = vmatprep.subr.bf16.mxu0 0
        %5191 = vmatpush1.bf16.msra.mxu0 %v4637
        %5192 = vmatprep.subr.bf16.mxu0 0
        %5193 = vmatpush1.bf16.msra.mxu0 %v4638
        %5194 = vmatprep.subr.bf16.mxu0 0
        %5195 = vmatpush1.bf16.msra.mxu0 %v4639
        %5196 = vmatprep.subr.bf16.mxu0 0
        %5197 = vmatpush1.bf16.msra.mxu0 %v4640
        %5198 = vmatprep.subr.bf16.mxu0 0
        %5199 = vmatpush1.bf16.msra.mxu0 %v4641
        %5200 = vmatprep.mubr.bf16.mxu0 %v4843
        %5201 = vmatmul.mubr.bf16.gmra.mrb[0].mxu0 %v4842
        %v5202 = vpop.f32.mrb[0].mxu0
        %v5203 = vadd.f32 0.0, %v5202
        %v5204 = vpop.f32.mrb[0].mxu0
        %v5205 = vpop.f32.mrb[0].mxu0
        %v5206 = vpop.f32.mrb[0].mxu0
        %5207 = vdwg.mxu0
        %v5208 = vadd.f32 %v5163, %v5203
        %v5209 = vmax.f32 %v5087, %v5208
        %s5210 = scalar_lea.vmem %s4, 6
        %v5211 = vld [vmem:[%s5210] sm:$0x1]
        %v5213 = vsel %vm3025, %v5211, 0
        %5215 = vmatprep.subr.bf16.mxu0 %v3034
        %5216 = vmatpush1.bf16.msra.mxu0 %v3031
        %5217 = vmatprep.subr.bf16.mxu0 0
        %5218 = vmatpush1.bf16.msra.mxu0 0
        %5219 = vmatprep.subr.bf16.mxu0 0
        %5220 = vmatpush1.bf16.msra.mxu0 0
        %5221 = vmatprep.subr.bf16.mxu0 0
        %5222 = vmatpush1.bf16.msra.mxu0 0
        %5223 = vmatprep.subr.bf16.mxu0 0
        %5224 = vmatpush1.bf16.msra.mxu0 0
        %5225 = vmatprep.subr.bf16.mxu0 0
        %5226 = vmatpush1.bf16.msra.mxu0 0
        %5227 = vmatprep.subr.bf16.mxu0 0
        %5228 = vmatpush1.bf16.msra.mxu0 0
        %5229 = vmatprep.subr.bf16.mxu0 0
        %5230 = vmatpush1.bf16.msra.mxu0 0
        %5231 = vmatprep.subr.bf16.mxu0 0
        %5232 = vmatpush1.bf16.msra.mxu0 0
        %5233 = vmatprep.subr.bf16.mxu0 0
        %5234 = vmatpush1.bf16.msra.mxu0 0
        %5235 = vmatprep.subr.bf16.mxu0 0
        %5236 = vmatpush1.bf16.msra.mxu0 0
        %5237 = vmatprep.subr.bf16.mxu0 0
        %5238 = vmatpush1.bf16.msra.mxu0 0
        %5239 = vmatprep.subr.bf16.mxu0 0
        %5240 = vmatpush1.bf16.msra.mxu0 0
        %5241 = vmatprep.subr.bf16.mxu0 0
        %5242 = vmatpush1.bf16.msra.mxu0 0
        %5243 = vmatprep.subr.bf16.mxu0 0
        %5244 = vmatpush1.bf16.msra.mxu0 0
        %5245 = vmatprep.subr.bf16.mxu0 0
        %5246 = vmatpush1.bf16.msra.mxu0 0
        %5247 = vmatprep.mubr.bf16.mxu0 0
        %5248 = vmatmul.mubr.bf16.gmra.mrb[0].mxu0 %v5213
        %v5249 = vpop.f32.mrb[0].mxu0
        %v5250 = vadd.f32 0.0, %v5249
        %v5251 = vpop.f32.mrb[0].mxu0
        %v5252 = vadd.f32 0.0, %v5251
        %v5253 = vpop.f32.mrb[0].mxu0
        %v5254 = vpop.f32.mrb[0].mxu0
        %5255 = vdwg.mxu0
        %v5256 = vpack.c.bf16 %v5250, %v5250
        %v5257 = vpack.c.bf16 %v5252, %v5252
        %s5258 = scalar_lea.vmem %s4, 7
        %v5259 = vld [vmem:[%s5258] sm:$0x1]
        %v5261 = vsel %vm3025, %v5259, 0
        %5263 = vmatprep.subr.bf16.mxu0 %v3034
        %5264 = vmatpush1.bf16.msra.mxu0 %v3031
        %5265 = vmatprep.subr.bf16.mxu0 0
        %5266 = vmatpush1.bf16.msra.mxu0 0
        %5267 = vmatprep.subr.bf16.mxu0 0
        %5268 = vmatpush1.bf16.msra.mxu0 0
        %5269 = vmatprep.subr.bf16.mxu0 0
        %5270 = vmatpush1.bf16.msra.mxu0 0
        %5271 = vmatprep.subr.bf16.mxu0 0
        %5272 = vmatpush1.bf16.msra.mxu0 0
        %5273 = vmatprep.subr.bf16.mxu0 0
        %5274 = vmatpush1.bf16.msra.mxu0 0
        %5275 = vmatprep.subr.bf16.mxu0 0
        %5276 = vmatpush1.bf16.msra.mxu0 0
        %5277 = vmatprep.subr.bf16.mxu0 0
        %5278 = vmatpush1.bf16.msra.mxu0 0
        %5279 = vmatprep.subr.bf16.mxu0 0
        %5280 = vmatpush1.bf16.msra.mxu0 0
        %5281 = vmatprep.subr.bf16.mxu0 0
        %5282 = vmatpush1.bf16.msra.mxu0 0
        %5283 = vmatprep.subr.bf16.mxu0 0
        %5284 = vmatpush1.bf16.msra.mxu0 0
        %5285 = vmatprep.subr.bf16.mxu0 0
        %5286 = vmatpush1.bf16.msra.mxu0 0
        %5287 = vmatprep.subr.bf16.mxu0 0
        %5288 = vmatpush1.bf16.msra.mxu0 0
        %5289 = vmatprep.subr.bf16.mxu0 0
        %5290 = vmatpush1.bf16.msra.mxu0 0
        %5291 = vmatprep.subr.bf16.mxu0 0
        %5292 = vmatpush1.bf16.msra.mxu0 0
        %5293 = vmatprep.subr.bf16.mxu0 0
        %5294 = vmatpush1.bf16.msra.mxu0 0
        %5295 = vmatprep.mubr.bf16.mxu0 0
        %5296 = vmatmul.mubr.bf16.gmra.mrb[0].mxu0 %v5261
        %v5297 = vpop.f32.mrb[0].mxu0
        %v5298 = vadd.f32 0.0, %v5297
        %v5299 = vpop.f32.mrb[0].mxu0
        %v5300 = vadd.f32 0.0, %v5299
        %v5301 = vpop.f32.mrb[0].mxu0
        %v5302 = vpop.f32.mrb[0].mxu0
        %5303 = vdwg.mxu0
        %v5304 = vpack.c.bf16 %v5298, %v5298
        %v5305 = vpack.c.bf16 %v5300, %v5300
        %s5306 = scalar_lea.vmem %s4, 8
        %v5307 = vld [vmem:[%s5306] sm:$0x1]
        %v5309 = vsel %vm3025, %v5307, 0
        %5311 = vmatprep.subr.bf16.mxu0 %v3034
        %5312 = vmatpush1.bf16.msra.mxu0 %v3031
        %5313 = vmatprep.subr.bf16.mxu0 0
        %5314 = vmatpush1.bf16.msra.mxu0 0
        %5315 = vmatprep.subr.bf16.mxu0 0
        %5316 = vmatpush1.bf16.msra.mxu0 0
        %5317 = vmatprep.subr.bf16.mxu0 0
        %5318 = vmatpush1.bf16.msra.mxu0 0
        %5319 = vmatprep.subr.bf16.mxu0 0
        %5320 = vmatpush1.bf16.msra.mxu0 0
        %5321 = vmatprep.subr.bf16.mxu0 0
        %5322 = vmatpush1.bf16.msra.mxu0 0
        %5323 = vmatprep.subr.bf16.mxu0 0
        %5324 = vmatpush1.bf16.msra.mxu0 0
        %5325 = vmatprep.subr.bf16.mxu0 0
        %5326 = vmatpush1.bf16.msra.mxu0 0
        %5327 = vmatprep.subr.bf16.mxu0 0
        %5328 = vmatpush1.bf16.msra.mxu0 0
        %5329 = vmatprep.subr.bf16.mxu0 0
        %5330 = vmatpush1.bf16.msra.mxu0 0
        %5331 = vmatprep.subr.bf16.mxu0 0
        %5332 = vmatpush1.bf16.msra.mxu0 0
        %5333 = vmatprep.subr.bf16.mxu0 0
        %5334 = vmatpush1.bf16.msra.mxu0 0
        %5335 = vmatprep.subr.bf16.mxu0 0
        %5336 = vmatpush1.bf16.msra.mxu0 0
        %5337 = vmatprep.subr.bf16.mxu0 0
        %5338 = vmatpush1.bf16.msra.mxu0 0
        %5339 = vmatprep.subr.bf16.mxu0 0
        %5340 = vmatpush1.bf16.msra.mxu0 0
        %5341 = vmatprep.subr.bf16.mxu0 0
        %5342 = vmatpush1.bf16.msra.mxu0 0
        %5343 = vmatprep.mubr.bf16.mxu0 0
        %5344 = vmatmul.mubr.bf16.gmra.mrb[0].mxu0 %v5309
        %v5345 = vpop.f32.mrb[0].mxu0
        %v5346 = vadd.f32 0.0, %v5345
        %v5347 = vpop.f32.mrb[0].mxu0
        %v5348 = vadd.f32 0.0, %v5347
        %v5349 = vpop.f32.mrb[0].mxu0
        %v5350 = vpop.f32.mrb[0].mxu0
        %5351 = vdwg.mxu0
        %v5352 = vpack.c.bf16 %v5346, %v5346
        %v5353 = vpack.c.bf16 %v5348, %v5348
        %5354 = vmatprep.subr.bf16.mxu0 0
        %5355 = vmatpush1.bf16.msra.mxu0 %v3304
        %5356 = vmatprep.subr.bf16.mxu0 0
        %5357 = vmatpush1.bf16.msra.mxu0 %v3305
        %5358 = vmatprep.subr.bf16.mxu0 0
        %5359 = vmatpush1.bf16.msra.mxu0 %v3306
        %5360 = vmatprep.subr.bf16.mxu0 0
        %5361 = vmatpush1.bf16.msra.mxu0 %v3307
        %5362 = vmatprep.subr.bf16.mxu0 0
        %5363 = vmatpush1.bf16.msra.mxu0 %v3308
        %5364 = vmatprep.subr.bf16.mxu0 0
        %5365 = vmatpush1.bf16.msra.mxu0 %v3309
        %5366 = vmatprep.subr.bf16.mxu0 0
        %5367 = vmatpush1.bf16.msra.mxu0 %v3310
        %5368 = vmatprep.subr.bf16.mxu0 0
        %5369 = vmatpush1.bf16.msra.mxu0 %v3311
        %5370 = vmatprep.subr.bf16.mxu0 0
        %5371 = vmatpush1.bf16.msra.mxu0 %v3312
        %5372 = vmatprep.subr.bf16.mxu0 0
        %5373 = vmatpush1.bf16.msra.mxu0 %v3313
        %5374 = vmatprep.subr.bf16.mxu0 0
        %5375 = vmatpush1.bf16.msra.mxu0 %v3314
        %5376 = vmatprep.subr.bf16.mxu0 0
        %5377 = vmatpush1.bf16.msra.mxu0 %v3315
        %5378 = vmatprep.subr.bf16.mxu0 0
        %5379 = vmatpush1.bf16.msra.mxu0 %v3316
        %5380 = vmatprep.subr.bf16.mxu0 0
        %5381 = vmatpush1.bf16.msra.mxu0 %v3317
        %5382 = vmatprep.subr.bf16.mxu0 0
        %5383 = vmatpush1.bf16.msra.mxu0 %v3318
        %5384 = vmatprep.subr.bf16.mxu0 0
        %5385 = vmatpush1.bf16.msra.mxu0 %v3319
        %5386 = vmatprep.mubr.bf16.mxu0 %v5305
        %5387 = vmatmul.mubr.bf16.gmra.mrb[0].mxu0 %v5304
        %v5388 = vpop.f32.mrb[0].mxu0
        %v5389 = vadd.f32 0.0, %v5388
        %v5390 = vpop.f32.mrb[0].mxu0
        %v5391 = vpop.f32.mrb[0].mxu0
        %v5392 = vpop.f32.mrb[0].mxu0
        %5393 = vdwg.mxu0
        %5394 = vmatprep.subr.bf16.mxu0 0
        %5395 = vmatpush1.bf16.msra.mxu0 %v3440
        %5396 = vmatprep.subr.bf16.mxu0 0
        %5397 = vmatpush1.bf16.msra.mxu0 %v3441
        %5398 = vmatprep.subr.bf16.mxu0 0
        %5399 = vmatpush1.bf16.msra.mxu0 %v3442
        %5400 = vmatprep.subr.bf16.mxu0 0
        %5401 = vmatpush1.bf16.msra.mxu0 %v3443
        %5402 = vmatprep.subr.bf16.mxu0 0
        %5403 = vmatpush1.bf16.msra.mxu0 %v3444
        %5404 = vmatprep.subr.bf16.mxu0 0
        %5405 = vmatpush1.bf16.msra.mxu0 %v3445
        %5406 = vmatprep.subr.bf16.mxu0 0
        %5407 = vmatpush1.bf16.msra.mxu0 %v3446
        %5408 = vmatprep.subr.bf16.mxu0 0
        %5409 = vmatpush1.bf16.msra.mxu0 %v3447
        %5410 = vmatprep.subr.bf16.mxu0 0
        %5411 = vmatpush1.bf16.msra.mxu0 %v3448
        %5412 = vmatprep.subr.bf16.mxu0 0
        %5413 = vmatpush1.bf16.msra.mxu0 %v3449
        %5414 = vmatprep.subr.bf16.mxu0 0
        %5415 = vmatpush1.bf16.msra.mxu0 %v3450
        %5416 = vmatprep.subr.bf16.mxu0 0
        %5417 = vmatpush1.bf16.msra.mxu0 %v3451
        %5418 = vmatprep.subr.bf16.mxu0 0
        %5419 = vmatpush1.bf16.msra.mxu0 %v3452
        %5420 = vmatprep.subr.bf16.mxu0 0
        %5421 = vmatpush1.bf16.msra.mxu0 %v3453
        %5422 = vmatprep.subr.bf16.mxu0 0
        %5423 = vmatpush1.bf16.msra.mxu0 %v3454
        %5424 = vmatprep.subr.bf16.mxu0 0
        %5425 = vmatpush1.bf16.msra.mxu0 %v3455
        %5426 = vmatprep.mubr.bf16.mxu0 %v5257
        %5427 = vmatmul.mubr.bf16.gmra.mrb[0].mxu0 %v5256
        %v5428 = vpop.f32.mrb[0].mxu0
        %v5429 = vadd.f32 %v5389, %v5428
        %v5430 = vpop.f32.mrb[0].mxu0
        %v5431 = vpop.f32.mrb[0].mxu0
        %v5432 = vpop.f32.mrb[0].mxu0
        %5433 = vdwg.mxu0
        %5434 = vmatprep.subr.bf16.mxu0 0
        %5435 = vmatpush1.bf16.msra.mxu0 %v3609
        %5436 = vmatprep.subr.bf16.mxu0 0
        %5437 = vmatpush1.bf16.msra.mxu0 %v3610
        %5438 = vmatprep.subr.bf16.mxu0 0
        %5439 = vmatpush1.bf16.msra.mxu0 %v3611
        %5440 = vmatprep.subr.bf16.mxu0 0
        %5441 = vmatpush1.bf16.msra.mxu0 %v3612
        %5442 = vmatprep.subr.bf16.mxu0 0
        %5443 = vmatpush1.bf16.msra.mxu0 %v3613
        %5444 = vmatprep.subr.bf16.mxu0 0
        %5445 = vmatpush1.bf16.msra.mxu0 %v3614
        %5446 = vmatprep.subr.bf16.mxu0 0
        %5447 = vmatpush1.bf16.msra.mxu0 %v3615
        %5448 = vmatprep.subr.bf16.mxu0 0
        %5449 = vmatpush1.bf16.msra.mxu0 %v3616
        %5450 = vmatprep.subr.bf16.mxu0 0
        %5451 = vmatpush1.bf16.msra.mxu0 %v3617
        %5452 = vmatprep.subr.bf16.mxu0 0
        %5453 = vmatpush1.bf16.msra.mxu0 %v3618
        %5454 = vmatprep.subr.bf16.mxu0 0
        %5455 = vmatpush1.bf16.msra.mxu0 %v3619
        %5456 = vmatprep.subr.bf16.mxu0 0
        %5457 = vmatpush1.bf16.msra.mxu0 %v3620
        %5458 = vmatprep.subr.bf16.mxu0 0
        %5459 = vmatpush1.bf16.msra.mxu0 %v3621
        %5460 = vmatprep.subr.bf16.mxu0 0
        %5461 = vmatpush1.bf16.msra.mxu0 %v3622
        %5462 = vmatprep.subr.bf16.mxu0 0
        %5463 = vmatpush1.bf16.msra.mxu0 %v3623
        %5464 = vmatprep.subr.bf16.mxu0 0
        %5465 = vmatpush1.bf16.msra.mxu0 %v3624
        %5466 = vmatprep.mubr.bf16.mxu0 %v5353
        %5467 = vmatmul.mubr.bf16.gmra.mrb[0].mxu0 %v5352
        %v5468 = vpop.f32.mrb[0].mxu0
        %v5469 = vadd.f32 0.0, %v5468
        %v5470 = vpop.f32.mrb[0].mxu0
        %v5471 = vpop.f32.mrb[0].mxu0
        %v5472 = vpop.f32.mrb[0].mxu0
        %5473 = vdwg.mxu0
        %v5474 = vadd.f32 %v5429, %v5469
        %v5475 = vmax.f32 %v5209, %v5474
        %5476 = vmatprep.subr.bf16.mxu0 0
        %5477 = vmatpush1.bf16.msra.mxu0 %v3812
        %5478 = vmatprep.subr.bf16.mxu0 0
        %5479 = vmatpush1.bf16.msra.mxu0 %v3813
        %5480 = vmatprep.subr.bf16.mxu0 0
        %5481 = vmatpush1.bf16.msra.mxu0 %v3814
        %5482 = vmatprep.subr.bf16.mxu0 0
        %5483 = vmatpush1.bf16.msra.mxu0 %v3815
        %5484 = vmatprep.subr.bf16.mxu0 0
        %5485 = vmatpush1.bf16.msra.mxu0 %v3816
        %5486 = vmatprep.subr.bf16.mxu0 0
        %5487 = vmatpush1.bf16.msra.mxu0 %v3817
        %5488 = vmatprep.subr.bf16.mxu0 0
        %5489 = vmatpush1.bf16.msra.mxu0 %v3818
        %5490 = vmatprep.subr.bf16.mxu0 0
        %5491 = vmatpush1.bf16.msra.mxu0 %v3819
        %5492 = vmatprep.subr.bf16.mxu0 0
        %5493 = vmatpush1.bf16.msra.mxu0 %v3820
        %5494 = vmatprep.subr.bf16.mxu0 0
        %5495 = vmatpush1.bf16.msra.mxu0 %v3821
        %5496 = vmatprep.subr.bf16.mxu0 0
        %5497 = vmatpush1.bf16.msra.mxu0 %v3822
        %5498 = vmatprep.subr.bf16.mxu0 0
        %5499 = vmatpush1.bf16.msra.mxu0 %v3823
        %5500 = vmatprep.subr.bf16.mxu0 0
        %5501 = vmatpush1.bf16.msra.mxu0 %v3824
        %5502 = vmatprep.subr.bf16.mxu0 0
        %5503 = vmatpush1.bf16.msra.mxu0 %v3825
        %5504 = vmatprep.subr.bf16.mxu0 0
        %5505 = vmatpush1.bf16.msra.mxu0 %v3826
        %5506 = vmatprep.subr.bf16.mxu0 0
        %5507 = vmatpush1.bf16.msra.mxu0 %v3827
        %5508 = vmatprep.mubr.bf16.mxu0 %v5305
        %5509 = vmatmul.mubr.bf16.gmra.mrb[0].mxu0 %v5304
        %v5510 = vpop.f32.mrb[0].mxu0
        %v5511 = vadd.f32 0.0, %v5510
        %v5512 = vpop.f32.mrb[0].mxu0
        %v5513 = vpop.f32.mrb[0].mxu0
        %v5514 = vpop.f32.mrb[0].mxu0
        %5515 = vdwg.mxu0
        %5516 = vmatprep.subr.bf16.mxu0 0
        %5517 = vmatpush1.bf16.msra.mxu0 %v3948
        %5518 = vmatprep.subr.bf16.mxu0 0
        %5519 = vmatpush1.bf16.msra.mxu0 %v3949
        %5520 = vmatprep.subr.bf16.mxu0 0
        %5521 = vmatpush1.bf16.msra.mxu0 %v3950
        %5522 = vmatprep.subr.bf16.mxu0 0
        %5523 = vmatpush1.bf16.msra.mxu0 %v3951
        %5524 = vmatprep.subr.bf16.mxu0 0
        %5525 = vmatpush1.bf16.msra.mxu0 %v3952
        %5526 = vmatprep.subr.bf16.mxu0 0
        %5527 = vmatpush1.bf16.msra.mxu0 %v3953
        %5528 = vmatprep.subr.bf16.mxu0 0
        %5529 = vmatpush1.bf16.msra.mxu0 %v3954
        %5530 = vmatprep.subr.bf16.mxu0 0
        %5531 = vmatpush1.bf16.msra.mxu0 %v3955
        %5532 = vmatprep.subr.bf16.mxu0 0
        %5533 = vmatpush1.bf16.msra.mxu0 %v3956
        %5534 = vmatprep.subr.bf16.mxu0 0
        %5535 = vmatpush1.bf16.msra.mxu0 %v3957
        %5536 = vmatprep.subr.bf16.mxu0 0
        %5537 = vmatpush1.bf16.msra.mxu0 %v3958
        %5538 = vmatprep.subr.bf16.mxu0 0
        %5539 = vmatpush1.bf16.msra.mxu0 %v3959
        %5540 = vmatprep.subr.bf16.mxu0 0
        %5541 = vmatpush1.bf16.msra.mxu0 %v3960
        %5542 = vmatprep.subr.bf16.mxu0 0
        %5543 = vmatpush1.bf16.msra.mxu0 %v3961
        %5544 = vmatprep.subr.bf16.mxu0 0
        %5545 = vmatpush1.bf16.msra.mxu0 %v3962
        %5546 = vmatprep.subr.bf16.mxu0 0
        %5547 = vmatpush1.bf16.msra.mxu0 %v3963
        %5548 = vmatprep.mubr.bf16.mxu0 %v5257
        %5549 = vmatmul.mubr.bf16.gmra.mrb[0].mxu0 %v5256
        %v5550 = vpop.f32.mrb[0].mxu0
        %v5551 = vadd.f32 %v5511, %v5550
        %v5552 = vpop.f32.mrb[0].mxu0
        %v5553 = vpop.f32.mrb[0].mxu0
        %v5554 = vpop.f32.mrb[0].mxu0
        %5555 = vdwg.mxu0
        %5556 = vmatprep.subr.bf16.mxu0 0
        %5557 = vmatpush1.bf16.msra.mxu0 %v4117
        %5558 = vmatprep.subr.bf16.mxu0 0
        %5559 = vmatpush1.bf16.msra.mxu0 %v4118
        %5560 = vmatprep.subr.bf16.mxu0 0
        %5561 = vmatpush1.bf16.msra.mxu0 %v4119
        %5562 = vmatprep.subr.bf16.mxu0 0
        %5563 = vmatpush1.bf16.msra.mxu0 %v4120
        %5564 = vmatprep.subr.bf16.mxu0 0
        %5565 = vmatpush1.bf16.msra.mxu0 %v4121
        %5566 = vmatprep.subr.bf16.mxu0 0
        %5567 = vmatpush1.bf16.msra.mxu0 %v4122
        %5568 = vmatprep.subr.bf16.mxu0 0
        %5569 = vmatpush1.bf16.msra.mxu0 %v4123
        %5570 = vmatprep.subr.bf16.mxu0 0
        %5571 = vmatpush1.bf16.msra.mxu0 %v4124
        %5572 = vmatprep.subr.bf16.mxu0 0
        %5573 = vmatpush1.bf16.msra.mxu0 %v4125
        %5574 = vmatprep.subr.bf16.mxu0 0
        %5575 = vmatpush1.bf16.msra.mxu0 %v4126
        %5576 = vmatprep.subr.bf16.mxu0 0
        %5577 = vmatpush1.bf16.msra.mxu0 %v4127
        %5578 = vmatprep.subr.bf16.mxu0 0
        %5579 = vmatpush1.bf16.msra.mxu0 %v4128
        %5580 = vmatprep.subr.bf16.mxu0 0
        %5581 = vmatpush1.bf16.msra.mxu0 %v4129
        %5582 = vmatprep.subr.bf16.mxu0 0
        %5583 = vmatpush1.bf16.msra.mxu0 %v4130
        %5584 = vmatprep.subr.bf16.mxu0 0
        %5585 = vmatpush1.bf16.msra.mxu0 %v4131
        %5586 = vmatprep.subr.bf16.mxu0 0
        %5587 = vmatpush1.bf16.msra.mxu0 %v4132
        %5588 = vmatprep.mubr.bf16.mxu0 %v5353
        %5589 = vmatmul.mubr.bf16.gmra.mrb[0].mxu0 %v5352
        %v5590 = vpop.f32.mrb[0].mxu0
        %v5591 = vadd.f32 0.0, %v5590
        %v5592 = vpop.f32.mrb[0].mxu0
        %v5593 = vpop.f32.mrb[0].mxu0
        %v5594 = vpop.f32.mrb[0].mxu0
        %5595 = vdwg.mxu0
        %v5596 = vadd.f32 %v5551, %v5591
        %v5597 = vmax.f32 %v5475, %v5596
        %5598 = vmatprep.subr.bf16.mxu0 0
        %5599 = vmatpush1.bf16.msra.mxu0 %v4321
        %5600 = vmatprep.subr.bf16.mxu0 0
        %5601 = vmatpush1.bf16.msra.mxu0 %v4322
        %5602 = vmatprep.subr.bf16.mxu0 0
        %5603 = vmatpush1.bf16.msra.mxu0 %v4323
        %5604 = vmatprep.subr.bf16.mxu0 0
        %5605 = vmatpush1.bf16.msra.mxu0 %v4324
        %5606 = vmatprep.subr.bf16.mxu0 0
        %5607 = vmatpush1.bf16.msra.mxu0 %v4325
        %5608 = vmatprep.subr.bf16.mxu0 0
        %5609 = vmatpush1.bf16.msra.mxu0 %v4326
        %5610 = vmatprep.subr.bf16.mxu0 0
        %5611 = vmatpush1.bf16.msra.mxu0 %v4327
        %5612 = vmatprep.subr.bf16.mxu0 0
        %5613 = vmatpush1.bf16.msra.mxu0 %v4328
        %5614 = vmatprep.subr.bf16.mxu0 0
        %5615 = vmatpush1.bf16.msra.mxu0 %v4329
        %5616 = vmatprep.subr.bf16.mxu0 0
        %5617 = vmatpush1.bf16.msra.mxu0 %v4330
        %5618 = vmatprep.subr.bf16.mxu0 0
        %5619 = vmatpush1.bf16.msra.mxu0 %v4331
        %5620 = vmatprep.subr.bf16.mxu0 0
        %5621 = vmatpush1.bf16.msra.mxu0 %v4332
        %5622 = vmatprep.subr.bf16.mxu0 0
        %5623 = vmatpush1.bf16.msra.mxu0 %v4333
        %5624 = vmatprep.subr.bf16.mxu0 0
        %5625 = vmatpush1.bf16.msra.mxu0 %v4334
        %5626 = vmatprep.subr.bf16.mxu0 0
        %5627 = vmatpush1.bf16.msra.mxu0 %v4335
        %5628 = vmatprep.subr.bf16.mxu0 0
        %5629 = vmatpush1.bf16.msra.mxu0 %v4336
        %5630 = vmatprep.mubr.bf16.mxu0 %v5305
        %5631 = vmatmul.mubr.bf16.gmra.mrb[0].mxu0 %v5304
        %v5632 = vpop.f32.mrb[0].mxu0
        %v5633 = vadd.f32 0.0, %v5632
        %v5634 = vpop.f32.mrb[0].mxu0
        %v5635 = vpop.f32.mrb[0].mxu0
        %v5636 = vpop.f32.mrb[0].mxu0
        %5637 = vdwg.mxu0
        %5638 = vmatprep.subr.bf16.mxu0 0
        %5639 = vmatpush1.bf16.msra.mxu0 %v4457
        %5640 = vmatprep.subr.bf16.mxu0 0
        %5641 = vmatpush1.bf16.msra.mxu0 %v4458
        %5642 = vmatprep.subr.bf16.mxu0 0
        %5643 = vmatpush1.bf16.msra.mxu0 %v4459
        %5644 = vmatprep.subr.bf16.mxu0 0
        %5645 = vmatpush1.bf16.msra.mxu0 %v4460
        %5646 = vmatprep.subr.bf16.mxu0 0
        %5647 = vmatpush1.bf16.msra.mxu0 %v4461
        %5648 = vmatprep.subr.bf16.mxu0 0
        %5649 = vmatpush1.bf16.msra.mxu0 %v4462
        %5650 = vmatprep.subr.bf16.mxu0 0
        %5651 = vmatpush1.bf16.msra.mxu0 %v4463
        %5652 = vmatprep.subr.bf16.mxu0 0
        %5653 = vmatpush1.bf16.msra.mxu0 %v4464
        %5654 = vmatprep.subr.bf16.mxu0 0
        %5655 = vmatpush1.bf16.msra.mxu0 %v4465
        %5656 = vmatprep.subr.bf16.mxu0 0
        %5657 = vmatpush1.bf16.msra.mxu0 %v4466
        %5658 = vmatprep.subr.bf16.mxu0 0
        %5659 = vmatpush1.bf16.msra.mxu0 %v4467
        %5660 = vmatprep.subr.bf16.mxu0 0
        %5661 = vmatpush1.bf16.msra.mxu0 %v4468
        %5662 = vmatprep.subr.bf16.mxu0 0
        %5663 = vmatpush1.bf16.msra.mxu0 %v4469
        %5664 = vmatprep.subr.bf16.mxu0 0
        %5665 = vmatpush1.bf16.msra.mxu0 %v4470
        %5666 = vmatprep.subr.bf16.mxu0 0
        %5667 = vmatpush1.bf16.msra.mxu0 %v4471
        %5668 = vmatprep.subr.bf16.mxu0 0
        %5669 = vmatpush1.bf16.msra.mxu0 %v4472
        %5670 = vmatprep.mubr.bf16.mxu0 %v5257
        %5671 = vmatmul.mubr.bf16.gmra.mrb[0].mxu0 %v5256
        %v5672 = vpop.f32.mrb[0].mxu0
        %v5673 = vadd.f32 %v5633, %v5672
        %v5674 = vpop.f32.mrb[0].mxu0
        %v5675 = vpop.f32.mrb[0].mxu0
        %v5676 = vpop.f32.mrb[0].mxu0
        %5677 = vdwg.mxu0
        %5678 = vmatprep.subr.bf16.mxu0 0
        %5679 = vmatpush1.bf16.msra.mxu0 %v4626
        %5680 = vmatprep.subr.bf16.mxu0 0
        %5681 = vmatpush1.bf16.msra.mxu0 %v4627
        %5682 = vmatprep.subr.bf16.mxu0 0
        %5683 = vmatpush1.bf16.msra.mxu0 %v4628
        %5684 = vmatprep.subr.bf16.mxu0 0
        %5685 = vmatpush1.bf16.msra.mxu0 %v4629
        %5686 = vmatprep.subr.bf16.mxu0 0
        %5687 = vmatpush1.bf16.msra.mxu0 %v4630
        %5688 = vmatprep.subr.bf16.mxu0 0
        %5689 = vmatpush1.bf16.msra.mxu0 %v4631
        %5690 = vmatprep.subr.bf16.mxu0 0
        %5691 = vmatpush1.bf16.msra.mxu0 %v4632
        %5692 = vmatprep.subr.bf16.mxu0 0
        %5693 = vmatpush1.bf16.msra.mxu0 %v4633
        %5694 = vmatprep.subr.bf16.mxu0 0
        %5695 = vmatpush1.bf16.msra.mxu0 %v4634
        %5696 = vmatprep.subr.bf16.mxu0 0
        %5697 = vmatpush1.bf16.msra.mxu0 %v4635
        %5698 = vmatprep.subr.bf16.mxu0 0
        %5699 = vmatpush1.bf16.msra.mxu0 %v4636
        %5700 = vmatprep.subr.bf16.mxu0 0
        %5701 = vmatpush1.bf16.msra.mxu0 %v4637
        %5702 = vmatprep.subr.bf16.mxu0 0
        %5703 = vmatpush1.bf16.msra.mxu0 %v4638
        %5704 = vmatprep.subr.bf16.mxu0 0
        %5705 = vmatpush1.bf16.msra.mxu0 %v4639
        %5706 = vmatprep.subr.bf16.mxu0 0
        %5707 = vmatpush1.bf16.msra.mxu0 %v4640
        %5708 = vmatprep.subr.bf16.mxu0 0
        %5709 = vmatpush1.bf16.msra.mxu0 %v4641
        %5710 = vmatprep.mubr.bf16.mxu0 %v5353
        %5711 = vmatmul.mubr.bf16.gmra.mrb[0].mxu0 %v5352
        %v5712 = vpop.f32.mrb[0].mxu0
        %v5713 = vadd.f32 0.0, %v5712
        %v5714 = vpop.f32.mrb[0].mxu0
        %v5715 = vpop.f32.mrb[0].mxu0
        %v5716 = vpop.f32.mrb[0].mxu0
        %5717 = vdwg.mxu0
        %v5718 = vadd.f32 %v5673, %v5713
        %v5719 = vmax.f32 %v5597, %v5718
        %v5720 = vld [vmem:[%s6] sm:$0x1]
        %v5721 = vadd.f32 %v5719, %v5720
        %vm5722 = vcmp.gt.f32.partialorder %v5721, 0.0
        %v5723 = vmul.f32 %v5721, 0.1
        %v5724 = vsel %vm5722, %v5721, %v5723
        %v5725 = vpack.c.bf16 %v5724, %v5724
        %v5726 = vld [vmem:[%s7] sm:$0xf]
        %v5727 = vld [vmem:[%s7 + $0x4] sm:$0xf]
        %v5728 = vld [vmem:[%s7 + $0x8] sm:$0xf]
        %v5729 = vld [vmem:[%s7 + $0xc] sm:$0xf]
        %v5730 = vld [vmem:[%s7 + $0x10] sm:$0xf]
        %v5731 = vld [vmem:[%s7 + $0x14] sm:$0xf]
        %v5732 = vld [vmem:[%s7 + $0x18] sm:$0xf]
        %v5733 = vld [vmem:[%s7 + $0x1c] sm:$0xf]
        %v5734 = vld [vmem:[%s8] sm:$0x1]
        %v5743 = vunpack.c.l.b16 %v5726
        %v5744 = vunpack.c.l.b16 %v5727
        %v5745 = vunpack.c.l.b16 %v5728
        %v5746 = vunpack.c.l.b16 %v5729
        %v5747 = vunpack.c.l.b16 %v5730
        %v5748 = vunpack.c.l.b16 %v5731
        %v5749 = vunpack.c.l.b16 %v5732
        %v5750 = vunpack.c.l.b16 %v5733
        %v5751 = vpack.c.b16 %v5744, %v5743
        %v5752 = vpack.c.b16 %v5746, %v5745
        %v5753 = vpack.c.b16 %v5748, %v5747
        %v5754 = vpack.c.b16 %v5750, %v5749
        %vm5759 = vcmask 523264
        %v5761 = vsel %vm5759, %v5725, 0
        %5763 = vmatprep.subr.bf16.mxu0 0
        %5764 = vmatpush1.bf16.msra.mxu0 %v5751
        %5765 = vmatprep.subr.bf16.mxu0 0
        %5766 = vmatpush1.bf16.msra.mxu0 %v5752
        %5767 = vmatprep.subr.bf16.mxu0 0
        %5768 = vmatpush1.bf16.msra.mxu0 %v5753
        %5769 = vmatprep.subr.bf16.mxu0 0
        %5770 = vmatpush1.bf16.msra.mxu0 %v5754
        %5771 = vmatprep.subr.bf16.mxu0 0
        %5772 = vmatpush1.bf16.msra.mxu0 0
        %5773 = vmatprep.subr.bf16.mxu0 0
        %5774 = vmatpush1.bf16.msra.mxu0 0
        %5775 = vmatprep.subr.bf16.mxu0 0
        %5776 = vmatpush1.bf16.msra.mxu0 0
        %5777 = vmatprep.subr.bf16.mxu0 0
        %5778 = vmatpush1.bf16.msra.mxu0 0
        %5779 = vmatprep.subr.bf16.mxu0 0
        %5780 = vmatpush1.bf16.msra.mxu0 0
        %5781 = vmatprep.subr.bf16.mxu0 0
        %5782 = vmatpush1.bf16.msra.mxu0 0
        %5783 = vmatprep.subr.bf16.mxu0 0
        %5784 = vmatpush1.bf16.msra.mxu0 0
        %5785 = vmatprep.subr.bf16.mxu0 0
        %5786 = vmatpush1.bf16.msra.mxu0 0
        %5787 = vmatprep.subr.bf16.mxu0 0
        %5788 = vmatpush1.bf16.msra.mxu0 0
        %5789 = vmatprep.subr.bf16.mxu0 0
        %5790 = vmatpush1.bf16.msra.mxu0 0
        %5791 = vmatprep.subr.bf16.mxu0 0
        %5792 = vmatpush1.bf16.msra.mxu0 0
        %5793 = vmatprep.subr.bf16.mxu0 0
        %5794 = vmatpush1.bf16.msra.mxu0 0
        %5795 = vmatprep.mubr.bf16.mxu0 0
        %5796 = vmatmul.mubr.bf16.gmra.mrb[0].mxu0 %v5761
        %v5797 = vpop.f32.mrb[0].mxu0
        %v5798 = vadd.f32 %v5734, %v5797
        %v5799 = vpop.f32.mrb[0].mxu0
        %v5800 = vpop.f32.mrb[0].mxu0
        %v5801 = vpop.f32.mrb[0].mxu0
        %5802 = vdwg.mxu0
        %vm5803 = vcmp.gt.f32.partialorder %v5798, 0.0
        %v5804 = vmul.f32 %v5798, 0.1
        %v5805 = vsel %vm5803, %v5798, %v5804
        %v5806 = vpack.c.bf16 %v5805, %v5805
        %v5807 = vld [vmem:[%s10] sm:$0x1]
        %v5808 = vld [vmem:[%s9] sm:$0xf]
        %v5809 = vld [vmem:[%s9 + $0x4] sm:$0xf]
        %v5810 = vld [vmem:[%s9 + $0x8] sm:$0xf]
        %v5811 = vld [vmem:[%s9 + $0xc] sm:$0xf]
        %v5812 = vld [vmem:[%s9 + $0x10] sm:$0xf]
        %v5813 = vld [vmem:[%s9 + $0x14] sm:$0xf]
        %v5814 = vld [vmem:[%s9 + $0x18] sm:$0xf]
        %v5815 = vld [vmem:[%s9 + $0x1c] sm:$0xf]
        %v5816 = vld [vmem:[%s9 + $0x20] sm:$0xf]
        %v5817 = vld [vmem:[%s9 + $0x24] sm:$0xf]
        %v5818 = vld [vmem:[%s9 + $0x28] sm:$0xf]
        %v5819 = vld [vmem:[%s9 + $0x2c] sm:$0xf]
        %v5820 = vld [vmem:[%s9 + $0x30] sm:$0xf]
        %v5821 = vld [vmem:[%s9 + $0x34] sm:$0xf]
        %v5822 = vld [vmem:[%s9 + $0x38] sm:$0xf]
        %v5823 = vld [vmem:[%s9 + $0x3c] sm:$0xf]
        %v5840 = vunpack.c.l.b16 %v5808
        %v5841 = vunpack.c.l.b16 %v5809
        %v5842 = vunpack.c.l.b16 %v5810
        %v5843 = vunpack.c.l.b16 %v5811
        %v5844 = vunpack.c.l.b16 %v5812
        %v5845 = vunpack.c.l.b16 %v5813
        %v5846 = vunpack.c.l.b16 %v5814
        %v5847 = vunpack.c.l.b16 %v5815
        %v5848 = vunpack.c.l.b16 %v5816
        %v5849 = vunpack.c.l.b16 %v5817
        %v5850 = vunpack.c.l.b16 %v5818
        %v5851 = vunpack.c.l.b16 %v5819
        %v5852 = vunpack.c.l.b16 %v5820
        %v5853 = vunpack.c.l.b16 %v5821
        %v5854 = vunpack.c.l.b16 %v5822
        %v5855 = vunpack.c.l.b16 %v5823
        %v5856 = vpack.c.b16 %v5841, %v5840
        %v5857 = vpack.c.b16 %v5843, %v5842
        %v5858 = vpack.c.b16 %v5845, %v5844
        %v5859 = vpack.c.b16 %v5847, %v5846
        %v5860 = vpack.c.b16 %v5849, %v5848
        %v5861 = vpack.c.b16 %v5851, %v5850
        %v5862 = vpack.c.b16 %v5853, %v5852
        %v5863 = vpack.c.b16 %v5855, %v5854
        %5872 = vmatprep.subr.bf16.mxu0 0
        %5873 = vmatpush1.bf16.msra.mxu0 %v5856
        %5874 = vmatprep.subr.bf16.mxu0 0
        %5875 = vmatpush1.bf16.msra.mxu0 %v5857
        %5876 = vmatprep.subr.bf16.mxu0 0
        %5877 = vmatpush1.bf16.msra.mxu0 %v5858
        %5878 = vmatprep.subr.bf16.mxu0 0
        %5879 = vmatpush1.bf16.msra.mxu0 %v5859
        %5880 = vmatprep.subr.bf16.mxu0 0
        %5881 = vmatpush1.bf16.msra.mxu0 %v5860
        %5882 = vmatprep.subr.bf16.mxu0 0
        %5883 = vmatpush1.bf16.msra.mxu0 %v5861
        %5884 = vmatprep.subr.bf16.mxu0 0
        %5885 = vmatpush1.bf16.msra.mxu0 %v5862
        %5886 = vmatprep.subr.bf16.mxu0 0
        %5887 = vmatpush1.bf16.msra.mxu0 %v5863
        %5888 = vmatprep.subr.bf16.mxu0 0
        %5889 = vmatpush1.bf16.msra.mxu0 0
        %5890 = vmatprep.subr.bf16.mxu0 0
        %5891 = vmatpush1.bf16.msra.mxu0 0
        %5892 = vmatprep.subr.bf16.mxu0 0
        %5893 = vmatpush1.bf16.msra.mxu0 0
        %5894 = vmatprep.subr.bf16.mxu0 0
        %5895 = vmatpush1.bf16.msra.mxu0 0
        %5896 = vmatprep.subr.bf16.mxu0 0
        %5897 = vmatpush1.bf16.msra.mxu0 0
        %5898 = vmatprep.subr.bf16.mxu0 0
        %5899 = vmatpush1.bf16.msra.mxu0 0
        %5900 = vmatprep.subr.bf16.mxu0 0
        %5901 = vmatpush1.bf16.msra.mxu0 0
        %5902 = vmatprep.subr.bf16.mxu0 0
        %5903 = vmatpush1.bf16.msra.mxu0 0
        %5904 = vmatprep.mubr.bf16.mxu0 0
        %5905 = vmatmul.mubr.bf16.gmra.mrb[0].mxu0 %v5806
        %v5906 = vpop.f32.mrb[0].mxu0
        %v5907 = vadd.f32 0.0, %v5906
        %v5908 = vpop.f32.mrb[0].mxu0
        %v5909 = vpop.f32.mrb[0].mxu0
        %v5910 = vpop.f32.mrb[0].mxu0
        %5911 = vdwg.mxu0
        %v5912 = vadd.f32 %v5807, %v5907
        %5913 = vst [vmem:[%s378] sm:$0x1] %v5912
        %s5914 = sand.u32 %s269, 1
        %s5915 = scalar_lea.sflag [#allocation3], %s5914
        %s5916 = sand.u32 %s269, 1
        %s5917 = scalar_lea.vmem [#allocation2], %s5916
        // Predicated region
        $region65: #{brain_tumor_cnn_forward.1} parent=63 // pred_check
          %p5918 = pneg %p279
        $region66: #{brain_tumor_cnn_forward.1} parent=63 // pred_check_branch
          %5920 = sbr.rel (%p5918) target = $region68
        $region67: #{brain_tumor_cnn_forward.1} parent=63 // pred_region
          %s5922 = ssub.s32 16, 16
          %5923 = vsyncadd %s5915, %s5922
          %s5924 = smul.addr %s25, 16
          %s5925 = scalar_lea.hbm %s11, %s5924
          %s5927 = sshll.u32 %s5917, 4
          %s5928 = int_to_ptr.vmem [resolvable:$true] %s5927
          %5930 = dma.vmem_to_hbm [thread:$0]  %s5928, 16, %s5925, %s5915
        $region68: #{brain_tumor_cnn_forward.1} parent=63 // pred_fallthru
          _
      $region64: #{brain_tumor_cnn_forward.1} parent=5 // pred_fallthru
        _
      %p5931 = scmp.le.s32.totalorder 2, %s20
      // Predicated region
      $region69: #{brain_tumor_cnn_forward.1} parent=5 // pred_check
        %p5932 = pneg %p5931
      $region70: #{brain_tumor_cnn_forward.1} parent=5 // pred_check_branch
        %5934 = sbr.rel (%p5932) target = $region72
      $region71: #{brain_tumor_cnn_forward.1} parent=5 // pred_region
        %s5935 = ssub.s32 %s20, 2
        // Predicated region
        $region73: #{brain_tumor_cnn_forward.1} parent=71 // pred_check
          %p5936 = pneg %p285
        $region74: #{brain_tumor_cnn_forward.1} parent=71 // pred_check_branch
          %5938 = sbr.rel (%p5936) target = $region76
        $region75: #{brain_tumor_cnn_forward.1} parent=71 // pred_region
          %s5939 = sand.u32 %s270, 1
          %s5940 = scalar_lea.sflag [#allocation3], %s5939
          %s5941 = sand.u32 %s270, 1
          %s5942 = scalar_lea.vmem [#allocation2], %s5941
          %5943 = dma.done %s5940, 16
        $region76: #{brain_tumor_cnn_forward.1} parent=71 // pred_fallthru
          _
      $region72: #{brain_tumor_cnn_forward.1} parent=5 // pred_fallthru
        _
    $region6: #{brain_tumor_cnn_forward.1} parent=1 // loop_footer
      %s24 = sadd.s32 1, %s20
    $region7: #{brain_tumor_cnn_forward.1} parent=1 // loop_footer_branch
      %19 = sbr.rel target = $region3
    $region8: #{brain_tumor_cnn_forward.1} parent=1 // loop_exit
      _
    %5944 = vsyncpa [#allocation3], 1
    %s5945 = scalar_lea.sflag [#allocation3], 1
    %5946 = vsyncpa %s5945, 1

</llo_original>
